<compile_context>
chip_gen: v7x
topology: tpu7x:2x2x1
jax: 0.10.0
libtpu: 0.0.40
codegen_flags: <defaults>
</compile_context>

<pallas_src>
import functools

import jax
import jax.numpy as jnp
from jax.experimental import pallas as pl
from jax.experimental.pallas import tpu as pltpu


def _pick_head_group(num_heads, head_dim, target_lanes=256):
    """Largest divisor G of num_heads with G*head_dim <= target_lanes, preferring
    lane-dense (multiple-of-128) or whole-width group slabs."""
    cands = [g for g in range(1, num_heads + 1)
             if num_heads % g == 0 and g * head_dim <= target_lanes]
    if not cands:
        return 1
    dense = [g for g in cands if g == num_heads or (g * head_dim) % 128 == 0]
    return max(dense) if dense else max(cands)


def _vmem_limit_bytes(Np, C, GHD, G, n_groups):
    """Actual footprint estimate (double-buffered blocks + resident weights + temps),
    with generous headroom, never requesting all of v7x's 64 MiB."""
    bf16, f32 = 2, 4
    weights = 2 * ((3 * n_groups * C * GHD + n_groups * GHD * C) * bf16 + C * f32)
    x_blk = 2 * Np * C * bf16
    mask_blk = 2 * Np * f32
    out_blk = 2 * Np * C * f32
    attn_blk = 2 * G * Np * Np * f32
    temps = 6 * Np * GHD * f32 + 4 * Np * Np * f32 + 2 * Np * C * f32
    need = weights + x_blk + mask_blk + out_blk + attn_blk + temps
    return min(max(2 * need + (8 << 20), 24 << 20), 56 << 20)


def _attention_kernel(x_ref, mask_ref, wq_ref, wk_ref, wv_ref, wp_ref, bp_ref,
                      out_ref, attn_ref, *, heads_per_group, head_dim):
    """One grid step = one (batch, head-group).  All weights are VMEM-resident
    (constant index_map).  The output projection accumulates directly into out_ref,
    whose block index is constant over the (innermost, 'arbitrary') group axis."""
    g = pl.program_id(1)

    @pl.when(g == 0)
    def _():
        # seed the resident output block with the projection bias (added once)
        out_ref[0] = jnp.broadcast_to(bp_ref[...], out_ref.shape[1:]).astype(out_ref.dtype)

    x = x_ref[0]                                          # (Np, C)  bf16
    # single mask broadcast per step, reused by every head in the group
    mask_bias = (mask_ref[0, 0] * 10000.0)[None, :]       # (1, Np)  f32

    # grouped projections: output width = heads_per_group * head_dim lanes,
    # scale already folded into Wq in the wrapper, f32 accumulation on the MXU
    q_g = jnp.dot(x, wq_ref[g], preferred_element_type=jnp.float32).astype(jnp.bfloat16)
    k_g = jnp.dot(x, wk_ref[g], preferred_element_type=jnp.float32).astype(jnp.bfloat16)
    v_g = jnp.dot(x, wv_ref[g], preferred_element_type=jnp.float32).astype(jnp.bfloat16)
    wp_g = wp_ref[g]                                      # (G*hd, C) bf16

    ctx_parts = []
    for h in range(heads_per_group):                      # unrolled at trace time
        sl = slice(h * head_dim, (h + 1) * head_dim)
        # scores: contract over head_dim (no explicit transpose), f32 accumulation
        s = jax.lax.dot_general(q_g[:, sl], k_g[:, sl], (((1,), (1,)), ((), ())),
                                preferred_element_type=jnp.float32)     # (Np, Np)
        s = s - mask_bias
        # numerically-stable softmax over keys (f32)
        s = s - jnp.max(s, axis=-1, keepdims=True)
        e = jnp.exp(s)
        p = e * pl.reciprocal(jnp.sum(e, axis=-1, keepdims=True), approx=True)
        attn_ref[0, h] = p                                              # (Np, Np) f32
        ctx_parts.append(jnp.dot(p.astype(jnp.bfloat16), v_g[:, sl],
                                 preferred_element_type=jnp.float32))   # (Np, hd)

    if heads_per_group == 1 or head_dim % 64 == 0:
        # fused output projection for the whole group: contraction K = G*head_dim
        ctx_g = (ctx_parts[0] if heads_per_group == 1
                 else jnp.concatenate(ctx_parts, axis=-1)).astype(jnp.bfloat16)
        out_ref[0] += jnp.dot(ctx_g, wp_g, preferred_element_type=jnp.float32)
    else:
        # tiny head dims: lane-concat of sub-64-wide pieces isn't worth the relayout;
        # accumulate per-head K=head_dim projections instead.
        for h in range(heads_per_group):
            out_ref[0] += jnp.dot(ctx_parts[h].astype(jnp.bfloat16),
                                  wp_g[h * head_dim:(h + 1) * head_dim, :],
                                  preferred_element_type=jnp.float32)


def attention_forward(x, mask, wqkv, wproj, bproj, num_heads):
    B, N, C = x.shape
    hd = C // num_heads
    scale = hd ** -0.5

    G = _pick_head_group(num_heads, hd)
    n_groups = num_heads // G
    GHD = G * hd

    # pad tokens to a lane-dense multiple of 128; padded keys are masked out
    Np = ((N + 127) // 128) * 128
    pad = Np - N
    if pad:
        x = jnp.pad(x, ((0, 0), (0, pad), (0, 0)))
        mask = jnp.pad(mask, ((0, 0), (0, pad)), constant_values=1.0)

    x_bf = x.astype(jnp.bfloat16)
    mask3 = mask[:, None, :].astype(jnp.float32)                     # (B, 1, Np)

    # group-major weight layout, scale folded into Q, bf16 for the MXU
    wq = (wqkv[:, :C] * scale).reshape(C, n_groups, GHD).transpose(1, 0, 2).astype(jnp.bfloat16)
    wk = wqkv[:, C:2 * C].reshape(C, n_groups, GHD).transpose(1, 0, 2).astype(jnp.bfloat16)
    wv = wqkv[:, 2 * C:].reshape(C, n_groups, GHD).transpose(1, 0, 2).astype(jnp.bfloat16)
    wp = wproj.reshape(n_groups, GHD, C).astype(jnp.bfloat16)        # (n_groups, G*hd, C)
    bp = bproj.reshape(1, C).astype(jnp.float32)

    out_shapes = (
        jax.ShapeDtypeStruct((B, Np, C), jnp.float32),                 # projected output (f32 accum)
        jax.ShapeDtypeStruct((B, num_heads, Np, Np), jnp.float32),     # attention probs
    )

    kernel = functools.partial(_attention_kernel, heads_per_group=G, head_dim=hd)

    out_p, attn_p = pl.pallas_call(
        kernel,
        out_shape=out_shapes,
        grid_spec=pltpu.PrefetchScalarGridSpec(
            num_scalar_prefetch=0,
            grid=(B, n_groups),
            in_specs=[
                pl.BlockSpec((1, Np, C), lambda b, g: (b, 0, 0)),          # x (bf16)
                pl.BlockSpec((1, 1, Np), lambda b, g: (b, 0, 0)),          # mask
                pl.BlockSpec((n_groups, C, GHD), lambda b, g: (0, 0, 0)),  # Wq (resident, pre-scaled)
                pl.BlockSpec((n_groups, C, GHD), lambda b, g: (0, 0, 0)),  # Wk (resident)
                pl.BlockSpec((n_groups, C, GHD), lambda b, g: (0, 0, 0)),  # Wv (resident)
                pl.BlockSpec((n_groups, GHD, C), lambda b, g: (0, 0, 0)),  # Wproj (resident)
                pl.BlockSpec((1, C), lambda b, g: (0, 0)),                 # b_proj (resident)
            ],
            out_specs=[
                pl.BlockSpec((1, Np, C), lambda b, g: (b, 0, 0)),          # resident accumulator
                pl.BlockSpec((1, G, Np, Np), lambda b, g: (b, g, 0, 0)),   # per-group probs
            ],
        ),
        compiler_params=pltpu.CompilerParams(
            dimension_semantics=("parallel", "arbitrary"),
            vmem_limit_bytes=_vmem_limit_bytes(Np, C, GHD, G, n_groups),
        ),
    )(x_bf, mask3, wq, wk, wv, wp, bp)

    out_p = out_p.astype(x.dtype)
    if pad:
        out_p = out_p[:, :N, :]
        attn_p = attn_p[:, :, :N, :N]
    return out_p, attn_p


def _reference(x, mask, wqkv, wproj, bproj, num_heads):
    """Pure-JAX f32 reference mirroring the PyTorch forward exactly."""
    B, N, C = x.shape
    hd = C // num_heads
    qkv = x @ wqkv
    q, k, v = jnp.split(qkv, 3, axis=-1)
    to_heads = lambda t: t.reshape(B, N, num_heads, hd).transpose(0, 2, 1, 3)
    qh, kh, vh = to_heads(q), to_heads(k), to_heads(v)
    s = jnp.einsum("bhnd,bhmd->bhnm", qh, kh) * (hd ** -0.5) - mask[:, None, None, :] * 10000.0
    p = jax.nn.softmax(s, axis=-1)
    ctx = jnp.einsum("bhnm,bhmd->bhnd", p, vh).transpose(0, 2, 1, 3).reshape(B, N, C)
    return ctx @ wproj + bproj, p


if __name__ == "__main__":
    def run_case(B, N, C, H, seed, atol, rtol):
        key = jax.random.PRNGKey(seed)
        k1, k2, k3, k4, k5 = jax.random.split(key, 5)
        x = jax.random.normal(k1, (B, N, C), dtype=jnp.float32)
        # mask convention matches the PyTorch code: 1.0 -> key masked out (-10000 added)
        mask = (jax.random.uniform(k2, (B, N)) < 0.25).astype(jnp.float32)
        # weights stored as (in_features, out_features) so y = x @ W + b
        wqkv = jax.random.normal(k3, (C, 3 * C), dtype=jnp.float32) * 0.05
        wproj = jax.random.normal(k4, (C, C), dtype=jnp.float32) * 0.05
        bproj = jax.random.normal(k5, (1, C), dtype=jnp.float32) * 0.05

        out, attn = attention_forward(x, mask, wqkv, wproj, bproj, H)
        jax.block_until_ready((out, attn))

        out_ref, attn_ref = _reference(x, mask, wqkv, wproj, bproj, H)
        # kernel matmuls run in bf16 (f32 accumulation) -> relaxed tolerance
        assert jnp.allclose(attn, attn_ref, atol=atol, rtol=rtol), f"attn mismatch {(B, N, C, H)}"
        assert jnp.allclose(out, out_ref, atol=atol, rtol=rtol), f"out mismatch {(B, N, C, H)}"

    # small module-scale test (dim=32, heads=8 -> single head-group, per-head projection path)
    run_case(B=2, N=8, C=32, H=8, seed=0, atol=2e-2, rtol=2e-2)
    # larger test exercising head grouping (head_dim=64 -> G=4, 2 groups), the fused
    # K=256 output projection, and token padding (N=200 -> Np=256)
    run_case(B=2, N=200, C=512, H=8, seed=1, atol=5e-2, rtol=5e-2)

    print("KERNEL_OK")
</pallas_src>

<mosaic_0001>
module attributes {stable_mosaic.version = 11 : i64} {
  func.func @_attention_kernel(%arg0: i32, %arg1: i32, %arg2: memref<1x128x32xbf16, #tpu.memory_space<vmem>>, %arg3: memref<1x1x128xf32, #tpu.memory_space<vmem>>, %arg4: memref<1x32x32xbf16, #tpu.memory_space<vmem>>, %arg5: memref<1x32x32xbf16, #tpu.memory_space<vmem>>, %arg6: memref<1x32x32xbf16, #tpu.memory_space<vmem>>, %arg7: memref<1x32x32xbf16, #tpu.memory_space<vmem>>, %arg8: memref<1x32xf32, #tpu.memory_space<vmem>>, %arg9: memref<1x128x32xf32, #tpu.memory_space<vmem>>, %arg10: memref<1x8x128x128xf32, #tpu.memory_space<vmem>>) attributes {dimension_semantics = [#tpu.dimension_semantics<parallel>, #tpu.dimension_semantics<arbitrary>], iteration_bounds = array<i64: 2, 1>, scalar_prefetch = 0 : i64, scratch_operands = 0 : i64, tpu.core_type = #tpu.core_type<tc>, window_params = [{transform_indices = @transform_0, window_bounds = array<i64: 1, 128, 32>}, {transform_indices = @transform_1, window_bounds = array<i64: 1, 1, 128>}, {pipeline_mode = #tpu.pipeline_mode<synchronous>, transform_indices = @transform_2, window_bounds = array<i64: 1, 32, 32>}, {pipeline_mode = #tpu.pipeline_mode<synchronous>, transform_indices = @transform_3, window_bounds = array<i64: 1, 32, 32>}, {pipeline_mode = #tpu.pipeline_mode<synchronous>, transform_indices = @transform_4, window_bounds = array<i64: 1, 32, 32>}, {pipeline_mode = #tpu.pipeline_mode<synchronous>, transform_indices = @transform_5, window_bounds = array<i64: 1, 32, 32>}, {pipeline_mode = #tpu.pipeline_mode<synchronous>, transform_indices = @transform_6, window_bounds = array<i64: 1, 32>}, {transform_indices = @transform_7, window_bounds = array<i64: 1, 128, 32>}, {transform_indices = @transform_8, window_bounds = array<i64: 1, 8, 128, 128>}]} {
    %c0_i32 = arith.constant 0 : i32
    %0 = arith.cmpi eq, %arg1, %c0_i32 : i32
    %1 = arith.extui %0 : i1 to i32
    %c0_i32_0 = arith.constant 0 : i32
    %2 = arith.cmpi ne, %1, %c0_i32_0 : i32
    scf.if %2 {
      %c0_130 = arith.constant 0 : index
      %c0_131 = arith.constant 0 : index
      %268 = vector.load %arg8[%c0_130, %c0_131] : memref<1x32xf32, #tpu.memory_space<vmem>>, vector<1x32xf32>
      %269 = vector.shape_cast %268 : vector<1x32xf32> to vector<1x32xf32>
      %270 = vector.broadcast %269 : vector<1x32xf32> to vector<128x32xf32>
      %c0_132 = arith.constant 0 : index
      %c0_133 = arith.constant 0 : index
      %c0_134 = arith.constant 0 : index
      %271 = vector.load %arg9[%c0_132, %c0_133, %c0_134] : memref<1x128x32xf32, #tpu.memory_space<vmem>>, vector<1x128x32xf32>
      %272 = vector.shape_cast %271 : vector<1x128x32xf32> to vector<128x32xf32>
      %273 = vector.shape_cast %270 : vector<128x32xf32> to vector<1x128x32xf32>
      tpu.vector_store %arg9[%c0_132, %c0_133, %c0_134], %273 {strides = array<i32>} : memref<1x128x32xf32, #tpu.memory_space<vmem>>, vector<1x128x32xf32>,
    } else {
    }
    %c0 = arith.constant 0 : index
    %c0_1 = arith.constant 0 : index
    %c0_2 = arith.constant 0 : index
    %3 = vector.load %arg2[%c0, %c0_1, %c0_2] : memref<1x128x32xbf16, #tpu.memory_space<vmem>>, vector<1x128x32xbf16>
    %4 = vector.shape_cast %3 : vector<1x128x32xbf16> to vector<128x32xbf16>
    %c0_3 = arith.constant 0 : index
    %c0_4 = arith.constant 0 : index
    %c0_5 = arith.constant 0 : index
    %5 = vector.load %arg3[%c0_3, %c0_4, %c0_5] : memref<1x1x128xf32, #tpu.memory_space<vmem>>, vector<1x1x128xf32>
    %6 = vector.shape_cast %5 : vector<1x1x128xf32> to vector<128xf32>
    %cst = arith.constant 1.000000e+04 : f32
    %7 = vector.broadcast %cst : f32 to vector<128xf32>
    %8 = arith.mulf %6, %7 : vector<128xf32>
    %9 = vector.shape_cast %8 : vector<128xf32> to vector<1x128xf32>
    %10 = arith.index_cast %arg1 : i32 to index
    %c0_6 = arith.constant 0 : index
    %c0_7 = arith.constant 0 : index
    %11 = vector.load %arg4[%10, %c0_6, %c0_7] : memref<1x32x32xbf16, #tpu.memory_space<vmem>>, vector<1x32x32xbf16>
    %12 = vector.shape_cast %11 : vector<1x32x32xbf16> to vector<32x32xbf16>
    %cst_8 = arith.constant dense<0.000000e+00> : vector<128x32xf32>
    %13 = tpu.matmul %4, %12, %cst_8 {dimension_numbers = #tpu.dot_dimension_numbers<[1], [0], [0], [1], [0, 0, 1, 1], [], []>} : vector<128x32xbf16>, vector<32x32xbf16>, vector<128x32xf32> -> vector<128x32xf32>
    %14 = arith.truncf %13 : vector<128x32xf32> to vector<128x32xbf16>
    %15 = arith.index_cast %arg1 : i32 to index
    %c0_9 = arith.constant 0 : index
    %c0_10 = arith.constant 0 : index
    %16 = vector.load %arg5[%15, %c0_9, %c0_10] : memref<1x32x32xbf16, #tpu.memory_space<vmem>>, vector<1x32x32xbf16>
    %17 = vector.shape_cast %16 : vector<1x32x32xbf16> to vector<32x32xbf16>
    %cst_11 = arith.constant dense<0.000000e+00> : vector<128x32xf32>
    %18 = tpu.matmul %4, %17, %cst_11 {dimension_numbers = #tpu.dot_dimension_numbers<[1], [0], [0], [1], [0, 0, 1, 1], [], []>} : vector<128x32xbf16>, vector<32x32xbf16>, vector<128x32xf32> -> vector<128x32xf32>
    %19 = arith.truncf %18 : vector<128x32xf32> to vector<128x32xbf16>
    %20 = arith.index_cast %arg1 : i32 to index
    %c0_12 = arith.constant 0 : index
    %c0_13 = arith.constant 0 : index
    %21 = vector.load %arg6[%20, %c0_12, %c0_13] : memref<1x32x32xbf16, #tpu.memory_space<vmem>>, vector<1x32x32xbf16>
    %22 = vector.shape_cast %21 : vector<1x32x32xbf16> to vector<32x32xbf16>
    %cst_14 = arith.constant dense<0.000000e+00> : vector<128x32xf32>
    %23 = tpu.matmul %4, %22, %cst_14 {dimension_numbers = #tpu.dot_dimension_numbers<[1], [0], [0], [1], [0, 0, 1, 1], [], []>} : vector<128x32xbf16>, vector<32x32xbf16>, vector<128x32xf32> -> vector<128x32xf32>
    %24 = arith.truncf %23 : vector<128x32xf32> to vector<128x32xbf16>
    %25 = arith.index_cast %arg1 : i32 to index
    %c0_15 = arith.constant 0 : index
    %c0_16 = arith.constant 0 : index
    %26 = vector.load %arg7[%25, %c0_15, %c0_16] : memref<1x32x32xbf16, #tpu.memory_space<vmem>>, vector<1x32x32xbf16>
    %27 = vector.shape_cast %26 : vector<1x32x32xbf16> to vector<32x32xbf16>
    %28 = vector.extract_strided_slice %14 {offsets = [0, 0], sizes = [128, 4], strides = [1, 1]} : vector<128x32xbf16> to vector<128x4xbf16>
    %29 = vector.extract_strided_slice %19 {offsets = [0, 0], sizes = [128, 4], strides = [1, 1]} : vector<128x32xbf16> to vector<128x4xbf16>
    %cst_17 = arith.constant dense<0.000000e+00> : vector<128x128xf32>
    %30 = tpu.matmul %28, %29, %cst_17 {dimension_numbers = #tpu.dot_dimension_numbers<[1], [1], [0], [0], [0, 0, 1, 0], [], []>} : vector<128x4xbf16>, vector<128x4xbf16>, vector<128x128xf32> -> vector<128x128xf32>
    %31 = vector.broadcast %9 : vector<1x128xf32> to vector<128x128xf32>
    %32 = arith.subf %30, %31 : vector<128x128xf32>
    %cst_18 = arith.constant dense<0xFF800000> : vector<128xf32>
    %33 = vector.multi_reduction <maximumf>, %32, %cst_18 [1] : vector<128x128xf32> to vector<128xf32>
    %34 = vector.shape_cast %33 : vector<128xf32> to vector<128x1xf32>
    %35 = vector.broadcast %34 : vector<128x1xf32> to vector<128x128xf32>
    %36 = arith.subf %32, %35 : vector<128x128xf32>
    %37 = math.exp %36 : vector<128x128xf32>
    %cst_19 = arith.constant dense<0.000000e+00> : vector<128xf32>
    %38 = vector.multi_reduction <add>, %37, %cst_19 [1] : vector<128x128xf32> to vector<128xf32>
    %39 = vector.shape_cast %38 : vector<128xf32> to vector<128x1xf32>
    %40 = tpu.reciprocal %39 {approx = true} : vector<128x1xf32> -> vector<128x1xf32>
    %41 = vector.broadcast %40 : vector<128x1xf32> to vector<128x128xf32>
    %42 = arith.mulf %37, %41 : vector<128x128xf32>
    %c0_20 = arith.constant 0 : index
    %c0_21 = arith.constant 0 : index
    %c0_22 = arith.constant 0 : index
    %c0_23 = arith.constant 0 : index
    %43 = vector.load %arg10[%c0_20, %c0_21, %c0_22, %c0_23] : memref<1x8x128x128xf32, #tpu.memory_space<vmem>>, vector<1x1x128x128xf32>
    %44 = vector.shape_cast %43 : vector<1x1x128x128xf32> to vector<128x128xf32>
    %45 = vector.shape_cast %42 : vector<128x128xf32> to vector<1x1x128x128xf32>
    tpu.vector_store %arg10[%c0_20, %c0_21, %c0_22, %c0_23], %45 {strides = array<i32>} : memref<1x8x128x128xf32, #tpu.memory_space<vmem>>, vector<1x1x128x128xf32>,
    %46 = arith.truncf %42 : vector<128x128xf32> to vector<128x128xbf16>
    %47 = vector.extract_strided_slice %24 {offsets = [0, 0], sizes = [128, 4], strides = [1, 1]} : vector<128x32xbf16> to vector<128x4xbf16>
    %cst_24 = arith.constant dense<0.000000e+00> : vector<128x4xf32>
    %48 = tpu.matmul %46, %47, %cst_24 {dimension_numbers = #tpu.dot_dimension_numbers<[1], [0], [0], [1], [0, 0, 1, 1], [], []>} : vector<128x128xbf16>, vector<128x4xbf16>, vector<128x4xf32> -> vector<128x4xf32>
    %49 = vector.extract_strided_slice %14 {offsets = [0, 4], sizes = [128, 4], strides = [1, 1]} : vector<128x32xbf16> to vector<128x4xbf16>
    %50 = vector.extract_strided_slice %19 {offsets = [0, 4], sizes = [128, 4], strides = [1, 1]} : vector<128x32xbf16> to vector<128x4xbf16>
    %cst_25 = arith.constant dense<0.000000e+00> : vector<128x128xf32>
    %51 = tpu.matmul %49, %50, %cst_25 {dimension_numbers = #tpu.dot_dimension_numbers<[1], [1], [0], [0], [0, 0, 1, 0], [], []>} : vector<128x4xbf16>, vector<128x4xbf16>, vector<128x128xf32> -> vector<128x128xf32>
    %52 = vector.broadcast %9 : vector<1x128xf32> to vector<128x128xf32>
    %53 = arith.subf %51, %52 : vector<128x128xf32>
    %cst_26 = arith.constant dense<0xFF800000> : vector<128xf32>
    %54 = vector.multi_reduction <maximumf>, %53, %cst_26 [1] : vector<128x128xf32> to vector<128xf32>
    %55 = vector.shape_cast %54 : vector<128xf32> to vector<128x1xf32>
    %56 = vector.broadcast %55 : vector<128x1xf32> to vector<128x128xf32>
    %57 = arith.subf %53, %56 : vector<128x128xf32>
    %58 = math.exp %57 : vector<128x128xf32>
    %cst_27 = arith.constant dense<0.000000e+00> : vector<128xf32>
    %59 = vector.multi_reduction <add>, %58, %cst_27 [1] : vector<128x128xf32> to vector<128xf32>
    %60 = vector.shape_cast %59 : vector<128xf32> to vector<128x1xf32>
    %61 = tpu.reciprocal %60 {approx = true} : vector<128x1xf32> -> vector<128x1xf32>
    %62 = vector.broadcast %61 : vector<128x1xf32> to vector<128x128xf32>
    %63 = arith.mulf %58, %62 : vector<128x128xf32>
    %c0_28 = arith.constant 0 : index
    %c1 = arith.constant 1 : index
    %c0_29 = arith.constant 0 : index
    %c0_30 = arith.constant 0 : index
    %64 = vector.load %arg10[%c0_28, %c1, %c0_29, %c0_30] : memref<1x8x128x128xf32, #tpu.memory_space<vmem>>, vector<1x1x128x128xf32>
    %65 = vector.shape_cast %64 : vector<1x1x128x128xf32> to vector<128x128xf32>
    %66 = vector.shape_cast %63 : vector<128x128xf32> to vector<1x1x128x128xf32>
    tpu.vector_store %arg10[%c0_28, %c1, %c0_29, %c0_30], %66 {strides = array<i32>} : memref<1x8x128x128xf32, #tpu.memory_space<vmem>>, vector<1x1x128x128xf32>,
    %67 = arith.truncf %63 : vector<128x128xf32> to vector<128x128xbf16>
    %68 = vector.extract_strided_slice %24 {offsets = [0, 4], sizes = [128, 4], strides = [1, 1]} : vector<128x32xbf16> to vector<128x4xbf16>
    %cst_31 = arith.constant dense<0.000000e+00> : vector<128x4xf32>
    %69 = tpu.matmul %67, %68, %cst_31 {dimension_numbers = #tpu.dot_dimension_numbers<[1], [0], [0], [1], [0, 0, 1, 1], [], []>} : vector<128x128xbf16>, vector<128x4xbf16>, vector<128x4xf32> -> vector<128x4xf32>
    %70 = vector.extract_strided_slice %14 {offsets = [0, 8], sizes = [128, 4], strides = [1, 1]} : vector<128x32xbf16> to vector<128x4xbf16>
    %71 = vector.extract_strided_slice %19 {offsets = [0, 8], sizes = [128, 4], strides = [1, 1]} : vector<128x32xbf16> to vector<128x4xbf16>
    %cst_32 = arith.constant dense<0.000000e+00> : vector<128x128xf32>
    %72 = tpu.matmul %70, %71, %cst_32 {dimension_numbers = #tpu.dot_dimension_numbers<[1], [1], [0], [0], [0, 0, 1, 0], [], []>} : vector<128x4xbf16>, vector<128x4xbf16>, vector<128x128xf32> -> vector<128x128xf32>
    %73 = vector.broadcast %9 : vector<1x128xf32> to vector<128x128xf32>
    %74 = arith.subf %72, %73 : vector<128x128xf32>
    %cst_33 = arith.constant dense<0xFF800000> : vector<128xf32>
    %75 = vector.multi_reduction <maximumf>, %74, %cst_33 [1] : vector<128x128xf32> to vector<128xf32>
    %76 = vector.shape_cast %75 : vector<128xf32> to vector<128x1xf32>
    %77 = vector.broadcast %76 : vector<128x1xf32> to vector<128x128xf32>
    %78 = arith.subf %74, %77 : vector<128x128xf32>
    %79 = math.exp %78 : vector<128x128xf32>
    %cst_34 = arith.constant dense<0.000000e+00> : vector<128xf32>
    %80 = vector.multi_reduction <add>, %79, %cst_34 [1] : vector<128x128xf32> to vector<128xf32>
    %81 = vector.shape_cast %80 : vector<128xf32> to vector<128x1xf32>
    %82 = tpu.reciprocal %81 {approx = true} : vector<128x1xf32> -> vector<128x1xf32>
    %83 = vector.broadcast %82 : vector<128x1xf32> to vector<128x128xf32>
    %84 = arith.mulf %79, %83 : vector<128x128xf32>
    %c0_35 = arith.constant 0 : index
    %c2 = arith.constant 2 : index
    %c0_36 = arith.constant 0 : index
    %c0_37 = arith.constant 0 : index
    %85 = vector.load %arg10[%c0_35, %c2, %c0_36, %c0_37] : memref<1x8x128x128xf32, #tpu.memory_space<vmem>>, vector<1x1x128x128xf32>
    %86 = vector.shape_cast %85 : vector<1x1x128x128xf32> to vector<128x128xf32>
    %87 = vector.shape_cast %84 : vector<128x128xf32> to vector<1x1x128x128xf32>
    tpu.vector_store %arg10[%c0_35, %c2, %c0_36, %c0_37], %87 {strides = array<i32>} : memref<1x8x128x128xf32, #tpu.memory_space<vmem>>, vector<1x1x128x128xf32>,
    %88 = arith.truncf %84 : vector<128x128xf32> to vector<128x128xbf16>
    %89 = vector.extract_strided_slice %24 {offsets = [0, 8], sizes = [128, 4], strides = [1, 1]} : vector<128x32xbf16> to vector<128x4xbf16>
    %cst_38 = arith.constant dense<0.000000e+00> : vector<128x4xf32>
    %90 = tpu.matmul %88, %89, %cst_38 {dimension_numbers = #tpu.dot_dimension_numbers<[1], [0], [0], [1], [0, 0, 1, 1], [], []>} : vector<128x128xbf16>, vector<128x4xbf16>, vector<128x4xf32> -> vector<128x4xf32>
    %91 = vector.extract_strided_slice %14 {offsets = [0, 12], sizes = [128, 4], strides = [1, 1]} : vector<128x32xbf16> to vector<128x4xbf16>
    %92 = vector.extract_strided_slice %19 {offsets = [0, 12], sizes = [128, 4], strides = [1, 1]} : vector<128x32xbf16> to vector<128x4xbf16>
    %cst_39 = arith.constant dense<0.000000e+00> : vector<128x128xf32>
    %93 = tpu.matmul %91, %92, %cst_39 {dimension_numbers = #tpu.dot_dimension_numbers<[1], [1], [0], [0], [0, 0, 1, 0], [], []>} : vector<128x4xbf16>, vector<128x4xbf16>, vector<128x128xf32> -> vector<128x128xf32>
    %94 = vector.broadcast %9 : vector<1x128xf32> to vector<128x128xf32>
    %95 = arith.subf %93, %94 : vector<128x128xf32>
    %cst_40 = arith.constant dense<0xFF800000> : vector<128xf32>
    %96 = vector.multi_reduction <maximumf>, %95, %cst_40 [1] : vector<128x128xf32> to vector<128xf32>
    %97 = vector.shape_cast %96 : vector<128xf32> to vector<128x1xf32>
    %98 = vector.broadcast %97 : vector<128x1xf32> to vector<128x128xf32>
    %99 = arith.subf %95, %98 : vector<128x128xf32>
    %100 = math.exp %99 : vector<128x128xf32>
    %cst_41 = arith.constant dense<0.000000e+00> : vector<128xf32>
    %101 = vector.multi_reduction <add>, %100, %cst_41 [1] : vector<128x128xf32> to vector<128xf32>
    %102 = vector.shape_cast %101 : vector<128xf32> to vector<128x1xf32>
    %103 = tpu.reciprocal %102 {approx = true} : vector<128x1xf32> -> vector<128x1xf32>
    %104 = vector.broadcast %103 : vector<128x1xf32> to vector<128x128xf32>
    %105 = arith.mulf %100, %104 : vector<128x128xf32>
    %c0_42 = arith.constant 0 : index
    %c3 = arith.constant 3 : index
    %c0_43 = arith.constant 0 : index
    %c0_44 = arith.constant 0 : index
    %106 = vector.load %arg10[%c0_42, %c3, %c0_43, %c0_44] : memref<1x8x128x128xf32, #tpu.memory_space<vmem>>, vector<1x1x128x128xf32>
    %107 = vector.shape_cast %106 : vector<1x1x128x128xf32> to vector<128x128xf32>
    %108 = vector.shape_cast %105 : vector<128x128xf32> to vector<1x1x128x128xf32>
    tpu.vector_store %arg10[%c0_42, %c3, %c0_43, %c0_44], %108 {strides = array<i32>} : memref<1x8x128x128xf32, #tpu.memory_space<vmem>>, vector<1x1x128x128xf32>,
    %109 = arith.truncf %105 : vector<128x128xf32> to vector<128x128xbf16>
    %110 = vector.extract_strided_slice %24 {offsets = [0, 12], sizes = [128, 4], strides = [1, 1]} : vector<128x32xbf16> to vector<128x4xbf16>
    %cst_45 = arith.constant dense<0.000000e+00> : vector<128x4xf32>
    %111 = tpu.matmul %109, %110, %cst_45 {dimension_numbers = #tpu.dot_dimension_numbers<[1], [0], [0], [1], [0, 0, 1, 1], [], []>} : vector<128x128xbf16>, vector<128x4xbf16>, vector<128x4xf32> -> vector<128x4xf32>
    %112 = vector.extract_strided_slice %14 {offsets = [0, 16], sizes = [128, 4], strides = [1, 1]} : vector<128x32xbf16> to vector<128x4xbf16>
    %113 = vector.extract_strided_slice %19 {offsets = [0, 16], sizes = [128, 4], strides = [1, 1]} : vector<128x32xbf16> to vector<128x4xbf16>
    %cst_46 = arith.constant dense<0.000000e+00> : vector<128x128xf32>
    %114 = tpu.matmul %112, %113, %cst_46 {dimension_numbers = #tpu.dot_dimension_numbers<[1], [1], [0], [0], [0, 0, 1, 0], [], []>} : vector<128x4xbf16>, vector<128x4xbf16>, vector<128x128xf32> -> vector<128x128xf32>
    %115 = vector.broadcast %9 : vector<1x128xf32> to vector<128x128xf32>
    %116 = arith.subf %114, %115 : vector<128x128xf32>
    %cst_47 = arith.constant dense<0xFF800000> : vector<128xf32>
    %117 = vector.multi_reduction <maximumf>, %116, %cst_47 [1] : vector<128x128xf32> to vector<128xf32>
    %118 = vector.shape_cast %117 : vector<128xf32> to vector<128x1xf32>
    %119 = vector.broadcast %118 : vector<128x1xf32> to vector<128x128xf32>
    %120 = arith.subf %116, %119 : vector<128x128xf32>
    %121 = math.exp %120 : vector<128x128xf32>
    %cst_48 = arith.constant dense<0.000000e+00> : vector<128xf32>
    %122 = vector.multi_reduction <add>, %121, %cst_48 [1] : vector<128x128xf32> to vector<128xf32>
    %123 = vector.shape_cast %122 : vector<128xf32> to vector<128x1xf32>
    %124 = tpu.reciprocal %123 {approx = true} : vector<128x1xf32> -> vector<128x1xf32>
    %125 = vector.broadcast %124 : vector<128x1xf32> to vector<128x128xf32>
    %126 = arith.mulf %121, %125 : vector<128x128xf32>
    %c0_49 = arith.constant 0 : index
    %c4 = arith.constant 4 : index
    %c0_50 = arith.constant 0 : index
    %c0_51 = arith.constant 0 : index
    %127 = vector.load %arg10[%c0_49, %c4, %c0_50, %c0_51] : memref<1x8x128x128xf32, #tpu.memory_space<vmem>>, vector<1x1x128x128xf32>
    %128 = vector.shape_cast %127 : vector<1x1x128x128xf32> to vector<128x128xf32>
    %129 = vector.shape_cast %126 : vector<128x128xf32> to vector<1x1x128x128xf32>
    tpu.vector_store %arg10[%c0_49, %c4, %c0_50, %c0_51], %129 {strides = array<i32>} : memref<1x8x128x128xf32, #tpu.memory_space<vmem>>, vector<1x1x128x128xf32>,
    %130 = arith.truncf %126 : vector<128x128xf32> to vector<128x128xbf16>
    %131 = vector.extract_strided_slice %24 {offsets = [0, 16], sizes = [128, 4], strides = [1, 1]} : vector<128x32xbf16> to vector<128x4xbf16>
    %cst_52 = arith.constant dense<0.000000e+00> : vector<128x4xf32>
    %132 = tpu.matmul %130, %131, %cst_52 {dimension_numbers = #tpu.dot_dimension_numbers<[1], [0], [0], [1], [0, 0, 1, 1], [], []>} : vector<128x128xbf16>, vector<128x4xbf16>, vector<128x4xf32> -> vector<128x4xf32>
    %133 = vector.extract_strided_slice %14 {offsets = [0, 20], sizes = [128, 4], strides = [1, 1]} : vector<128x32xbf16> to vector<128x4xbf16>
    %134 = vector.extract_strided_slice %19 {offsets = [0, 20], sizes = [128, 4], strides = [1, 1]} : vector<128x32xbf16> to vector<128x4xbf16>
    %cst_53 = arith.constant dense<0.000000e+00> : vector<128x128xf32>
    %135 = tpu.matmul %133, %134, %cst_53 {dimension_numbers = #tpu.dot_dimension_numbers<[1], [1], [0], [0], [0, 0, 1, 0], [], []>} : vector<128x4xbf16>, vector<128x4xbf16>, vector<128x128xf32> -> vector<128x128xf32>
    %136 = vector.broadcast %9 : vector<1x128xf32> to vector<128x128xf32>
    %137 = arith.subf %135, %136 : vector<128x128xf32>
    %cst_54 = arith.constant dense<0xFF800000> : vector<128xf32>
    %138 = vector.multi_reduction <maximumf>, %137, %cst_54 [1] : vector<128x128xf32> to vector<128xf32>
    %139 = vector.shape_cast %138 : vector<128xf32> to vector<128x1xf32>
    %140 = vector.broadcast %139 : vector<128x1xf32> to vector<128x128xf32>
    %141 = arith.subf %137, %140 : vector<128x128xf32>
    %142 = math.exp %141 : vector<128x128xf32>
    %cst_55 = arith.constant dense<0.000000e+00> : vector<128xf32>
    %143 = vector.multi_reduction <add>, %142, %cst_55 [1] : vector<128x128xf32> to vector<128xf32>
    %144 = vector.shape_cast %143 : vector<128xf32> to vector<128x1xf32>
    %145 = tpu.reciprocal %144 {approx = true} : vector<128x1xf32> -> vector<128x1xf32>
    %146 = vector.broadcast %145 : vector<128x1xf32> to vector<128x128xf32>
    %147 = arith.mulf %142, %146 : vector<128x128xf32>
    %c0_56 = arith.constant 0 : index
    %c5 = arith.constant 5 : index
    %c0_57 = arith.constant 0 : index
    %c0_58 = arith.constant 0 : index
    %148 = vector.load %arg10[%c0_56, %c5, %c0_57, %c0_58] : memref<1x8x128x128xf32, #tpu.memory_space<vmem>>, vector<1x1x128x128xf32>
    %149 = vector.shape_cast %148 : vector<1x1x128x128xf32> to vector<128x128xf32>
    %150 = vector.shape_cast %147 : vector<128x128xf32> to vector<1x1x128x128xf32>
    tpu.vector_store %arg10[%c0_56, %c5, %c0_57, %c0_58], %150 {strides = array<i32>} : memref<1x8x128x128xf32, #tpu.memory_space<vmem>>, vector<1x1x128x128xf32>,
    %151 = arith.truncf %147 : vector<128x128xf32> to vector<128x128xbf16>
    %152 = vector.extract_strided_slice %24 {offsets = [0, 20], sizes = [128, 4], strides = [1, 1]} : vector<128x32xbf16> to vector<128x4xbf16>
    %cst_59 = arith.constant dense<0.000000e+00> : vector<128x4xf32>
    %153 = tpu.matmul %151, %152, %cst_59 {dimension_numbers = #tpu.dot_dimension_numbers<[1], [0], [0], [1], [0, 0, 1, 1], [], []>} : vector<128x128xbf16>, vector<128x4xbf16>, vector<128x4xf32> -> vector<128x4xf32>
    %154 = vector.extract_strided_slice %14 {offsets = [0, 24], sizes = [128, 4], strides = [1, 1]} : vector<128x32xbf16> to vector<128x4xbf16>
    %155 = vector.extract_strided_slice %19 {offsets = [0, 24], sizes = [128, 4], strides = [1, 1]} : vector<128x32xbf16> to vector<128x4xbf16>
    %cst_60 = arith.constant dense<0.000000e+00> : vector<128x128xf32>
    %156 = tpu.matmul %154, %155, %cst_60 {dimension_numbers = #tpu.dot_dimension_numbers<[1], [1], [0], [0], [0, 0, 1, 0], [], []>} : vector<128x4xbf16>, vector<128x4xbf16>, vector<128x128xf32> -> vector<128x128xf32>
    %157 = vector.broadcast %9 : vector<1x128xf32> to vector<128x128xf32>
    %158 = arith.subf %156, %157 : vector<128x128xf32>
    %cst_61 = arith.constant dense<0xFF800000> : vector<128xf32>
    %159 = vector.multi_reduction <maximumf>, %158, %cst_61 [1] : vector<128x128xf32> to vector<128xf32>
    %160 = vector.shape_cast %159 : vector<128xf32> to vector<128x1xf32>
    %161 = vector.broadcast %160 : vector<128x1xf32> to vector<128x128xf32>
    %162 = arith.subf %158, %161 : vector<128x128xf32>
    %163 = math.exp %162 : vector<128x128xf32>
    %cst_62 = arith.constant dense<0.000000e+00> : vector<128xf32>
    %164 = vector.multi_reduction <add>, %163, %cst_62 [1] : vector<128x128xf32> to vector<128xf32>
    %165 = vector.shape_cast %164 : vector<128xf32> to vector<128x1xf32>
    %166 = tpu.reciprocal %165 {approx = true} : vector<128x1xf32> -> vector<128x1xf32>
    %167 = vector.broadcast %166 : vector<128x1xf32> to vector<128x128xf32>
    %168 = arith.mulf %163, %167 : vector<128x128xf32>
    %c0_63 = arith.constant 0 : index
    %c6 = arith.constant 6 : index
    %c0_64 = arith.constant 0 : index
    %c0_65 = arith.constant 0 : index
    %169 = vector.load %arg10[%c0_63, %c6, %c0_64, %c0_65] : memref<1x8x128x128xf32, #tpu.memory_space<vmem>>, vector<1x1x128x128xf32>
    %170 = vector.shape_cast %169 : vector<1x1x128x128xf32> to vector<128x128xf32>
    %171 = vector.shape_cast %168 : vector<128x128xf32> to vector<1x1x128x128xf32>
    tpu.vector_store %arg10[%c0_63, %c6, %c0_64, %c0_65], %171 {strides = array<i32>} : memref<1x8x128x128xf32, #tpu.memory_space<vmem>>, vector<1x1x128x128xf32>,
    %172 = arith.truncf %168 : vector<128x128xf32> to vector<128x128xbf16>
    %173 = vector.extract_strided_slice %24 {offsets = [0, 24], sizes = [128, 4], strides = [1, 1]} : vector<128x32xbf16> to vector<128x4xbf16>
    %cst_66 = arith.constant dense<0.000000e+00> : vector<128x4xf32>
    %174 = tpu.matmul %172, %173, %cst_66 {dimension_numbers = #tpu.dot_dimension_numbers<[1], [0], [0], [1], [0, 0, 1, 1], [], []>} : vector<128x128xbf16>, vector<128x4xbf16>, vector<128x4xf32> -> vector<128x4xf32>
    %175 = vector.extract_strided_slice %14 {offsets = [0, 28], sizes = [128, 4], strides = [1, 1]} : vector<128x32xbf16> to vector<128x4xbf16>
    %176 = vector.extract_strided_slice %19 {offsets = [0, 28], sizes = [128, 4], strides = [1, 1]} : vector<128x32xbf16> to vector<128x4xbf16>
    %cst_67 = arith.constant dense<0.000000e+00> : vector<128x128xf32>
    %177 = tpu.matmul %175, %176, %cst_67 {dimension_numbers = #tpu.dot_dimension_numbers<[1], [1], [0], [0], [0, 0, 1, 0], [], []>} : vector<128x4xbf16>, vector<128x4xbf16>, vector<128x128xf32> -> vector<128x128xf32>
    %178 = vector.broadcast %9 : vector<1x128xf32> to vector<128x128xf32>
    %179 = arith.subf %177, %178 : vector<128x128xf32>
    %cst_68 = arith.constant dense<0xFF800000> : vector<128xf32>
    %180 = vector.multi_reduction <maximumf>, %179, %cst_68 [1] : vector<128x128xf32> to vector<128xf32>
    %181 = vector.shape_cast %180 : vector<128xf32> to vector<128x1xf32>
    %182 = vector.broadcast %181 : vector<128x1xf32> to vector<128x128xf32>
    %183 = arith.subf %179, %182 : vector<128x128xf32>
    %184 = math.exp %183 : vector<128x128xf32>
    %cst_69 = arith.constant dense<0.000000e+00> : vector<128xf32>
    %185 = vector.multi_reduction <add>, %184, %cst_69 [1] : vector<128x128xf32> to vector<128xf32>
    %186 = vector.shape_cast %185 : vector<128xf32> to vector<128x1xf32>
    %187 = tpu.reciprocal %186 {approx = true} : vector<128x1xf32> -> vector<128x1xf32>
    %188 = vector.broadcast %187 : vector<128x1xf32> to vector<128x128xf32>
    %189 = arith.mulf %184, %188 : vector<128x128xf32>
    %c0_70 = arith.constant 0 : index
    %c7 = arith.constant 7 : index
    %c0_71 = arith.constant 0 : index
    %c0_72 = arith.constant 0 : index
    %190 = vector.load %arg10[%c0_70, %c7, %c0_71, %c0_72] : memref<1x8x128x128xf32, #tpu.memory_space<vmem>>, vector<1x1x128x128xf32>
    %191 = vector.shape_cast %190 : vector<1x1x128x128xf32> to vector<128x128xf32>
    %192 = vector.shape_cast %189 : vector<128x128xf32> to vector<1x1x128x128xf32>
    tpu.vector_store %arg10[%c0_70, %c7, %c0_71, %c0_72], %192 {strides = array<i32>} : memref<1x8x128x128xf32, #tpu.memory_space<vmem>>, vector<1x1x128x128xf32>,
    %193 = arith.truncf %189 : vector<128x128xf32> to vector<128x128xbf16>
    %194 = vector.extract_strided_slice %24 {offsets = [0, 28], sizes = [128, 4], strides = [1, 1]} : vector<128x32xbf16> to vector<128x4xbf16>
    %cst_73 = arith.constant dense<0.000000e+00> : vector<128x4xf32>
    %195 = tpu.matmul %193, %194, %cst_73 {dimension_numbers = #tpu.dot_dimension_numbers<[1], [0], [0], [1], [0, 0, 1, 1], [], []>} : vector<128x128xbf16>, vector<128x4xbf16>, vector<128x4xf32> -> vector<128x4xf32>
    %c0_74 = arith.constant 0 : index
    %c0_75 = arith.constant 0 : index
    %c0_76 = arith.constant 0 : index
    %196 = vector.load %arg9[%c0_74, %c0_75, %c0_76] : memref<1x128x32xf32, #tpu.memory_space<vmem>>, vector<1x128x32xf32>
    %197 = vector.shape_cast %196 : vector<1x128x32xf32> to vector<128x32xf32>
    %198 = arith.truncf %48 : vector<128x4xf32> to vector<128x4xbf16>
    %199 = vector.extract_strided_slice %27 {offsets = [0, 0], sizes = [4, 32], strides = [1, 1]} : vector<32x32xbf16> to vector<4x32xbf16>
    %cst_77 = arith.constant dense<0.000000e+00> : vector<128x32xf32>
    %200 = tpu.matmul %198, %199, %cst_77 {dimension_numbers = #tpu.dot_dimension_numbers<[1], [0], [0], [1], [0, 0, 1, 1], [], []>} : vector<128x4xbf16>, vector<4x32xbf16>, vector<128x32xf32> -> vector<128x32xf32>
    %201 = arith.addf %197, %200 : vector<128x32xf32>
    %c0_78 = arith.constant 0 : index
    %c0_79 = arith.constant 0 : index
    %c0_80 = arith.constant 0 : index
    %202 = vector.load %arg9[%c0_78, %c0_79, %c0_80] : memref<1x128x32xf32, #tpu.memory_space<vmem>>, vector<1x128x32xf32>
    %203 = vector.shape_cast %202 : vector<1x128x32xf32> to vector<128x32xf32>
    %204 = vector.shape_cast %201 : vector<128x32xf32> to vector<1x128x32xf32>
    tpu.vector_store %arg9[%c0_78, %c0_79, %c0_80], %204 {strides = array<i32>} : memref<1x128x32xf32, #tpu.memory_space<vmem>>, vector<1x128x32xf32>,
    %c0_81 = arith.constant 0 : index
    %c0_82 = arith.constant 0 : index
    %c0_83 = arith.constant 0 : index
    %205 = vector.load %arg9[%c0_81, %c0_82, %c0_83] : memref<1x128x32xf32, #tpu.memory_space<vmem>>, vector<1x128x32xf32>
    %206 = vector.shape_cast %205 : vector<1x128x32xf32> to vector<128x32xf32>
    %207 = arith.truncf %69 : vector<128x4xf32> to vector<128x4xbf16>
    %208 = vector.extract_strided_slice %27 {offsets = [4, 0], sizes = [4, 32], strides = [1, 1]} : vector<32x32xbf16> to vector<4x32xbf16>
    %cst_84 = arith.constant dense<0.000000e+00> : vector<128x32xf32>
    %209 = tpu.matmul %207, %208, %cst_84 {dimension_numbers = #tpu.dot_dimension_numbers<[1], [0], [0], [1], [0, 0, 1, 1], [], []>} : vector<128x4xbf16>, vector<4x32xbf16>, vector<128x32xf32> -> vector<128x32xf32>
    %210 = arith.addf %206, %209 : vector<128x32xf32>
    %c0_85 = arith.constant 0 : index
    %c0_86 = arith.constant 0 : index
    %c0_87 = arith.constant 0 : index
    %211 = vector.load %arg9[%c0_85, %c0_86, %c0_87] : memref<1x128x32xf32, #tpu.memory_space<vmem>>, vector<1x128x32xf32>
    %212 = vector.shape_cast %211 : vector<1x128x32xf32> to vector<128x32xf32>
    %213 = vector.shape_cast %210 : vector<128x32xf32> to vector<1x128x32xf32>
    tpu.vector_store %arg9[%c0_85, %c0_86, %c0_87], %213 {strides = array<i32>} : memref<1x128x32xf32, #tpu.memory_space<vmem>>, vector<1x128x32xf32>,
    %c0_88 = arith.constant 0 : index
    %c0_89 = arith.constant 0 : index
    %c0_90 = arith.constant 0 : index
    %214 = vector.load %arg9[%c0_88, %c0_89, %c0_90] : memref<1x128x32xf32, #tpu.memory_space<vmem>>, vector<1x128x32xf32>
    %215 = vector.shape_cast %214 : vector<1x128x32xf32> to vector<128x32xf32>
    %216 = arith.truncf %90 : vector<128x4xf32> to vector<128x4xbf16>
    %217 = vector.extract_strided_slice %27 {offsets = [8, 0], sizes = [4, 32], strides = [1, 1]} : vector<32x32xbf16> to vector<4x32xbf16>
    %cst_91 = arith.constant dense<0.000000e+00> : vector<128x32xf32>
    %218 = tpu.matmul %216, %217, %cst_91 {dimension_numbers = #tpu.dot_dimension_numbers<[1], [0], [0], [1], [0, 0, 1, 1], [], []>} : vector<128x4xbf16>, vector<4x32xbf16>, vector<128x32xf32> -> vector<128x32xf32>
    %219 = arith.addf %215, %218 : vector<128x32xf32>
    %c0_92 = arith.constant 0 : index
    %c0_93 = arith.constant 0 : index
    %c0_94 = arith.constant 0 : index
    %220 = vector.load %arg9[%c0_92, %c0_93, %c0_94] : memref<1x128x32xf32, #tpu.memory_space<vmem>>, vector<1x128x32xf32>
    %221 = vector.shape_cast %220 : vector<1x128x32xf32> to vector<128x32xf32>
    %222 = vector.shape_cast %219 : vector<128x32xf32> to vector<1x128x32xf32>
    tpu.vector_store %arg9[%c0_92, %c0_93, %c0_94], %222 {strides = array<i32>} : memref<1x128x32xf32, #tpu.memory_space<vmem>>, vector<1x128x32xf32>,
    %c0_95 = arith.constant 0 : index
    %c0_96 = arith.constant 0 : index
    %c0_97 = arith.constant 0 : index
    %223 = vector.load %arg9[%c0_95, %c0_96, %c0_97] : memref<1x128x32xf32, #tpu.memory_space<vmem>>, vector<1x128x32xf32>
    %224 = vector.shape_cast %223 : vector<1x128x32xf32> to vector<128x32xf32>
    %225 = arith.truncf %111 : vector<128x4xf32> to vector<128x4xbf16>
    %226 = vector.extract_strided_slice %27 {offsets = [12, 0], sizes = [4, 32], strides = [1, 1]} : vector<32x32xbf16> to vector<4x32xbf16>
    %cst_98 = arith.constant dense<0.000000e+00> : vector<128x32xf32>
    %227 = tpu.matmul %225, %226, %cst_98 {dimension_numbers = #tpu.dot_dimension_numbers<[1], [0], [0], [1], [0, 0, 1, 1], [], []>} : vector<128x4xbf16>, vector<4x32xbf16>, vector<128x32xf32> -> vector<128x32xf32>
    %228 = arith.addf %224, %227 : vector<128x32xf32>
    %c0_99 = arith.constant 0 : index
    %c0_100 = arith.constant 0 : index
    %c0_101 = arith.constant 0 : index
    %229 = vector.load %arg9[%c0_99, %c0_100, %c0_101] : memref<1x128x32xf32, #tpu.memory_space<vmem>>, vector<1x128x32xf32>
    %230 = vector.shape_cast %229 : vector<1x128x32xf32> to vector<128x32xf32>
    %231 = vector.shape_cast %228 : vector<128x32xf32> to vector<1x128x32xf32>
    tpu.vector_store %arg9[%c0_99, %c0_100, %c0_101], %231 {strides = array<i32>} : memref<1x128x32xf32, #tpu.memory_space<vmem>>, vector<1x128x32xf32>,
    %c0_102 = arith.constant 0 : index
    %c0_103 = arith.constant 0 : index
    %c0_104 = arith.constant 0 : index
    %232 = vector.load %arg9[%c0_102, %c0_103, %c0_104] : memref<1x128x32xf32, #tpu.memory_space<vmem>>, vector<1x128x32xf32>
    %233 = vector.shape_cast %232 : vector<1x128x32xf32> to vector<128x32xf32>
    %234 = arith.truncf %132 : vector<128x4xf32> to vector<128x4xbf16>
    %235 = vector.extract_strided_slice %27 {offsets = [16, 0], sizes = [4, 32], strides = [1, 1]} : vector<32x32xbf16> to vector<4x32xbf16>
    %cst_105 = arith.constant dense<0.000000e+00> : vector<128x32xf32>
    %236 = tpu.matmul %234, %235, %cst_105 {dimension_numbers = #tpu.dot_dimension_numbers<[1], [0], [0], [1], [0, 0, 1, 1], [], []>} : vector<128x4xbf16>, vector<4x32xbf16>, vector<128x32xf32> -> vector<128x32xf32>
    %237 = arith.addf %233, %236 : vector<128x32xf32>
    %c0_106 = arith.constant 0 : index
    %c0_107 = arith.constant 0 : index
    %c0_108 = arith.constant 0 : index
    %238 = vector.load %arg9[%c0_106, %c0_107, %c0_108] : memref<1x128x32xf32, #tpu.memory_space<vmem>>, vector<1x128x32xf32>
    %239 = vector.shape_cast %238 : vector<1x128x32xf32> to vector<128x32xf32>
    %240 = vector.shape_cast %237 : vector<128x32xf32> to vector<1x128x32xf32>
    tpu.vector_store %arg9[%c0_106, %c0_107, %c0_108], %240 {strides = array<i32>} : memref<1x128x32xf32, #tpu.memory_space<vmem>>, vector<1x128x32xf32>,
    %c0_109 = arith.constant 0 : index
    %c0_110 = arith.constant 0 : index
    %c0_111 = arith.constant 0 : index
    %241 = vector.load %arg9[%c0_109, %c0_110, %c0_111] : memref<1x128x32xf32, #tpu.memory_space<vmem>>, vector<1x128x32xf32>
    %242 = vector.shape_cast %241 : vector<1x128x32xf32> to vector<128x32xf32>
    %243 = arith.truncf %153 : vector<128x4xf32> to vector<128x4xbf16>
    %244 = vector.extract_strided_slice %27 {offsets = [20, 0], sizes = [4, 32], strides = [1, 1]} : vector<32x32xbf16> to vector<4x32xbf16>
    %cst_112 = arith.constant dense<0.000000e+00> : vector<128x32xf32>
    %245 = tpu.matmul %243, %244, %cst_112 {dimension_numbers = #tpu.dot_dimension_numbers<[1], [0], [0], [1], [0, 0, 1, 1], [], []>} : vector<128x4xbf16>, vector<4x32xbf16>, vector<128x32xf32> -> vector<128x32xf32>
    %246 = arith.addf %242, %245 : vector<128x32xf32>
    %c0_113 = arith.constant 0 : index
    %c0_114 = arith.constant 0 : index
    %c0_115 = arith.constant 0 : index
    %247 = vector.load %arg9[%c0_113, %c0_114, %c0_115] : memref<1x128x32xf32, #tpu.memory_space<vmem>>, vector<1x128x32xf32>
    %248 = vector.shape_cast %247 : vector<1x128x32xf32> to vector<128x32xf32>
    %249 = vector.shape_cast %246 : vector<128x32xf32> to vector<1x128x32xf32>
    tpu.vector_store %arg9[%c0_113, %c0_114, %c0_115], %249 {strides = array<i32>} : memref<1x128x32xf32, #tpu.memory_space<vmem>>, vector<1x128x32xf32>,
    %c0_116 = arith.constant 0 : index
    %c0_117 = arith.constant 0 : index
    %c0_118 = arith.constant 0 : index
    %250 = vector.load %arg9[%c0_116, %c0_117, %c0_118] : memref<1x128x32xf32, #tpu.memory_space<vmem>>, vector<1x128x32xf32>
    %251 = vector.shape_cast %250 : vector<1x128x32xf32> to vector<128x32xf32>
    %252 = arith.truncf %174 : vector<128x4xf32> to vector<128x4xbf16>
    %253 = vector.extract_strided_slice %27 {offsets = [24, 0], sizes = [4, 32], strides = [1, 1]} : vector<32x32xbf16> to vector<4x32xbf16>
    %cst_119 = arith.constant dense<0.000000e+00> : vector<128x32xf32>
    %254 = tpu.matmul %252, %253, %cst_119 {dimension_numbers = #tpu.dot_dimension_numbers<[1], [0], [0], [1], [0, 0, 1, 1], [], []>} : vector<128x4xbf16>, vector<4x32xbf16>, vector<128x32xf32> -> vector<128x32xf32>
    %255 = arith.addf %251, %254 : vector<128x32xf32>
    %c0_120 = arith.constant 0 : index
    %c0_121 = arith.constant 0 : index
    %c0_122 = arith.constant 0 : index
    %256 = vector.load %arg9[%c0_120, %c0_121, %c0_122] : memref<1x128x32xf32, #tpu.memory_space<vmem>>, vector<1x128x32xf32>
    %257 = vector.shape_cast %256 : vector<1x128x32xf32> to vector<128x32xf32>
    %258 = vector.shape_cast %255 : vector<128x32xf32> to vector<1x128x32xf32>
    tpu.vector_store %arg9[%c0_120, %c0_121, %c0_122], %258 {strides = array<i32>} : memref<1x128x32xf32, #tpu.memory_space<vmem>>, vector<1x128x32xf32>,
    %c0_123 = arith.constant 0 : index
    %c0_124 = arith.constant 0 : index
    %c0_125 = arith.constant 0 : index
    %259 = vector.load %arg9[%c0_123, %c0_124, %c0_125] : memref<1x128x32xf32, #tpu.memory_space<vmem>>, vector<1x128x32xf32>
    %260 = vector.shape_cast %259 : vector<1x128x32xf32> to vector<128x32xf32>
    %261 = arith.truncf %195 : vector<128x4xf32> to vector<128x4xbf16>
    %262 = vector.extract_strided_slice %27 {offsets = [28, 0], sizes = [4, 32], strides = [1, 1]} : vector<32x32xbf16> to vector<4x32xbf16>
    %cst_126 = arith.constant dense<0.000000e+00> : vector<128x32xf32>
    %263 = tpu.matmul %261, %262, %cst_126 {dimension_numbers = #tpu.dot_dimension_numbers<[1], [0], [0], [1], [0, 0, 1, 1], [], []>} : vector<128x4xbf16>, vector<4x32xbf16>, vector<128x32xf32> -> vector<128x32xf32>
    %264 = arith.addf %260, %263 : vector<128x32xf32>
    %c0_127 = arith.constant 0 : index
    %c0_128 = arith.constant 0 : index
    %c0_129 = arith.constant 0 : index
    %265 = vector.load %arg9[%c0_127, %c0_128, %c0_129] : memref<1x128x32xf32, #tpu.memory_space<vmem>>, vector<1x128x32xf32>
    %266 = vector.shape_cast %265 : vector<1x128x32xf32> to vector<128x32xf32>
    %267 = vector.shape_cast %264 : vector<128x32xf32> to vector<1x128x32xf32>
    tpu.vector_store %arg9[%c0_127, %c0_128, %c0_129], %267 {strides = array<i32>} : memref<1x128x32xf32, #tpu.memory_space<vmem>>, vector<1x128x32xf32>,
    return
  }
  func.func @transform_0(%arg0: i32, %arg1: i32) -> (i32, i32, i32) {
    %c0_i32 = arith.constant 0 : i32
    %c0_i32_0 = arith.constant 0 : i32
    %c0_i32_1 = arith.constant 0 : i32
    return %arg0, %c0_i32, %c0_i32_0 : i32, i32, i32
  }
  func.func @transform_1(%arg0: i32, %arg1: i32) -> (i32, i32, i32) {
    %c0_i32 = arith.constant 0 : i32
    %c0_i32_0 = arith.constant 0 : i32
    %c0_i32_1 = arith.constant 0 : i32
    return %arg0, %c0_i32, %c0_i32_0 : i32, i32, i32
  }
  func.func @transform_2(%arg0: i32, %arg1: i32) -> (i32, i32, i32) {
    %c0_i32 = arith.constant 0 : i32
    %c0_i32_0 = arith.constant 0 : i32
    %c0_i32_1 = arith.constant 0 : i32
    %c0_i32_2 = arith.constant 0 : i32
    return %c0_i32, %c0_i32_0, %c0_i32_1 : i32, i32, i32
  }
  func.func @transform_3(%arg0: i32, %arg1: i32) -> (i32, i32, i32) {
    %c0_i32 = arith.constant 0 : i32
    %c0_i32_0 = arith.constant 0 : i32
    %c0_i32_1 = arith.constant 0 : i32
    %c0_i32_2 = arith.constant 0 : i32
    return %c0_i32, %c0_i32_0, %c0_i32_1 : i32, i32, i32
  }
  func.func @transform_4(%arg0: i32, %arg1: i32) -> (i32, i32, i32) {
    %c0_i32 = arith.constant 0 : i32
    %c0_i32_0 = arith.constant 0 : i32
    %c0_i32_1 = arith.constant 0 : i32
    %c0_i32_2 = arith.constant 0 : i32
    return %c0_i32, %c0_i32_0, %c0_i32_1 : i32, i32, i32
  }
  func.func @transform_5(%arg0: i32, %arg1: i32) -> (i32, i32, i32) {
    %c0_i32 = arith.constant 0 : i32
    %c0_i32_0 = arith.constant 0 : i32
    %c0_i32_1 = arith.constant 0 : i32
    %c0_i32_2 = arith.constant 0 : i32
    return %c0_i32, %c0_i32_0, %c0_i32_1 : i32, i32, i32
  }
  func.func @transform_6(%arg0: i32, %arg1: i32) -> (i32, i32) {
    %c0_i32 = arith.constant 0 : i32
    %c0_i32_0 = arith.constant 0 : i32
    %c0_i32_1 = arith.constant 0 : i32
    return %c0_i32, %c0_i32_0 : i32, i32
  }
  func.func @transform_7(%arg0: i32, %arg1: i32) -> (i32, i32, i32) {
    %c0_i32 = arith.constant 0 : i32
    %c0_i32_0 = arith.constant 0 : i32
    %c0_i32_1 = arith.constant 0 : i32
    return %arg0, %c0_i32, %c0_i32_0 : i32, i32, i32
  }
  func.func @transform_8(%arg0: i32, %arg1: i32) -> (i32, i32, i32, i32) {
    %c0_i32 = arith.constant 0 : i32
    %c0_i32_0 = arith.constant 0 : i32
    %c0_i32_1 = arith.constant 0 : i32
    return %arg0, %arg1, %c0_i32, %c0_i32_0 : i32, i32, i32, i32
  }
}

</mosaic_0001>

<llo_original>
// kernel: tpu_custom_call.1
$region0: #{tpu_custom_call.1}
  #allocation0 [shape = 'u32[]', space=smem, size = 0x4, offset = 0x4, fixed_abs, tag = 'smem constant byte address 0x4 - core index']
  #allocation1 [shape = 'u32[144,128]{1,0:T(1,128)}', space=vmem, size = 0x12000, scoped, tag = 'internal scratch']
  %s0 = inlined_call_operand.vmem [shape: bf16[2,128,32], index: 0, kind: input, shape index: {}]
  %s1 = inlined_call_operand.vmem [shape: f32[2,1,128], index: 1, kind: input, shape index: {}]
  %s2 = inlined_call_operand.vmem [shape: bf16[1,32,32], index: 2, kind: input, shape index: {}]
  %s3 = inlined_call_operand.vmem [shape: bf16[1,32,32], index: 3, kind: input, shape index: {}]
  %s4 = inlined_call_operand.vmem [shape: bf16[1,32,32], index: 4, kind: input, shape index: {}]
  %s5 = inlined_call_operand.vmem [shape: bf16[1,32,32], index: 5, kind: input, shape index: {}]
  %s6 = inlined_call_operand.vmem [shape: f32[1,32], index: 6, kind: input, shape index: {}]
  %s7 = inlined_call_operand.vmem [shape: f32[2,128,32], index: 7, kind: output, shape index: {0}]
  %s8 = inlined_call_operand.hbm [shape: f32[2,8,128,128], index: 8, kind: output, shape index: {1}]
  %9 = xla_tuple %s7, %s8
  %s10 = sld [smem:[#allocation0]]
  $region73: #{tpu_custom_call.1} parent=0
    _
  %s12 = ssub.s32 1, %s10
  %s13 = scalar_select 0, %s12, %s10
  $region1: #{tpu_custom_call.1} parent=0
    #allocation2 [shape = 'u8[1048576]{0}', space=vmem, size = 0x100000, scoped, tag = 'output window, operand 1']
    #allocation3 [shape = 's32[2]{0}', space=sflag, size = 0x8, scoped, tag = 'scoped memory for tpu_custom_call.1']
    %14 = vsyncpa [#allocation3], 0
    %s15 = scalar_lea.sflag [#allocation3], 1
    %16 = vsyncpa %s15, 0
    loop: start=0, step=1, limit=4
    $region2: #{tpu_custom_call.1} parent=1 // loop_pre_header
      _
    $region3: #{tpu_custom_call.1} parent=1 // loop_header
      %s18 = sphi 0, %s22
      %p19 = scmp.ge.s32.totalorder %s18, 4
      %s25 = sphi 0, %s37
      %s26 = sphi 0, %s33
      %s27 = sphi 0, %s25
      %s28 = sphi 0, %s26
      %s29 = sphi 0, %s27
      %s30 = sphi 0, %s28
      %s40 = sphi 0, %s42
      %s43 = sphi 0, %s40
      %s44 = sphi 0, %s43
      %s60 = sphi 0, %s44
      %s66 = sphi 0, %s68
      %s69 = sphi 0, %s66
      %s70 = sphi 0, %s69
      %s86 = sphi 0, %s70
      %s90 = sphi 0, %s90
      %s92 = sphi 0, %s90
      %s93 = sphi 0, %s92
      %s107 = sphi 0, %s93
      %s111 = sphi 0, %s111
      %s113 = sphi 0, %s111
      %s114 = sphi 0, %s113
      %s128 = sphi 0, %s114
      %s132 = sphi 0, %s132
      %s134 = sphi 0, %s132
      %s135 = sphi 0, %s134
      %s149 = sphi 0, %s135
      %s153 = sphi 0, %s153
      %s155 = sphi 0, %s153
      %s156 = sphi 0, %s155
      %s170 = sphi 0, %s156
      %s174 = sphi 0, %s174
      %s176 = sphi 0, %s174
      %s177 = sphi 0, %s176
      %s191 = sphi 0, %s177
      %s197 = sphi 0, %s199
      %s200 = sphi 0, %s197
      %s201 = sphi 0, %s200
      %s217 = sphi 0, %s201
      %s225 = sphi 0, %s227
      %s228 = sphi 0, %s225
      %s229 = sphi 0, %s228
      %s245 = sphi 0, %s229
    $region4: #{tpu_custom_call.1} parent=1 // loop_header_branch
      %21 = sbr.rel (%p19) target = $region8
    $region5: #{tpu_custom_call.1} parent=1 // loop_body
      %s23 = ssub.s32 %s18, 1
      %s24 = ssub.s32 %s18, 2
      %s31 = sadd.s32 1, %s26
      %p32 = scmp.ge.s32.totalorder %s31, 1
      %s33 = scalar_select %p32, 0, %s31
      %s34 = sadd.s32 1, %s25
      %s35 = scalar_select %p32, %s34, %s25
      %p36 = scmp.ge.s32.totalorder %s35, 2
      %s37 = scalar_select %p36, 0, %s35
      %s38 = ssub.s32 %s25, %s37
      %p39 = scmp.eq.s32.totalorder %s38, 0
      %s41 = sadd.s32 %s40, 1
      %s42 = scalar_select %p39, %s40, %s41
      %p45 = pneg %p39
      %p46 = scmp.eq.s32.totalorder %s18, 1
      %p47 = por %p45, %p46
      %p48 = scmp.ne.s32.totalorder %s40, %s43
      %p49 = scmp.eq.s32.totalorder %s18, 0
      %p50 = por %p48, %p49
      %p51 = scmp.ne.s32.totalorder %s40, %s43
      %p52 = scmp.eq.s32.totalorder %s23, 1
      %p53 = por %p51, %p52
      %p54 = scmp.ne.s32.totalorder %s43, %s44
      %p55 = scmp.eq.s32.totalorder %s23, 0
      %p56 = por %p54, %p55
      %p57 = scmp.ne.s32.totalorder %s43, %s44
      %p58 = scmp.eq.s32.totalorder %s24, 1
      %p59 = por %p57, %p58
      %p61 = scmp.ne.s32.totalorder %s44, %s60
      %p62 = scmp.eq.s32.totalorder %s24, 0
      %p63 = por %p61, %p62
      %s64 = ssub.s32 %s25, %s37
      %p65 = scmp.eq.s32.totalorder %s64, 0
      %s67 = sadd.s32 %s66, 1
      %s68 = scalar_select %p65, %s66, %s67
      %p71 = pneg %p65
      %p72 = scmp.eq.s32.totalorder %s18, 1
      %p73 = por %p71, %p72
      %p74 = scmp.ne.s32.totalorder %s66, %s69
      %p75 = scmp.eq.s32.totalorder %s18, 0
      %p76 = por %p74, %p75
      %p77 = scmp.ne.s32.totalorder %s66, %s69
      %p78 = scmp.eq.s32.totalorder %s23, 1
      %p79 = por %p77, %p78
      %p80 = scmp.ne.s32.totalorder %s69, %s70
      %p81 = scmp.eq.s32.totalorder %s23, 0
      %p82 = por %p80, %p81
      %p83 = scmp.ne.s32.totalorder %s69, %s70
      %p84 = scmp.eq.s32.totalorder %s24, 1
      %p85 = por %p83, %p84
      %p87 = scmp.ne.s32.totalorder %s70, %s86
      %p88 = scmp.eq.s32.totalorder %s24, 0
      %p89 = por %p87, %p88
      %s91 = sadd.s32 %s90, 1
      %p94 = scmp.eq.s32.totalorder %s18, 1
      %p95 = scmp.ne.s32.totalorder %s90, %s92
      %p96 = scmp.eq.s32.totalorder %s18, 0
      %p97 = por %p95, %p96
      %p98 = scmp.ne.s32.totalorder %s90, %s92
      %p99 = scmp.eq.s32.totalorder %s23, 1
      %p100 = por %p98, %p99
      %p101 = scmp.ne.s32.totalorder %s92, %s93
      %p102 = scmp.eq.s32.totalorder %s23, 0
      %p103 = por %p101, %p102
      %p104 = scmp.ne.s32.totalorder %s92, %s93
      %p105 = scmp.eq.s32.totalorder %s24, 1
      %p106 = por %p104, %p105
      %p108 = scmp.ne.s32.totalorder %s93, %s107
      %p109 = scmp.eq.s32.totalorder %s24, 0
      %p110 = por %p108, %p109
      %s112 = sadd.s32 %s111, 1
      %p115 = scmp.eq.s32.totalorder %s18, 1
      %p116 = scmp.ne.s32.totalorder %s111, %s113
      %p117 = scmp.eq.s32.totalorder %s18, 0
      %p118 = por %p116, %p117
      %p119 = scmp.ne.s32.totalorder %s111, %s113
      %p120 = scmp.eq.s32.totalorder %s23, 1
      %p121 = por %p119, %p120
      %p122 = scmp.ne.s32.totalorder %s113, %s114
      %p123 = scmp.eq.s32.totalorder %s23, 0
      %p124 = por %p122, %p123
      %p125 = scmp.ne.s32.totalorder %s113, %s114
      %p126 = scmp.eq.s32.totalorder %s24, 1
      %p127 = por %p125, %p126
      %p129 = scmp.ne.s32.totalorder %s114, %s128
      %p130 = scmp.eq.s32.totalorder %s24, 0
      %p131 = por %p129, %p130
      %s133 = sadd.s32 %s132, 1
      %p136 = scmp.eq.s32.totalorder %s18, 1
      %p137 = scmp.ne.s32.totalorder %s132, %s134
      %p138 = scmp.eq.s32.totalorder %s18, 0
      %p139 = por %p137, %p138
      %p140 = scmp.ne.s32.totalorder %s132, %s134
      %p141 = scmp.eq.s32.totalorder %s23, 1
      %p142 = por %p140, %p141
      %p143 = scmp.ne.s32.totalorder %s134, %s135
      %p144 = scmp.eq.s32.totalorder %s23, 0
      %p145 = por %p143, %p144
      %p146 = scmp.ne.s32.totalorder %s134, %s135
      %p147 = scmp.eq.s32.totalorder %s24, 1
      %p148 = por %p146, %p147
      %p150 = scmp.ne.s32.totalorder %s135, %s149
      %p151 = scmp.eq.s32.totalorder %s24, 0
      %p152 = por %p150, %p151
      %s154 = sadd.s32 %s153, 1
      %p157 = scmp.eq.s32.totalorder %s18, 1
      %p158 = scmp.ne.s32.totalorder %s153, %s155
      %p159 = scmp.eq.s32.totalorder %s18, 0
      %p160 = por %p158, %p159
      %p161 = scmp.ne.s32.totalorder %s153, %s155
      %p162 = scmp.eq.s32.totalorder %s23, 1
      %p163 = por %p161, %p162
      %p164 = scmp.ne.s32.totalorder %s155, %s156
      %p165 = scmp.eq.s32.totalorder %s23, 0
      %p166 = por %p164, %p165
      %p167 = scmp.ne.s32.totalorder %s155, %s156
      %p168 = scmp.eq.s32.totalorder %s24, 1
      %p169 = por %p167, %p168
      %p171 = scmp.ne.s32.totalorder %s156, %s170
      %p172 = scmp.eq.s32.totalorder %s24, 0
      %p173 = por %p171, %p172
      %s175 = sadd.s32 %s174, 1
      %p178 = scmp.eq.s32.totalorder %s18, 1
      %p179 = scmp.ne.s32.totalorder %s174, %s176
      %p180 = scmp.eq.s32.totalorder %s18, 0
      %p181 = por %p179, %p180
      %p182 = scmp.ne.s32.totalorder %s174, %s176
      %p183 = scmp.eq.s32.totalorder %s23, 1
      %p184 = por %p182, %p183
      %p185 = scmp.ne.s32.totalorder %s176, %s177
      %p186 = scmp.eq.s32.totalorder %s23, 0
      %p187 = por %p185, %p186
      %p188 = scmp.ne.s32.totalorder %s176, %s177
      %p189 = scmp.eq.s32.totalorder %s24, 1
      %p190 = por %p188, %p189
      %p192 = scmp.ne.s32.totalorder %s177, %s191
      %p193 = scmp.eq.s32.totalorder %s24, 0
      %p194 = por %p192, %p193
      %s195 = ssub.s32 %s25, %s37
      %p196 = scmp.eq.s32.totalorder %s195, 0
      %s198 = sadd.s32 %s197, 1
      %s199 = scalar_select %p196, %s197, %s198
      %p202 = pneg %p196
      %p203 = scmp.eq.s32.totalorder %s18, 1
      %p204 = por %p202, %p203
      %p205 = scmp.ne.s32.totalorder %s197, %s200
      %p206 = scmp.eq.s32.totalorder %s18, 0
      %p207 = por %p205, %p206
      %p208 = scmp.ne.s32.totalorder %s197, %s200
      %p209 = scmp.eq.s32.totalorder %s23, 1
      %p210 = por %p208, %p209
      %p211 = scmp.ne.s32.totalorder %s200, %s201
      %p212 = scmp.eq.s32.totalorder %s23, 0
      %p213 = por %p211, %p212
      %p214 = scmp.ne.s32.totalorder %s200, %s201
      %p215 = scmp.eq.s32.totalorder %s24, 1
      %p216 = por %p214, %p215
      %p218 = scmp.ne.s32.totalorder %s201, %s217
      %p219 = scmp.eq.s32.totalorder %s24, 0
      %p220 = por %p218, %p219
      %s221 = ssub.s32 %s25, %s37
      %s222 = ssub.s32 %s26, %s33
      %s223 = sor.u32 %s221, %s222
      %p224 = scmp.eq.s32.totalorder %s223, 0
      %s226 = sadd.s32 %s225, 1
      %s227 = scalar_select %p224, %s225, %s226
      %p230 = pneg %p224
      %p231 = scmp.eq.s32.totalorder %s18, 1
      %p232 = por %p230, %p231
      %p233 = scmp.ne.s32.totalorder %s225, %s228
      %p234 = scmp.eq.s32.totalorder %s18, 0
      %p235 = por %p233, %p234
      %p236 = scmp.ne.s32.totalorder %s225, %s228
      %p237 = scmp.eq.s32.totalorder %s23, 1
      %p238 = por %p236, %p237
      %p239 = scmp.ne.s32.totalorder %s228, %s229
      %p240 = scmp.eq.s32.totalorder %s23, 0
      %p241 = por %p239, %p240
      %p242 = scmp.ne.s32.totalorder %s228, %s229
      %p243 = scmp.eq.s32.totalorder %s24, 1
      %p244 = por %p242, %p243
      %p246 = scmp.ne.s32.totalorder %s229, %s245
      %p247 = scmp.eq.s32.totalorder %s24, 0
      %p248 = por %p246, %p247
      %p249 = scmp.le.s32.totalorder 1, %s18
      %p250 = scmp.lt.s32.totalorder %s18, 3
      %p251 = pnand %p249, %p250
      %p252 = pneg %p251
      // Predicated region
      $region9: #{tpu_custom_call.1} parent=5 // pred_check
        _
      $region10: #{tpu_custom_call.1} parent=5 // pred_check_branch
        %254 = sbr.rel (%p251) target = $region12
      $region11: #{tpu_custom_call.1} parent=5 // pred_region
        %s255 = ssub.s32 %s18, 1
        // Predicated region
        $region13: #{tpu_custom_call.1} parent=11 // pred_check
          %p256 = pneg %p103
        $region14: #{tpu_custom_call.1} parent=11 // pred_check_branch
          %258 = sbr.rel (%p256) target = $region16
        $region15: #{tpu_custom_call.1} parent=11 // pred_region
          _
        $region16: #{tpu_custom_call.1} parent=11 // pred_fallthru
          _
        // Predicated region
        $region17: #{tpu_custom_call.1} parent=11 // pred_check
          %p259 = pneg %p124
        $region18: #{tpu_custom_call.1} parent=11 // pred_check_branch
          %261 = sbr.rel (%p259) target = $region20
        $region19: #{tpu_custom_call.1} parent=11 // pred_region
          _
        $region20: #{tpu_custom_call.1} parent=11 // pred_fallthru
          _
        // Predicated region
        $region21: #{tpu_custom_call.1} parent=11 // pred_check
          %p262 = pneg %p145
        $region22: #{tpu_custom_call.1} parent=11 // pred_check_branch
          %264 = sbr.rel (%p262) target = $region24
        $region23: #{tpu_custom_call.1} parent=11 // pred_region
          _
        $region24: #{tpu_custom_call.1} parent=11 // pred_fallthru
          _
        // Predicated region
        $region25: #{tpu_custom_call.1} parent=11 // pred_check
          %p265 = pneg %p166
        $region26: #{tpu_custom_call.1} parent=11 // pred_check_branch
          %267 = sbr.rel (%p265) target = $region28
        $region27: #{tpu_custom_call.1} parent=11 // pred_region
          _
        $region28: #{tpu_custom_call.1} parent=11 // pred_fallthru
          _
        // Predicated region
        $region29: #{tpu_custom_call.1} parent=11 // pred_check
          %p268 = pneg %p187
        $region30: #{tpu_custom_call.1} parent=11 // pred_check_branch
          %270 = sbr.rel (%p268) target = $region32
        $region31: #{tpu_custom_call.1} parent=11 // pred_region
          _
        $region32: #{tpu_custom_call.1} parent=11 // pred_fallthru
          _
      $region12: #{tpu_custom_call.1} parent=5 // pred_fallthru
        _
      %p271 = scmp.lt.s32.totalorder %s18, 2
      // Predicated region
      $region33: #{tpu_custom_call.1} parent=5 // pred_check
        %p272 = pneg %p271
      $region34: #{tpu_custom_call.1} parent=5 // pred_check_branch
        %274 = sbr.rel (%p272) target = $region36
      $region35: #{tpu_custom_call.1} parent=5 // pred_region
        // Predicated region
        $region37: #{tpu_custom_call.1} parent=35 // pred_check
          %p275 = pneg %p50
        $region38: #{tpu_custom_call.1} parent=35 // pred_check_branch
          %277 = sbr.rel (%p275) target = $region40
        $region39: #{tpu_custom_call.1} parent=35 // pred_region
          %p278 = scmp.lt.s32.totalorder %s25, 1
          %s279 = scalar_select %p278, %s25, 1
          %s280 = smul.addr %s279, 16
          %s281 = smul.addr %s280, 4
          %s282 = scalar_lea.vmem %s0, %s281
        $region40: #{tpu_custom_call.1} parent=35 // pred_fallthru
          _
        // Predicated region
        $region41: #{tpu_custom_call.1} parent=35 // pred_check
          %p283 = pneg %p76
        $region42: #{tpu_custom_call.1} parent=35 // pred_check_branch
          %285 = sbr.rel (%p283) target = $region44
        $region43: #{tpu_custom_call.1} parent=35 // pred_region
          %p286 = scmp.lt.s32.totalorder %s25, 1
          %s287 = scalar_select %p286, %s25, 1
          %s288 = scalar_lea.vmem %s1, %s287
        $region44: #{tpu_custom_call.1} parent=35 // pred_fallthru
          _
      $region36: #{tpu_custom_call.1} parent=5 // pred_fallthru
        _
      %p289 = scmp.le.s32.totalorder 1, %s18
      %p290 = scmp.lt.s32.totalorder %s18, 3
      %p291 = pnand %p289, %p290
      %p292 = pneg %p291
      // Predicated region
      $region45: #{tpu_custom_call.1} parent=5 // pred_check
        _
      $region46: #{tpu_custom_call.1} parent=5 // pred_check_branch
        %294 = sbr.rel (%p291) target = $region48
      $region47: #{tpu_custom_call.1} parent=5 // pred_region
        %s295 = ssub.s32 %s18, 1
        %p296 = scmp.lt.s32.totalorder %s27, 1
        %s297 = scalar_select %p296, %s27, 1
        %s298 = smul.addr %s297, 16
        %s299 = smul.addr %s298, 4
        %s300 = scalar_lea.vmem %s0, %s299
        %p301 = pneg %p56
        %p302 = pneg %p53
        %p303 = scmp.lt.s32.totalorder %s27, 1
        %s304 = scalar_select %p303, %s27, 1
        %s305 = scalar_lea.vmem %s1, %s304
        %p306 = pneg %p82
        %p307 = pneg %p79
        %p308 = pneg %p103
        %p309 = pneg %p100
        %p310 = pneg %p124
        %p311 = pneg %p121
        %p312 = pneg %p145
        %p313 = pneg %p142
        %p314 = pneg %p166
        %p315 = pneg %p163
        %p316 = pneg %p187
        %p317 = pneg %p184
        %p318 = pneg %p213
        %p319 = pneg %p210
        %p320 = scmp.lt.s32.totalorder %s27, 1
        %s321 = scalar_select %p320, %s27, 1
        %s322 = smul.addr %s321, 16
        %s323 = smul.addr %s322, 8
        %s324 = scalar_lea.vmem %s7, %s323
        %p325 = pneg %p241
        %p326 = pneg %p238
        %s327 = sand.u32 %s228, 1
        %s328 = scalar_lea.sflag [#allocation3], %s327
        %s329 = sand.u32 %s228, 1
        %s330 = smul.addr %s329, 1024
        %s331 = scalar_lea.vmem [#allocation2], %s330
        %p332 = scmp.lt.s32.totalorder %s27, 1
        %s333 = scalar_select %p332, %s27, 1
        %s334 = smul.addr %s333, 16
        %s335 = smul.addr %s334, 4
        %s336 = scalar_lea.vmem %s0, %s335
        %p337 = scmp.lt.s32.totalorder %s27, 1
        %s338 = scalar_select %p337, %s27, 1
        %s339 = scalar_lea.vmem %s1, %s338
        %p340 = scmp.lt.s32.totalorder %s27, 1
        %s341 = scalar_select %p340, %s27, 1
        %s342 = smul.addr %s341, 16
        %s343 = smul.addr %s342, 8
        %s344 = scalar_lea.vmem %s7, %s343
        %s345 = smul.u32 8, %s28
        %p347 = scmp.eq.s32.totalorder %s28, 0
        // Predicated region
        $region49: #{tpu_custom_call.1} parent=47 // pred_check
          %p348 = pneg %p347
        $region50: #{tpu_custom_call.1} parent=47 // pred_check_branch
          %350 = sbr.rel (%p348) target = $region52
        $region51: #{tpu_custom_call.1} parent=47 // pred_region
          %v351 = vld [vmem:[%s6] sm:$0x1]
          %v353 = vlaneseq
          %v354 = vshrl.u32 %v353, 7
          %v355 = vsub.s32 0, %v354
          %v356 = vrot.slane %v351, %v355
          %vm358 = vcmask 261120
          %359 = vst.msk [vmem:[%s344] sm:$0xff] %vm358, %v356
          %360 = vst.msk [vmem:[%s344 + $0x8] sm:$0xff] %vm358, %v356
          %361 = vst.msk [vmem:[%s344 + $0x10] sm:$0xff] %vm358, %v356
          %362 = vst.msk [vmem:[%s344 + $0x18] sm:$0xff] %vm358, %v356
          %363 = vst.msk [vmem:[%s344 + $0x20] sm:$0xff] %vm358, %v356
          %364 = vst.msk [vmem:[%s344 + $0x28] sm:$0xff] %vm358, %v356
          %365 = vst.msk [vmem:[%s344 + $0x30] sm:$0xff] %vm358, %v356
          %366 = vst.msk [vmem:[%s344 + $0x38] sm:$0xff] %vm358, %v356
          %367 = vst.msk [vmem:[%s344 + $0x40] sm:$0xff] %vm358, %v356
          %368 = vst.msk [vmem:[%s344 + $0x48] sm:$0xff] %vm358, %v356
          %369 = vst.msk [vmem:[%s344 + $0x50] sm:$0xff] %vm358, %v356
          %370 = vst.msk [vmem:[%s344 + $0x58] sm:$0xff] %vm358, %v356
          %371 = vst.msk [vmem:[%s344 + $0x60] sm:$0xff] %vm358, %v356
          %372 = vst.msk [vmem:[%s344 + $0x68] sm:$0xff] %vm358, %v356
          %373 = vst.msk [vmem:[%s344 + $0x70] sm:$0xff] %vm358, %v356
          %374 = vst.msk [vmem:[%s344 + $0x78] sm:$0xff] %vm358, %v356
        $region52: #{tpu_custom_call.1} parent=47 // pred_fallthru
          _
        %v375 = vld [vmem:[%s336] sm:$0xf]
        %v376 = vld [vmem:[%s336 + $0x4] sm:$0xf]
        %v377 = vld [vmem:[%s336 + $0x8] sm:$0xf]
        %v378 = vld [vmem:[%s336 + $0xc] sm:$0xf]
        %v379 = vld [vmem:[%s336 + $0x10] sm:$0xf]
        %v380 = vld [vmem:[%s336 + $0x14] sm:$0xf]
        %v381 = vld [vmem:[%s336 + $0x18] sm:$0xf]
        %v382 = vld [vmem:[%s336 + $0x1c] sm:$0xf]
        %v383 = vld [vmem:[%s336 + $0x20] sm:$0xf]
        %v384 = vld [vmem:[%s336 + $0x24] sm:$0xf]
        %v385 = vld [vmem:[%s336 + $0x28] sm:$0xf]
        %v386 = vld [vmem:[%s336 + $0x2c] sm:$0xf]
        %v387 = vld [vmem:[%s336 + $0x30] sm:$0xf]
        %v388 = vld [vmem:[%s336 + $0x34] sm:$0xf]
        %v389 = vld [vmem:[%s336 + $0x38] sm:$0xf]
        %v390 = vld [vmem:[%s336 + $0x3c] sm:$0xf]
        %v391 = vld [vmem:[%s339] sm:$0x1]
        %v392 = vmul.f32 %v391, 10000.0
        %s393 = smul.u32 %s28, 4
        %s394 = smul.addr %s393, 4
        %s395 = scalar_lea.vmem %s2, %s394
        %v396 = vld [vmem:[%s395] sm:$0xf]
        %v397 = vld [vmem:[%s395 + $0x4] sm:$0xf]
        %v398 = vld [vmem:[%s395 + $0x8] sm:$0xf]
        %v399 = vld [vmem:[%s395 + $0xc] sm:$0xf]
        %v416 = vunpack.c.l.b16 %v375
        %v417 = vunpack.c.l.b16 %v376
        %v418 = vunpack.c.l.b16 %v377
        %v419 = vunpack.c.l.b16 %v378
        %v420 = vunpack.c.l.b16 %v379
        %v421 = vunpack.c.l.b16 %v380
        %v422 = vunpack.c.l.b16 %v381
        %v423 = vunpack.c.l.b16 %v382
        %v424 = vunpack.c.l.b16 %v383
        %v425 = vunpack.c.l.b16 %v384
        %v426 = vunpack.c.l.b16 %v385
        %v427 = vunpack.c.l.b16 %v386
        %v428 = vunpack.c.l.b16 %v387
        %v429 = vunpack.c.l.b16 %v388
        %v430 = vunpack.c.l.b16 %v389
        %v431 = vunpack.c.l.b16 %v390
        %v432 = vpack.c.b16 %v417, %v416
        %v433 = vpack.c.b16 %v419, %v418
        %v434 = vpack.c.b16 %v421, %v420
        %v435 = vpack.c.b16 %v423, %v422
        %v436 = vpack.c.b16 %v425, %v424
        %v437 = vpack.c.b16 %v427, %v426
        %v438 = vpack.c.b16 %v429, %v428
        %v439 = vpack.c.b16 %v431, %v430
        %v444 = vunpack.c.l.b16 %v396
        %v445 = vunpack.c.l.b16 %v397
        %v446 = vunpack.c.l.b16 %v398
        %v447 = vunpack.c.l.b16 %v399
        %v448 = vpack.c.b16 %v445, %v444
        %v449 = vpack.c.b16 %v447, %v446
        %vm452 = vcmask 261120
        %v454 = vsel %vm452, %v432, 0
        %v457 = vsel %vm452, %v433, 0
        %v460 = vsel %vm452, %v434, 0
        %v463 = vsel %vm452, %v435, 0
        %v466 = vsel %vm452, %v436, 0
        %v469 = vsel %vm452, %v437, 0
        %v472 = vsel %vm452, %v438, 0
        %v475 = vsel %vm452, %v439, 0
        %477 = vmatprep.subr.bf16.mxu0 0
        %478 = vmatpush1.bf16.msra.mxu0 %v448
        %479 = vmatprep.subr.bf16.mxu0 0
        %480 = vmatpush1.bf16.msra.mxu0 %v449
        %481 = vmatprep.subr.bf16.mxu0 0
        %482 = vmatpush1.bf16.msra.mxu0 0
        %483 = vmatprep.subr.bf16.mxu0 0
        %484 = vmatpush1.bf16.msra.mxu0 0
        %485 = vmatprep.subr.bf16.mxu0 0
        %486 = vmatpush1.bf16.msra.mxu0 0
        %487 = vmatprep.subr.bf16.mxu0 0
        %488 = vmatpush1.bf16.msra.mxu0 0
        %489 = vmatprep.subr.bf16.mxu0 0
        %490 = vmatpush1.bf16.msra.mxu0 0
        %491 = vmatprep.subr.bf16.mxu0 0
        %492 = vmatpush1.bf16.msra.mxu0 0
        %493 = vmatprep.subr.bf16.mxu0 0
        %494 = vmatpush1.bf16.msra.mxu0 0
        %495 = vmatprep.subr.bf16.mxu0 0
        %496 = vmatpush1.bf16.msra.mxu0 0
        %497 = vmatprep.subr.bf16.mxu0 0
        %498 = vmatpush1.bf16.msra.mxu0 0
        %499 = vmatprep.subr.bf16.mxu0 0
        %500 = vmatpush1.bf16.msra.mxu0 0
        %501 = vmatprep.subr.bf16.mxu0 0
        %502 = vmatpush1.bf16.msra.mxu0 0
        %503 = vmatprep.subr.bf16.mxu0 0
        %504 = vmatpush1.bf16.msra.mxu0 0
        %505 = vmatprep.subr.bf16.mxu0 0
        %506 = vmatpush1.bf16.msra.mxu0 0
        %507 = vmatprep.subr.bf16.mxu0 0
        %508 = vmatpush1.bf16.msra.mxu0 0
        %509 = vmatprep.mubr.bf16.mxu0 0
        %510 = vmatmul.mubr.bf16.gmra.mrb[0].mxu0 %v454
        %v511 = vpop.f32.mrb[0].mxu0
        %v512 = vadd.f32 0.0, %v511
        %v513 = vpop.f32.mrb[0].mxu0
        %v514 = vpop.f32.mrb[0].mxu0
        %v515 = vadd.f32 0.0, %v514
        %v516 = vpop.f32.mrb[0].mxu0
        %517 = vmatprep.mubr.bf16.mxu0 0
        %518 = vmatmul.mubr.bf16.gmra.mrb[0].mxu0 %v457
        %v519 = vpop.f32.mrb[0].mxu0
        %v520 = vadd.f32 0.0, %v519
        %v521 = vpop.f32.mrb[0].mxu0
        %v522 = vpop.f32.mrb[0].mxu0
        %v523 = vadd.f32 0.0, %v522
        %v524 = vpop.f32.mrb[0].mxu0
        %525 = vmatprep.mubr.bf16.mxu0 0
        %526 = vmatmul.mubr.bf16.gmra.mrb[0].mxu0 %v460
        %v527 = vpop.f32.mrb[0].mxu0
        %v528 = vadd.f32 0.0, %v527
        %v529 = vpop.f32.mrb[0].mxu0
        %v530 = vpop.f32.mrb[0].mxu0
        %v531 = vadd.f32 0.0, %v530
        %v532 = vpop.f32.mrb[0].mxu0
        %533 = vmatprep.mubr.bf16.mxu0 0
        %534 = vmatmul.mubr.bf16.gmra.mrb[0].mxu0 %v463
        %v535 = vpop.f32.mrb[0].mxu0
        %v536 = vadd.f32 0.0, %v535
        %v537 = vpop.f32.mrb[0].mxu0
        %v538 = vpop.f32.mrb[0].mxu0
        %v539 = vadd.f32 0.0, %v538
        %v540 = vpop.f32.mrb[0].mxu0
        %541 = vmatprep.mubr.bf16.mxu0 0
        %542 = vmatmul.mubr.bf16.gmra.mrb[0].mxu0 %v466
        %v543 = vpop.f32.mrb[0].mxu0
        %v544 = vadd.f32 0.0, %v543
        %v545 = vpop.f32.mrb[0].mxu0
        %v546 = vpop.f32.mrb[0].mxu0
        %v547 = vadd.f32 0.0, %v546
        %v548 = vpop.f32.mrb[0].mxu0
        %549 = vmatprep.mubr.bf16.mxu0 0
        %550 = vmatmul.mubr.bf16.gmra.mrb[0].mxu0 %v469
        %v551 = vpop.f32.mrb[0].mxu0
        %v552 = vadd.f32 0.0, %v551
        %v553 = vpop.f32.mrb[0].mxu0
        %v554 = vpop.f32.mrb[0].mxu0
        %v555 = vadd.f32 0.0, %v554
        %v556 = vpop.f32.mrb[0].mxu0
        %557 = vmatprep.mubr.bf16.mxu0 0
        %558 = vmatmul.mubr.bf16.gmra.mrb[0].mxu0 %v472
        %v559 = vpop.f32.mrb[0].mxu0
        %v560 = vadd.f32 0.0, %v559
        %v561 = vpop.f32.mrb[0].mxu0
        %v562 = vpop.f32.mrb[0].mxu0
        %v563 = vadd.f32 0.0, %v562
        %v564 = vpop.f32.mrb[0].mxu0
        %565 = vmatprep.mubr.bf16.mxu0 0
        %566 = vmatmul.mubr.bf16.gmra.mrb[0].mxu0 %v475
        %v567 = vpop.f32.mrb[0].mxu0
        %v568 = vadd.f32 0.0, %v567
        %v569 = vpop.f32.mrb[0].mxu0
        %v570 = vpop.f32.mrb[0].mxu0
        %v571 = vadd.f32 0.0, %v570
        %v572 = vpop.f32.mrb[0].mxu0
        %573 = vdwg.mxu0
        %v574 = vpack.c.bf16 %v515, %v512
        %v575 = vpack.c.bf16 %v523, %v520
        %v576 = vpack.c.bf16 %v531, %v528
        %v577 = vpack.c.bf16 %v539, %v536
        %v578 = vpack.c.bf16 %v547, %v544
        %v579 = vpack.c.bf16 %v555, %v552
        %v580 = vpack.c.bf16 %v563, %v560
        %v581 = vpack.c.bf16 %v571, %v568
        %s582 = smul.addr %s393, 4
        %s583 = scalar_lea.vmem %s3, %s582
        %v584 = vld [vmem:[%s583] sm:$0xf]
        %v585 = vld [vmem:[%s583 + $0x4] sm:$0xf]
        %v586 = vld [vmem:[%s583 + $0x8] sm:$0xf]
        %v587 = vld [vmem:[%s583 + $0xc] sm:$0xf]
        %v592 = vunpack.c.l.b16 %v584
        %v593 = vunpack.c.l.b16 %v585
        %v594 = vunpack.c.l.b16 %v586
        %v595 = vunpack.c.l.b16 %v587
        %v596 = vpack.c.b16 %v593, %v592
        %v597 = vpack.c.b16 %v595, %v594
        %600 = vmatprep.subr.bf16.mxu0 0
        %601 = vmatpush1.bf16.msra.mxu0 %v596
        %602 = vmatprep.subr.bf16.mxu0 0
        %603 = vmatpush1.bf16.msra.mxu0 %v597
        %604 = vmatprep.subr.bf16.mxu0 0
        %605 = vmatpush1.bf16.msra.mxu0 0
        %606 = vmatprep.subr.bf16.mxu0 0
        %607 = vmatpush1.bf16.msra.mxu0 0
        %608 = vmatprep.subr.bf16.mxu0 0
        %609 = vmatpush1.bf16.msra.mxu0 0
        %610 = vmatprep.subr.bf16.mxu0 0
        %611 = vmatpush1.bf16.msra.mxu0 0
        %612 = vmatprep.subr.bf16.mxu0 0
        %613 = vmatpush1.bf16.msra.mxu0 0
        %614 = vmatprep.subr.bf16.mxu0 0
        %615 = vmatpush1.bf16.msra.mxu0 0
        %616 = vmatprep.subr.bf16.mxu0 0
        %617 = vmatpush1.bf16.msra.mxu0 0
        %618 = vmatprep.subr.bf16.mxu0 0
        %619 = vmatpush1.bf16.msra.mxu0 0
        %620 = vmatprep.subr.bf16.mxu0 0
        %621 = vmatpush1.bf16.msra.mxu0 0
        %622 = vmatprep.subr.bf16.mxu0 0
        %623 = vmatpush1.bf16.msra.mxu0 0
        %624 = vmatprep.subr.bf16.mxu0 0
        %625 = vmatpush1.bf16.msra.mxu0 0
        %626 = vmatprep.subr.bf16.mxu0 0
        %627 = vmatpush1.bf16.msra.mxu0 0
        %628 = vmatprep.subr.bf16.mxu0 0
        %629 = vmatpush1.bf16.msra.mxu0 0
        %630 = vmatprep.subr.bf16.mxu0 0
        %631 = vmatpush1.bf16.msra.mxu0 0
        %632 = vmatprep.mubr.bf16.mxu0 0
        %633 = vmatmul.mubr.bf16.gmra.mrb[0].mxu0 %v454
        %v634 = vpop.f32.mrb[0].mxu0
        %v635 = vadd.f32 0.0, %v634
        %v636 = vpop.f32.mrb[0].mxu0
        %v637 = vpop.f32.mrb[0].mxu0
        %v638 = vadd.f32 0.0, %v637
        %v639 = vpop.f32.mrb[0].mxu0
        %640 = vmatprep.mubr.bf16.mxu0 0
        %641 = vmatmul.mubr.bf16.gmra.mrb[0].mxu0 %v457
        %v642 = vpop.f32.mrb[0].mxu0
        %v643 = vadd.f32 0.0, %v642
        %v644 = vpop.f32.mrb[0].mxu0
        %v645 = vpop.f32.mrb[0].mxu0
        %v646 = vadd.f32 0.0, %v645
        %v647 = vpop.f32.mrb[0].mxu0
        %648 = vmatprep.mubr.bf16.mxu0 0
        %649 = vmatmul.mubr.bf16.gmra.mrb[0].mxu0 %v460
        %v650 = vpop.f32.mrb[0].mxu0
        %v651 = vadd.f32 0.0, %v650
        %v652 = vpop.f32.mrb[0].mxu0
        %v653 = vpop.f32.mrb[0].mxu0
        %v654 = vadd.f32 0.0, %v653
        %v655 = vpop.f32.mrb[0].mxu0
        %656 = vmatprep.mubr.bf16.mxu0 0
        %657 = vmatmul.mubr.bf16.gmra.mrb[0].mxu0 %v463
        %v658 = vpop.f32.mrb[0].mxu0
        %v659 = vadd.f32 0.0, %v658
        %v660 = vpop.f32.mrb[0].mxu0
        %v661 = vpop.f32.mrb[0].mxu0
        %v662 = vadd.f32 0.0, %v661
        %v663 = vpop.f32.mrb[0].mxu0
        %664 = vmatprep.mubr.bf16.mxu0 0
        %665 = vmatmul.mubr.bf16.gmra.mrb[0].mxu0 %v466
        %v666 = vpop.f32.mrb[0].mxu0
        %v667 = vadd.f32 0.0, %v666
        %v668 = vpop.f32.mrb[0].mxu0
        %v669 = vpop.f32.mrb[0].mxu0
        %v670 = vadd.f32 0.0, %v669
        %v671 = vpop.f32.mrb[0].mxu0
        %672 = vmatprep.mubr.bf16.mxu0 0
        %673 = vmatmul.mubr.bf16.gmra.mrb[0].mxu0 %v469
        %v674 = vpop.f32.mrb[0].mxu0
        %v675 = vadd.f32 0.0, %v674
        %v676 = vpop.f32.mrb[0].mxu0
        %v677 = vpop.f32.mrb[0].mxu0
        %v678 = vadd.f32 0.0, %v677
        %v679 = vpop.f32.mrb[0].mxu0
        %680 = vmatprep.mubr.bf16.mxu0 0
        %681 = vmatmul.mubr.bf16.gmra.mrb[0].mxu0 %v472
        %v682 = vpop.f32.mrb[0].mxu0
        %v683 = vadd.f32 0.0, %v682
        %v684 = vpop.f32.mrb[0].mxu0
        %v685 = vpop.f32.mrb[0].mxu0
        %v686 = vadd.f32 0.0, %v685
        %v687 = vpop.f32.mrb[0].mxu0
        %688 = vmatprep.mubr.bf16.mxu0 0
        %689 = vmatmul.mubr.bf16.gmra.mrb[0].mxu0 %v475
        %v690 = vpop.f32.mrb[0].mxu0
        %v691 = vadd.f32 0.0, %v690
        %v692 = vpop.f32.mrb[0].mxu0
        %v693 = vpop.f32.mrb[0].mxu0
        %v694 = vadd.f32 0.0, %v693
        %v695 = vpop.f32.mrb[0].mxu0
        %696 = vdwg.mxu0
        %v697 = vpack.c.bf16 %v638, %v635
        %v698 = vpack.c.bf16 %v646, %v643
        %v699 = vpack.c.bf16 %v654, %v651
        %v700 = vpack.c.bf16 %v662, %v659
        %v701 = vpack.c.bf16 %v670, %v667
        %v702 = vpack.c.bf16 %v678, %v675
        %v703 = vpack.c.bf16 %v686, %v683
        %v704 = vpack.c.bf16 %v694, %v691
        %s705 = smul.addr %s393, 4
        %s706 = scalar_lea.vmem %s4, %s705
        %v707 = vld [vmem:[%s706] sm:$0xf]
        %v708 = vld [vmem:[%s706 + $0x4] sm:$0xf]
        %v709 = vld [vmem:[%s706 + $0x8] sm:$0xf]
        %v710 = vld [vmem:[%s706 + $0xc] sm:$0xf]
        %v715 = vunpack.c.l.b16 %v707
        %v716 = vunpack.c.l.b16 %v708
        %v717 = vunpack.c.l.b16 %v709
        %v718 = vunpack.c.l.b16 %v710
        %v719 = vpack.c.b16 %v716, %v715
        %v720 = vpack.c.b16 %v718, %v717
        %723 = vmatprep.subr.bf16.mxu0 0
        %724 = vmatpush1.bf16.msra.mxu0 %v719
        %725 = vmatprep.subr.bf16.mxu0 0
        %726 = vmatpush1.bf16.msra.mxu0 %v720
        %727 = vmatprep.subr.bf16.mxu0 0
        %728 = vmatpush1.bf16.msra.mxu0 0
        %729 = vmatprep.subr.bf16.mxu0 0
        %730 = vmatpush1.bf16.msra.mxu0 0
        %731 = vmatprep.subr.bf16.mxu0 0
        %732 = vmatpush1.bf16.msra.mxu0 0
        %733 = vmatprep.subr.bf16.mxu0 0
        %734 = vmatpush1.bf16.msra.mxu0 0
        %735 = vmatprep.subr.bf16.mxu0 0
        %736 = vmatpush1.bf16.msra.mxu0 0
        %737 = vmatprep.subr.bf16.mxu0 0
        %738 = vmatpush1.bf16.msra.mxu0 0
        %739 = vmatprep.subr.bf16.mxu0 0
        %740 = vmatpush1.bf16.msra.mxu0 0
        %741 = vmatprep.subr.bf16.mxu0 0
        %742 = vmatpush1.bf16.msra.mxu0 0
        %743 = vmatprep.subr.bf16.mxu0 0
        %744 = vmatpush1.bf16.msra.mxu0 0
        %745 = vmatprep.subr.bf16.mxu0 0
        %746 = vmatpush1.bf16.msra.mxu0 0
        %747 = vmatprep.subr.bf16.mxu0 0
        %748 = vmatpush1.bf16.msra.mxu0 0
        %749 = vmatprep.subr.bf16.mxu0 0
        %750 = vmatpush1.bf16.msra.mxu0 0
        %751 = vmatprep.subr.bf16.mxu0 0
        %752 = vmatpush1.bf16.msra.mxu0 0
        %753 = vmatprep.subr.bf16.mxu0 0
        %754 = vmatpush1.bf16.msra.mxu0 0
        %755 = vmatprep.mubr.bf16.mxu0 0
        %756 = vmatmul.mubr.bf16.gmra.mrb[0].mxu0 %v454
        %v757 = vpop.f32.mrb[0].mxu0
        %v758 = vadd.f32 0.0, %v757
        %v759 = vpop.f32.mrb[0].mxu0
        %v760 = vpop.f32.mrb[0].mxu0
        %v761 = vadd.f32 0.0, %v760
        %v762 = vpop.f32.mrb[0].mxu0
        %763 = vmatprep.mubr.bf16.mxu0 0
        %764 = vmatmul.mubr.bf16.gmra.mrb[0].mxu0 %v457
        %v765 = vpop.f32.mrb[0].mxu0
        %v766 = vadd.f32 0.0, %v765
        %v767 = vpop.f32.mrb[0].mxu0
        %v768 = vpop.f32.mrb[0].mxu0
        %v769 = vadd.f32 0.0, %v768
        %v770 = vpop.f32.mrb[0].mxu0
        %771 = vmatprep.mubr.bf16.mxu0 0
        %772 = vmatmul.mubr.bf16.gmra.mrb[0].mxu0 %v460
        %v773 = vpop.f32.mrb[0].mxu0
        %v774 = vadd.f32 0.0, %v773
        %v775 = vpop.f32.mrb[0].mxu0
        %v776 = vpop.f32.mrb[0].mxu0
        %v777 = vadd.f32 0.0, %v776
        %v778 = vpop.f32.mrb[0].mxu0
        %779 = vmatprep.mubr.bf16.mxu0 0
        %780 = vmatmul.mubr.bf16.gmra.mrb[0].mxu0 %v463
        %v781 = vpop.f32.mrb[0].mxu0
        %v782 = vadd.f32 0.0, %v781
        %v783 = vpop.f32.mrb[0].mxu0
        %v784 = vpop.f32.mrb[0].mxu0
        %v785 = vadd.f32 0.0, %v784
        %v786 = vpop.f32.mrb[0].mxu0
        %787 = vmatprep.mubr.bf16.mxu0 0
        %788 = vmatmul.mubr.bf16.gmra.mrb[0].mxu0 %v466
        %v789 = vpop.f32.mrb[0].mxu0
        %v790 = vadd.f32 0.0, %v789
        %v791 = vpop.f32.mrb[0].mxu0
        %v792 = vpop.f32.mrb[0].mxu0
        %v793 = vadd.f32 0.0, %v792
        %v794 = vpop.f32.mrb[0].mxu0
        %795 = vmatprep.mubr.bf16.mxu0 0
        %796 = vmatmul.mubr.bf16.gmra.mrb[0].mxu0 %v469
        %v797 = vpop.f32.mrb[0].mxu0
        %v798 = vadd.f32 0.0, %v797
        %v799 = vpop.f32.mrb[0].mxu0
        %v800 = vpop.f32.mrb[0].mxu0
        %v801 = vadd.f32 0.0, %v800
        %v802 = vpop.f32.mrb[0].mxu0
        %803 = vmatprep.mubr.bf16.mxu0 0
        %804 = vmatmul.mubr.bf16.gmra.mrb[0].mxu0 %v472
        %v805 = vpop.f32.mrb[0].mxu0
        %v806 = vadd.f32 0.0, %v805
        %v807 = vpop.f32.mrb[0].mxu0
        %v808 = vpop.f32.mrb[0].mxu0
        %v809 = vadd.f32 0.0, %v808
        %v810 = vpop.f32.mrb[0].mxu0
        %811 = vmatprep.mubr.bf16.mxu0 0
        %812 = vmatmul.mubr.bf16.gmra.mrb[0].mxu0 %v475
        %v813 = vpop.f32.mrb[0].mxu0
        %v814 = vadd.f32 0.0, %v813
        %v815 = vpop.f32.mrb[0].mxu0
        %v816 = vpop.f32.mrb[0].mxu0
        %v817 = vadd.f32 0.0, %v816
        %v818 = vpop.f32.mrb[0].mxu0
        %819 = vdwg.mxu0
        %v820 = vpack.c.bf16 %v761, %v758
        %v821 = vpack.c.bf16 %v769, %v766
        %v822 = vpack.c.bf16 %v777, %v774
        %v823 = vpack.c.bf16 %v785, %v782
        %v824 = vpack.c.bf16 %v793, %v790
        %v825 = vpack.c.bf16 %v801, %v798
        %v826 = vpack.c.bf16 %v809, %v806
        %v827 = vpack.c.bf16 %v817, %v814
        %s828 = smul.addr %s393, 4
        %s829 = scalar_lea.vmem %s5, %s828
        %v830 = vld [vmem:[%s829] sm:$0xf]
        %v831 = vld [vmem:[%s829 + $0x4] sm:$0xf]
        %v832 = vld [vmem:[%s829 + $0x8] sm:$0xf]
        %v833 = vld [vmem:[%s829 + $0xc] sm:$0xf]
        %vm834 = vcmask 31744
        %v836 = vsel %vm834, %v574, 0
        %v839 = vsel %vm834, %v575, 0
        %v842 = vsel %vm834, %v576, 0
        %v845 = vsel %vm834, %v577, 0
        %v848 = vsel %vm834, %v578, 0
        %v851 = vsel %vm834, %v579, 0
        %v854 = vsel %vm834, %v580, 0
        %v857 = vsel %vm834, %v581, 0
        %v860 = vsel %vm834, %v697, 0
        %v863 = vsel %vm834, %v698, 0
        %v866 = vsel %vm834, %v699, 0
        %v869 = vsel %vm834, %v700, 0
        %v872 = vsel %vm834, %v701, 0
        %v875 = vsel %vm834, %v702, 0
        %v878 = vsel %vm834, %v703, 0
        %v881 = vsel %vm834, %v704, 0
        %883 = vmatprep.subr.bf16.mxu0 0
        %884 = vmatpush1.bf16.xpose.msra.mxu0 %v860
        %885 = vmatprep.subr.bf16.mxu0 0
        %886 = vmatpush1.bf16.xpose.msra.mxu0 %v863
        %887 = vmatprep.subr.bf16.mxu0 0
        %888 = vmatpush1.bf16.xpose.msra.mxu0 %v866
        %889 = vmatprep.subr.bf16.mxu0 0
        %890 = vmatpush1.bf16.xpose.msra.mxu0 %v869
        %891 = vmatprep.subr.bf16.mxu0 0
        %892 = vmatpush1.bf16.xpose.msra.mxu0 %v872
        %893 = vmatprep.subr.bf16.mxu0 0
        %894 = vmatpush1.bf16.xpose.msra.mxu0 %v875
        %895 = vmatprep.subr.bf16.mxu0 0
        %896 = vmatpush1.bf16.xpose.msra.mxu0 %v878
        %897 = vmatprep.subr.bf16.mxu0 0
        %898 = vmatpush1.bf16.xpose.msra.mxu0 %v881
        %899 = vmatprep.subr.bf16.mxu0 0
        %900 = vmatpush1.bf16.xpose.msra.mxu0 0
        %901 = vmatprep.subr.bf16.mxu0 0
        %902 = vmatpush1.bf16.xpose.msra.mxu0 0
        %903 = vmatprep.subr.bf16.mxu0 0
        %904 = vmatpush1.bf16.xpose.msra.mxu0 0
        %905 = vmatprep.subr.bf16.mxu0 0
        %906 = vmatpush1.bf16.xpose.msra.mxu0 0
        %907 = vmatprep.subr.bf16.mxu0 0
        %908 = vmatpush1.bf16.xpose.msra.mxu0 0
        %909 = vmatprep.subr.bf16.mxu0 0
        %910 = vmatpush1.bf16.xpose.msra.mxu0 0
        %911 = vmatprep.subr.bf16.mxu0 0
        %912 = vmatpush1.bf16.xpose.msra.mxu0 0
        %913 = vmatprep.subr.bf16.mxu0 0
        %914 = vmatpush1.bf16.xpose.msra.mxu0 0
        %915 = vmatprep.mubr.bf16.mxu0 0
        %916 = vmatmul.mubr.bf16.gmra.mrb[0].mxu0 %v836
        %v917 = vpop.f32.mrb[0].mxu0
        %v918 = vadd.f32 0.0, %v917
        %v919 = vpop.f32.mrb[0].mxu0
        %v920 = vpop.f32.mrb[0].mxu0
        %v921 = vadd.f32 0.0, %v920
        %v922 = vpop.f32.mrb[0].mxu0
        %923 = vmatprep.mubr.bf16.mxu0 0
        %924 = vmatmul.mubr.bf16.gmra.mrb[0].mxu0 %v839
        %v925 = vpop.f32.mrb[0].mxu0
        %v926 = vadd.f32 0.0, %v925
        %v927 = vpop.f32.mrb[0].mxu0
        %v928 = vpop.f32.mrb[0].mxu0
        %v929 = vadd.f32 0.0, %v928
        %v930 = vpop.f32.mrb[0].mxu0
        %931 = vmatprep.mubr.bf16.mxu0 0
        %932 = vmatmul.mubr.bf16.gmra.mrb[0].mxu0 %v842
        %v933 = vpop.f32.mrb[0].mxu0
        %v934 = vadd.f32 0.0, %v933
        %v935 = vpop.f32.mrb[0].mxu0
        %v936 = vpop.f32.mrb[0].mxu0
        %v937 = vadd.f32 0.0, %v936
        %v938 = vpop.f32.mrb[0].mxu0
        %939 = vmatprep.mubr.bf16.mxu0 0
        %940 = vmatmul.mubr.bf16.gmra.mrb[0].mxu0 %v845
        %v941 = vpop.f32.mrb[0].mxu0
        %v942 = vadd.f32 0.0, %v941
        %v943 = vpop.f32.mrb[0].mxu0
        %v944 = vpop.f32.mrb[0].mxu0
        %v945 = vadd.f32 0.0, %v944
        %v946 = vpop.f32.mrb[0].mxu0
        %947 = vmatprep.mubr.bf16.mxu0 0
        %948 = vmatmul.mubr.bf16.gmra.mrb[0].mxu0 %v848
        %v949 = vpop.f32.mrb[0].mxu0
        %v950 = vadd.f32 0.0, %v949
        %v951 = vpop.f32.mrb[0].mxu0
        %v952 = vpop.f32.mrb[0].mxu0
        %v953 = vadd.f32 0.0, %v952
        %v954 = vpop.f32.mrb[0].mxu0
        %955 = vmatprep.mubr.bf16.mxu0 0
        %956 = vmatmul.mubr.bf16.gmra.mrb[0].mxu0 %v851
        %v957 = vpop.f32.mrb[0].mxu0
        %v958 = vadd.f32 0.0, %v957
        %v959 = vpop.f32.mrb[0].mxu0
        %v960 = vpop.f32.mrb[0].mxu0
        %v961 = vadd.f32 0.0, %v960
        %v962 = vpop.f32.mrb[0].mxu0
        %963 = vmatprep.mubr.bf16.mxu0 0
        %964 = vmatmul.mubr.bf16.gmra.mrb[0].mxu0 %v854
        %v965 = vpop.f32.mrb[0].mxu0
        %v966 = vadd.f32 0.0, %v965
        %v967 = vpop.f32.mrb[0].mxu0
        %v968 = vpop.f32.mrb[0].mxu0
        %v969 = vadd.f32 0.0, %v968
        %v970 = vpop.f32.mrb[0].mxu0
        %971 = vmatprep.mubr.bf16.mxu0 0
        %972 = vmatmul.mubr.bf16.gmra.mrb[0].mxu0 %v857
        %v973 = vpop.f32.mrb[0].mxu0
        %v974 = vadd.f32 0.0, %v973
        %v975 = vpop.f32.mrb[0].mxu0
        %v976 = vpop.f32.mrb[0].mxu0
        %v977 = vadd.f32 0.0, %v976
        %v978 = vpop.f32.mrb[0].mxu0
        %979 = vdwg.mxu0
        %v981 = vlaneseq
        %v982 = vshrl.u32 %v981, 7
        %v983 = vsub.s32 0, %v982
        %v984 = vrot.slane %v392, %v983
        %v986 = vsub.f32 %v918, %v984
        %v987 = vsub.f32 %v921, %v984
        %v988 = vsub.f32 %v926, %v984
        %v989 = vsub.f32 %v929, %v984
        %v990 = vsub.f32 %v934, %v984
        %v991 = vsub.f32 %v937, %v984
        %v992 = vsub.f32 %v942, %v984
        %v993 = vsub.f32 %v945, %v984
        %v994 = vsub.f32 %v950, %v984
        %v995 = vsub.f32 %v953, %v984
        %v996 = vsub.f32 %v958, %v984
        %v997 = vsub.f32 %v961, %v984
        %v998 = vsub.f32 %v966, %v984
        %v999 = vsub.f32 %v969, %v984
        %v1000 = vsub.f32 %v974, %v984
        %v1001 = vsub.f32 %v977, %v984
        %1002 = vmax.xlane.f32.xlu0 %v986
        %v1003 = vpop.xlane.xlu0 %1002
        %1004 = vmax.xlane.f32.xlu0 %v987
        %v1005 = vpop.xlane.xlu0 %1004
        %1006 = vmax.xlane.f32.xlu0 %v988
        %v1007 = vpop.xlane.xlu0 %1006
        %1008 = vmax.xlane.f32.xlu0 %v989
        %v1009 = vpop.xlane.xlu0 %1008
        %1010 = vmax.xlane.f32.xlu0 %v990
        %v1011 = vpop.xlane.xlu0 %1010
        %1012 = vmax.xlane.f32.xlu0 %v991
        %v1013 = vpop.xlane.xlu0 %1012
        %1014 = vmax.xlane.f32.xlu0 %v992
        %v1015 = vpop.xlane.xlu0 %1014
        %1016 = vmax.xlane.f32.xlu0 %v993
        %v1017 = vpop.xlane.xlu0 %1016
        %1018 = vmax.xlane.f32.xlu0 %v994
        %v1019 = vpop.xlane.xlu0 %1018
        %1020 = vmax.xlane.f32.xlu0 %v995
        %v1021 = vpop.xlane.xlu0 %1020
        %1022 = vmax.xlane.f32.xlu0 %v996
        %v1023 = vpop.xlane.xlu0 %1022
        %1024 = vmax.xlane.f32.xlu0 %v997
        %v1025 = vpop.xlane.xlu0 %1024
        %1026 = vmax.xlane.f32.xlu0 %v998
        %v1027 = vpop.xlane.xlu0 %1026
        %1028 = vmax.xlane.f32.xlu0 %v999
        %v1029 = vpop.xlane.xlu0 %1028
        %1030 = vmax.xlane.f32.xlu0 %v1000
        %v1031 = vpop.xlane.xlu0 %1030
        %1032 = vmax.xlane.f32.xlu0 %v1001
        %v1033 = vpop.xlane.xlu0 %1032
        %v1034 = vsub.f32 %v986, %v1003
        %v1035 = vsub.f32 %v987, %v1005
        %v1036 = vsub.f32 %v988, %v1007
        %v1037 = vsub.f32 %v989, %v1009
        %v1038 = vsub.f32 %v990, %v1011
        %v1039 = vsub.f32 %v991, %v1013
        %v1040 = vsub.f32 %v992, %v1015
        %v1041 = vsub.f32 %v993, %v1017
        %v1042 = vsub.f32 %v994, %v1019
        %v1043 = vsub.f32 %v995, %v1021
        %v1044 = vsub.f32 %v996, %v1023
        %v1045 = vsub.f32 %v997, %v1025
        %v1046 = vsub.f32 %v998, %v1027
        %v1047 = vsub.f32 %v999, %v1029
        %v1048 = vsub.f32 %v1000, %v1031
        %v1049 = vsub.f32 %v1001, %v1033
        %v1050 = vmul.f32 %v1034, 1.442695
        %v1051 = vpow.pop %v1050
        %v1052 = vmul.f32 %v1035, 1.442695
        %v1053 = vpow.pop %v1052
        %v1054 = vmul.f32 %v1036, 1.442695
        %v1055 = vpow.pop %v1054
        %v1056 = vmul.f32 %v1037, 1.442695
        %v1057 = vpow.pop %v1056
        %v1058 = vmul.f32 %v1038, 1.442695
        %v1059 = vpow.pop %v1058
        %v1060 = vmul.f32 %v1039, 1.442695
        %v1061 = vpow.pop %v1060
        %v1062 = vmul.f32 %v1040, 1.442695
        %v1063 = vpow.pop %v1062
        %v1064 = vmul.f32 %v1041, 1.442695
        %v1065 = vpow.pop %v1064
        %v1066 = vmul.f32 %v1042, 1.442695
        %v1067 = vpow.pop %v1066
        %v1068 = vmul.f32 %v1043, 1.442695
        %v1069 = vpow.pop %v1068
        %v1070 = vmul.f32 %v1044, 1.442695
        %v1071 = vpow.pop %v1070
        %v1072 = vmul.f32 %v1045, 1.442695
        %v1073 = vpow.pop %v1072
        %v1074 = vmul.f32 %v1046, 1.442695
        %v1075 = vpow.pop %v1074
        %v1076 = vmul.f32 %v1047, 1.442695
        %v1077 = vpow.pop %v1076
        %v1078 = vmul.f32 %v1048, 1.442695
        %v1079 = vpow.pop %v1078
        %v1080 = vmul.f32 %v1049, 1.442695
        %v1081 = vpow.pop %v1080
        %1082 = vadd.xlane.f32.xlu0 %v1051
        %v1083 = vpop.xlane.xlu0 %1082
        %1084 = vadd.xlane.f32.xlu0 %v1053
        %v1085 = vpop.xlane.xlu0 %1084
        %1086 = vadd.xlane.f32.xlu0 %v1055
        %v1087 = vpop.xlane.xlu0 %1086
        %1088 = vadd.xlane.f32.xlu0 %v1057
        %v1089 = vpop.xlane.xlu0 %1088
        %1090 = vadd.xlane.f32.xlu0 %v1059
        %v1091 = vpop.xlane.xlu0 %1090
        %1092 = vadd.xlane.f32.xlu0 %v1061
        %v1093 = vpop.xlane.xlu0 %1092
        %1094 = vadd.xlane.f32.xlu0 %v1063
        %v1095 = vpop.xlane.xlu0 %1094
        %1096 = vadd.xlane.f32.xlu0 %v1065
        %v1097 = vpop.xlane.xlu0 %1096
        %1098 = vadd.xlane.f32.xlu0 %v1067
        %v1099 = vpop.xlane.xlu0 %1098
        %1100 = vadd.xlane.f32.xlu0 %v1069
        %v1101 = vpop.xlane.xlu0 %1100
        %1102 = vadd.xlane.f32.xlu0 %v1071
        %v1103 = vpop.xlane.xlu0 %1102
        %1104 = vadd.xlane.f32.xlu0 %v1073
        %v1105 = vpop.xlane.xlu0 %1104
        %1106 = vadd.xlane.f32.xlu0 %v1075
        %v1107 = vpop.xlane.xlu0 %1106
        %1108 = vadd.xlane.f32.xlu0 %v1077
        %v1109 = vpop.xlane.xlu0 %1108
        %1110 = vadd.xlane.f32.xlu0 %v1079
        %v1111 = vpop.xlane.xlu0 %1110
        %1112 = vadd.xlane.f32.xlu0 %v1081
        %v1113 = vpop.xlane.xlu0 %1112
        %v1114 = vrcp.pop %v1083
        %v1115 = vrcp.pop %v1085
        %v1116 = vrcp.pop %v1087
        %v1117 = vrcp.pop %v1089
        %v1118 = vrcp.pop %v1091
        %v1119 = vrcp.pop %v1093
        %v1120 = vrcp.pop %v1095
        %v1121 = vrcp.pop %v1097
        %v1122 = vrcp.pop %v1099
        %v1123 = vrcp.pop %v1101
        %v1124 = vrcp.pop %v1103
        %v1125 = vrcp.pop %v1105
        %v1126 = vrcp.pop %v1107
        %v1127 = vrcp.pop %v1109
        %v1128 = vrcp.pop %v1111
        %v1129 = vrcp.pop %v1113
        %v1130 = vmul.f32 %v1051, %v1114
        %v1131 = vmul.f32 %v1053, %v1115
        %v1132 = vmul.f32 %v1055, %v1116
        %v1133 = vmul.f32 %v1057, %v1117
        %v1134 = vmul.f32 %v1059, %v1118
        %v1135 = vmul.f32 %v1061, %v1119
        %v1136 = vmul.f32 %v1063, %v1120
        %v1137 = vmul.f32 %v1065, %v1121
        %v1138 = vmul.f32 %v1067, %v1122
        %v1139 = vmul.f32 %v1069, %v1123
        %v1140 = vmul.f32 %v1071, %v1124
        %v1141 = vmul.f32 %v1073, %v1125
        %v1142 = vmul.f32 %v1075, %v1126
        %v1143 = vmul.f32 %v1077, %v1127
        %v1144 = vmul.f32 %v1079, %v1128
        %v1145 = vmul.f32 %v1081, %v1129
        %1146 = vst [vmem:[%s331] sm:$0xff] %v1130
        %1147 = vst [vmem:[%s331 + $0x8] sm:$0xff] %v1131
        %1148 = vst [vmem:[%s331 + $0x10] sm:$0xff] %v1132
        %1149 = vst [vmem:[%s331 + $0x18] sm:$0xff] %v1133
        %1150 = vst [vmem:[%s331 + $0x20] sm:$0xff] %v1134
        %1151 = vst [vmem:[%s331 + $0x28] sm:$0xff] %v1135
        %1152 = vst [vmem:[%s331 + $0x30] sm:$0xff] %v1136
        %1153 = vst [vmem:[%s331 + $0x38] sm:$0xff] %v1137
        %1154 = vst [vmem:[%s331 + $0x40] sm:$0xff] %v1138
        %1155 = vst [vmem:[%s331 + $0x48] sm:$0xff] %v1139
        %1156 = vst [vmem:[%s331 + $0x50] sm:$0xff] %v1140
        %1157 = vst [vmem:[%s331 + $0x58] sm:$0xff] %v1141
        %1158 = vst [vmem:[%s331 + $0x60] sm:$0xff] %v1142
        %1159 = vst [vmem:[%s331 + $0x68] sm:$0xff] %v1143
        %1160 = vst [vmem:[%s331 + $0x70] sm:$0xff] %v1144
        %1161 = vst [vmem:[%s331 + $0x78] sm:$0xff] %v1145
        %v1162 = vpack.c.bf16 %v1131, %v1130
        %v1163 = vpack.c.bf16 %v1133, %v1132
        %v1164 = vpack.c.bf16 %v1135, %v1134
        %v1165 = vpack.c.bf16 %v1137, %v1136
        %v1166 = vpack.c.bf16 %v1139, %v1138
        %v1167 = vpack.c.bf16 %v1141, %v1140
        %v1168 = vpack.c.bf16 %v1143, %v1142
        %v1169 = vpack.c.bf16 %v1145, %v1144
        %1170 = vmatprep.subr.bf16.mxu0 0
        %1171 = vmatpush1.bf16.msra.mxu0 %v820
        %1172 = vmatprep.subr.bf16.mxu0 0
        %1173 = vmatpush1.bf16.msra.mxu0 %v821
        %1174 = vmatprep.subr.bf16.mxu0 0
        %1175 = vmatpush1.bf16.msra.mxu0 %v822
        %1176 = vmatprep.subr.bf16.mxu0 0
        %1177 = vmatpush1.bf16.msra.mxu0 %v823
        %1178 = vmatprep.subr.bf16.mxu0 0
        %1179 = vmatpush1.bf16.msra.mxu0 %v824
        %1180 = vmatprep.subr.bf16.mxu0 0
        %1181 = vmatpush1.bf16.msra.mxu0 %v825
        %1182 = vmatprep.subr.bf16.mxu0 0
        %1183 = vmatpush1.bf16.msra.mxu0 %v826
        %1184 = vmatprep.subr.bf16.mxu0 0
        %1185 = vmatpush1.bf16.msra.mxu0 %v827
        %1186 = vmatprep.subr.bf16.mxu0 0
        %1187 = vmatpush1.bf16.msra.mxu0 0
        %1188 = vmatprep.subr.bf16.mxu0 0
        %1189 = vmatpush1.bf16.msra.mxu0 0
        %1190 = vmatprep.subr.bf16.mxu0 0
        %1191 = vmatpush1.bf16.msra.mxu0 0
        %1192 = vmatprep.subr.bf16.mxu0 0
        %1193 = vmatpush1.bf16.msra.mxu0 0
        %1194 = vmatprep.subr.bf16.mxu0 0
        %1195 = vmatpush1.bf16.msra.mxu0 0
        %1196 = vmatprep.subr.bf16.mxu0 0
        %1197 = vmatpush1.bf16.msra.mxu0 0
        %1198 = vmatprep.subr.bf16.mxu0 0
        %1199 = vmatpush1.bf16.msra.mxu0 0
        %1200 = vmatprep.subr.bf16.mxu0 0
        %1201 = vmatpush1.bf16.msra.mxu0 0
        %1202 = vmatprep.mubr.bf16.mxu0 0
        %1203 = vmatmul.mubr.bf16.gmra.mrb[0].mxu0 %v1162
        %v1204 = vpop.f32.mrb[0].mxu0
        %v1205 = vadd.f32 0.0, %v1204
        %v1206 = vpop.f32.mrb[0].mxu0
        %v1207 = vpop.f32.mrb[0].mxu0
        %v1208 = vadd.f32 0.0, %v1207
        %v1209 = vpop.f32.mrb[0].mxu0
        %1210 = vmatprep.mubr.bf16.mxu0 0
        %1211 = vmatmul.mubr.bf16.gmra.mrb[0].mxu0 %v1163
        %v1212 = vpop.f32.mrb[0].mxu0
        %v1213 = vadd.f32 0.0, %v1212
        %v1214 = vpop.f32.mrb[0].mxu0
        %v1215 = vpop.f32.mrb[0].mxu0
        %v1216 = vadd.f32 0.0, %v1215
        %v1217 = vpop.f32.mrb[0].mxu0
        %1218 = vmatprep.mubr.bf16.mxu0 0
        %1219 = vmatmul.mubr.bf16.gmra.mrb[0].mxu0 %v1164
        %v1220 = vpop.f32.mrb[0].mxu0
        %v1221 = vadd.f32 0.0, %v1220
        %v1222 = vpop.f32.mrb[0].mxu0
        %v1223 = vpop.f32.mrb[0].mxu0
        %v1224 = vadd.f32 0.0, %v1223
        %v1225 = vpop.f32.mrb[0].mxu0
        %1226 = vmatprep.mubr.bf16.mxu0 0
        %1227 = vmatmul.mubr.bf16.gmra.mrb[0].mxu0 %v1165
        %v1228 = vpop.f32.mrb[0].mxu0
        %v1229 = vadd.f32 0.0, %v1228
        %v1230 = vpop.f32.mrb[0].mxu0
        %v1231 = vpop.f32.mrb[0].mxu0
        %v1232 = vadd.f32 0.0, %v1231
        %v1233 = vpop.f32.mrb[0].mxu0
        %1234 = vmatprep.mubr.bf16.mxu0 0
        %1235 = vmatmul.mubr.bf16.gmra.mrb[0].mxu0 %v1166
        %v1236 = vpop.f32.mrb[0].mxu0
        %v1237 = vadd.f32 0.0, %v1236
        %v1238 = vpop.f32.mrb[0].mxu0
        %v1239 = vpop.f32.mrb[0].mxu0
        %v1240 = vadd.f32 0.0, %v1239
        %v1241 = vpop.f32.mrb[0].mxu0
        %1242 = vmatprep.mubr.bf16.mxu0 0
        %1243 = vmatmul.mubr.bf16.gmra.mrb[0].mxu0 %v1167
        %v1244 = vpop.f32.mrb[0].mxu0
        %v1245 = vadd.f32 0.0, %v1244
        %v1246 = vpop.f32.mrb[0].mxu0
        %v1247 = vpop.f32.mrb[0].mxu0
        %v1248 = vadd.f32 0.0, %v1247
        %v1249 = vpop.f32.mrb[0].mxu0
        %1250 = vmatprep.mubr.bf16.mxu0 0
        %1251 = vmatmul.mubr.bf16.gmra.mrb[0].mxu0 %v1168
        %v1252 = vpop.f32.mrb[0].mxu0
        %v1253 = vadd.f32 0.0, %v1252
        %v1254 = vpop.f32.mrb[0].mxu0
        %v1255 = vpop.f32.mrb[0].mxu0
        %v1256 = vadd.f32 0.0, %v1255
        %v1257 = vpop.f32.mrb[0].mxu0
        %1258 = vmatprep.mubr.bf16.mxu0 0
        %1259 = vmatmul.mubr.bf16.gmra.mrb[0].mxu0 %v1169
        %v1260 = vpop.f32.mrb[0].mxu0
        %v1261 = vadd.f32 0.0, %v1260
        %v1262 = vpop.f32.mrb[0].mxu0
        %v1263 = vpop.f32.mrb[0].mxu0
        %v1264 = vadd.f32 0.0, %v1263
        %v1265 = vpop.f32.mrb[0].mxu0
        %1266 = vdwg.mxu0
        %1275 = vrot.lane.b32.xlu0 %v574, 124
        %v1276 = vpop.permute.xlu0 %1275
        %1277 = vrot.lane.b32.xlu0 %v575, 124
        %v1278 = vpop.permute.xlu0 %1277
        %1279 = vrot.lane.b32.xlu0 %v576, 124
        %v1280 = vpop.permute.xlu0 %1279
        %1281 = vrot.lane.b32.xlu0 %v577, 124
        %v1282 = vpop.permute.xlu0 %1281
        %1283 = vrot.lane.b32.xlu0 %v578, 124
        %v1284 = vpop.permute.xlu0 %1283
        %1285 = vrot.lane.b32.xlu0 %v579, 124
        %v1286 = vpop.permute.xlu0 %1285
        %1287 = vrot.lane.b32.xlu0 %v580, 124
        %v1288 = vpop.permute.xlu0 %1287
        %1289 = vrot.lane.b32.xlu0 %v581, 124
        %v1290 = vpop.permute.xlu0 %1289
        %1299 = vrot.lane.b32.xlu0 %v697, 124
        %v1300 = vpop.permute.xlu0 %1299
        %1301 = vrot.lane.b32.xlu0 %v698, 124
        %v1302 = vpop.permute.xlu0 %1301
        %1303 = vrot.lane.b32.xlu0 %v699, 124
        %v1304 = vpop.permute.xlu0 %1303
        %1305 = vrot.lane.b32.xlu0 %v700, 124
        %v1306 = vpop.permute.xlu0 %1305
        %1307 = vrot.lane.b32.xlu0 %v701, 124
        %v1308 = vpop.permute.xlu0 %1307
        %1309 = vrot.lane.b32.xlu0 %v702, 124
        %v1310 = vpop.permute.xlu0 %1309
        %1311 = vrot.lane.b32.xlu0 %v703, 124
        %v1312 = vpop.permute.xlu0 %1311
        %1313 = vrot.lane.b32.xlu0 %v704, 124
        %v1314 = vpop.permute.xlu0 %1313
        %v1316 = vsel %vm834, %v1276, 0
        %v1319 = vsel %vm834, %v1278, 0
        %v1322 = vsel %vm834, %v1280, 0
        %v1325 = vsel %vm834, %v1282, 0
        %v1328 = vsel %vm834, %v1284, 0
        %v1331 = vsel %vm834, %v1286, 0
        %v1334 = vsel %vm834, %v1288, 0
        %v1337 = vsel %vm834, %v1290, 0
        %v1340 = vsel %vm834, %v1300, 0
        %v1343 = vsel %vm834, %v1302, 0
        %v1346 = vsel %vm834, %v1304, 0
        %v1349 = vsel %vm834, %v1306, 0
        %v1352 = vsel %vm834, %v1308, 0
        %v1355 = vsel %vm834, %v1310, 0
        %v1358 = vsel %vm834, %v1312, 0
        %v1361 = vsel %vm834, %v1314, 0
        %1363 = vmatprep.subr.bf16.mxu0 0
        %1364 = vmatpush1.bf16.xpose.msra.mxu0 %v1340
        %1365 = vmatprep.subr.bf16.mxu0 0
        %1366 = vmatpush1.bf16.xpose.msra.mxu0 %v1343
        %1367 = vmatprep.subr.bf16.mxu0 0
        %1368 = vmatpush1.bf16.xpose.msra.mxu0 %v1346
        %1369 = vmatprep.subr.bf16.mxu0 0
        %1370 = vmatpush1.bf16.xpose.msra.mxu0 %v1349
        %1371 = vmatprep.subr.bf16.mxu0 0
        %1372 = vmatpush1.bf16.xpose.msra.mxu0 %v1352
        %1373 = vmatprep.subr.bf16.mxu0 0
        %1374 = vmatpush1.bf16.xpose.msra.mxu0 %v1355
        %1375 = vmatprep.subr.bf16.mxu0 0
        %1376 = vmatpush1.bf16.xpose.msra.mxu0 %v1358
        %1377 = vmatprep.subr.bf16.mxu0 0
        %1378 = vmatpush1.bf16.xpose.msra.mxu0 %v1361
        %1379 = vmatprep.subr.bf16.mxu0 0
        %1380 = vmatpush1.bf16.xpose.msra.mxu0 0
        %1381 = vmatprep.subr.bf16.mxu0 0
        %1382 = vmatpush1.bf16.xpose.msra.mxu0 0
        %1383 = vmatprep.subr.bf16.mxu0 0
        %1384 = vmatpush1.bf16.xpose.msra.mxu0 0
        %1385 = vmatprep.subr.bf16.mxu0 0
        %1386 = vmatpush1.bf16.xpose.msra.mxu0 0
        %1387 = vmatprep.subr.bf16.mxu0 0
        %1388 = vmatpush1.bf16.xpose.msra.mxu0 0
        %1389 = vmatprep.subr.bf16.mxu0 0
        %1390 = vmatpush1.bf16.xpose.msra.mxu0 0
        %1391 = vmatprep.subr.bf16.mxu0 0
        %1392 = vmatpush1.bf16.xpose.msra.mxu0 0
        %1393 = vmatprep.subr.bf16.mxu0 0
        %1394 = vmatpush1.bf16.xpose.msra.mxu0 0
        %1395 = vmatprep.mubr.bf16.mxu0 0
        %1396 = vmatmul.mubr.bf16.gmra.mrb[0].mxu0 %v1316
        %v1397 = vpop.f32.mrb[0].mxu0
        %v1398 = vadd.f32 0.0, %v1397
        %v1399 = vpop.f32.mrb[0].mxu0
        %v1400 = vpop.f32.mrb[0].mxu0
        %v1401 = vadd.f32 0.0, %v1400
        %v1402 = vpop.f32.mrb[0].mxu0
        %1403 = vmatprep.mubr.bf16.mxu0 0
        %1404 = vmatmul.mubr.bf16.gmra.mrb[0].mxu0 %v1319
        %v1405 = vpop.f32.mrb[0].mxu0
        %v1406 = vadd.f32 0.0, %v1405
        %v1407 = vpop.f32.mrb[0].mxu0
        %v1408 = vpop.f32.mrb[0].mxu0
        %v1409 = vadd.f32 0.0, %v1408
        %v1410 = vpop.f32.mrb[0].mxu0
        %1411 = vmatprep.mubr.bf16.mxu0 0
        %1412 = vmatmul.mubr.bf16.gmra.mrb[0].mxu0 %v1322
        %v1413 = vpop.f32.mrb[0].mxu0
        %v1414 = vadd.f32 0.0, %v1413
        %v1415 = vpop.f32.mrb[0].mxu0
        %v1416 = vpop.f32.mrb[0].mxu0
        %v1417 = vadd.f32 0.0, %v1416
        %v1418 = vpop.f32.mrb[0].mxu0
        %1419 = vmatprep.mubr.bf16.mxu0 0
        %1420 = vmatmul.mubr.bf16.gmra.mrb[0].mxu0 %v1325
        %v1421 = vpop.f32.mrb[0].mxu0
        %v1422 = vadd.f32 0.0, %v1421
        %v1423 = vpop.f32.mrb[0].mxu0
        %v1424 = vpop.f32.mrb[0].mxu0
        %v1425 = vadd.f32 0.0, %v1424
        %v1426 = vpop.f32.mrb[0].mxu0
        %1427 = vmatprep.mubr.bf16.mxu0 0
        %1428 = vmatmul.mubr.bf16.gmra.mrb[0].mxu0 %v1328
        %v1429 = vpop.f32.mrb[0].mxu0
        %v1430 = vadd.f32 0.0, %v1429
        %v1431 = vpop.f32.mrb[0].mxu0
        %v1432 = vpop.f32.mrb[0].mxu0
        %v1433 = vadd.f32 0.0, %v1432
        %v1434 = vpop.f32.mrb[0].mxu0
        %1435 = vmatprep.mubr.bf16.mxu0 0
        %1436 = vmatmul.mubr.bf16.gmra.mrb[0].mxu0 %v1331
        %v1437 = vpop.f32.mrb[0].mxu0
        %v1438 = vadd.f32 0.0, %v1437
        %v1439 = vpop.f32.mrb[0].mxu0
        %v1440 = vpop.f32.mrb[0].mxu0
        %v1441 = vadd.f32 0.0, %v1440
        %v1442 = vpop.f32.mrb[0].mxu0
        %1443 = vmatprep.mubr.bf16.mxu0 0
        %1444 = vmatmul.mubr.bf16.gmra.mrb[0].mxu0 %v1334
        %v1445 = vpop.f32.mrb[0].mxu0
        %v1446 = vadd.f32 0.0, %v1445
        %v1447 = vpop.f32.mrb[0].mxu0
        %v1448 = vpop.f32.mrb[0].mxu0
        %v1449 = vadd.f32 0.0, %v1448
        %v1450 = vpop.f32.mrb[0].mxu0
        %1451 = vmatprep.mubr.bf16.mxu0 0
        %1452 = vmatmul.mubr.bf16.gmra.mrb[0].mxu0 %v1337
        %v1453 = vpop.f32.mrb[0].mxu0
        %v1454 = vadd.f32 0.0, %v1453
        %v1455 = vpop.f32.mrb[0].mxu0
        %v1456 = vpop.f32.mrb[0].mxu0
        %v1457 = vadd.f32 0.0, %v1456
        %v1458 = vpop.f32.mrb[0].mxu0
        %1459 = vdwg.mxu0
        %v1460 = vsub.f32 %v1398, %v984
        %v1461 = vsub.f32 %v1401, %v984
        %v1462 = vsub.f32 %v1406, %v984
        %v1463 = vsub.f32 %v1409, %v984
        %v1464 = vsub.f32 %v1414, %v984
        %v1465 = vsub.f32 %v1417, %v984
        %v1466 = vsub.f32 %v1422, %v984
        %v1467 = vsub.f32 %v1425, %v984
        %v1468 = vsub.f32 %v1430, %v984
        %v1469 = vsub.f32 %v1433, %v984
        %v1470 = vsub.f32 %v1438, %v984
        %v1471 = vsub.f32 %v1441, %v984
        %v1472 = vsub.f32 %v1446, %v984
        %v1473 = vsub.f32 %v1449, %v984
        %v1474 = vsub.f32 %v1454, %v984
        %v1475 = vsub.f32 %v1457, %v984
        %1476 = vmax.xlane.f32.xlu0 %v1460
        %v1477 = vpop.xlane.xlu0 %1476
        %1478 = vmax.xlane.f32.xlu0 %v1461
        %v1479 = vpop.xlane.xlu0 %1478
        %1480 = vmax.xlane.f32.xlu0 %v1462
        %v1481 = vpop.xlane.xlu0 %1480
        %1482 = vmax.xlane.f32.xlu0 %v1463
        %v1483 = vpop.xlane.xlu0 %1482
        %1484 = vmax.xlane.f32.xlu0 %v1464
        %v1485 = vpop.xlane.xlu0 %1484
        %1486 = vmax.xlane.f32.xlu0 %v1465
        %v1487 = vpop.xlane.xlu0 %1486
        %1488 = vmax.xlane.f32.xlu0 %v1466
        %v1489 = vpop.xlane.xlu0 %1488
        %1490 = vmax.xlane.f32.xlu0 %v1467
        %v1491 = vpop.xlane.xlu0 %1490
        %1492 = vmax.xlane.f32.xlu0 %v1468
        %v1493 = vpop.xlane.xlu0 %1492
        %1494 = vmax.xlane.f32.xlu0 %v1469
        %v1495 = vpop.xlane.xlu0 %1494
        %1496 = vmax.xlane.f32.xlu0 %v1470
        %v1497 = vpop.xlane.xlu0 %1496
        %1498 = vmax.xlane.f32.xlu0 %v1471
        %v1499 = vpop.xlane.xlu0 %1498
        %1500 = vmax.xlane.f32.xlu0 %v1472
        %v1501 = vpop.xlane.xlu0 %1500
        %1502 = vmax.xlane.f32.xlu0 %v1473
        %v1503 = vpop.xlane.xlu0 %1502
        %1504 = vmax.xlane.f32.xlu0 %v1474
        %v1505 = vpop.xlane.xlu0 %1504
        %1506 = vmax.xlane.f32.xlu0 %v1475
        %v1507 = vpop.xlane.xlu0 %1506
        %v1508 = vsub.f32 %v1460, %v1477
        %v1509 = vsub.f32 %v1461, %v1479
        %v1510 = vsub.f32 %v1462, %v1481
        %v1511 = vsub.f32 %v1463, %v1483
        %v1512 = vsub.f32 %v1464, %v1485
        %v1513 = vsub.f32 %v1465, %v1487
        %v1514 = vsub.f32 %v1466, %v1489
        %v1515 = vsub.f32 %v1467, %v1491
        %v1516 = vsub.f32 %v1468, %v1493
        %v1517 = vsub.f32 %v1469, %v1495
        %v1518 = vsub.f32 %v1470, %v1497
        %v1519 = vsub.f32 %v1471, %v1499
        %v1520 = vsub.f32 %v1472, %v1501
        %v1521 = vsub.f32 %v1473, %v1503
        %v1522 = vsub.f32 %v1474, %v1505
        %v1523 = vsub.f32 %v1475, %v1507
        %v1524 = vmul.f32 %v1508, 1.442695
        %v1525 = vpow.pop %v1524
        %v1526 = vmul.f32 %v1509, 1.442695
        %v1527 = vpow.pop %v1526
        %v1528 = vmul.f32 %v1510, 1.442695
        %v1529 = vpow.pop %v1528
        %v1530 = vmul.f32 %v1511, 1.442695
        %v1531 = vpow.pop %v1530
        %v1532 = vmul.f32 %v1512, 1.442695
        %v1533 = vpow.pop %v1532
        %v1534 = vmul.f32 %v1513, 1.442695
        %v1535 = vpow.pop %v1534
        %v1536 = vmul.f32 %v1514, 1.442695
        %v1537 = vpow.pop %v1536
        %v1538 = vmul.f32 %v1515, 1.442695
        %v1539 = vpow.pop %v1538
        %v1540 = vmul.f32 %v1516, 1.442695
        %v1541 = vpow.pop %v1540
        %v1542 = vmul.f32 %v1517, 1.442695
        %v1543 = vpow.pop %v1542
        %v1544 = vmul.f32 %v1518, 1.442695
        %v1545 = vpow.pop %v1544
        %v1546 = vmul.f32 %v1519, 1.442695
        %v1547 = vpow.pop %v1546
        %v1548 = vmul.f32 %v1520, 1.442695
        %v1549 = vpow.pop %v1548
        %v1550 = vmul.f32 %v1521, 1.442695
        %v1551 = vpow.pop %v1550
        %v1552 = vmul.f32 %v1522, 1.442695
        %v1553 = vpow.pop %v1552
        %v1554 = vmul.f32 %v1523, 1.442695
        %v1555 = vpow.pop %v1554
        %1556 = vadd.xlane.f32.xlu0 %v1525
        %v1557 = vpop.xlane.xlu0 %1556
        %1558 = vadd.xlane.f32.xlu0 %v1527
        %v1559 = vpop.xlane.xlu0 %1558
        %1560 = vadd.xlane.f32.xlu0 %v1529
        %v1561 = vpop.xlane.xlu0 %1560
        %1562 = vadd.xlane.f32.xlu0 %v1531
        %v1563 = vpop.xlane.xlu0 %1562
        %1564 = vadd.xlane.f32.xlu0 %v1533
        %v1565 = vpop.xlane.xlu0 %1564
        %1566 = vadd.xlane.f32.xlu0 %v1535
        %v1567 = vpop.xlane.xlu0 %1566
        %1568 = vadd.xlane.f32.xlu0 %v1537
        %v1569 = vpop.xlane.xlu0 %1568
        %1570 = vadd.xlane.f32.xlu0 %v1539
        %v1571 = vpop.xlane.xlu0 %1570
        %1572 = vadd.xlane.f32.xlu0 %v1541
        %v1573 = vpop.xlane.xlu0 %1572
        %1574 = vadd.xlane.f32.xlu0 %v1543
        %v1575 = vpop.xlane.xlu0 %1574
        %1576 = vadd.xlane.f32.xlu0 %v1545
        %v1577 = vpop.xlane.xlu0 %1576
        %1578 = vadd.xlane.f32.xlu0 %v1547
        %v1579 = vpop.xlane.xlu0 %1578
        %1580 = vadd.xlane.f32.xlu0 %v1549
        %v1581 = vpop.xlane.xlu0 %1580
        %1582 = vadd.xlane.f32.xlu0 %v1551
        %v1583 = vpop.xlane.xlu0 %1582
        %1584 = vadd.xlane.f32.xlu0 %v1553
        %v1585 = vpop.xlane.xlu0 %1584
        %1586 = vadd.xlane.f32.xlu0 %v1555
        %v1587 = vpop.xlane.xlu0 %1586
        %v1588 = vrcp.pop %v1557
        %v1589 = vrcp.pop %v1559
        %v1590 = vrcp.pop %v1561
        %v1591 = vrcp.pop %v1563
        %v1592 = vrcp.pop %v1565
        %v1593 = vrcp.pop %v1567
        %v1594 = vrcp.pop %v1569
        %v1595 = vrcp.pop %v1571
        %v1596 = vrcp.pop %v1573
        %v1597 = vrcp.pop %v1575
        %v1598 = vrcp.pop %v1577
        %v1599 = vrcp.pop %v1579
        %v1600 = vrcp.pop %v1581
        %v1601 = vrcp.pop %v1583
        %v1602 = vrcp.pop %v1585
        %v1603 = vrcp.pop %v1587
        %v1604 = vmul.f32 %v1525, %v1588
        %v1605 = vmul.f32 %v1527, %v1589
        %v1606 = vmul.f32 %v1529, %v1590
        %v1607 = vmul.f32 %v1531, %v1591
        %v1608 = vmul.f32 %v1533, %v1592
        %v1609 = vmul.f32 %v1535, %v1593
        %v1610 = vmul.f32 %v1537, %v1594
        %v1611 = vmul.f32 %v1539, %v1595
        %v1612 = vmul.f32 %v1541, %v1596
        %v1613 = vmul.f32 %v1543, %v1597
        %v1614 = vmul.f32 %v1545, %v1598
        %v1615 = vmul.f32 %v1547, %v1599
        %v1616 = vmul.f32 %v1549, %v1600
        %v1617 = vmul.f32 %v1551, %v1601
        %v1618 = vmul.f32 %v1553, %v1602
        %v1619 = vmul.f32 %v1555, %v1603
        %s1620 = scalar_lea.vmem %s331, 128 [#allocation2]
        %1621 = vst [vmem:[%s1620] sm:$0xff] %v1604
        %1622 = vst [vmem:[%s1620 + $0x8] sm:$0xff] %v1605
        %1623 = vst [vmem:[%s1620 + $0x10] sm:$0xff] %v1606
        %1624 = vst [vmem:[%s1620 + $0x18] sm:$0xff] %v1607
        %1625 = vst [vmem:[%s1620 + $0x20] sm:$0xff] %v1608
        %1626 = vst [vmem:[%s1620 + $0x28] sm:$0xff] %v1609
        %1627 = vst [vmem:[%s1620 + $0x30] sm:$0xff] %v1610
        %1628 = vst [vmem:[%s1620 + $0x38] sm:$0xff] %v1611
        %1629 = vst [vmem:[%s1620 + $0x40] sm:$0xff] %v1612
        %1630 = vst [vmem:[%s1620 + $0x48] sm:$0xff] %v1613
        %1631 = vst [vmem:[%s1620 + $0x50] sm:$0xff] %v1614
        %1632 = vst [vmem:[%s1620 + $0x58] sm:$0xff] %v1615
        %1633 = vst [vmem:[%s1620 + $0x60] sm:$0xff] %v1616
        %1634 = vst [vmem:[%s1620 + $0x68] sm:$0xff] %v1617
        %1635 = vst [vmem:[%s1620 + $0x70] sm:$0xff] %v1618
        %1636 = vst [vmem:[%s1620 + $0x78] sm:$0xff] %v1619
        %v1637 = vpack.c.bf16 %v1605, %v1604
        %v1638 = vpack.c.bf16 %v1607, %v1606
        %v1639 = vpack.c.bf16 %v1609, %v1608
        %v1640 = vpack.c.bf16 %v1611, %v1610
        %v1641 = vpack.c.bf16 %v1613, %v1612
        %v1642 = vpack.c.bf16 %v1615, %v1614
        %v1643 = vpack.c.bf16 %v1617, %v1616
        %v1644 = vpack.c.bf16 %v1619, %v1618
        %1653 = vrot.lane.b32.xlu0 %v820, 124
        %v1654 = vpop.permute.xlu0 %1653
        %1655 = vrot.lane.b32.xlu0 %v821, 124
        %v1656 = vpop.permute.xlu0 %1655
        %1657 = vrot.lane.b32.xlu0 %v822, 124
        %v1658 = vpop.permute.xlu0 %1657
        %1659 = vrot.lane.b32.xlu0 %v823, 124
        %v1660 = vpop.permute.xlu0 %1659
        %1661 = vrot.lane.b32.xlu0 %v824, 124
        %v1662 = vpop.permute.xlu0 %1661
        %1663 = vrot.lane.b32.xlu0 %v825, 124
        %v1664 = vpop.permute.xlu0 %1663
        %1665 = vrot.lane.b32.xlu0 %v826, 124
        %v1666 = vpop.permute.xlu0 %1665
        %1667 = vrot.lane.b32.xlu0 %v827, 124
        %v1668 = vpop.permute.xlu0 %1667
        %1677 = vmatprep.subr.bf16.mxu0 0
        %1678 = vmatpush1.bf16.msra.mxu0 %v1654
        %1679 = vmatprep.subr.bf16.mxu0 0
        %1680 = vmatpush1.bf16.msra.mxu0 %v1656
        %1681 = vmatprep.subr.bf16.mxu0 0
        %1682 = vmatpush1.bf16.msra.mxu0 %v1658
        %1683 = vmatprep.subr.bf16.mxu0 0
        %1684 = vmatpush1.bf16.msra.mxu0 %v1660
        %1685 = vmatprep.subr.bf16.mxu0 0
        %1686 = vmatpush1.bf16.msra.mxu0 %v1662
        %1687 = vmatprep.subr.bf16.mxu0 0
        %1688 = vmatpush1.bf16.msra.mxu0 %v1664
        %1689 = vmatprep.subr.bf16.mxu0 0
        %1690 = vmatpush1.bf16.msra.mxu0 %v1666
        %1691 = vmatprep.subr.bf16.mxu0 0
        %1692 = vmatpush1.bf16.msra.mxu0 %v1668
        %1693 = vmatprep.subr.bf16.mxu0 0
        %1694 = vmatpush1.bf16.msra.mxu0 0
        %1695 = vmatprep.subr.bf16.mxu0 0
        %1696 = vmatpush1.bf16.msra.mxu0 0
        %1697 = vmatprep.subr.bf16.mxu0 0
        %1698 = vmatpush1.bf16.msra.mxu0 0
        %1699 = vmatprep.subr.bf16.mxu0 0
        %1700 = vmatpush1.bf16.msra.mxu0 0
        %1701 = vmatprep.subr.bf16.mxu0 0
        %1702 = vmatpush1.bf16.msra.mxu0 0
        %1703 = vmatprep.subr.bf16.mxu0 0
        %1704 = vmatpush1.bf16.msra.mxu0 0
        %1705 = vmatprep.subr.bf16.mxu0 0
        %1706 = vmatpush1.bf16.msra.mxu0 0
        %1707 = vmatprep.subr.bf16.mxu0 0
        %1708 = vmatpush1.bf16.msra.mxu0 0
        %1709 = vmatprep.mubr.bf16.mxu0 0
        %1710 = vmatmul.mubr.bf16.gmra.mrb[0].mxu0 %v1637
        %v1711 = vpop.f32.mrb[0].mxu0
        %v1712 = vadd.f32 0.0, %v1711
        %v1713 = vpop.f32.mrb[0].mxu0
        %v1714 = vpop.f32.mrb[0].mxu0
        %v1715 = vadd.f32 0.0, %v1714
        %v1716 = vpop.f32.mrb[0].mxu0
        %1717 = vmatprep.mubr.bf16.mxu0 0
        %1718 = vmatmul.mubr.bf16.gmra.mrb[0].mxu0 %v1638
        %v1719 = vpop.f32.mrb[0].mxu0
        %v1720 = vadd.f32 0.0, %v1719
        %v1721 = vpop.f32.mrb[0].mxu0
        %v1722 = vpop.f32.mrb[0].mxu0
        %v1723 = vadd.f32 0.0, %v1722
        %v1724 = vpop.f32.mrb[0].mxu0
        %1725 = vmatprep.mubr.bf16.mxu0 0
        %1726 = vmatmul.mubr.bf16.gmra.mrb[0].mxu0 %v1639
        %v1727 = vpop.f32.mrb[0].mxu0
        %v1728 = vadd.f32 0.0, %v1727
        %v1729 = vpop.f32.mrb[0].mxu0
        %v1730 = vpop.f32.mrb[0].mxu0
        %v1731 = vadd.f32 0.0, %v1730
        %v1732 = vpop.f32.mrb[0].mxu0
        %1733 = vmatprep.mubr.bf16.mxu0 0
        %1734 = vmatmul.mubr.bf16.gmra.mrb[0].mxu0 %v1640
        %v1735 = vpop.f32.mrb[0].mxu0
        %v1736 = vadd.f32 0.0, %v1735
        %v1737 = vpop.f32.mrb[0].mxu0
        %v1738 = vpop.f32.mrb[0].mxu0
        %v1739 = vadd.f32 0.0, %v1738
        %v1740 = vpop.f32.mrb[0].mxu0
        %1741 = vmatprep.mubr.bf16.mxu0 0
        %1742 = vmatmul.mubr.bf16.gmra.mrb[0].mxu0 %v1641
        %v1743 = vpop.f32.mrb[0].mxu0
        %v1744 = vadd.f32 0.0, %v1743
        %v1745 = vpop.f32.mrb[0].mxu0
        %v1746 = vpop.f32.mrb[0].mxu0
        %v1747 = vadd.f32 0.0, %v1746
        %v1748 = vpop.f32.mrb[0].mxu0
        %1749 = vmatprep.mubr.bf16.mxu0 0
        %1750 = vmatmul.mubr.bf16.gmra.mrb[0].mxu0 %v1642
        %v1751 = vpop.f32.mrb[0].mxu0
        %v1752 = vadd.f32 0.0, %v1751
        %v1753 = vpop.f32.mrb[0].mxu0
        %v1754 = vpop.f32.mrb[0].mxu0
        %v1755 = vadd.f32 0.0, %v1754
        %v1756 = vpop.f32.mrb[0].mxu0
        %1757 = vmatprep.mubr.bf16.mxu0 0
        %1758 = vmatmul.mubr.bf16.gmra.mrb[0].mxu0 %v1643
        %v1759 = vpop.f32.mrb[0].mxu0
        %v1760 = vadd.f32 0.0, %v1759
        %v1761 = vpop.f32.mrb[0].mxu0
        %v1762 = vpop.f32.mrb[0].mxu0
        %v1763 = vadd.f32 0.0, %v1762
        %v1764 = vpop.f32.mrb[0].mxu0
        %1765 = vmatprep.mubr.bf16.mxu0 0
        %1766 = vmatmul.mubr.bf16.gmra.mrb[0].mxu0 %v1644
        %v1767 = vpop.f32.mrb[0].mxu0
        %v1768 = vadd.f32 0.0, %v1767
        %v1769 = vpop.f32.mrb[0].mxu0
        %v1770 = vpop.f32.mrb[0].mxu0
        %v1771 = vadd.f32 0.0, %v1770
        %v1772 = vpop.f32.mrb[0].mxu0
        %1773 = vdwg.mxu0
        %1774 = vrot.lane.b32.xlu0 %v574, 120
        %v1775 = vpop.permute.xlu0 %1774
        %1776 = vrot.lane.b32.xlu0 %v575, 120
        %v1777 = vpop.permute.xlu0 %1776
        %1778 = vrot.lane.b32.xlu0 %v576, 120
        %v1779 = vpop.permute.xlu0 %1778
        %1780 = vrot.lane.b32.xlu0 %v577, 120
        %v1781 = vpop.permute.xlu0 %1780
        %1782 = vrot.lane.b32.xlu0 %v578, 120
        %v1783 = vpop.permute.xlu0 %1782
        %1784 = vrot.lane.b32.xlu0 %v579, 120
        %v1785 = vpop.permute.xlu0 %1784
        %1786 = vrot.lane.b32.xlu0 %v580, 120
        %v1787 = vpop.permute.xlu0 %1786
        %1788 = vrot.lane.b32.xlu0 %v581, 120
        %v1789 = vpop.permute.xlu0 %1788
        %1790 = vrot.lane.b32.xlu0 %v697, 120
        %v1791 = vpop.permute.xlu0 %1790
        %1792 = vrot.lane.b32.xlu0 %v698, 120
        %v1793 = vpop.permute.xlu0 %1792
        %1794 = vrot.lane.b32.xlu0 %v699, 120
        %v1795 = vpop.permute.xlu0 %1794
        %1796 = vrot.lane.b32.xlu0 %v700, 120
        %v1797 = vpop.permute.xlu0 %1796
        %1798 = vrot.lane.b32.xlu0 %v701, 120
        %v1799 = vpop.permute.xlu0 %1798
        %1800 = vrot.lane.b32.xlu0 %v702, 120
        %v1801 = vpop.permute.xlu0 %1800
        %1802 = vrot.lane.b32.xlu0 %v703, 120
        %v1803 = vpop.permute.xlu0 %1802
        %1804 = vrot.lane.b32.xlu0 %v704, 120
        %v1805 = vpop.permute.xlu0 %1804
        %v1807 = vsel %vm834, %v1775, 0
        %v1810 = vsel %vm834, %v1777, 0
        %v1813 = vsel %vm834, %v1779, 0
        %v1816 = vsel %vm834, %v1781, 0
        %v1819 = vsel %vm834, %v1783, 0
        %v1822 = vsel %vm834, %v1785, 0
        %v1825 = vsel %vm834, %v1787, 0
        %v1828 = vsel %vm834, %v1789, 0
        %v1831 = vsel %vm834, %v1791, 0
        %v1834 = vsel %vm834, %v1793, 0
        %v1837 = vsel %vm834, %v1795, 0
        %v1840 = vsel %vm834, %v1797, 0
        %v1843 = vsel %vm834, %v1799, 0
        %v1846 = vsel %vm834, %v1801, 0
        %v1849 = vsel %vm834, %v1803, 0
        %v1852 = vsel %vm834, %v1805, 0
        %1854 = vmatprep.subr.bf16.mxu0 0
        %1855 = vmatpush1.bf16.xpose.msra.mxu0 %v1831
        %1856 = vmatprep.subr.bf16.mxu0 0
        %1857 = vmatpush1.bf16.xpose.msra.mxu0 %v1834
        %1858 = vmatprep.subr.bf16.mxu0 0
        %1859 = vmatpush1.bf16.xpose.msra.mxu0 %v1837
        %1860 = vmatprep.subr.bf16.mxu0 0
        %1861 = vmatpush1.bf16.xpose.msra.mxu0 %v1840
        %1862 = vmatprep.subr.bf16.mxu0 0
        %1863 = vmatpush1.bf16.xpose.msra.mxu0 %v1843
        %1864 = vmatprep.subr.bf16.mxu0 0
        %1865 = vmatpush1.bf16.xpose.msra.mxu0 %v1846
        %1866 = vmatprep.subr.bf16.mxu0 0
        %1867 = vmatpush1.bf16.xpose.msra.mxu0 %v1849
        %1868 = vmatprep.subr.bf16.mxu0 0
        %1869 = vmatpush1.bf16.xpose.msra.mxu0 %v1852
        %1870 = vmatprep.subr.bf16.mxu0 0
        %1871 = vmatpush1.bf16.xpose.msra.mxu0 0
        %1872 = vmatprep.subr.bf16.mxu0 0
        %1873 = vmatpush1.bf16.xpose.msra.mxu0 0
        %1874 = vmatprep.subr.bf16.mxu0 0
        %1875 = vmatpush1.bf16.xpose.msra.mxu0 0
        %1876 = vmatprep.subr.bf16.mxu0 0
        %1877 = vmatpush1.bf16.xpose.msra.mxu0 0
        %1878 = vmatprep.subr.bf16.mxu0 0
        %1879 = vmatpush1.bf16.xpose.msra.mxu0 0
        %1880 = vmatprep.subr.bf16.mxu0 0
        %1881 = vmatpush1.bf16.xpose.msra.mxu0 0
        %1882 = vmatprep.subr.bf16.mxu0 0
        %1883 = vmatpush1.bf16.xpose.msra.mxu0 0
        %1884 = vmatprep.subr.bf16.mxu0 0
        %1885 = vmatpush1.bf16.xpose.msra.mxu0 0
        %1886 = vmatprep.mubr.bf16.mxu0 0
        %1887 = vmatmul.mubr.bf16.gmra.mrb[0].mxu0 %v1807
        %v1888 = vpop.f32.mrb[0].mxu0
        %v1889 = vadd.f32 0.0, %v1888
        %v1890 = vpop.f32.mrb[0].mxu0
        %v1891 = vpop.f32.mrb[0].mxu0
        %v1892 = vadd.f32 0.0, %v1891
        %v1893 = vpop.f32.mrb[0].mxu0
        %1894 = vmatprep.mubr.bf16.mxu0 0
        %1895 = vmatmul.mubr.bf16.gmra.mrb[0].mxu0 %v1810
        %v1896 = vpop.f32.mrb[0].mxu0
        %v1897 = vadd.f32 0.0, %v1896
        %v1898 = vpop.f32.mrb[0].mxu0
        %v1899 = vpop.f32.mrb[0].mxu0
        %v1900 = vadd.f32 0.0, %v1899
        %v1901 = vpop.f32.mrb[0].mxu0
        %1902 = vmatprep.mubr.bf16.mxu0 0
        %1903 = vmatmul.mubr.bf16.gmra.mrb[0].mxu0 %v1813
        %v1904 = vpop.f32.mrb[0].mxu0
        %v1905 = vadd.f32 0.0, %v1904
        %v1906 = vpop.f32.mrb[0].mxu0
        %v1907 = vpop.f32.mrb[0].mxu0
        %v1908 = vadd.f32 0.0, %v1907
        %v1909 = vpop.f32.mrb[0].mxu0
        %1910 = vmatprep.mubr.bf16.mxu0 0
        %1911 = vmatmul.mubr.bf16.gmra.mrb[0].mxu0 %v1816
        %v1912 = vpop.f32.mrb[0].mxu0
        %v1913 = vadd.f32 0.0, %v1912
        %v1914 = vpop.f32.mrb[0].mxu0
        %v1915 = vpop.f32.mrb[0].mxu0
        %v1916 = vadd.f32 0.0, %v1915
        %v1917 = vpop.f32.mrb[0].mxu0
        %1918 = vmatprep.mubr.bf16.mxu0 0
        %1919 = vmatmul.mubr.bf16.gmra.mrb[0].mxu0 %v1819
        %v1920 = vpop.f32.mrb[0].mxu0
        %v1921 = vadd.f32 0.0, %v1920
        %v1922 = vpop.f32.mrb[0].mxu0
        %v1923 = vpop.f32.mrb[0].mxu0
        %v1924 = vadd.f32 0.0, %v1923
        %v1925 = vpop.f32.mrb[0].mxu0
        %1926 = vmatprep.mubr.bf16.mxu0 0
        %1927 = vmatmul.mubr.bf16.gmra.mrb[0].mxu0 %v1822
        %v1928 = vpop.f32.mrb[0].mxu0
        %v1929 = vadd.f32 0.0, %v1928
        %v1930 = vpop.f32.mrb[0].mxu0
        %v1931 = vpop.f32.mrb[0].mxu0
        %v1932 = vadd.f32 0.0, %v1931
        %v1933 = vpop.f32.mrb[0].mxu0
        %1934 = vmatprep.mubr.bf16.mxu0 0
        %1935 = vmatmul.mubr.bf16.gmra.mrb[0].mxu0 %v1825
        %v1936 = vpop.f32.mrb[0].mxu0
        %v1937 = vadd.f32 0.0, %v1936
        %v1938 = vpop.f32.mrb[0].mxu0
        %v1939 = vpop.f32.mrb[0].mxu0
        %v1940 = vadd.f32 0.0, %v1939
        %v1941 = vpop.f32.mrb[0].mxu0
        %1942 = vmatprep.mubr.bf16.mxu0 0
        %1943 = vmatmul.mubr.bf16.gmra.mrb[0].mxu0 %v1828
        %v1944 = vpop.f32.mrb[0].mxu0
        %v1945 = vadd.f32 0.0, %v1944
        %v1946 = vpop.f32.mrb[0].mxu0
        %v1947 = vpop.f32.mrb[0].mxu0
        %v1948 = vadd.f32 0.0, %v1947
        %v1949 = vpop.f32.mrb[0].mxu0
        %1950 = vdwg.mxu0
        %v1951 = vsub.f32 %v1889, %v984
        %v1952 = vsub.f32 %v1892, %v984
        %v1953 = vsub.f32 %v1897, %v984
        %v1954 = vsub.f32 %v1900, %v984
        %v1955 = vsub.f32 %v1905, %v984
        %v1956 = vsub.f32 %v1908, %v984
        %v1957 = vsub.f32 %v1913, %v984
        %v1958 = vsub.f32 %v1916, %v984
        %v1959 = vsub.f32 %v1921, %v984
        %v1960 = vsub.f32 %v1924, %v984
        %v1961 = vsub.f32 %v1929, %v984
        %v1962 = vsub.f32 %v1932, %v984
        %v1963 = vsub.f32 %v1937, %v984
        %v1964 = vsub.f32 %v1940, %v984
        %v1965 = vsub.f32 %v1945, %v984
        %v1966 = vsub.f32 %v1948, %v984
        %1967 = vmax.xlane.f32.xlu0 %v1951
        %v1968 = vpop.xlane.xlu0 %1967
        %1969 = vmax.xlane.f32.xlu0 %v1952
        %v1970 = vpop.xlane.xlu0 %1969
        %1971 = vmax.xlane.f32.xlu0 %v1953
        %v1972 = vpop.xlane.xlu0 %1971
        %1973 = vmax.xlane.f32.xlu0 %v1954
        %v1974 = vpop.xlane.xlu0 %1973
        %1975 = vmax.xlane.f32.xlu0 %v1955
        %v1976 = vpop.xlane.xlu0 %1975
        %1977 = vmax.xlane.f32.xlu0 %v1956
        %v1978 = vpop.xlane.xlu0 %1977
        %1979 = vmax.xlane.f32.xlu0 %v1957
        %v1980 = vpop.xlane.xlu0 %1979
        %1981 = vmax.xlane.f32.xlu0 %v1958
        %v1982 = vpop.xlane.xlu0 %1981
        %1983 = vmax.xlane.f32.xlu0 %v1959
        %v1984 = vpop.xlane.xlu0 %1983
        %1985 = vmax.xlane.f32.xlu0 %v1960
        %v1986 = vpop.xlane.xlu0 %1985
        %1987 = vmax.xlane.f32.xlu0 %v1961
        %v1988 = vpop.xlane.xlu0 %1987
        %1989 = vmax.xlane.f32.xlu0 %v1962
        %v1990 = vpop.xlane.xlu0 %1989
        %1991 = vmax.xlane.f32.xlu0 %v1963
        %v1992 = vpop.xlane.xlu0 %1991
        %1993 = vmax.xlane.f32.xlu0 %v1964
        %v1994 = vpop.xlane.xlu0 %1993
        %1995 = vmax.xlane.f32.xlu0 %v1965
        %v1996 = vpop.xlane.xlu0 %1995
        %1997 = vmax.xlane.f32.xlu0 %v1966
        %v1998 = vpop.xlane.xlu0 %1997
        %v1999 = vsub.f32 %v1951, %v1968
        %v2000 = vsub.f32 %v1952, %v1970
        %v2001 = vsub.f32 %v1953, %v1972
        %v2002 = vsub.f32 %v1954, %v1974
        %v2003 = vsub.f32 %v1955, %v1976
        %v2004 = vsub.f32 %v1956, %v1978
        %v2005 = vsub.f32 %v1957, %v1980
        %v2006 = vsub.f32 %v1958, %v1982
        %v2007 = vsub.f32 %v1959, %v1984
        %v2008 = vsub.f32 %v1960, %v1986
        %v2009 = vsub.f32 %v1961, %v1988
        %v2010 = vsub.f32 %v1962, %v1990
        %v2011 = vsub.f32 %v1963, %v1992
        %v2012 = vsub.f32 %v1964, %v1994
        %v2013 = vsub.f32 %v1965, %v1996
        %v2014 = vsub.f32 %v1966, %v1998
        %v2015 = vmul.f32 %v1999, 1.442695
        %v2016 = vpow.pop %v2015
        %v2017 = vmul.f32 %v2000, 1.442695
        %v2018 = vpow.pop %v2017
        %v2019 = vmul.f32 %v2001, 1.442695
        %v2020 = vpow.pop %v2019
        %v2021 = vmul.f32 %v2002, 1.442695
        %v2022 = vpow.pop %v2021
        %v2023 = vmul.f32 %v2003, 1.442695
        %v2024 = vpow.pop %v2023
        %v2025 = vmul.f32 %v2004, 1.442695
        %v2026 = vpow.pop %v2025
        %v2027 = vmul.f32 %v2005, 1.442695
        %v2028 = vpow.pop %v2027
        %v2029 = vmul.f32 %v2006, 1.442695
        %v2030 = vpow.pop %v2029
        %v2031 = vmul.f32 %v2007, 1.442695
        %v2032 = vpow.pop %v2031
        %v2033 = vmul.f32 %v2008, 1.442695
        %v2034 = vpow.pop %v2033
        %v2035 = vmul.f32 %v2009, 1.442695
        %v2036 = vpow.pop %v2035
        %v2037 = vmul.f32 %v2010, 1.442695
        %v2038 = vpow.pop %v2037
        %v2039 = vmul.f32 %v2011, 1.442695
        %v2040 = vpow.pop %v2039
        %v2041 = vmul.f32 %v2012, 1.442695
        %v2042 = vpow.pop %v2041
        %v2043 = vmul.f32 %v2013, 1.442695
        %v2044 = vpow.pop %v2043
        %v2045 = vmul.f32 %v2014, 1.442695
        %v2046 = vpow.pop %v2045
        %2047 = vadd.xlane.f32.xlu0 %v2016
        %v2048 = vpop.xlane.xlu0 %2047
        %2049 = vadd.xlane.f32.xlu0 %v2018
        %v2050 = vpop.xlane.xlu0 %2049
        %2051 = vadd.xlane.f32.xlu0 %v2020
        %v2052 = vpop.xlane.xlu0 %2051
        %2053 = vadd.xlane.f32.xlu0 %v2022
        %v2054 = vpop.xlane.xlu0 %2053
        %2055 = vadd.xlane.f32.xlu0 %v2024
        %v2056 = vpop.xlane.xlu0 %2055
        %2057 = vadd.xlane.f32.xlu0 %v2026
        %v2058 = vpop.xlane.xlu0 %2057
        %2059 = vadd.xlane.f32.xlu0 %v2028
        %v2060 = vpop.xlane.xlu0 %2059
        %2061 = vadd.xlane.f32.xlu0 %v2030
        %v2062 = vpop.xlane.xlu0 %2061
        %2063 = vadd.xlane.f32.xlu0 %v2032
        %v2064 = vpop.xlane.xlu0 %2063
        %2065 = vadd.xlane.f32.xlu0 %v2034
        %v2066 = vpop.xlane.xlu0 %2065
        %2067 = vadd.xlane.f32.xlu0 %v2036
        %v2068 = vpop.xlane.xlu0 %2067
        %2069 = vadd.xlane.f32.xlu0 %v2038
        %v2070 = vpop.xlane.xlu0 %2069
        %2071 = vadd.xlane.f32.xlu0 %v2040
        %v2072 = vpop.xlane.xlu0 %2071
        %2073 = vadd.xlane.f32.xlu0 %v2042
        %v2074 = vpop.xlane.xlu0 %2073
        %2075 = vadd.xlane.f32.xlu0 %v2044
        %v2076 = vpop.xlane.xlu0 %2075
        %2077 = vadd.xlane.f32.xlu0 %v2046
        %v2078 = vpop.xlane.xlu0 %2077
        %v2079 = vrcp.pop %v2048
        %v2080 = vrcp.pop %v2050
        %v2081 = vrcp.pop %v2052
        %v2082 = vrcp.pop %v2054
        %v2083 = vrcp.pop %v2056
        %v2084 = vrcp.pop %v2058
        %v2085 = vrcp.pop %v2060
        %v2086 = vrcp.pop %v2062
        %v2087 = vrcp.pop %v2064
        %v2088 = vrcp.pop %v2066
        %v2089 = vrcp.pop %v2068
        %v2090 = vrcp.pop %v2070
        %v2091 = vrcp.pop %v2072
        %v2092 = vrcp.pop %v2074
        %v2093 = vrcp.pop %v2076
        %v2094 = vrcp.pop %v2078
        %v2095 = vmul.f32 %v2016, %v2079
        %v2096 = vmul.f32 %v2018, %v2080
        %v2097 = vmul.f32 %v2020, %v2081
        %v2098 = vmul.f32 %v2022, %v2082
        %v2099 = vmul.f32 %v2024, %v2083
        %v2100 = vmul.f32 %v2026, %v2084
        %v2101 = vmul.f32 %v2028, %v2085
        %v2102 = vmul.f32 %v2030, %v2086
        %v2103 = vmul.f32 %v2032, %v2087
        %v2104 = vmul.f32 %v2034, %v2088
        %v2105 = vmul.f32 %v2036, %v2089
        %v2106 = vmul.f32 %v2038, %v2090
        %v2107 = vmul.f32 %v2040, %v2091
        %v2108 = vmul.f32 %v2042, %v2092
        %v2109 = vmul.f32 %v2044, %v2093
        %v2110 = vmul.f32 %v2046, %v2094
        %s2111 = scalar_lea.vmem %s331, 256 [#allocation2]
        %2112 = vst [vmem:[%s2111] sm:$0xff] %v2095
        %2113 = vst [vmem:[%s2111 + $0x8] sm:$0xff] %v2096
        %2114 = vst [vmem:[%s2111 + $0x10] sm:$0xff] %v2097
        %2115 = vst [vmem:[%s2111 + $0x18] sm:$0xff] %v2098
        %2116 = vst [vmem:[%s2111 + $0x20] sm:$0xff] %v2099
        %2117 = vst [vmem:[%s2111 + $0x28] sm:$0xff] %v2100
        %2118 = vst [vmem:[%s2111 + $0x30] sm:$0xff] %v2101
        %2119 = vst [vmem:[%s2111 + $0x38] sm:$0xff] %v2102
        %2120 = vst [vmem:[%s2111 + $0x40] sm:$0xff] %v2103
        %2121 = vst [vmem:[%s2111 + $0x48] sm:$0xff] %v2104
        %2122 = vst [vmem:[%s2111 + $0x50] sm:$0xff] %v2105
        %2123 = vst [vmem:[%s2111 + $0x58] sm:$0xff] %v2106
        %2124 = vst [vmem:[%s2111 + $0x60] sm:$0xff] %v2107
        %2125 = vst [vmem:[%s2111 + $0x68] sm:$0xff] %v2108
        %2126 = vst [vmem:[%s2111 + $0x70] sm:$0xff] %v2109
        %2127 = vst [vmem:[%s2111 + $0x78] sm:$0xff] %v2110
        %v2128 = vpack.c.bf16 %v2096, %v2095
        %v2129 = vpack.c.bf16 %v2098, %v2097
        %v2130 = vpack.c.bf16 %v2100, %v2099
        %v2131 = vpack.c.bf16 %v2102, %v2101
        %v2132 = vpack.c.bf16 %v2104, %v2103
        %v2133 = vpack.c.bf16 %v2106, %v2105
        %v2134 = vpack.c.bf16 %v2108, %v2107
        %v2135 = vpack.c.bf16 %v2110, %v2109
        %2136 = vrot.lane.b32.xlu0 %v820, 120
        %v2137 = vpop.permute.xlu0 %2136
        %2138 = vrot.lane.b32.xlu0 %v821, 120
        %v2139 = vpop.permute.xlu0 %2138
        %2140 = vrot.lane.b32.xlu0 %v822, 120
        %v2141 = vpop.permute.xlu0 %2140
        %2142 = vrot.lane.b32.xlu0 %v823, 120
        %v2143 = vpop.permute.xlu0 %2142
        %2144 = vrot.lane.b32.xlu0 %v824, 120
        %v2145 = vpop.permute.xlu0 %2144
        %2146 = vrot.lane.b32.xlu0 %v825, 120
        %v2147 = vpop.permute.xlu0 %2146
        %2148 = vrot.lane.b32.xlu0 %v826, 120
        %v2149 = vpop.permute.xlu0 %2148
        %2150 = vrot.lane.b32.xlu0 %v827, 120
        %v2151 = vpop.permute.xlu0 %2150
        %2160 = vmatprep.subr.bf16.mxu0 0
        %2161 = vmatpush1.bf16.msra.mxu0 %v2137
        %2162 = vmatprep.subr.bf16.mxu0 0
        %2163 = vmatpush1.bf16.msra.mxu0 %v2139
        %2164 = vmatprep.subr.bf16.mxu0 0
        %2165 = vmatpush1.bf16.msra.mxu0 %v2141
        %2166 = vmatprep.subr.bf16.mxu0 0
        %2167 = vmatpush1.bf16.msra.mxu0 %v2143
        %2168 = vmatprep.subr.bf16.mxu0 0
        %2169 = vmatpush1.bf16.msra.mxu0 %v2145
        %2170 = vmatprep.subr.bf16.mxu0 0
        %2171 = vmatpush1.bf16.msra.mxu0 %v2147
        %2172 = vmatprep.subr.bf16.mxu0 0
        %2173 = vmatpush1.bf16.msra.mxu0 %v2149
        %2174 = vmatprep.subr.bf16.mxu0 0
        %2175 = vmatpush1.bf16.msra.mxu0 %v2151
        %2176 = vmatprep.subr.bf16.mxu0 0
        %2177 = vmatpush1.bf16.msra.mxu0 0
        %2178 = vmatprep.subr.bf16.mxu0 0
        %2179 = vmatpush1.bf16.msra.mxu0 0
        %2180 = vmatprep.subr.bf16.mxu0 0
        %2181 = vmatpush1.bf16.msra.mxu0 0
        %2182 = vmatprep.subr.bf16.mxu0 0
        %2183 = vmatpush1.bf16.msra.mxu0 0
        %2184 = vmatprep.subr.bf16.mxu0 0
        %2185 = vmatpush1.bf16.msra.mxu0 0
        %2186 = vmatprep.subr.bf16.mxu0 0
        %2187 = vmatpush1.bf16.msra.mxu0 0
        %2188 = vmatprep.subr.bf16.mxu0 0
        %2189 = vmatpush1.bf16.msra.mxu0 0
        %2190 = vmatprep.subr.bf16.mxu0 0
        %2191 = vmatpush1.bf16.msra.mxu0 0
        %2192 = vmatprep.mubr.bf16.mxu0 0
        %2193 = vmatmul.mubr.bf16.gmra.mrb[0].mxu0 %v2128
        %v2194 = vpop.f32.mrb[0].mxu0
        %v2195 = vadd.f32 0.0, %v2194
        %v2196 = vpop.f32.mrb[0].mxu0
        %v2197 = vpop.f32.mrb[0].mxu0
        %v2198 = vadd.f32 0.0, %v2197
        %v2199 = vpop.f32.mrb[0].mxu0
        %2200 = vmatprep.mubr.bf16.mxu0 0
        %2201 = vmatmul.mubr.bf16.gmra.mrb[0].mxu0 %v2129
        %v2202 = vpop.f32.mrb[0].mxu0
        %v2203 = vadd.f32 0.0, %v2202
        %v2204 = vpop.f32.mrb[0].mxu0
        %v2205 = vpop.f32.mrb[0].mxu0
        %v2206 = vadd.f32 0.0, %v2205
        %v2207 = vpop.f32.mrb[0].mxu0
        %2208 = vmatprep.mubr.bf16.mxu0 0
        %2209 = vmatmul.mubr.bf16.gmra.mrb[0].mxu0 %v2130
        %v2210 = vpop.f32.mrb[0].mxu0
        %v2211 = vadd.f32 0.0, %v2210
        %v2212 = vpop.f32.mrb[0].mxu0
        %v2213 = vpop.f32.mrb[0].mxu0
        %v2214 = vadd.f32 0.0, %v2213
        %v2215 = vpop.f32.mrb[0].mxu0
        %2216 = vmatprep.mubr.bf16.mxu0 0
        %2217 = vmatmul.mubr.bf16.gmra.mrb[0].mxu0 %v2131
        %v2218 = vpop.f32.mrb[0].mxu0
        %v2219 = vadd.f32 0.0, %v2218
        %v2220 = vpop.f32.mrb[0].mxu0
        %v2221 = vpop.f32.mrb[0].mxu0
        %v2222 = vadd.f32 0.0, %v2221
        %v2223 = vpop.f32.mrb[0].mxu0
        %2224 = vmatprep.mubr.bf16.mxu0 0
        %2225 = vmatmul.mubr.bf16.gmra.mrb[0].mxu0 %v2132
        %v2226 = vpop.f32.mrb[0].mxu0
        %v2227 = vadd.f32 0.0, %v2226
        %v2228 = vpop.f32.mrb[0].mxu0
        %v2229 = vpop.f32.mrb[0].mxu0
        %v2230 = vadd.f32 0.0, %v2229
        %v2231 = vpop.f32.mrb[0].mxu0
        %2232 = vmatprep.mubr.bf16.mxu0 0
        %2233 = vmatmul.mubr.bf16.gmra.mrb[0].mxu0 %v2133
        %v2234 = vpop.f32.mrb[0].mxu0
        %v2235 = vadd.f32 0.0, %v2234
        %v2236 = vpop.f32.mrb[0].mxu0
        %v2237 = vpop.f32.mrb[0].mxu0
        %v2238 = vadd.f32 0.0, %v2237
        %v2239 = vpop.f32.mrb[0].mxu0
        %2240 = vmatprep.mubr.bf16.mxu0 0
        %2241 = vmatmul.mubr.bf16.gmra.mrb[0].mxu0 %v2134
        %v2242 = vpop.f32.mrb[0].mxu0
        %v2243 = vadd.f32 0.0, %v2242
        %v2244 = vpop.f32.mrb[0].mxu0
        %v2245 = vpop.f32.mrb[0].mxu0
        %v2246 = vadd.f32 0.0, %v2245
        %v2247 = vpop.f32.mrb[0].mxu0
        %2248 = vmatprep.mubr.bf16.mxu0 0
        %2249 = vmatmul.mubr.bf16.gmra.mrb[0].mxu0 %v2135
        %v2250 = vpop.f32.mrb[0].mxu0
        %v2251 = vadd.f32 0.0, %v2250
        %v2252 = vpop.f32.mrb[0].mxu0
        %v2253 = vpop.f32.mrb[0].mxu0
        %v2254 = vadd.f32 0.0, %v2253
        %v2255 = vpop.f32.mrb[0].mxu0
        %2256 = vdwg.mxu0
        %2257 = vrot.lane.b32.xlu0 %v574, 116
        %v2258 = vpop.permute.xlu0 %2257
        %2259 = vrot.lane.b32.xlu0 %v575, 116
        %v2260 = vpop.permute.xlu0 %2259
        %2261 = vrot.lane.b32.xlu0 %v576, 116
        %v2262 = vpop.permute.xlu0 %2261
        %2263 = vrot.lane.b32.xlu0 %v577, 116
        %v2264 = vpop.permute.xlu0 %2263
        %2265 = vrot.lane.b32.xlu0 %v578, 116
        %v2266 = vpop.permute.xlu0 %2265
        %2267 = vrot.lane.b32.xlu0 %v579, 116
        %v2268 = vpop.permute.xlu0 %2267
        %2269 = vrot.lane.b32.xlu0 %v580, 116
        %v2270 = vpop.permute.xlu0 %2269
        %2271 = vrot.lane.b32.xlu0 %v581, 116
        %v2272 = vpop.permute.xlu0 %2271
        %2273 = vrot.lane.b32.xlu0 %v697, 116
        %v2274 = vpop.permute.xlu0 %2273
        %2275 = vrot.lane.b32.xlu0 %v698, 116
        %v2276 = vpop.permute.xlu0 %2275
        %2277 = vrot.lane.b32.xlu0 %v699, 116
        %v2278 = vpop.permute.xlu0 %2277
        %2279 = vrot.lane.b32.xlu0 %v700, 116
        %v2280 = vpop.permute.xlu0 %2279
        %2281 = vrot.lane.b32.xlu0 %v701, 116
        %v2282 = vpop.permute.xlu0 %2281
        %2283 = vrot.lane.b32.xlu0 %v702, 116
        %v2284 = vpop.permute.xlu0 %2283
        %2285 = vrot.lane.b32.xlu0 %v703, 116
        %v2286 = vpop.permute.xlu0 %2285
        %2287 = vrot.lane.b32.xlu0 %v704, 116
        %v2288 = vpop.permute.xlu0 %2287
        %v2290 = vsel %vm834, %v2258, 0
        %v2293 = vsel %vm834, %v2260, 0
        %v2296 = vsel %vm834, %v2262, 0
        %v2299 = vsel %vm834, %v2264, 0
        %v2302 = vsel %vm834, %v2266, 0
        %v2305 = vsel %vm834, %v2268, 0
        %v2308 = vsel %vm834, %v2270, 0
        %v2311 = vsel %vm834, %v2272, 0
        %v2314 = vsel %vm834, %v2274, 0
        %v2317 = vsel %vm834, %v2276, 0
        %v2320 = vsel %vm834, %v2278, 0
        %v2323 = vsel %vm834, %v2280, 0
        %v2326 = vsel %vm834, %v2282, 0
        %v2329 = vsel %vm834, %v2284, 0
        %v2332 = vsel %vm834, %v2286, 0
        %v2335 = vsel %vm834, %v2288, 0
        %2337 = vmatprep.subr.bf16.mxu0 0
        %2338 = vmatpush1.bf16.xpose.msra.mxu0 %v2314
        %2339 = vmatprep.subr.bf16.mxu0 0
        %2340 = vmatpush1.bf16.xpose.msra.mxu0 %v2317
        %2341 = vmatprep.subr.bf16.mxu0 0
        %2342 = vmatpush1.bf16.xpose.msra.mxu0 %v2320
        %2343 = vmatprep.subr.bf16.mxu0 0
        %2344 = vmatpush1.bf16.xpose.msra.mxu0 %v2323
        %2345 = vmatprep.subr.bf16.mxu0 0
        %2346 = vmatpush1.bf16.xpose.msra.mxu0 %v2326
        %2347 = vmatprep.subr.bf16.mxu0 0
        %2348 = vmatpush1.bf16.xpose.msra.mxu0 %v2329
        %2349 = vmatprep.subr.bf16.mxu0 0
        %2350 = vmatpush1.bf16.xpose.msra.mxu0 %v2332
        %2351 = vmatprep.subr.bf16.mxu0 0
        %2352 = vmatpush1.bf16.xpose.msra.mxu0 %v2335
        %2353 = vmatprep.subr.bf16.mxu0 0
        %2354 = vmatpush1.bf16.xpose.msra.mxu0 0
        %2355 = vmatprep.subr.bf16.mxu0 0
        %2356 = vmatpush1.bf16.xpose.msra.mxu0 0
        %2357 = vmatprep.subr.bf16.mxu0 0
        %2358 = vmatpush1.bf16.xpose.msra.mxu0 0
        %2359 = vmatprep.subr.bf16.mxu0 0
        %2360 = vmatpush1.bf16.xpose.msra.mxu0 0
        %2361 = vmatprep.subr.bf16.mxu0 0
        %2362 = vmatpush1.bf16.xpose.msra.mxu0 0
        %2363 = vmatprep.subr.bf16.mxu0 0
        %2364 = vmatpush1.bf16.xpose.msra.mxu0 0
        %2365 = vmatprep.subr.bf16.mxu0 0
        %2366 = vmatpush1.bf16.xpose.msra.mxu0 0
        %2367 = vmatprep.subr.bf16.mxu0 0
        %2368 = vmatpush1.bf16.xpose.msra.mxu0 0
        %2369 = vmatprep.mubr.bf16.mxu0 0
        %2370 = vmatmul.mubr.bf16.gmra.mrb[0].mxu0 %v2290
        %v2371 = vpop.f32.mrb[0].mxu0
        %v2372 = vadd.f32 0.0, %v2371
        %v2373 = vpop.f32.mrb[0].mxu0
        %v2374 = vpop.f32.mrb[0].mxu0
        %v2375 = vadd.f32 0.0, %v2374
        %v2376 = vpop.f32.mrb[0].mxu0
        %2377 = vmatprep.mubr.bf16.mxu0 0
        %2378 = vmatmul.mubr.bf16.gmra.mrb[0].mxu0 %v2293
        %v2379 = vpop.f32.mrb[0].mxu0
        %v2380 = vadd.f32 0.0, %v2379
        %v2381 = vpop.f32.mrb[0].mxu0
        %v2382 = vpop.f32.mrb[0].mxu0
        %v2383 = vadd.f32 0.0, %v2382
        %v2384 = vpop.f32.mrb[0].mxu0
        %2385 = vmatprep.mubr.bf16.mxu0 0
        %2386 = vmatmul.mubr.bf16.gmra.mrb[0].mxu0 %v2296
        %v2387 = vpop.f32.mrb[0].mxu0
        %v2388 = vadd.f32 0.0, %v2387
        %v2389 = vpop.f32.mrb[0].mxu0
        %v2390 = vpop.f32.mrb[0].mxu0
        %v2391 = vadd.f32 0.0, %v2390
        %v2392 = vpop.f32.mrb[0].mxu0
        %2393 = vmatprep.mubr.bf16.mxu0 0
        %2394 = vmatmul.mubr.bf16.gmra.mrb[0].mxu0 %v2299
        %v2395 = vpop.f32.mrb[0].mxu0
        %v2396 = vadd.f32 0.0, %v2395
        %v2397 = vpop.f32.mrb[0].mxu0
        %v2398 = vpop.f32.mrb[0].mxu0
        %v2399 = vadd.f32 0.0, %v2398
        %v2400 = vpop.f32.mrb[0].mxu0
        %2401 = vmatprep.mubr.bf16.mxu0 0
        %2402 = vmatmul.mubr.bf16.gmra.mrb[0].mxu0 %v2302
        %v2403 = vpop.f32.mrb[0].mxu0
        %v2404 = vadd.f32 0.0, %v2403
        %v2405 = vpop.f32.mrb[0].mxu0
        %v2406 = vpop.f32.mrb[0].mxu0
        %v2407 = vadd.f32 0.0, %v2406
        %v2408 = vpop.f32.mrb[0].mxu0
        %2409 = vmatprep.mubr.bf16.mxu0 0
        %2410 = vmatmul.mubr.bf16.gmra.mrb[0].mxu0 %v2305
        %v2411 = vpop.f32.mrb[0].mxu0
        %v2412 = vadd.f32 0.0, %v2411
        %v2413 = vpop.f32.mrb[0].mxu0
        %v2414 = vpop.f32.mrb[0].mxu0
        %v2415 = vadd.f32 0.0, %v2414
        %v2416 = vpop.f32.mrb[0].mxu0
        %2417 = vmatprep.mubr.bf16.mxu0 0
        %2418 = vmatmul.mubr.bf16.gmra.mrb[0].mxu0 %v2308
        %v2419 = vpop.f32.mrb[0].mxu0
        %v2420 = vadd.f32 0.0, %v2419
        %v2421 = vpop.f32.mrb[0].mxu0
        %v2422 = vpop.f32.mrb[0].mxu0
        %v2423 = vadd.f32 0.0, %v2422
        %v2424 = vpop.f32.mrb[0].mxu0
        %2425 = vmatprep.mubr.bf16.mxu0 0
        %2426 = vmatmul.mubr.bf16.gmra.mrb[0].mxu0 %v2311
        %v2427 = vpop.f32.mrb[0].mxu0
        %v2428 = vadd.f32 0.0, %v2427
        %v2429 = vpop.f32.mrb[0].mxu0
        %v2430 = vpop.f32.mrb[0].mxu0
        %v2431 = vadd.f32 0.0, %v2430
        %v2432 = vpop.f32.mrb[0].mxu0
        %2433 = vdwg.mxu0
        %v2434 = vsub.f32 %v2372, %v984
        %v2435 = vsub.f32 %v2375, %v984
        %v2436 = vsub.f32 %v2380, %v984
        %v2437 = vsub.f32 %v2383, %v984
        %v2438 = vsub.f32 %v2388, %v984
        %v2439 = vsub.f32 %v2391, %v984
        %v2440 = vsub.f32 %v2396, %v984
        %v2441 = vsub.f32 %v2399, %v984
        %v2442 = vsub.f32 %v2404, %v984
        %v2443 = vsub.f32 %v2407, %v984
        %v2444 = vsub.f32 %v2412, %v984
        %v2445 = vsub.f32 %v2415, %v984
        %v2446 = vsub.f32 %v2420, %v984
        %v2447 = vsub.f32 %v2423, %v984
        %v2448 = vsub.f32 %v2428, %v984
        %v2449 = vsub.f32 %v2431, %v984
        %2450 = vmax.xlane.f32.xlu0 %v2434
        %v2451 = vpop.xlane.xlu0 %2450
        %2452 = vmax.xlane.f32.xlu0 %v2435
        %v2453 = vpop.xlane.xlu0 %2452
        %2454 = vmax.xlane.f32.xlu0 %v2436
        %v2455 = vpop.xlane.xlu0 %2454
        %2456 = vmax.xlane.f32.xlu0 %v2437
        %v2457 = vpop.xlane.xlu0 %2456
        %2458 = vmax.xlane.f32.xlu0 %v2438
        %v2459 = vpop.xlane.xlu0 %2458
        %2460 = vmax.xlane.f32.xlu0 %v2439
        %v2461 = vpop.xlane.xlu0 %2460
        %2462 = vmax.xlane.f32.xlu0 %v2440
        %v2463 = vpop.xlane.xlu0 %2462
        %2464 = vmax.xlane.f32.xlu0 %v2441
        %v2465 = vpop.xlane.xlu0 %2464
        %2466 = vmax.xlane.f32.xlu0 %v2442
        %v2467 = vpop.xlane.xlu0 %2466
        %2468 = vmax.xlane.f32.xlu0 %v2443
        %v2469 = vpop.xlane.xlu0 %2468
        %2470 = vmax.xlane.f32.xlu0 %v2444
        %v2471 = vpop.xlane.xlu0 %2470
        %2472 = vmax.xlane.f32.xlu0 %v2445
        %v2473 = vpop.xlane.xlu0 %2472
        %2474 = vmax.xlane.f32.xlu0 %v2446
        %v2475 = vpop.xlane.xlu0 %2474
        %2476 = vmax.xlane.f32.xlu0 %v2447
        %v2477 = vpop.xlane.xlu0 %2476
        %2478 = vmax.xlane.f32.xlu0 %v2448
        %v2479 = vpop.xlane.xlu0 %2478
        %2480 = vmax.xlane.f32.xlu0 %v2449
        %v2481 = vpop.xlane.xlu0 %2480
        %v2482 = vsub.f32 %v2434, %v2451
        %v2483 = vsub.f32 %v2435, %v2453
        %v2484 = vsub.f32 %v2436, %v2455
        %v2485 = vsub.f32 %v2437, %v2457
        %v2486 = vsub.f32 %v2438, %v2459
        %v2487 = vsub.f32 %v2439, %v2461
        %v2488 = vsub.f32 %v2440, %v2463
        %v2489 = vsub.f32 %v2441, %v2465
        %v2490 = vsub.f32 %v2442, %v2467
        %v2491 = vsub.f32 %v2443, %v2469
        %v2492 = vsub.f32 %v2444, %v2471
        %v2493 = vsub.f32 %v2445, %v2473
        %v2494 = vsub.f32 %v2446, %v2475
        %v2495 = vsub.f32 %v2447, %v2477
        %v2496 = vsub.f32 %v2448, %v2479
        %v2497 = vsub.f32 %v2449, %v2481
        %v2498 = vmul.f32 %v2482, 1.442695
        %v2499 = vpow.pop %v2498
        %v2500 = vmul.f32 %v2483, 1.442695
        %v2501 = vpow.pop %v2500
        %v2502 = vmul.f32 %v2484, 1.442695
        %v2503 = vpow.pop %v2502
        %v2504 = vmul.f32 %v2485, 1.442695
        %v2505 = vpow.pop %v2504
        %v2506 = vmul.f32 %v2486, 1.442695
        %v2507 = vpow.pop %v2506
        %v2508 = vmul.f32 %v2487, 1.442695
        %v2509 = vpow.pop %v2508
        %v2510 = vmul.f32 %v2488, 1.442695
        %v2511 = vpow.pop %v2510
        %v2512 = vmul.f32 %v2489, 1.442695
        %v2513 = vpow.pop %v2512
        %v2514 = vmul.f32 %v2490, 1.442695
        %v2515 = vpow.pop %v2514
        %v2516 = vmul.f32 %v2491, 1.442695
        %v2517 = vpow.pop %v2516
        %v2518 = vmul.f32 %v2492, 1.442695
        %v2519 = vpow.pop %v2518
        %v2520 = vmul.f32 %v2493, 1.442695
        %v2521 = vpow.pop %v2520
        %v2522 = vmul.f32 %v2494, 1.442695
        %v2523 = vpow.pop %v2522
        %v2524 = vmul.f32 %v2495, 1.442695
        %v2525 = vpow.pop %v2524
        %v2526 = vmul.f32 %v2496, 1.442695
        %v2527 = vpow.pop %v2526
        %v2528 = vmul.f32 %v2497, 1.442695
        %v2529 = vpow.pop %v2528
        %2530 = vadd.xlane.f32.xlu0 %v2499
        %v2531 = vpop.xlane.xlu0 %2530
        %2532 = vadd.xlane.f32.xlu0 %v2501
        %v2533 = vpop.xlane.xlu0 %2532
        %2534 = vadd.xlane.f32.xlu0 %v2503
        %v2535 = vpop.xlane.xlu0 %2534
        %2536 = vadd.xlane.f32.xlu0 %v2505
        %v2537 = vpop.xlane.xlu0 %2536
        %2538 = vadd.xlane.f32.xlu0 %v2507
        %v2539 = vpop.xlane.xlu0 %2538
        %2540 = vadd.xlane.f32.xlu0 %v2509
        %v2541 = vpop.xlane.xlu0 %2540
        %2542 = vadd.xlane.f32.xlu0 %v2511
        %v2543 = vpop.xlane.xlu0 %2542
        %2544 = vadd.xlane.f32.xlu0 %v2513
        %v2545 = vpop.xlane.xlu0 %2544
        %2546 = vadd.xlane.f32.xlu0 %v2515
        %v2547 = vpop.xlane.xlu0 %2546
        %2548 = vadd.xlane.f32.xlu0 %v2517
        %v2549 = vpop.xlane.xlu0 %2548
        %2550 = vadd.xlane.f32.xlu0 %v2519
        %v2551 = vpop.xlane.xlu0 %2550
        %2552 = vadd.xlane.f32.xlu0 %v2521
        %v2553 = vpop.xlane.xlu0 %2552
        %2554 = vadd.xlane.f32.xlu0 %v2523
        %v2555 = vpop.xlane.xlu0 %2554
        %2556 = vadd.xlane.f32.xlu0 %v2525
        %v2557 = vpop.xlane.xlu0 %2556
        %2558 = vadd.xlane.f32.xlu0 %v2527
        %v2559 = vpop.xlane.xlu0 %2558
        %2560 = vadd.xlane.f32.xlu0 %v2529
        %v2561 = vpop.xlane.xlu0 %2560
        %v2562 = vrcp.pop %v2531
        %v2563 = vrcp.pop %v2533
        %v2564 = vrcp.pop %v2535
        %v2565 = vrcp.pop %v2537
        %v2566 = vrcp.pop %v2539
        %v2567 = vrcp.pop %v2541
        %v2568 = vrcp.pop %v2543
        %v2569 = vrcp.pop %v2545
        %v2570 = vrcp.pop %v2547
        %v2571 = vrcp.pop %v2549
        %v2572 = vrcp.pop %v2551
        %v2573 = vrcp.pop %v2553
        %v2574 = vrcp.pop %v2555
        %v2575 = vrcp.pop %v2557
        %v2576 = vrcp.pop %v2559
        %v2577 = vrcp.pop %v2561
        %v2578 = vmul.f32 %v2499, %v2562
        %v2579 = vmul.f32 %v2501, %v2563
        %v2580 = vmul.f32 %v2503, %v2564
        %v2581 = vmul.f32 %v2505, %v2565
        %v2582 = vmul.f32 %v2507, %v2566
        %v2583 = vmul.f32 %v2509, %v2567
        %v2584 = vmul.f32 %v2511, %v2568
        %v2585 = vmul.f32 %v2513, %v2569
        %v2586 = vmul.f32 %v2515, %v2570
        %v2587 = vmul.f32 %v2517, %v2571
        %v2588 = vmul.f32 %v2519, %v2572
        %v2589 = vmul.f32 %v2521, %v2573
        %v2590 = vmul.f32 %v2523, %v2574
        %v2591 = vmul.f32 %v2525, %v2575
        %v2592 = vmul.f32 %v2527, %v2576
        %v2593 = vmul.f32 %v2529, %v2577
        %s2594 = scalar_lea.vmem %s331, 384 [#allocation2]
        %2595 = vst [vmem:[%s2594] sm:$0xff] %v2578
        %2596 = vst [vmem:[%s2594 + $0x8] sm:$0xff] %v2579
        %2597 = vst [vmem:[%s2594 + $0x10] sm:$0xff] %v2580
        %2598 = vst [vmem:[%s2594 + $0x18] sm:$0xff] %v2581
        %2599 = vst [vmem:[%s2594 + $0x20] sm:$0xff] %v2582
        %2600 = vst [vmem:[%s2594 + $0x28] sm:$0xff] %v2583
        %2601 = vst [vmem:[%s2594 + $0x30] sm:$0xff] %v2584
        %2602 = vst [vmem:[%s2594 + $0x38] sm:$0xff] %v2585
        %2603 = vst [vmem:[%s2594 + $0x40] sm:$0xff] %v2586
        %2604 = vst [vmem:[%s2594 + $0x48] sm:$0xff] %v2587
        %2605 = vst [vmem:[%s2594 + $0x50] sm:$0xff] %v2588
        %2606 = vst [vmem:[%s2594 + $0x58] sm:$0xff] %v2589
        %2607 = vst [vmem:[%s2594 + $0x60] sm:$0xff] %v2590
        %2608 = vst [vmem:[%s2594 + $0x68] sm:$0xff] %v2591
        %2609 = vst [vmem:[%s2594 + $0x70] sm:$0xff] %v2592
        %2610 = vst [vmem:[%s2594 + $0x78] sm:$0xff] %v2593
        %v2611 = vpack.c.bf16 %v2579, %v2578
        %v2612 = vpack.c.bf16 %v2581, %v2580
        %v2613 = vpack.c.bf16 %v2583, %v2582
        %v2614 = vpack.c.bf16 %v2585, %v2584
        %v2615 = vpack.c.bf16 %v2587, %v2586
        %v2616 = vpack.c.bf16 %v2589, %v2588
        %v2617 = vpack.c.bf16 %v2591, %v2590
        %v2618 = vpack.c.bf16 %v2593, %v2592
        %2619 = vrot.lane.b32.xlu0 %v820, 116
        %v2620 = vpop.permute.xlu0 %2619
        %2621 = vrot.lane.b32.xlu0 %v821, 116
        %v2622 = vpop.permute.xlu0 %2621
        %2623 = vrot.lane.b32.xlu0 %v822, 116
        %v2624 = vpop.permute.xlu0 %2623
        %2625 = vrot.lane.b32.xlu0 %v823, 116
        %v2626 = vpop.permute.xlu0 %2625
        %2627 = vrot.lane.b32.xlu0 %v824, 116
        %v2628 = vpop.permute.xlu0 %2627
        %2629 = vrot.lane.b32.xlu0 %v825, 116
        %v2630 = vpop.permute.xlu0 %2629
        %2631 = vrot.lane.b32.xlu0 %v826, 116
        %v2632 = vpop.permute.xlu0 %2631
        %2633 = vrot.lane.b32.xlu0 %v827, 116
        %v2634 = vpop.permute.xlu0 %2633
        %2643 = vmatprep.subr.bf16.mxu0 0
        %2644 = vmatpush1.bf16.msra.mxu0 %v2620
        %2645 = vmatprep.subr.bf16.mxu0 0
        %2646 = vmatpush1.bf16.msra.mxu0 %v2622
        %2647 = vmatprep.subr.bf16.mxu0 0
        %2648 = vmatpush1.bf16.msra.mxu0 %v2624
        %2649 = vmatprep.subr.bf16.mxu0 0
        %2650 = vmatpush1.bf16.msra.mxu0 %v2626
        %2651 = vmatprep.subr.bf16.mxu0 0
        %2652 = vmatpush1.bf16.msra.mxu0 %v2628
        %2653 = vmatprep.subr.bf16.mxu0 0
        %2654 = vmatpush1.bf16.msra.mxu0 %v2630
        %2655 = vmatprep.subr.bf16.mxu0 0
        %2656 = vmatpush1.bf16.msra.mxu0 %v2632
        %2657 = vmatprep.subr.bf16.mxu0 0
        %2658 = vmatpush1.bf16.msra.mxu0 %v2634
        %2659 = vmatprep.subr.bf16.mxu0 0
        %2660 = vmatpush1.bf16.msra.mxu0 0
        %2661 = vmatprep.subr.bf16.mxu0 0
        %2662 = vmatpush1.bf16.msra.mxu0 0
        %2663 = vmatprep.subr.bf16.mxu0 0
        %2664 = vmatpush1.bf16.msra.mxu0 0
        %2665 = vmatprep.subr.bf16.mxu0 0
        %2666 = vmatpush1.bf16.msra.mxu0 0
        %2667 = vmatprep.subr.bf16.mxu0 0
        %2668 = vmatpush1.bf16.msra.mxu0 0
        %2669 = vmatprep.subr.bf16.mxu0 0
        %2670 = vmatpush1.bf16.msra.mxu0 0
        %2671 = vmatprep.subr.bf16.mxu0 0
        %2672 = vmatpush1.bf16.msra.mxu0 0
        %2673 = vmatprep.subr.bf16.mxu0 0
        %2674 = vmatpush1.bf16.msra.mxu0 0
        %2675 = vmatprep.mubr.bf16.mxu0 0
        %2676 = vmatmul.mubr.bf16.gmra.mrb[0].mxu0 %v2611
        %v2677 = vpop.f32.mrb[0].mxu0
        %v2678 = vadd.f32 0.0, %v2677
        %v2679 = vpop.f32.mrb[0].mxu0
        %v2680 = vpop.f32.mrb[0].mxu0
        %v2681 = vadd.f32 0.0, %v2680
        %v2682 = vpop.f32.mrb[0].mxu0
        %2683 = vmatprep.mubr.bf16.mxu0 0
        %2684 = vmatmul.mubr.bf16.gmra.mrb[0].mxu0 %v2612
        %v2685 = vpop.f32.mrb[0].mxu0
        %v2686 = vadd.f32 0.0, %v2685
        %v2687 = vpop.f32.mrb[0].mxu0
        %v2688 = vpop.f32.mrb[0].mxu0
        %v2689 = vadd.f32 0.0, %v2688
        %v2690 = vpop.f32.mrb[0].mxu0
        %2691 = vmatprep.mubr.bf16.mxu0 0
        %2692 = vmatmul.mubr.bf16.gmra.mrb[0].mxu0 %v2613
        %v2693 = vpop.f32.mrb[0].mxu0
        %v2694 = vadd.f32 0.0, %v2693
        %v2695 = vpop.f32.mrb[0].mxu0
        %v2696 = vpop.f32.mrb[0].mxu0
        %v2697 = vadd.f32 0.0, %v2696
        %v2698 = vpop.f32.mrb[0].mxu0
        %2699 = vmatprep.mubr.bf16.mxu0 0
        %2700 = vmatmul.mubr.bf16.gmra.mrb[0].mxu0 %v2614
        %v2701 = vpop.f32.mrb[0].mxu0
        %v2702 = vadd.f32 0.0, %v2701
        %v2703 = vpop.f32.mrb[0].mxu0
        %v2704 = vpop.f32.mrb[0].mxu0
        %v2705 = vadd.f32 0.0, %v2704
        %v2706 = vpop.f32.mrb[0].mxu0
        %2707 = vmatprep.mubr.bf16.mxu0 0
        %2708 = vmatmul.mubr.bf16.gmra.mrb[0].mxu0 %v2615
        %v2709 = vpop.f32.mrb[0].mxu0
        %v2710 = vadd.f32 0.0, %v2709
        %v2711 = vpop.f32.mrb[0].mxu0
        %v2712 = vpop.f32.mrb[0].mxu0
        %v2713 = vadd.f32 0.0, %v2712
        %v2714 = vpop.f32.mrb[0].mxu0
        %2715 = vmatprep.mubr.bf16.mxu0 0
        %2716 = vmatmul.mubr.bf16.gmra.mrb[0].mxu0 %v2616
        %v2717 = vpop.f32.mrb[0].mxu0
        %v2718 = vadd.f32 0.0, %v2717
        %v2719 = vpop.f32.mrb[0].mxu0
        %v2720 = vpop.f32.mrb[0].mxu0
        %v2721 = vadd.f32 0.0, %v2720
        %v2722 = vpop.f32.mrb[0].mxu0
        %2723 = vmatprep.mubr.bf16.mxu0 0
        %2724 = vmatmul.mubr.bf16.gmra.mrb[0].mxu0 %v2617
        %v2725 = vpop.f32.mrb[0].mxu0
        %v2726 = vadd.f32 0.0, %v2725
        %v2727 = vpop.f32.mrb[0].mxu0
        %v2728 = vpop.f32.mrb[0].mxu0
        %v2729 = vadd.f32 0.0, %v2728
        %v2730 = vpop.f32.mrb[0].mxu0
        %2731 = vmatprep.mubr.bf16.mxu0 0
        %2732 = vmatmul.mubr.bf16.gmra.mrb[0].mxu0 %v2618
        %v2733 = vpop.f32.mrb[0].mxu0
        %v2734 = vadd.f32 0.0, %v2733
        %v2735 = vpop.f32.mrb[0].mxu0
        %v2736 = vpop.f32.mrb[0].mxu0
        %v2737 = vadd.f32 0.0, %v2736
        %v2738 = vpop.f32.mrb[0].mxu0
        %2739 = vdwg.mxu0
        %2740 = vrot.lane.b32.xlu0 %v574, 112
        %v2741 = vpop.permute.xlu0 %2740
        %2742 = vrot.lane.b32.xlu0 %v575, 112
        %v2743 = vpop.permute.xlu0 %2742
        %2744 = vrot.lane.b32.xlu0 %v576, 112
        %v2745 = vpop.permute.xlu0 %2744
        %2746 = vrot.lane.b32.xlu0 %v577, 112
        %v2747 = vpop.permute.xlu0 %2746
        %2748 = vrot.lane.b32.xlu0 %v578, 112
        %v2749 = vpop.permute.xlu0 %2748
        %2750 = vrot.lane.b32.xlu0 %v579, 112
        %v2751 = vpop.permute.xlu0 %2750
        %2752 = vrot.lane.b32.xlu0 %v580, 112
        %v2753 = vpop.permute.xlu0 %2752
        %2754 = vrot.lane.b32.xlu0 %v581, 112
        %v2755 = vpop.permute.xlu0 %2754
        %2756 = vrot.lane.b32.xlu0 %v697, 112
        %v2757 = vpop.permute.xlu0 %2756
        %2758 = vrot.lane.b32.xlu0 %v698, 112
        %v2759 = vpop.permute.xlu0 %2758
        %2760 = vrot.lane.b32.xlu0 %v699, 112
        %v2761 = vpop.permute.xlu0 %2760
        %2762 = vrot.lane.b32.xlu0 %v700, 112
        %v2763 = vpop.permute.xlu0 %2762
        %2764 = vrot.lane.b32.xlu0 %v701, 112
        %v2765 = vpop.permute.xlu0 %2764
        %2766 = vrot.lane.b32.xlu0 %v702, 112
        %v2767 = vpop.permute.xlu0 %2766
        %2768 = vrot.lane.b32.xlu0 %v703, 112
        %v2769 = vpop.permute.xlu0 %2768
        %2770 = vrot.lane.b32.xlu0 %v704, 112
        %v2771 = vpop.permute.xlu0 %2770
        %v2773 = vsel %vm834, %v2741, 0
        %v2776 = vsel %vm834, %v2743, 0
        %v2779 = vsel %vm834, %v2745, 0
        %v2782 = vsel %vm834, %v2747, 0
        %v2785 = vsel %vm834, %v2749, 0
        %v2788 = vsel %vm834, %v2751, 0
        %v2791 = vsel %vm834, %v2753, 0
        %v2794 = vsel %vm834, %v2755, 0
        %v2797 = vsel %vm834, %v2757, 0
        %v2800 = vsel %vm834, %v2759, 0
        %v2803 = vsel %vm834, %v2761, 0
        %v2806 = vsel %vm834, %v2763, 0
        %v2809 = vsel %vm834, %v2765, 0
        %v2812 = vsel %vm834, %v2767, 0
        %v2815 = vsel %vm834, %v2769, 0
        %v2818 = vsel %vm834, %v2771, 0
        %2820 = vmatprep.subr.bf16.mxu0 0
        %2821 = vmatpush1.bf16.xpose.msra.mxu0 %v2797
        %2822 = vmatprep.subr.bf16.mxu0 0
        %2823 = vmatpush1.bf16.xpose.msra.mxu0 %v2800
        %2824 = vmatprep.subr.bf16.mxu0 0
        %2825 = vmatpush1.bf16.xpose.msra.mxu0 %v2803
        %2826 = vmatprep.subr.bf16.mxu0 0
        %2827 = vmatpush1.bf16.xpose.msra.mxu0 %v2806
        %2828 = vmatprep.subr.bf16.mxu0 0
        %2829 = vmatpush1.bf16.xpose.msra.mxu0 %v2809
        %2830 = vmatprep.subr.bf16.mxu0 0
        %2831 = vmatpush1.bf16.xpose.msra.mxu0 %v2812
        %2832 = vmatprep.subr.bf16.mxu0 0
        %2833 = vmatpush1.bf16.xpose.msra.mxu0 %v2815
        %2834 = vmatprep.subr.bf16.mxu0 0
        %2835 = vmatpush1.bf16.xpose.msra.mxu0 %v2818
        %2836 = vmatprep.subr.bf16.mxu0 0
        %2837 = vmatpush1.bf16.xpose.msra.mxu0 0
        %2838 = vmatprep.subr.bf16.mxu0 0
        %2839 = vmatpush1.bf16.xpose.msra.mxu0 0
        %2840 = vmatprep.subr.bf16.mxu0 0
        %2841 = vmatpush1.bf16.xpose.msra.mxu0 0
        %2842 = vmatprep.subr.bf16.mxu0 0
        %2843 = vmatpush1.bf16.xpose.msra.mxu0 0
        %2844 = vmatprep.subr.bf16.mxu0 0
        %2845 = vmatpush1.bf16.xpose.msra.mxu0 0
        %2846 = vmatprep.subr.bf16.mxu0 0
        %2847 = vmatpush1.bf16.xpose.msra.mxu0 0
        %2848 = vmatprep.subr.bf16.mxu0 0
        %2849 = vmatpush1.bf16.xpose.msra.mxu0 0
        %2850 = vmatprep.subr.bf16.mxu0 0
        %2851 = vmatpush1.bf16.xpose.msra.mxu0 0
        %2852 = vmatprep.mubr.bf16.mxu0 0
        %2853 = vmatmul.mubr.bf16.gmra.mrb[0].mxu0 %v2773
        %v2854 = vpop.f32.mrb[0].mxu0
        %v2855 = vadd.f32 0.0, %v2854
        %v2856 = vpop.f32.mrb[0].mxu0
        %v2857 = vpop.f32.mrb[0].mxu0
        %v2858 = vadd.f32 0.0, %v2857
        %v2859 = vpop.f32.mrb[0].mxu0
        %2860 = vmatprep.mubr.bf16.mxu0 0
        %2861 = vmatmul.mubr.bf16.gmra.mrb[0].mxu0 %v2776
        %v2862 = vpop.f32.mrb[0].mxu0
        %v2863 = vadd.f32 0.0, %v2862
        %v2864 = vpop.f32.mrb[0].mxu0
        %v2865 = vpop.f32.mrb[0].mxu0
        %v2866 = vadd.f32 0.0, %v2865
        %v2867 = vpop.f32.mrb[0].mxu0
        %2868 = vmatprep.mubr.bf16.mxu0 0
        %2869 = vmatmul.mubr.bf16.gmra.mrb[0].mxu0 %v2779
        %v2870 = vpop.f32.mrb[0].mxu0
        %v2871 = vadd.f32 0.0, %v2870
        %v2872 = vpop.f32.mrb[0].mxu0
        %v2873 = vpop.f32.mrb[0].mxu0
        %v2874 = vadd.f32 0.0, %v2873
        %v2875 = vpop.f32.mrb[0].mxu0
        %2876 = vmatprep.mubr.bf16.mxu0 0
        %2877 = vmatmul.mubr.bf16.gmra.mrb[0].mxu0 %v2782
        %v2878 = vpop.f32.mrb[0].mxu0
        %v2879 = vadd.f32 0.0, %v2878
        %v2880 = vpop.f32.mrb[0].mxu0
        %v2881 = vpop.f32.mrb[0].mxu0
        %v2882 = vadd.f32 0.0, %v2881
        %v2883 = vpop.f32.mrb[0].mxu0
        %2884 = vmatprep.mubr.bf16.mxu0 0
        %2885 = vmatmul.mubr.bf16.gmra.mrb[0].mxu0 %v2785
        %v2886 = vpop.f32.mrb[0].mxu0
        %v2887 = vadd.f32 0.0, %v2886
        %v2888 = vpop.f32.mrb[0].mxu0
        %v2889 = vpop.f32.mrb[0].mxu0
        %v2890 = vadd.f32 0.0, %v2889
        %v2891 = vpop.f32.mrb[0].mxu0
        %2892 = vmatprep.mubr.bf16.mxu0 0
        %2893 = vmatmul.mubr.bf16.gmra.mrb[0].mxu0 %v2788
        %v2894 = vpop.f32.mrb[0].mxu0
        %v2895 = vadd.f32 0.0, %v2894
        %v2896 = vpop.f32.mrb[0].mxu0
        %v2897 = vpop.f32.mrb[0].mxu0
        %v2898 = vadd.f32 0.0, %v2897
        %v2899 = vpop.f32.mrb[0].mxu0
        %2900 = vmatprep.mubr.bf16.mxu0 0
        %2901 = vmatmul.mubr.bf16.gmra.mrb[0].mxu0 %v2791
        %v2902 = vpop.f32.mrb[0].mxu0
        %v2903 = vadd.f32 0.0, %v2902
        %v2904 = vpop.f32.mrb[0].mxu0
        %v2905 = vpop.f32.mrb[0].mxu0
        %v2906 = vadd.f32 0.0, %v2905
        %v2907 = vpop.f32.mrb[0].mxu0
        %2908 = vmatprep.mubr.bf16.mxu0 0
        %2909 = vmatmul.mubr.bf16.gmra.mrb[0].mxu0 %v2794
        %v2910 = vpop.f32.mrb[0].mxu0
        %v2911 = vadd.f32 0.0, %v2910
        %v2912 = vpop.f32.mrb[0].mxu0
        %v2913 = vpop.f32.mrb[0].mxu0
        %v2914 = vadd.f32 0.0, %v2913
        %v2915 = vpop.f32.mrb[0].mxu0
        %2916 = vdwg.mxu0
        %v2917 = vsub.f32 %v2855, %v984
        %v2918 = vsub.f32 %v2858, %v984
        %v2919 = vsub.f32 %v2863, %v984
        %v2920 = vsub.f32 %v2866, %v984
        %v2921 = vsub.f32 %v2871, %v984
        %v2922 = vsub.f32 %v2874, %v984
        %v2923 = vsub.f32 %v2879, %v984
        %v2924 = vsub.f32 %v2882, %v984
        %v2925 = vsub.f32 %v2887, %v984
        %v2926 = vsub.f32 %v2890, %v984
        %v2927 = vsub.f32 %v2895, %v984
        %v2928 = vsub.f32 %v2898, %v984
        %v2929 = vsub.f32 %v2903, %v984
        %v2930 = vsub.f32 %v2906, %v984
        %v2931 = vsub.f32 %v2911, %v984
        %v2932 = vsub.f32 %v2914, %v984
        %2933 = vmax.xlane.f32.xlu0 %v2917
        %v2934 = vpop.xlane.xlu0 %2933
        %2935 = vmax.xlane.f32.xlu0 %v2918
        %v2936 = vpop.xlane.xlu0 %2935
        %2937 = vmax.xlane.f32.xlu0 %v2919
        %v2938 = vpop.xlane.xlu0 %2937
        %2939 = vmax.xlane.f32.xlu0 %v2920
        %v2940 = vpop.xlane.xlu0 %2939
        %2941 = vmax.xlane.f32.xlu0 %v2921
        %v2942 = vpop.xlane.xlu0 %2941
        %2943 = vmax.xlane.f32.xlu0 %v2922
        %v2944 = vpop.xlane.xlu0 %2943
        %2945 = vmax.xlane.f32.xlu0 %v2923
        %v2946 = vpop.xlane.xlu0 %2945
        %2947 = vmax.xlane.f32.xlu0 %v2924
        %v2948 = vpop.xlane.xlu0 %2947
        %2949 = vmax.xlane.f32.xlu0 %v2925
        %v2950 = vpop.xlane.xlu0 %2949
        %2951 = vmax.xlane.f32.xlu0 %v2926
        %v2952 = vpop.xlane.xlu0 %2951
        %2953 = vmax.xlane.f32.xlu0 %v2927
        %v2954 = vpop.xlane.xlu0 %2953
        %2955 = vmax.xlane.f32.xlu0 %v2928
        %v2956 = vpop.xlane.xlu0 %2955
        %2957 = vmax.xlane.f32.xlu0 %v2929
        %v2958 = vpop.xlane.xlu0 %2957
        %2959 = vmax.xlane.f32.xlu0 %v2930
        %v2960 = vpop.xlane.xlu0 %2959
        %2961 = vmax.xlane.f32.xlu0 %v2931
        %v2962 = vpop.xlane.xlu0 %2961
        %2963 = vmax.xlane.f32.xlu0 %v2932
        %v2964 = vpop.xlane.xlu0 %2963
        %v2965 = vsub.f32 %v2917, %v2934
        %v2966 = vsub.f32 %v2918, %v2936
        %v2967 = vsub.f32 %v2919, %v2938
        %v2968 = vsub.f32 %v2920, %v2940
        %v2969 = vsub.f32 %v2921, %v2942
        %v2970 = vsub.f32 %v2922, %v2944
        %v2971 = vsub.f32 %v2923, %v2946
        %v2972 = vsub.f32 %v2924, %v2948
        %v2973 = vsub.f32 %v2925, %v2950
        %v2974 = vsub.f32 %v2926, %v2952
        %v2975 = vsub.f32 %v2927, %v2954
        %v2976 = vsub.f32 %v2928, %v2956
        %v2977 = vsub.f32 %v2929, %v2958
        %v2978 = vsub.f32 %v2930, %v2960
        %v2979 = vsub.f32 %v2931, %v2962
        %v2980 = vsub.f32 %v2932, %v2964
        %v2981 = vmul.f32 %v2965, 1.442695
        %v2982 = vpow.pop %v2981
        %v2983 = vmul.f32 %v2966, 1.442695
        %v2984 = vpow.pop %v2983
        %v2985 = vmul.f32 %v2967, 1.442695
        %v2986 = vpow.pop %v2985
        %v2987 = vmul.f32 %v2968, 1.442695
        %v2988 = vpow.pop %v2987
        %v2989 = vmul.f32 %v2969, 1.442695
        %v2990 = vpow.pop %v2989
        %v2991 = vmul.f32 %v2970, 1.442695
        %v2992 = vpow.pop %v2991
        %v2993 = vmul.f32 %v2971, 1.442695
        %v2994 = vpow.pop %v2993
        %v2995 = vmul.f32 %v2972, 1.442695
        %v2996 = vpow.pop %v2995
        %v2997 = vmul.f32 %v2973, 1.442695
        %v2998 = vpow.pop %v2997
        %v2999 = vmul.f32 %v2974, 1.442695
        %v3000 = vpow.pop %v2999
        %v3001 = vmul.f32 %v2975, 1.442695
        %v3002 = vpow.pop %v3001
        %v3003 = vmul.f32 %v2976, 1.442695
        %v3004 = vpow.pop %v3003
        %v3005 = vmul.f32 %v2977, 1.442695
        %v3006 = vpow.pop %v3005
        %v3007 = vmul.f32 %v2978, 1.442695
        %v3008 = vpow.pop %v3007
        %v3009 = vmul.f32 %v2979, 1.442695
        %v3010 = vpow.pop %v3009
        %v3011 = vmul.f32 %v2980, 1.442695
        %v3012 = vpow.pop %v3011
        %3013 = vadd.xlane.f32.xlu0 %v2982
        %v3014 = vpop.xlane.xlu0 %3013
        %3015 = vadd.xlane.f32.xlu0 %v2984
        %v3016 = vpop.xlane.xlu0 %3015
        %3017 = vadd.xlane.f32.xlu0 %v2986
        %v3018 = vpop.xlane.xlu0 %3017
        %3019 = vadd.xlane.f32.xlu0 %v2988
        %v3020 = vpop.xlane.xlu0 %3019
        %3021 = vadd.xlane.f32.xlu0 %v2990
        %v3022 = vpop.xlane.xlu0 %3021
        %3023 = vadd.xlane.f32.xlu0 %v2992
        %v3024 = vpop.xlane.xlu0 %3023
        %3025 = vadd.xlane.f32.xlu0 %v2994
        %v3026 = vpop.xlane.xlu0 %3025
        %3027 = vadd.xlane.f32.xlu0 %v2996
        %v3028 = vpop.xlane.xlu0 %3027
        %3029 = vadd.xlane.f32.xlu0 %v2998
        %v3030 = vpop.xlane.xlu0 %3029
        %3031 = vadd.xlane.f32.xlu0 %v3000
        %v3032 = vpop.xlane.xlu0 %3031
        %3033 = vadd.xlane.f32.xlu0 %v3002
        %v3034 = vpop.xlane.xlu0 %3033
        %3035 = vadd.xlane.f32.xlu0 %v3004
        %v3036 = vpop.xlane.xlu0 %3035
        %3037 = vadd.xlane.f32.xlu0 %v3006
        %v3038 = vpop.xlane.xlu0 %3037
        %3039 = vadd.xlane.f32.xlu0 %v3008
        %v3040 = vpop.xlane.xlu0 %3039
        %3041 = vadd.xlane.f32.xlu0 %v3010
        %v3042 = vpop.xlane.xlu0 %3041
        %3043 = vadd.xlane.f32.xlu0 %v3012
        %v3044 = vpop.xlane.xlu0 %3043
        %v3045 = vrcp.pop %v3014
        %v3046 = vrcp.pop %v3016
        %v3047 = vrcp.pop %v3018
        %v3048 = vrcp.pop %v3020
        %v3049 = vrcp.pop %v3022
        %v3050 = vrcp.pop %v3024
        %v3051 = vrcp.pop %v3026
        %v3052 = vrcp.pop %v3028
        %v3053 = vrcp.pop %v3030
        %v3054 = vrcp.pop %v3032
        %v3055 = vrcp.pop %v3034
        %v3056 = vrcp.pop %v3036
        %v3057 = vrcp.pop %v3038
        %v3058 = vrcp.pop %v3040
        %v3059 = vrcp.pop %v3042
        %v3060 = vrcp.pop %v3044
        %v3061 = vmul.f32 %v2982, %v3045
        %v3062 = vmul.f32 %v2984, %v3046
        %v3063 = vmul.f32 %v2986, %v3047
        %v3064 = vmul.f32 %v2988, %v3048
        %v3065 = vmul.f32 %v2990, %v3049
        %v3066 = vmul.f32 %v2992, %v3050
        %v3067 = vmul.f32 %v2994, %v3051
        %v3068 = vmul.f32 %v2996, %v3052
        %v3069 = vmul.f32 %v2998, %v3053
        %v3070 = vmul.f32 %v3000, %v3054
        %v3071 = vmul.f32 %v3002, %v3055
        %v3072 = vmul.f32 %v3004, %v3056
        %v3073 = vmul.f32 %v3006, %v3057
        %v3074 = vmul.f32 %v3008, %v3058
        %v3075 = vmul.f32 %v3010, %v3059
        %v3076 = vmul.f32 %v3012, %v3060
        %s3077 = scalar_lea.vmem %s331, 512 [#allocation2]
        %3078 = vst [vmem:[%s3077] sm:$0xff] %v3061
        %3079 = vst [vmem:[%s3077 + $0x8] sm:$0xff] %v3062
        %3080 = vst [vmem:[%s3077 + $0x10] sm:$0xff] %v3063
        %3081 = vst [vmem:[%s3077 + $0x18] sm:$0xff] %v3064
        %3082 = vst [vmem:[%s3077 + $0x20] sm:$0xff] %v3065
        %3083 = vst [vmem:[%s3077 + $0x28] sm:$0xff] %v3066
        %3084 = vst [vmem:[%s3077 + $0x30] sm:$0xff] %v3067
        %3085 = vst [vmem:[%s3077 + $0x38] sm:$0xff] %v3068
        %3086 = vst [vmem:[%s3077 + $0x40] sm:$0xff] %v3069
        %3087 = vst [vmem:[%s3077 + $0x48] sm:$0xff] %v3070
        %3088 = vst [vmem:[%s3077 + $0x50] sm:$0xff] %v3071
        %3089 = vst [vmem:[%s3077 + $0x58] sm:$0xff] %v3072
        %3090 = vst [vmem:[%s3077 + $0x60] sm:$0xff] %v3073
        %3091 = vst [vmem:[%s3077 + $0x68] sm:$0xff] %v3074
        %3092 = vst [vmem:[%s3077 + $0x70] sm:$0xff] %v3075
        %3093 = vst [vmem:[%s3077 + $0x78] sm:$0xff] %v3076
        %v3094 = vpack.c.bf16 %v3062, %v3061
        %v3095 = vpack.c.bf16 %v3064, %v3063
        %v3096 = vpack.c.bf16 %v3066, %v3065
        %v3097 = vpack.c.bf16 %v3068, %v3067
        %v3098 = vpack.c.bf16 %v3070, %v3069
        %v3099 = vpack.c.bf16 %v3072, %v3071
        %v3100 = vpack.c.bf16 %v3074, %v3073
        %v3101 = vpack.c.bf16 %v3076, %v3075
        %3102 = vrot.lane.b32.xlu0 %v820, 112
        %v3103 = vpop.permute.xlu0 %3102
        %3104 = vrot.lane.b32.xlu0 %v821, 112
        %v3105 = vpop.permute.xlu0 %3104
        %3106 = vrot.lane.b32.xlu0 %v822, 112
        %v3107 = vpop.permute.xlu0 %3106
        %3108 = vrot.lane.b32.xlu0 %v823, 112
        %v3109 = vpop.permute.xlu0 %3108
        %3110 = vrot.lane.b32.xlu0 %v824, 112
        %v3111 = vpop.permute.xlu0 %3110
        %3112 = vrot.lane.b32.xlu0 %v825, 112
        %v3113 = vpop.permute.xlu0 %3112
        %3114 = vrot.lane.b32.xlu0 %v826, 112
        %v3115 = vpop.permute.xlu0 %3114
        %3116 = vrot.lane.b32.xlu0 %v827, 112
        %v3117 = vpop.permute.xlu0 %3116
        %3126 = vmatprep.subr.bf16.mxu0 0
        %3127 = vmatpush1.bf16.msra.mxu0 %v3103
        %3128 = vmatprep.subr.bf16.mxu0 0
        %3129 = vmatpush1.bf16.msra.mxu0 %v3105
        %3130 = vmatprep.subr.bf16.mxu0 0
        %3131 = vmatpush1.bf16.msra.mxu0 %v3107
        %3132 = vmatprep.subr.bf16.mxu0 0
        %3133 = vmatpush1.bf16.msra.mxu0 %v3109
        %3134 = vmatprep.subr.bf16.mxu0 0
        %3135 = vmatpush1.bf16.msra.mxu0 %v3111
        %3136 = vmatprep.subr.bf16.mxu0 0
        %3137 = vmatpush1.bf16.msra.mxu0 %v3113
        %3138 = vmatprep.subr.bf16.mxu0 0
        %3139 = vmatpush1.bf16.msra.mxu0 %v3115
        %3140 = vmatprep.subr.bf16.mxu0 0
        %3141 = vmatpush1.bf16.msra.mxu0 %v3117
        %3142 = vmatprep.subr.bf16.mxu0 0
        %3143 = vmatpush1.bf16.msra.mxu0 0
        %3144 = vmatprep.subr.bf16.mxu0 0
        %3145 = vmatpush1.bf16.msra.mxu0 0
        %3146 = vmatprep.subr.bf16.mxu0 0
        %3147 = vmatpush1.bf16.msra.mxu0 0
        %3148 = vmatprep.subr.bf16.mxu0 0
        %3149 = vmatpush1.bf16.msra.mxu0 0
        %3150 = vmatprep.subr.bf16.mxu0 0
        %3151 = vmatpush1.bf16.msra.mxu0 0
        %3152 = vmatprep.subr.bf16.mxu0 0
        %3153 = vmatpush1.bf16.msra.mxu0 0
        %3154 = vmatprep.subr.bf16.mxu0 0
        %3155 = vmatpush1.bf16.msra.mxu0 0
        %3156 = vmatprep.subr.bf16.mxu0 0
        %3157 = vmatpush1.bf16.msra.mxu0 0
        %3158 = vmatprep.mubr.bf16.mxu0 0
        %3159 = vmatmul.mubr.bf16.gmra.mrb[0].mxu0 %v3094
        %v3160 = vpop.f32.mrb[0].mxu0
        %v3161 = vadd.f32 0.0, %v3160
        %v3162 = vpop.f32.mrb[0].mxu0
        %v3163 = vpop.f32.mrb[0].mxu0
        %v3164 = vadd.f32 0.0, %v3163
        %v3165 = vpop.f32.mrb[0].mxu0
        %3166 = vmatprep.mubr.bf16.mxu0 0
        %3167 = vmatmul.mubr.bf16.gmra.mrb[0].mxu0 %v3095
        %v3168 = vpop.f32.mrb[0].mxu0
        %v3169 = vadd.f32 0.0, %v3168
        %v3170 = vpop.f32.mrb[0].mxu0
        %v3171 = vpop.f32.mrb[0].mxu0
        %v3172 = vadd.f32 0.0, %v3171
        %v3173 = vpop.f32.mrb[0].mxu0
        %3174 = vmatprep.mubr.bf16.mxu0 0
        %3175 = vmatmul.mubr.bf16.gmra.mrb[0].mxu0 %v3096
        %v3176 = vpop.f32.mrb[0].mxu0
        %v3177 = vadd.f32 0.0, %v3176
        %v3178 = vpop.f32.mrb[0].mxu0
        %v3179 = vpop.f32.mrb[0].mxu0
        %v3180 = vadd.f32 0.0, %v3179
        %v3181 = vpop.f32.mrb[0].mxu0
        %3182 = vmatprep.mubr.bf16.mxu0 0
        %3183 = vmatmul.mubr.bf16.gmra.mrb[0].mxu0 %v3097
        %v3184 = vpop.f32.mrb[0].mxu0
        %v3185 = vadd.f32 0.0, %v3184
        %v3186 = vpop.f32.mrb[0].mxu0
        %v3187 = vpop.f32.mrb[0].mxu0
        %v3188 = vadd.f32 0.0, %v3187
        %v3189 = vpop.f32.mrb[0].mxu0
        %3190 = vmatprep.mubr.bf16.mxu0 0
        %3191 = vmatmul.mubr.bf16.gmra.mrb[0].mxu0 %v3098
        %v3192 = vpop.f32.mrb[0].mxu0
        %v3193 = vadd.f32 0.0, %v3192
        %v3194 = vpop.f32.mrb[0].mxu0
        %v3195 = vpop.f32.mrb[0].mxu0
        %v3196 = vadd.f32 0.0, %v3195
        %v3197 = vpop.f32.mrb[0].mxu0
        %3198 = vmatprep.mubr.bf16.mxu0 0
        %3199 = vmatmul.mubr.bf16.gmra.mrb[0].mxu0 %v3099
        %v3200 = vpop.f32.mrb[0].mxu0
        %v3201 = vadd.f32 0.0, %v3200
        %v3202 = vpop.f32.mrb[0].mxu0
        %v3203 = vpop.f32.mrb[0].mxu0
        %v3204 = vadd.f32 0.0, %v3203
        %v3205 = vpop.f32.mrb[0].mxu0
        %3206 = vmatprep.mubr.bf16.mxu0 0
        %3207 = vmatmul.mubr.bf16.gmra.mrb[0].mxu0 %v3100
        %v3208 = vpop.f32.mrb[0].mxu0
        %v3209 = vadd.f32 0.0, %v3208
        %v3210 = vpop.f32.mrb[0].mxu0
        %v3211 = vpop.f32.mrb[0].mxu0
        %v3212 = vadd.f32 0.0, %v3211
        %v3213 = vpop.f32.mrb[0].mxu0
        %3214 = vmatprep.mubr.bf16.mxu0 0
        %3215 = vmatmul.mubr.bf16.gmra.mrb[0].mxu0 %v3101
        %v3216 = vpop.f32.mrb[0].mxu0
        %v3217 = vadd.f32 0.0, %v3216
        %v3218 = vpop.f32.mrb[0].mxu0
        %v3219 = vpop.f32.mrb[0].mxu0
        %v3220 = vadd.f32 0.0, %v3219
        %v3221 = vpop.f32.mrb[0].mxu0
        %3222 = vdwg.mxu0
        %3223 = vrot.lane.b32.xlu0 %v574, 108
        %v3224 = vpop.permute.xlu0 %3223
        %3225 = vrot.lane.b32.xlu0 %v575, 108
        %v3226 = vpop.permute.xlu0 %3225
        %3227 = vrot.lane.b32.xlu0 %v576, 108
        %v3228 = vpop.permute.xlu0 %3227
        %3229 = vrot.lane.b32.xlu0 %v577, 108
        %v3230 = vpop.permute.xlu0 %3229
        %3231 = vrot.lane.b32.xlu0 %v578, 108
        %v3232 = vpop.permute.xlu0 %3231
        %3233 = vrot.lane.b32.xlu0 %v579, 108
        %v3234 = vpop.permute.xlu0 %3233
        %3235 = vrot.lane.b32.xlu0 %v580, 108
        %v3236 = vpop.permute.xlu0 %3235
        %3237 = vrot.lane.b32.xlu0 %v581, 108
        %v3238 = vpop.permute.xlu0 %3237
        %3239 = vrot.lane.b32.xlu0 %v697, 108
        %v3240 = vpop.permute.xlu0 %3239
        %3241 = vrot.lane.b32.xlu0 %v698, 108
        %v3242 = vpop.permute.xlu0 %3241
        %3243 = vrot.lane.b32.xlu0 %v699, 108
        %v3244 = vpop.permute.xlu0 %3243
        %3245 = vrot.lane.b32.xlu0 %v700, 108
        %v3246 = vpop.permute.xlu0 %3245
        %3247 = vrot.lane.b32.xlu0 %v701, 108
        %v3248 = vpop.permute.xlu0 %3247
        %3249 = vrot.lane.b32.xlu0 %v702, 108
        %v3250 = vpop.permute.xlu0 %3249
        %3251 = vrot.lane.b32.xlu0 %v703, 108
        %v3252 = vpop.permute.xlu0 %3251
        %3253 = vrot.lane.b32.xlu0 %v704, 108
        %v3254 = vpop.permute.xlu0 %3253
        %v3256 = vsel %vm834, %v3224, 0
        %v3259 = vsel %vm834, %v3226, 0
        %v3262 = vsel %vm834, %v3228, 0
        %v3265 = vsel %vm834, %v3230, 0
        %v3268 = vsel %vm834, %v3232, 0
        %v3271 = vsel %vm834, %v3234, 0
        %v3274 = vsel %vm834, %v3236, 0
        %v3277 = vsel %vm834, %v3238, 0
        %v3280 = vsel %vm834, %v3240, 0
        %v3283 = vsel %vm834, %v3242, 0
        %v3286 = vsel %vm834, %v3244, 0
        %v3289 = vsel %vm834, %v3246, 0
        %v3292 = vsel %vm834, %v3248, 0
        %v3295 = vsel %vm834, %v3250, 0
        %v3298 = vsel %vm834, %v3252, 0
        %v3301 = vsel %vm834, %v3254, 0
        %3303 = vmatprep.subr.bf16.mxu0 0
        %3304 = vmatpush1.bf16.xpose.msra.mxu0 %v3280
        %3305 = vmatprep.subr.bf16.mxu0 0
        %3306 = vmatpush1.bf16.xpose.msra.mxu0 %v3283
        %3307 = vmatprep.subr.bf16.mxu0 0
        %3308 = vmatpush1.bf16.xpose.msra.mxu0 %v3286
        %3309 = vmatprep.subr.bf16.mxu0 0
        %3310 = vmatpush1.bf16.xpose.msra.mxu0 %v3289
        %3311 = vmatprep.subr.bf16.mxu0 0
        %3312 = vmatpush1.bf16.xpose.msra.mxu0 %v3292
        %3313 = vmatprep.subr.bf16.mxu0 0
        %3314 = vmatpush1.bf16.xpose.msra.mxu0 %v3295
        %3315 = vmatprep.subr.bf16.mxu0 0
        %3316 = vmatpush1.bf16.xpose.msra.mxu0 %v3298
        %3317 = vmatprep.subr.bf16.mxu0 0
        %3318 = vmatpush1.bf16.xpose.msra.mxu0 %v3301
        %3319 = vmatprep.subr.bf16.mxu0 0
        %3320 = vmatpush1.bf16.xpose.msra.mxu0 0
        %3321 = vmatprep.subr.bf16.mxu0 0
        %3322 = vmatpush1.bf16.xpose.msra.mxu0 0
        %3323 = vmatprep.subr.bf16.mxu0 0
        %3324 = vmatpush1.bf16.xpose.msra.mxu0 0
        %3325 = vmatprep.subr.bf16.mxu0 0
        %3326 = vmatpush1.bf16.xpose.msra.mxu0 0
        %3327 = vmatprep.subr.bf16.mxu0 0
        %3328 = vmatpush1.bf16.xpose.msra.mxu0 0
        %3329 = vmatprep.subr.bf16.mxu0 0
        %3330 = vmatpush1.bf16.xpose.msra.mxu0 0
        %3331 = vmatprep.subr.bf16.mxu0 0
        %3332 = vmatpush1.bf16.xpose.msra.mxu0 0
        %3333 = vmatprep.subr.bf16.mxu0 0
        %3334 = vmatpush1.bf16.xpose.msra.mxu0 0
        %3335 = vmatprep.mubr.bf16.mxu0 0
        %3336 = vmatmul.mubr.bf16.gmra.mrb[0].mxu0 %v3256
        %v3337 = vpop.f32.mrb[0].mxu0
        %v3338 = vadd.f32 0.0, %v3337
        %v3339 = vpop.f32.mrb[0].mxu0
        %v3340 = vpop.f32.mrb[0].mxu0
        %v3341 = vadd.f32 0.0, %v3340
        %v3342 = vpop.f32.mrb[0].mxu0
        %3343 = vmatprep.mubr.bf16.mxu0 0
        %3344 = vmatmul.mubr.bf16.gmra.mrb[0].mxu0 %v3259
        %v3345 = vpop.f32.mrb[0].mxu0
        %v3346 = vadd.f32 0.0, %v3345
        %v3347 = vpop.f32.mrb[0].mxu0
        %v3348 = vpop.f32.mrb[0].mxu0
        %v3349 = vadd.f32 0.0, %v3348
        %v3350 = vpop.f32.mrb[0].mxu0
        %3351 = vmatprep.mubr.bf16.mxu0 0
        %3352 = vmatmul.mubr.bf16.gmra.mrb[0].mxu0 %v3262
        %v3353 = vpop.f32.mrb[0].mxu0
        %v3354 = vadd.f32 0.0, %v3353
        %v3355 = vpop.f32.mrb[0].mxu0
        %v3356 = vpop.f32.mrb[0].mxu0
        %v3357 = vadd.f32 0.0, %v3356
        %v3358 = vpop.f32.mrb[0].mxu0
        %3359 = vmatprep.mubr.bf16.mxu0 0
        %3360 = vmatmul.mubr.bf16.gmra.mrb[0].mxu0 %v3265
        %v3361 = vpop.f32.mrb[0].mxu0
        %v3362 = vadd.f32 0.0, %v3361
        %v3363 = vpop.f32.mrb[0].mxu0
        %v3364 = vpop.f32.mrb[0].mxu0
        %v3365 = vadd.f32 0.0, %v3364
        %v3366 = vpop.f32.mrb[0].mxu0
        %3367 = vmatprep.mubr.bf16.mxu0 0
        %3368 = vmatmul.mubr.bf16.gmra.mrb[0].mxu0 %v3268
        %v3369 = vpop.f32.mrb[0].mxu0
        %v3370 = vadd.f32 0.0, %v3369
        %v3371 = vpop.f32.mrb[0].mxu0
        %v3372 = vpop.f32.mrb[0].mxu0
        %v3373 = vadd.f32 0.0, %v3372
        %v3374 = vpop.f32.mrb[0].mxu0
        %3375 = vmatprep.mubr.bf16.mxu0 0
        %3376 = vmatmul.mubr.bf16.gmra.mrb[0].mxu0 %v3271
        %v3377 = vpop.f32.mrb[0].mxu0
        %v3378 = vadd.f32 0.0, %v3377
        %v3379 = vpop.f32.mrb[0].mxu0
        %v3380 = vpop.f32.mrb[0].mxu0
        %v3381 = vadd.f32 0.0, %v3380
        %v3382 = vpop.f32.mrb[0].mxu0
        %3383 = vmatprep.mubr.bf16.mxu0 0
        %3384 = vmatmul.mubr.bf16.gmra.mrb[0].mxu0 %v3274
        %v3385 = vpop.f32.mrb[0].mxu0
        %v3386 = vadd.f32 0.0, %v3385
        %v3387 = vpop.f32.mrb[0].mxu0
        %v3388 = vpop.f32.mrb[0].mxu0
        %v3389 = vadd.f32 0.0, %v3388
        %v3390 = vpop.f32.mrb[0].mxu0
        %3391 = vmatprep.mubr.bf16.mxu0 0
        %3392 = vmatmul.mubr.bf16.gmra.mrb[0].mxu0 %v3277
        %v3393 = vpop.f32.mrb[0].mxu0
        %v3394 = vadd.f32 0.0, %v3393
        %v3395 = vpop.f32.mrb[0].mxu0
        %v3396 = vpop.f32.mrb[0].mxu0
        %v3397 = vadd.f32 0.0, %v3396
        %v3398 = vpop.f32.mrb[0].mxu0
        %3399 = vdwg.mxu0
        %v3400 = vsub.f32 %v3338, %v984
        %v3401 = vsub.f32 %v3341, %v984
        %v3402 = vsub.f32 %v3346, %v984
        %v3403 = vsub.f32 %v3349, %v984
        %v3404 = vsub.f32 %v3354, %v984
        %v3405 = vsub.f32 %v3357, %v984
        %v3406 = vsub.f32 %v3362, %v984
        %v3407 = vsub.f32 %v3365, %v984
        %v3408 = vsub.f32 %v3370, %v984
        %v3409 = vsub.f32 %v3373, %v984
        %v3410 = vsub.f32 %v3378, %v984
        %v3411 = vsub.f32 %v3381, %v984
        %v3412 = vsub.f32 %v3386, %v984
        %v3413 = vsub.f32 %v3389, %v984
        %v3414 = vsub.f32 %v3394, %v984
        %v3415 = vsub.f32 %v3397, %v984
        %3416 = vmax.xlane.f32.xlu0 %v3400
        %v3417 = vpop.xlane.xlu0 %3416
        %3418 = vmax.xlane.f32.xlu0 %v3401
        %v3419 = vpop.xlane.xlu0 %3418
        %3420 = vmax.xlane.f32.xlu0 %v3402
        %v3421 = vpop.xlane.xlu0 %3420
        %3422 = vmax.xlane.f32.xlu0 %v3403
        %v3423 = vpop.xlane.xlu0 %3422
        %3424 = vmax.xlane.f32.xlu0 %v3404
        %v3425 = vpop.xlane.xlu0 %3424
        %3426 = vmax.xlane.f32.xlu0 %v3405
        %v3427 = vpop.xlane.xlu0 %3426
        %3428 = vmax.xlane.f32.xlu0 %v3406
        %v3429 = vpop.xlane.xlu0 %3428
        %3430 = vmax.xlane.f32.xlu0 %v3407
        %v3431 = vpop.xlane.xlu0 %3430
        %3432 = vmax.xlane.f32.xlu0 %v3408
        %v3433 = vpop.xlane.xlu0 %3432
        %3434 = vmax.xlane.f32.xlu0 %v3409
        %v3435 = vpop.xlane.xlu0 %3434
        %3436 = vmax.xlane.f32.xlu0 %v3410
        %v3437 = vpop.xlane.xlu0 %3436
        %3438 = vmax.xlane.f32.xlu0 %v3411
        %v3439 = vpop.xlane.xlu0 %3438
        %3440 = vmax.xlane.f32.xlu0 %v3412
        %v3441 = vpop.xlane.xlu0 %3440
        %3442 = vmax.xlane.f32.xlu0 %v3413
        %v3443 = vpop.xlane.xlu0 %3442
        %3444 = vmax.xlane.f32.xlu0 %v3414
        %v3445 = vpop.xlane.xlu0 %3444
        %3446 = vmax.xlane.f32.xlu0 %v3415
        %v3447 = vpop.xlane.xlu0 %3446
        %v3448 = vsub.f32 %v3400, %v3417
        %v3449 = vsub.f32 %v3401, %v3419
        %v3450 = vsub.f32 %v3402, %v3421
        %v3451 = vsub.f32 %v3403, %v3423
        %v3452 = vsub.f32 %v3404, %v3425
        %v3453 = vsub.f32 %v3405, %v3427
        %v3454 = vsub.f32 %v3406, %v3429
        %v3455 = vsub.f32 %v3407, %v3431
        %v3456 = vsub.f32 %v3408, %v3433
        %v3457 = vsub.f32 %v3409, %v3435
        %v3458 = vsub.f32 %v3410, %v3437
        %v3459 = vsub.f32 %v3411, %v3439
        %v3460 = vsub.f32 %v3412, %v3441
        %v3461 = vsub.f32 %v3413, %v3443
        %v3462 = vsub.f32 %v3414, %v3445
        %v3463 = vsub.f32 %v3415, %v3447
        %v3464 = vmul.f32 %v3448, 1.442695
        %v3465 = vpow.pop %v3464
        %v3466 = vmul.f32 %v3449, 1.442695
        %v3467 = vpow.pop %v3466
        %v3468 = vmul.f32 %v3450, 1.442695
        %v3469 = vpow.pop %v3468
        %v3470 = vmul.f32 %v3451, 1.442695
        %v3471 = vpow.pop %v3470
        %v3472 = vmul.f32 %v3452, 1.442695
        %v3473 = vpow.pop %v3472
        %v3474 = vmul.f32 %v3453, 1.442695
        %v3475 = vpow.pop %v3474
        %v3476 = vmul.f32 %v3454, 1.442695
        %v3477 = vpow.pop %v3476
        %v3478 = vmul.f32 %v3455, 1.442695
        %v3479 = vpow.pop %v3478
        %v3480 = vmul.f32 %v3456, 1.442695
        %v3481 = vpow.pop %v3480
        %v3482 = vmul.f32 %v3457, 1.442695
        %v3483 = vpow.pop %v3482
        %v3484 = vmul.f32 %v3458, 1.442695
        %v3485 = vpow.pop %v3484
        %v3486 = vmul.f32 %v3459, 1.442695
        %v3487 = vpow.pop %v3486
        %v3488 = vmul.f32 %v3460, 1.442695
        %v3489 = vpow.pop %v3488
        %v3490 = vmul.f32 %v3461, 1.442695
        %v3491 = vpow.pop %v3490
        %v3492 = vmul.f32 %v3462, 1.442695
        %v3493 = vpow.pop %v3492
        %v3494 = vmul.f32 %v3463, 1.442695
        %v3495 = vpow.pop %v3494
        %3496 = vadd.xlane.f32.xlu0 %v3465
        %v3497 = vpop.xlane.xlu0 %3496
        %3498 = vadd.xlane.f32.xlu0 %v3467
        %v3499 = vpop.xlane.xlu0 %3498
        %3500 = vadd.xlane.f32.xlu0 %v3469
        %v3501 = vpop.xlane.xlu0 %3500
        %3502 = vadd.xlane.f32.xlu0 %v3471
        %v3503 = vpop.xlane.xlu0 %3502
        %3504 = vadd.xlane.f32.xlu0 %v3473
        %v3505 = vpop.xlane.xlu0 %3504
        %3506 = vadd.xlane.f32.xlu0 %v3475
        %v3507 = vpop.xlane.xlu0 %3506
        %3508 = vadd.xlane.f32.xlu0 %v3477
        %v3509 = vpop.xlane.xlu0 %3508
        %3510 = vadd.xlane.f32.xlu0 %v3479
        %v3511 = vpop.xlane.xlu0 %3510
        %3512 = vadd.xlane.f32.xlu0 %v3481
        %v3513 = vpop.xlane.xlu0 %3512
        %3514 = vadd.xlane.f32.xlu0 %v3483
        %v3515 = vpop.xlane.xlu0 %3514
        %3516 = vadd.xlane.f32.xlu0 %v3485
        %v3517 = vpop.xlane.xlu0 %3516
        %3518 = vadd.xlane.f32.xlu0 %v3487
        %v3519 = vpop.xlane.xlu0 %3518
        %3520 = vadd.xlane.f32.xlu0 %v3489
        %v3521 = vpop.xlane.xlu0 %3520
        %3522 = vadd.xlane.f32.xlu0 %v3491
        %v3523 = vpop.xlane.xlu0 %3522
        %3524 = vadd.xlane.f32.xlu0 %v3493
        %v3525 = vpop.xlane.xlu0 %3524
        %3526 = vadd.xlane.f32.xlu0 %v3495
        %v3527 = vpop.xlane.xlu0 %3526
        %v3528 = vrcp.pop %v3497
        %v3529 = vrcp.pop %v3499
        %v3530 = vrcp.pop %v3501
        %v3531 = vrcp.pop %v3503
        %v3532 = vrcp.pop %v3505
        %v3533 = vrcp.pop %v3507
        %v3534 = vrcp.pop %v3509
        %v3535 = vrcp.pop %v3511
        %v3536 = vrcp.pop %v3513
        %v3537 = vrcp.pop %v3515
        %v3538 = vrcp.pop %v3517
        %v3539 = vrcp.pop %v3519
        %v3540 = vrcp.pop %v3521
        %v3541 = vrcp.pop %v3523
        %v3542 = vrcp.pop %v3525
        %v3543 = vrcp.pop %v3527
        %v3544 = vmul.f32 %v3465, %v3528
        %v3545 = vmul.f32 %v3467, %v3529
        %v3546 = vmul.f32 %v3469, %v3530
        %v3547 = vmul.f32 %v3471, %v3531
        %v3548 = vmul.f32 %v3473, %v3532
        %v3549 = vmul.f32 %v3475, %v3533
        %v3550 = vmul.f32 %v3477, %v3534
        %v3551 = vmul.f32 %v3479, %v3535
        %v3552 = vmul.f32 %v3481, %v3536
        %v3553 = vmul.f32 %v3483, %v3537
        %v3554 = vmul.f32 %v3485, %v3538
        %v3555 = vmul.f32 %v3487, %v3539
        %v3556 = vmul.f32 %v3489, %v3540
        %v3557 = vmul.f32 %v3491, %v3541
        %v3558 = vmul.f32 %v3493, %v3542
        %v3559 = vmul.f32 %v3495, %v3543
        %s3560 = scalar_lea.vmem %s331, 640 [#allocation2]
        %3561 = vst [vmem:[%s3560] sm:$0xff] %v3544
        %3562 = vst [vmem:[%s3560 + $0x8] sm:$0xff] %v3545
        %3563 = vst [vmem:[%s3560 + $0x10] sm:$0xff] %v3546
        %3564 = vst [vmem:[%s3560 + $0x18] sm:$0xff] %v3547
        %3565 = vst [vmem:[%s3560 + $0x20] sm:$0xff] %v3548
        %3566 = vst [vmem:[%s3560 + $0x28] sm:$0xff] %v3549
        %3567 = vst [vmem:[%s3560 + $0x30] sm:$0xff] %v3550
        %3568 = vst [vmem:[%s3560 + $0x38] sm:$0xff] %v3551
        %3569 = vst [vmem:[%s3560 + $0x40] sm:$0xff] %v3552
        %3570 = vst [vmem:[%s3560 + $0x48] sm:$0xff] %v3553
        %3571 = vst [vmem:[%s3560 + $0x50] sm:$0xff] %v3554
        %3572 = vst [vmem:[%s3560 + $0x58] sm:$0xff] %v3555
        %3573 = vst [vmem:[%s3560 + $0x60] sm:$0xff] %v3556
        %3574 = vst [vmem:[%s3560 + $0x68] sm:$0xff] %v3557
        %3575 = vst [vmem:[%s3560 + $0x70] sm:$0xff] %v3558
        %3576 = vst [vmem:[%s3560 + $0x78] sm:$0xff] %v3559
        %v3577 = vpack.c.bf16 %v3545, %v3544
        %v3578 = vpack.c.bf16 %v3547, %v3546
        %v3579 = vpack.c.bf16 %v3549, %v3548
        %v3580 = vpack.c.bf16 %v3551, %v3550
        %v3581 = vpack.c.bf16 %v3553, %v3552
        %v3582 = vpack.c.bf16 %v3555, %v3554
        %v3583 = vpack.c.bf16 %v3557, %v3556
        %v3584 = vpack.c.bf16 %v3559, %v3558
        %3585 = vrot.lane.b32.xlu0 %v820, 108
        %v3586 = vpop.permute.xlu0 %3585
        %3587 = vrot.lane.b32.xlu0 %v821, 108
        %v3588 = vpop.permute.xlu0 %3587
        %3589 = vrot.lane.b32.xlu0 %v822, 108
        %v3590 = vpop.permute.xlu0 %3589
        %3591 = vrot.lane.b32.xlu0 %v823, 108
        %v3592 = vpop.permute.xlu0 %3591
        %3593 = vrot.lane.b32.xlu0 %v824, 108
        %v3594 = vpop.permute.xlu0 %3593
        %3595 = vrot.lane.b32.xlu0 %v825, 108
        %v3596 = vpop.permute.xlu0 %3595
        %3597 = vrot.lane.b32.xlu0 %v826, 108
        %v3598 = vpop.permute.xlu0 %3597
        %3599 = vrot.lane.b32.xlu0 %v827, 108
        %v3600 = vpop.permute.xlu0 %3599
        %3609 = vmatprep.subr.bf16.mxu0 0
        %3610 = vmatpush1.bf16.msra.mxu0 %v3586
        %3611 = vmatprep.subr.bf16.mxu0 0
        %3612 = vmatpush1.bf16.msra.mxu0 %v3588
        %3613 = vmatprep.subr.bf16.mxu0 0
        %3614 = vmatpush1.bf16.msra.mxu0 %v3590
        %3615 = vmatprep.subr.bf16.mxu0 0
        %3616 = vmatpush1.bf16.msra.mxu0 %v3592
        %3617 = vmatprep.subr.bf16.mxu0 0
        %3618 = vmatpush1.bf16.msra.mxu0 %v3594
        %3619 = vmatprep.subr.bf16.mxu0 0
        %3620 = vmatpush1.bf16.msra.mxu0 %v3596
        %3621 = vmatprep.subr.bf16.mxu0 0
        %3622 = vmatpush1.bf16.msra.mxu0 %v3598
        %3623 = vmatprep.subr.bf16.mxu0 0
        %3624 = vmatpush1.bf16.msra.mxu0 %v3600
        %3625 = vmatprep.subr.bf16.mxu0 0
        %3626 = vmatpush1.bf16.msra.mxu0 0
        %3627 = vmatprep.subr.bf16.mxu0 0
        %3628 = vmatpush1.bf16.msra.mxu0 0
        %3629 = vmatprep.subr.bf16.mxu0 0
        %3630 = vmatpush1.bf16.msra.mxu0 0
        %3631 = vmatprep.subr.bf16.mxu0 0
        %3632 = vmatpush1.bf16.msra.mxu0 0
        %3633 = vmatprep.subr.bf16.mxu0 0
        %3634 = vmatpush1.bf16.msra.mxu0 0
        %3635 = vmatprep.subr.bf16.mxu0 0
        %3636 = vmatpush1.bf16.msra.mxu0 0
        %3637 = vmatprep.subr.bf16.mxu0 0
        %3638 = vmatpush1.bf16.msra.mxu0 0
        %3639 = vmatprep.subr.bf16.mxu0 0
        %3640 = vmatpush1.bf16.msra.mxu0 0
        %3641 = vmatprep.mubr.bf16.mxu0 0
        %3642 = vmatmul.mubr.bf16.gmra.mrb[0].mxu0 %v3577
        %v3643 = vpop.f32.mrb[0].mxu0
        %v3644 = vadd.f32 0.0, %v3643
        %v3645 = vpop.f32.mrb[0].mxu0
        %v3646 = vpop.f32.mrb[0].mxu0
        %v3647 = vadd.f32 0.0, %v3646
        %v3648 = vpop.f32.mrb[0].mxu0
        %3649 = vmatprep.mubr.bf16.mxu0 0
        %3650 = vmatmul.mubr.bf16.gmra.mrb[0].mxu0 %v3578
        %v3651 = vpop.f32.mrb[0].mxu0
        %v3652 = vadd.f32 0.0, %v3651
        %v3653 = vpop.f32.mrb[0].mxu0
        %v3654 = vpop.f32.mrb[0].mxu0
        %v3655 = vadd.f32 0.0, %v3654
        %v3656 = vpop.f32.mrb[0].mxu0
        %3657 = vmatprep.mubr.bf16.mxu0 0
        %3658 = vmatmul.mubr.bf16.gmra.mrb[0].mxu0 %v3579
        %v3659 = vpop.f32.mrb[0].mxu0
        %v3660 = vadd.f32 0.0, %v3659
        %v3661 = vpop.f32.mrb[0].mxu0
        %v3662 = vpop.f32.mrb[0].mxu0
        %v3663 = vadd.f32 0.0, %v3662
        %v3664 = vpop.f32.mrb[0].mxu0
        %3665 = vmatprep.mubr.bf16.mxu0 0
        %3666 = vmatmul.mubr.bf16.gmra.mrb[0].mxu0 %v3580
        %v3667 = vpop.f32.mrb[0].mxu0
        %v3668 = vadd.f32 0.0, %v3667
        %v3669 = vpop.f32.mrb[0].mxu0
        %v3670 = vpop.f32.mrb[0].mxu0
        %v3671 = vadd.f32 0.0, %v3670
        %v3672 = vpop.f32.mrb[0].mxu0
        %3673 = vmatprep.mubr.bf16.mxu0 0
        %3674 = vmatmul.mubr.bf16.gmra.mrb[0].mxu0 %v3581
        %v3675 = vpop.f32.mrb[0].mxu0
        %v3676 = vadd.f32 0.0, %v3675
        %v3677 = vpop.f32.mrb[0].mxu0
        %v3678 = vpop.f32.mrb[0].mxu0
        %v3679 = vadd.f32 0.0, %v3678
        %v3680 = vpop.f32.mrb[0].mxu0
        %3681 = vmatprep.mubr.bf16.mxu0 0
        %3682 = vmatmul.mubr.bf16.gmra.mrb[0].mxu0 %v3582
        %v3683 = vpop.f32.mrb[0].mxu0
        %v3684 = vadd.f32 0.0, %v3683
        %v3685 = vpop.f32.mrb[0].mxu0
        %v3686 = vpop.f32.mrb[0].mxu0
        %v3687 = vadd.f32 0.0, %v3686
        %v3688 = vpop.f32.mrb[0].mxu0
        %3689 = vmatprep.mubr.bf16.mxu0 0
        %3690 = vmatmul.mubr.bf16.gmra.mrb[0].mxu0 %v3583
        %v3691 = vpop.f32.mrb[0].mxu0
        %v3692 = vadd.f32 0.0, %v3691
        %v3693 = vpop.f32.mrb[0].mxu0
        %v3694 = vpop.f32.mrb[0].mxu0
        %v3695 = vadd.f32 0.0, %v3694
        %v3696 = vpop.f32.mrb[0].mxu0
        %3697 = vmatprep.mubr.bf16.mxu0 0
        %3698 = vmatmul.mubr.bf16.gmra.mrb[0].mxu0 %v3584
        %v3699 = vpop.f32.mrb[0].mxu0
        %v3700 = vadd.f32 0.0, %v3699
        %v3701 = vpop.f32.mrb[0].mxu0
        %v3702 = vpop.f32.mrb[0].mxu0
        %v3703 = vadd.f32 0.0, %v3702
        %v3704 = vpop.f32.mrb[0].mxu0
        %3705 = vdwg.mxu0
        %3706 = vrot.lane.b32.xlu0 %v574, 104
        %v3707 = vpop.permute.xlu0 %3706
        %3708 = vrot.lane.b32.xlu0 %v575, 104
        %v3709 = vpop.permute.xlu0 %3708
        %3710 = vrot.lane.b32.xlu0 %v576, 104
        %v3711 = vpop.permute.xlu0 %3710
        %3712 = vrot.lane.b32.xlu0 %v577, 104
        %v3713 = vpop.permute.xlu0 %3712
        %3714 = vrot.lane.b32.xlu0 %v578, 104
        %v3715 = vpop.permute.xlu0 %3714
        %3716 = vrot.lane.b32.xlu0 %v579, 104
        %v3717 = vpop.permute.xlu0 %3716
        %3718 = vrot.lane.b32.xlu0 %v580, 104
        %v3719 = vpop.permute.xlu0 %3718
        %3720 = vrot.lane.b32.xlu0 %v581, 104
        %v3721 = vpop.permute.xlu0 %3720
        %3722 = vrot.lane.b32.xlu0 %v697, 104
        %v3723 = vpop.permute.xlu0 %3722
        %3724 = vrot.lane.b32.xlu0 %v698, 104
        %v3725 = vpop.permute.xlu0 %3724
        %3726 = vrot.lane.b32.xlu0 %v699, 104
        %v3727 = vpop.permute.xlu0 %3726
        %3728 = vrot.lane.b32.xlu0 %v700, 104
        %v3729 = vpop.permute.xlu0 %3728
        %3730 = vrot.lane.b32.xlu0 %v701, 104
        %v3731 = vpop.permute.xlu0 %3730
        %3732 = vrot.lane.b32.xlu0 %v702, 104
        %v3733 = vpop.permute.xlu0 %3732
        %3734 = vrot.lane.b32.xlu0 %v703, 104
        %v3735 = vpop.permute.xlu0 %3734
        %3736 = vrot.lane.b32.xlu0 %v704, 104
        %v3737 = vpop.permute.xlu0 %3736
        %v3739 = vsel %vm834, %v3707, 0
        %v3742 = vsel %vm834, %v3709, 0
        %v3745 = vsel %vm834, %v3711, 0
        %v3748 = vsel %vm834, %v3713, 0
        %v3751 = vsel %vm834, %v3715, 0
        %v3754 = vsel %vm834, %v3717, 0
        %v3757 = vsel %vm834, %v3719, 0
        %v3760 = vsel %vm834, %v3721, 0
        %v3763 = vsel %vm834, %v3723, 0
        %v3766 = vsel %vm834, %v3725, 0
        %v3769 = vsel %vm834, %v3727, 0
        %v3772 = vsel %vm834, %v3729, 0
        %v3775 = vsel %vm834, %v3731, 0
        %v3778 = vsel %vm834, %v3733, 0
        %v3781 = vsel %vm834, %v3735, 0
        %v3784 = vsel %vm834, %v3737, 0
        %3786 = vmatprep.subr.bf16.mxu0 0
        %3787 = vmatpush1.bf16.xpose.msra.mxu0 %v3763
        %3788 = vmatprep.subr.bf16.mxu0 0
        %3789 = vmatpush1.bf16.xpose.msra.mxu0 %v3766
        %3790 = vmatprep.subr.bf16.mxu0 0
        %3791 = vmatpush1.bf16.xpose.msra.mxu0 %v3769
        %3792 = vmatprep.subr.bf16.mxu0 0
        %3793 = vmatpush1.bf16.xpose.msra.mxu0 %v3772
        %3794 = vmatprep.subr.bf16.mxu0 0
        %3795 = vmatpush1.bf16.xpose.msra.mxu0 %v3775
        %3796 = vmatprep.subr.bf16.mxu0 0
        %3797 = vmatpush1.bf16.xpose.msra.mxu0 %v3778
        %3798 = vmatprep.subr.bf16.mxu0 0
        %3799 = vmatpush1.bf16.xpose.msra.mxu0 %v3781
        %3800 = vmatprep.subr.bf16.mxu0 0
        %3801 = vmatpush1.bf16.xpose.msra.mxu0 %v3784
        %3802 = vmatprep.subr.bf16.mxu0 0
        %3803 = vmatpush1.bf16.xpose.msra.mxu0 0
        %3804 = vmatprep.subr.bf16.mxu0 0
        %3805 = vmatpush1.bf16.xpose.msra.mxu0 0
        %3806 = vmatprep.subr.bf16.mxu0 0
        %3807 = vmatpush1.bf16.xpose.msra.mxu0 0
        %3808 = vmatprep.subr.bf16.mxu0 0
        %3809 = vmatpush1.bf16.xpose.msra.mxu0 0
        %3810 = vmatprep.subr.bf16.mxu0 0
        %3811 = vmatpush1.bf16.xpose.msra.mxu0 0
        %3812 = vmatprep.subr.bf16.mxu0 0
        %3813 = vmatpush1.bf16.xpose.msra.mxu0 0
        %3814 = vmatprep.subr.bf16.mxu0 0
        %3815 = vmatpush1.bf16.xpose.msra.mxu0 0
        %3816 = vmatprep.subr.bf16.mxu0 0
        %3817 = vmatpush1.bf16.xpose.msra.mxu0 0
        %3818 = vmatprep.mubr.bf16.mxu0 0
        %3819 = vmatmul.mubr.bf16.gmra.mrb[0].mxu0 %v3739
        %v3820 = vpop.f32.mrb[0].mxu0
        %v3821 = vadd.f32 0.0, %v3820
        %v3822 = vpop.f32.mrb[0].mxu0
        %v3823 = vpop.f32.mrb[0].mxu0
        %v3824 = vadd.f32 0.0, %v3823
        %v3825 = vpop.f32.mrb[0].mxu0
        %3826 = vmatprep.mubr.bf16.mxu0 0
        %3827 = vmatmul.mubr.bf16.gmra.mrb[0].mxu0 %v3742
        %v3828 = vpop.f32.mrb[0].mxu0
        %v3829 = vadd.f32 0.0, %v3828
        %v3830 = vpop.f32.mrb[0].mxu0
        %v3831 = vpop.f32.mrb[0].mxu0
        %v3832 = vadd.f32 0.0, %v3831
        %v3833 = vpop.f32.mrb[0].mxu0
        %3834 = vmatprep.mubr.bf16.mxu0 0
        %3835 = vmatmul.mubr.bf16.gmra.mrb[0].mxu0 %v3745
        %v3836 = vpop.f32.mrb[0].mxu0
        %v3837 = vadd.f32 0.0, %v3836
        %v3838 = vpop.f32.mrb[0].mxu0
        %v3839 = vpop.f32.mrb[0].mxu0
        %v3840 = vadd.f32 0.0, %v3839
        %v3841 = vpop.f32.mrb[0].mxu0
        %3842 = vmatprep.mubr.bf16.mxu0 0
        %3843 = vmatmul.mubr.bf16.gmra.mrb[0].mxu0 %v3748
        %v3844 = vpop.f32.mrb[0].mxu0
        %v3845 = vadd.f32 0.0, %v3844
        %v3846 = vpop.f32.mrb[0].mxu0
        %v3847 = vpop.f32.mrb[0].mxu0
        %v3848 = vadd.f32 0.0, %v3847
        %v3849 = vpop.f32.mrb[0].mxu0
        %3850 = vmatprep.mubr.bf16.mxu0 0
        %3851 = vmatmul.mubr.bf16.gmra.mrb[0].mxu0 %v3751
        %v3852 = vpop.f32.mrb[0].mxu0
        %v3853 = vadd.f32 0.0, %v3852
        %v3854 = vpop.f32.mrb[0].mxu0
        %v3855 = vpop.f32.mrb[0].mxu0
        %v3856 = vadd.f32 0.0, %v3855
        %v3857 = vpop.f32.mrb[0].mxu0
        %3858 = vmatprep.mubr.bf16.mxu0 0
        %3859 = vmatmul.mubr.bf16.gmra.mrb[0].mxu0 %v3754
        %v3860 = vpop.f32.mrb[0].mxu0
        %v3861 = vadd.f32 0.0, %v3860
        %v3862 = vpop.f32.mrb[0].mxu0
        %v3863 = vpop.f32.mrb[0].mxu0
        %v3864 = vadd.f32 0.0, %v3863
        %v3865 = vpop.f32.mrb[0].mxu0
        %3866 = vmatprep.mubr.bf16.mxu0 0
        %3867 = vmatmul.mubr.bf16.gmra.mrb[0].mxu0 %v3757
        %v3868 = vpop.f32.mrb[0].mxu0
        %v3869 = vadd.f32 0.0, %v3868
        %v3870 = vpop.f32.mrb[0].mxu0
        %v3871 = vpop.f32.mrb[0].mxu0
        %v3872 = vadd.f32 0.0, %v3871
        %v3873 = vpop.f32.mrb[0].mxu0
        %3874 = vmatprep.mubr.bf16.mxu0 0
        %3875 = vmatmul.mubr.bf16.gmra.mrb[0].mxu0 %v3760
        %v3876 = vpop.f32.mrb[0].mxu0
        %v3877 = vadd.f32 0.0, %v3876
        %v3878 = vpop.f32.mrb[0].mxu0
        %v3879 = vpop.f32.mrb[0].mxu0
        %v3880 = vadd.f32 0.0, %v3879
        %v3881 = vpop.f32.mrb[0].mxu0
        %3882 = vdwg.mxu0
        %v3883 = vsub.f32 %v3821, %v984
        %v3884 = vsub.f32 %v3824, %v984
        %v3885 = vsub.f32 %v3829, %v984
        %v3886 = vsub.f32 %v3832, %v984
        %v3887 = vsub.f32 %v3837, %v984
        %v3888 = vsub.f32 %v3840, %v984
        %v3889 = vsub.f32 %v3845, %v984
        %v3890 = vsub.f32 %v3848, %v984
        %v3891 = vsub.f32 %v3853, %v984
        %v3892 = vsub.f32 %v3856, %v984
        %v3893 = vsub.f32 %v3861, %v984
        %v3894 = vsub.f32 %v3864, %v984
        %v3895 = vsub.f32 %v3869, %v984
        %v3896 = vsub.f32 %v3872, %v984
        %v3897 = vsub.f32 %v3877, %v984
        %v3898 = vsub.f32 %v3880, %v984
        %3899 = vmax.xlane.f32.xlu0 %v3883
        %v3900 = vpop.xlane.xlu0 %3899
        %3901 = vmax.xlane.f32.xlu0 %v3884
        %v3902 = vpop.xlane.xlu0 %3901
        %3903 = vmax.xlane.f32.xlu0 %v3885
        %v3904 = vpop.xlane.xlu0 %3903
        %3905 = vmax.xlane.f32.xlu0 %v3886
        %v3906 = vpop.xlane.xlu0 %3905
        %3907 = vmax.xlane.f32.xlu0 %v3887
        %v3908 = vpop.xlane.xlu0 %3907
        %3909 = vmax.xlane.f32.xlu0 %v3888
        %v3910 = vpop.xlane.xlu0 %3909
        %3911 = vmax.xlane.f32.xlu0 %v3889
        %v3912 = vpop.xlane.xlu0 %3911
        %3913 = vmax.xlane.f32.xlu0 %v3890
        %v3914 = vpop.xlane.xlu0 %3913
        %3915 = vmax.xlane.f32.xlu0 %v3891
        %v3916 = vpop.xlane.xlu0 %3915
        %3917 = vmax.xlane.f32.xlu0 %v3892
        %v3918 = vpop.xlane.xlu0 %3917
        %3919 = vmax.xlane.f32.xlu0 %v3893
        %v3920 = vpop.xlane.xlu0 %3919
        %3921 = vmax.xlane.f32.xlu0 %v3894
        %v3922 = vpop.xlane.xlu0 %3921
        %3923 = vmax.xlane.f32.xlu0 %v3895
        %v3924 = vpop.xlane.xlu0 %3923
        %3925 = vmax.xlane.f32.xlu0 %v3896
        %v3926 = vpop.xlane.xlu0 %3925
        %3927 = vmax.xlane.f32.xlu0 %v3897
        %v3928 = vpop.xlane.xlu0 %3927
        %3929 = vmax.xlane.f32.xlu0 %v3898
        %v3930 = vpop.xlane.xlu0 %3929
        %v3931 = vsub.f32 %v3883, %v3900
        %v3932 = vsub.f32 %v3884, %v3902
        %v3933 = vsub.f32 %v3885, %v3904
        %v3934 = vsub.f32 %v3886, %v3906
        %v3935 = vsub.f32 %v3887, %v3908
        %v3936 = vsub.f32 %v3888, %v3910
        %v3937 = vsub.f32 %v3889, %v3912
        %v3938 = vsub.f32 %v3890, %v3914
        %v3939 = vsub.f32 %v3891, %v3916
        %v3940 = vsub.f32 %v3892, %v3918
        %v3941 = vsub.f32 %v3893, %v3920
        %v3942 = vsub.f32 %v3894, %v3922
        %v3943 = vsub.f32 %v3895, %v3924
        %v3944 = vsub.f32 %v3896, %v3926
        %v3945 = vsub.f32 %v3897, %v3928
        %v3946 = vsub.f32 %v3898, %v3930
        %v3947 = vmul.f32 %v3931, 1.442695
        %v3948 = vpow.pop %v3947
        %v3949 = vmul.f32 %v3932, 1.442695
        %v3950 = vpow.pop %v3949
        %v3951 = vmul.f32 %v3933, 1.442695
        %v3952 = vpow.pop %v3951
        %v3953 = vmul.f32 %v3934, 1.442695
        %v3954 = vpow.pop %v3953
        %v3955 = vmul.f32 %v3935, 1.442695
        %v3956 = vpow.pop %v3955
        %v3957 = vmul.f32 %v3936, 1.442695
        %v3958 = vpow.pop %v3957
        %v3959 = vmul.f32 %v3937, 1.442695
        %v3960 = vpow.pop %v3959
        %v3961 = vmul.f32 %v3938, 1.442695
        %v3962 = vpow.pop %v3961
        %v3963 = vmul.f32 %v3939, 1.442695
        %v3964 = vpow.pop %v3963
        %v3965 = vmul.f32 %v3940, 1.442695
        %v3966 = vpow.pop %v3965
        %v3967 = vmul.f32 %v3941, 1.442695
        %v3968 = vpow.pop %v3967
        %v3969 = vmul.f32 %v3942, 1.442695
        %v3970 = vpow.pop %v3969
        %v3971 = vmul.f32 %v3943, 1.442695
        %v3972 = vpow.pop %v3971
        %v3973 = vmul.f32 %v3944, 1.442695
        %v3974 = vpow.pop %v3973
        %v3975 = vmul.f32 %v3945, 1.442695
        %v3976 = vpow.pop %v3975
        %v3977 = vmul.f32 %v3946, 1.442695
        %v3978 = vpow.pop %v3977
        %3979 = vadd.xlane.f32.xlu0 %v3948
        %v3980 = vpop.xlane.xlu0 %3979
        %3981 = vadd.xlane.f32.xlu0 %v3950
        %v3982 = vpop.xlane.xlu0 %3981
        %3983 = vadd.xlane.f32.xlu0 %v3952
        %v3984 = vpop.xlane.xlu0 %3983
        %3985 = vadd.xlane.f32.xlu0 %v3954
        %v3986 = vpop.xlane.xlu0 %3985
        %3987 = vadd.xlane.f32.xlu0 %v3956
        %v3988 = vpop.xlane.xlu0 %3987
        %3989 = vadd.xlane.f32.xlu0 %v3958
        %v3990 = vpop.xlane.xlu0 %3989
        %3991 = vadd.xlane.f32.xlu0 %v3960
        %v3992 = vpop.xlane.xlu0 %3991
        %3993 = vadd.xlane.f32.xlu0 %v3962
        %v3994 = vpop.xlane.xlu0 %3993
        %3995 = vadd.xlane.f32.xlu0 %v3964
        %v3996 = vpop.xlane.xlu0 %3995
        %3997 = vadd.xlane.f32.xlu0 %v3966
        %v3998 = vpop.xlane.xlu0 %3997
        %3999 = vadd.xlane.f32.xlu0 %v3968
        %v4000 = vpop.xlane.xlu0 %3999
        %4001 = vadd.xlane.f32.xlu0 %v3970
        %v4002 = vpop.xlane.xlu0 %4001
        %4003 = vadd.xlane.f32.xlu0 %v3972
        %v4004 = vpop.xlane.xlu0 %4003
        %4005 = vadd.xlane.f32.xlu0 %v3974
        %v4006 = vpop.xlane.xlu0 %4005
        %4007 = vadd.xlane.f32.xlu0 %v3976
        %v4008 = vpop.xlane.xlu0 %4007
        %4009 = vadd.xlane.f32.xlu0 %v3978
        %v4010 = vpop.xlane.xlu0 %4009
        %v4011 = vrcp.pop %v3980
        %v4012 = vrcp.pop %v3982
        %v4013 = vrcp.pop %v3984
        %v4014 = vrcp.pop %v3986
        %v4015 = vrcp.pop %v3988
        %v4016 = vrcp.pop %v3990
        %v4017 = vrcp.pop %v3992
        %v4018 = vrcp.pop %v3994
        %v4019 = vrcp.pop %v3996
        %v4020 = vrcp.pop %v3998
        %v4021 = vrcp.pop %v4000
        %v4022 = vrcp.pop %v4002
        %v4023 = vrcp.pop %v4004
        %v4024 = vrcp.pop %v4006
        %v4025 = vrcp.pop %v4008
        %v4026 = vrcp.pop %v4010
        %v4027 = vmul.f32 %v3948, %v4011
        %v4028 = vmul.f32 %v3950, %v4012
        %v4029 = vmul.f32 %v3952, %v4013
        %v4030 = vmul.f32 %v3954, %v4014
        %v4031 = vmul.f32 %v3956, %v4015
        %v4032 = vmul.f32 %v3958, %v4016
        %v4033 = vmul.f32 %v3960, %v4017
        %v4034 = vmul.f32 %v3962, %v4018
        %v4035 = vmul.f32 %v3964, %v4019
        %v4036 = vmul.f32 %v3966, %v4020
        %v4037 = vmul.f32 %v3968, %v4021
        %v4038 = vmul.f32 %v3970, %v4022
        %v4039 = vmul.f32 %v3972, %v4023
        %v4040 = vmul.f32 %v3974, %v4024
        %v4041 = vmul.f32 %v3976, %v4025
        %v4042 = vmul.f32 %v3978, %v4026
        %s4043 = scalar_lea.vmem %s331, 768 [#allocation2]
        %4044 = vst [vmem:[%s4043] sm:$0xff] %v4027
        %4045 = vst [vmem:[%s4043 + $0x8] sm:$0xff] %v4028
        %4046 = vst [vmem:[%s4043 + $0x10] sm:$0xff] %v4029
        %4047 = vst [vmem:[%s4043 + $0x18] sm:$0xff] %v4030
        %4048 = vst [vmem:[%s4043 + $0x20] sm:$0xff] %v4031
        %4049 = vst [vmem:[%s4043 + $0x28] sm:$0xff] %v4032
        %4050 = vst [vmem:[%s4043 + $0x30] sm:$0xff] %v4033
        %4051 = vst [vmem:[%s4043 + $0x38] sm:$0xff] %v4034
        %4052 = vst [vmem:[%s4043 + $0x40] sm:$0xff] %v4035
        %4053 = vst [vmem:[%s4043 + $0x48] sm:$0xff] %v4036
        %4054 = vst [vmem:[%s4043 + $0x50] sm:$0xff] %v4037
        %4055 = vst [vmem:[%s4043 + $0x58] sm:$0xff] %v4038
        %4056 = vst [vmem:[%s4043 + $0x60] sm:$0xff] %v4039
        %4057 = vst [vmem:[%s4043 + $0x68] sm:$0xff] %v4040
        %4058 = vst [vmem:[%s4043 + $0x70] sm:$0xff] %v4041
        %4059 = vst [vmem:[%s4043 + $0x78] sm:$0xff] %v4042
        %v4060 = vpack.c.bf16 %v4028, %v4027
        %v4061 = vpack.c.bf16 %v4030, %v4029
        %v4062 = vpack.c.bf16 %v4032, %v4031
        %v4063 = vpack.c.bf16 %v4034, %v4033
        %v4064 = vpack.c.bf16 %v4036, %v4035
        %v4065 = vpack.c.bf16 %v4038, %v4037
        %v4066 = vpack.c.bf16 %v4040, %v4039
        %v4067 = vpack.c.bf16 %v4042, %v4041
        %4068 = vrot.lane.b32.xlu0 %v820, 104
        %v4069 = vpop.permute.xlu0 %4068
        %4070 = vrot.lane.b32.xlu0 %v821, 104
        %v4071 = vpop.permute.xlu0 %4070
        %4072 = vrot.lane.b32.xlu0 %v822, 104
        %v4073 = vpop.permute.xlu0 %4072
        %4074 = vrot.lane.b32.xlu0 %v823, 104
        %v4075 = vpop.permute.xlu0 %4074
        %4076 = vrot.lane.b32.xlu0 %v824, 104
        %v4077 = vpop.permute.xlu0 %4076
        %4078 = vrot.lane.b32.xlu0 %v825, 104
        %v4079 = vpop.permute.xlu0 %4078
        %4080 = vrot.lane.b32.xlu0 %v826, 104
        %v4081 = vpop.permute.xlu0 %4080
        %4082 = vrot.lane.b32.xlu0 %v827, 104
        %v4083 = vpop.permute.xlu0 %4082
        %4092 = vmatprep.subr.bf16.mxu0 0
        %4093 = vmatpush1.bf16.msra.mxu0 %v4069
        %4094 = vmatprep.subr.bf16.mxu0 0
        %4095 = vmatpush1.bf16.msra.mxu0 %v4071
        %4096 = vmatprep.subr.bf16.mxu0 0
        %4097 = vmatpush1.bf16.msra.mxu0 %v4073
        %4098 = vmatprep.subr.bf16.mxu0 0
        %4099 = vmatpush1.bf16.msra.mxu0 %v4075
        %4100 = vmatprep.subr.bf16.mxu0 0
        %4101 = vmatpush1.bf16.msra.mxu0 %v4077
        %4102 = vmatprep.subr.bf16.mxu0 0
        %4103 = vmatpush1.bf16.msra.mxu0 %v4079
        %4104 = vmatprep.subr.bf16.mxu0 0
        %4105 = vmatpush1.bf16.msra.mxu0 %v4081
        %4106 = vmatprep.subr.bf16.mxu0 0
        %4107 = vmatpush1.bf16.msra.mxu0 %v4083
        %4108 = vmatprep.subr.bf16.mxu0 0
        %4109 = vmatpush1.bf16.msra.mxu0 0
        %4110 = vmatprep.subr.bf16.mxu0 0
        %4111 = vmatpush1.bf16.msra.mxu0 0
        %4112 = vmatprep.subr.bf16.mxu0 0
        %4113 = vmatpush1.bf16.msra.mxu0 0
        %4114 = vmatprep.subr.bf16.mxu0 0
        %4115 = vmatpush1.bf16.msra.mxu0 0
        %4116 = vmatprep.subr.bf16.mxu0 0
        %4117 = vmatpush1.bf16.msra.mxu0 0
        %4118 = vmatprep.subr.bf16.mxu0 0
        %4119 = vmatpush1.bf16.msra.mxu0 0
        %4120 = vmatprep.subr.bf16.mxu0 0
        %4121 = vmatpush1.bf16.msra.mxu0 0
        %4122 = vmatprep.subr.bf16.mxu0 0
        %4123 = vmatpush1.bf16.msra.mxu0 0
        %4124 = vmatprep.mubr.bf16.mxu0 0
        %4125 = vmatmul.mubr.bf16.gmra.mrb[0].mxu0 %v4060
        %v4126 = vpop.f32.mrb[0].mxu0
        %v4127 = vadd.f32 0.0, %v4126
        %v4128 = vpop.f32.mrb[0].mxu0
        %v4129 = vpop.f32.mrb[0].mxu0
        %v4130 = vadd.f32 0.0, %v4129
        %v4131 = vpop.f32.mrb[0].mxu0
        %4132 = vmatprep.mubr.bf16.mxu0 0
        %4133 = vmatmul.mubr.bf16.gmra.mrb[0].mxu0 %v4061
        %v4134 = vpop.f32.mrb[0].mxu0
        %v4135 = vadd.f32 0.0, %v4134
        %v4136 = vpop.f32.mrb[0].mxu0
        %v4137 = vpop.f32.mrb[0].mxu0
        %v4138 = vadd.f32 0.0, %v4137
        %v4139 = vpop.f32.mrb[0].mxu0
        %4140 = vmatprep.mubr.bf16.mxu0 0
        %4141 = vmatmul.mubr.bf16.gmra.mrb[0].mxu0 %v4062
        %v4142 = vpop.f32.mrb[0].mxu0
        %v4143 = vadd.f32 0.0, %v4142
        %v4144 = vpop.f32.mrb[0].mxu0
        %v4145 = vpop.f32.mrb[0].mxu0
        %v4146 = vadd.f32 0.0, %v4145
        %v4147 = vpop.f32.mrb[0].mxu0
        %4148 = vmatprep.mubr.bf16.mxu0 0
        %4149 = vmatmul.mubr.bf16.gmra.mrb[0].mxu0 %v4063
        %v4150 = vpop.f32.mrb[0].mxu0
        %v4151 = vadd.f32 0.0, %v4150
        %v4152 = vpop.f32.mrb[0].mxu0
        %v4153 = vpop.f32.mrb[0].mxu0
        %v4154 = vadd.f32 0.0, %v4153
        %v4155 = vpop.f32.mrb[0].mxu0
        %4156 = vmatprep.mubr.bf16.mxu0 0
        %4157 = vmatmul.mubr.bf16.gmra.mrb[0].mxu0 %v4064
        %v4158 = vpop.f32.mrb[0].mxu0
        %v4159 = vadd.f32 0.0, %v4158
        %v4160 = vpop.f32.mrb[0].mxu0
        %v4161 = vpop.f32.mrb[0].mxu0
        %v4162 = vadd.f32 0.0, %v4161
        %v4163 = vpop.f32.mrb[0].mxu0
        %4164 = vmatprep.mubr.bf16.mxu0 0
        %4165 = vmatmul.mubr.bf16.gmra.mrb[0].mxu0 %v4065
        %v4166 = vpop.f32.mrb[0].mxu0
        %v4167 = vadd.f32 0.0, %v4166
        %v4168 = vpop.f32.mrb[0].mxu0
        %v4169 = vpop.f32.mrb[0].mxu0
        %v4170 = vadd.f32 0.0, %v4169
        %v4171 = vpop.f32.mrb[0].mxu0
        %4172 = vmatprep.mubr.bf16.mxu0 0
        %4173 = vmatmul.mubr.bf16.gmra.mrb[0].mxu0 %v4066
        %v4174 = vpop.f32.mrb[0].mxu0
        %v4175 = vadd.f32 0.0, %v4174
        %v4176 = vpop.f32.mrb[0].mxu0
        %v4177 = vpop.f32.mrb[0].mxu0
        %v4178 = vadd.f32 0.0, %v4177
        %v4179 = vpop.f32.mrb[0].mxu0
        %4180 = vmatprep.mubr.bf16.mxu0 0
        %4181 = vmatmul.mubr.bf16.gmra.mrb[0].mxu0 %v4067
        %v4182 = vpop.f32.mrb[0].mxu0
        %v4183 = vadd.f32 0.0, %v4182
        %v4184 = vpop.f32.mrb[0].mxu0
        %v4185 = vpop.f32.mrb[0].mxu0
        %v4186 = vadd.f32 0.0, %v4185
        %v4187 = vpop.f32.mrb[0].mxu0
        %4188 = vdwg.mxu0
        %4189 = vrot.lane.b32.xlu0 %v574, 100
        %v4190 = vpop.permute.xlu0 %4189
        %4191 = vrot.lane.b32.xlu0 %v575, 100
        %v4192 = vpop.permute.xlu0 %4191
        %4193 = vrot.lane.b32.xlu0 %v576, 100
        %v4194 = vpop.permute.xlu0 %4193
        %4195 = vrot.lane.b32.xlu0 %v577, 100
        %v4196 = vpop.permute.xlu0 %4195
        %4197 = vrot.lane.b32.xlu0 %v578, 100
        %v4198 = vpop.permute.xlu0 %4197
        %4199 = vrot.lane.b32.xlu0 %v579, 100
        %v4200 = vpop.permute.xlu0 %4199
        %4201 = vrot.lane.b32.xlu0 %v580, 100
        %v4202 = vpop.permute.xlu0 %4201
        %4203 = vrot.lane.b32.xlu0 %v581, 100
        %v4204 = vpop.permute.xlu0 %4203
        %4205 = vrot.lane.b32.xlu0 %v697, 100
        %v4206 = vpop.permute.xlu0 %4205
        %4207 = vrot.lane.b32.xlu0 %v698, 100
        %v4208 = vpop.permute.xlu0 %4207
        %4209 = vrot.lane.b32.xlu0 %v699, 100
        %v4210 = vpop.permute.xlu0 %4209
        %4211 = vrot.lane.b32.xlu0 %v700, 100
        %v4212 = vpop.permute.xlu0 %4211
        %4213 = vrot.lane.b32.xlu0 %v701, 100
        %v4214 = vpop.permute.xlu0 %4213
        %4215 = vrot.lane.b32.xlu0 %v702, 100
        %v4216 = vpop.permute.xlu0 %4215
        %4217 = vrot.lane.b32.xlu0 %v703, 100
        %v4218 = vpop.permute.xlu0 %4217
        %4219 = vrot.lane.b32.xlu0 %v704, 100
        %v4220 = vpop.permute.xlu0 %4219
        %v4222 = vsel %vm834, %v4190, 0
        %v4225 = vsel %vm834, %v4192, 0
        %v4228 = vsel %vm834, %v4194, 0
        %v4231 = vsel %vm834, %v4196, 0
        %v4234 = vsel %vm834, %v4198, 0
        %v4237 = vsel %vm834, %v4200, 0
        %v4240 = vsel %vm834, %v4202, 0
        %v4243 = vsel %vm834, %v4204, 0
        %v4246 = vsel %vm834, %v4206, 0
        %v4249 = vsel %vm834, %v4208, 0
        %v4252 = vsel %vm834, %v4210, 0
        %v4255 = vsel %vm834, %v4212, 0
        %v4258 = vsel %vm834, %v4214, 0
        %v4261 = vsel %vm834, %v4216, 0
        %v4264 = vsel %vm834, %v4218, 0
        %v4267 = vsel %vm834, %v4220, 0
        %4269 = vmatprep.subr.bf16.mxu0 0
        %4270 = vmatpush1.bf16.xpose.msra.mxu0 %v4246
        %4271 = vmatprep.subr.bf16.mxu0 0
        %4272 = vmatpush1.bf16.xpose.msra.mxu0 %v4249
        %4273 = vmatprep.subr.bf16.mxu0 0
        %4274 = vmatpush1.bf16.xpose.msra.mxu0 %v4252
        %4275 = vmatprep.subr.bf16.mxu0 0
        %4276 = vmatpush1.bf16.xpose.msra.mxu0 %v4255
        %4277 = vmatprep.subr.bf16.mxu0 0
        %4278 = vmatpush1.bf16.xpose.msra.mxu0 %v4258
        %4279 = vmatprep.subr.bf16.mxu0 0
        %4280 = vmatpush1.bf16.xpose.msra.mxu0 %v4261
        %4281 = vmatprep.subr.bf16.mxu0 0
        %4282 = vmatpush1.bf16.xpose.msra.mxu0 %v4264
        %4283 = vmatprep.subr.bf16.mxu0 0
        %4284 = vmatpush1.bf16.xpose.msra.mxu0 %v4267
        %4285 = vmatprep.subr.bf16.mxu0 0
        %4286 = vmatpush1.bf16.xpose.msra.mxu0 0
        %4287 = vmatprep.subr.bf16.mxu0 0
        %4288 = vmatpush1.bf16.xpose.msra.mxu0 0
        %4289 = vmatprep.subr.bf16.mxu0 0
        %4290 = vmatpush1.bf16.xpose.msra.mxu0 0
        %4291 = vmatprep.subr.bf16.mxu0 0
        %4292 = vmatpush1.bf16.xpose.msra.mxu0 0
        %4293 = vmatprep.subr.bf16.mxu0 0
        %4294 = vmatpush1.bf16.xpose.msra.mxu0 0
        %4295 = vmatprep.subr.bf16.mxu0 0
        %4296 = vmatpush1.bf16.xpose.msra.mxu0 0
        %4297 = vmatprep.subr.bf16.mxu0 0
        %4298 = vmatpush1.bf16.xpose.msra.mxu0 0
        %4299 = vmatprep.subr.bf16.mxu0 0
        %4300 = vmatpush1.bf16.xpose.msra.mxu0 0
        %4301 = vmatprep.mubr.bf16.mxu0 0
        %4302 = vmatmul.mubr.bf16.gmra.mrb[0].mxu0 %v4222
        %v4303 = vpop.f32.mrb[0].mxu0
        %v4304 = vadd.f32 0.0, %v4303
        %v4305 = vpop.f32.mrb[0].mxu0
        %v4306 = vpop.f32.mrb[0].mxu0
        %v4307 = vadd.f32 0.0, %v4306
        %v4308 = vpop.f32.mrb[0].mxu0
        %4309 = vmatprep.mubr.bf16.mxu0 0
        %4310 = vmatmul.mubr.bf16.gmra.mrb[0].mxu0 %v4225
        %v4311 = vpop.f32.mrb[0].mxu0
        %v4312 = vadd.f32 0.0, %v4311
        %v4313 = vpop.f32.mrb[0].mxu0
        %v4314 = vpop.f32.mrb[0].mxu0
        %v4315 = vadd.f32 0.0, %v4314
        %v4316 = vpop.f32.mrb[0].mxu0
        %4317 = vmatprep.mubr.bf16.mxu0 0
        %4318 = vmatmul.mubr.bf16.gmra.mrb[0].mxu0 %v4228
        %v4319 = vpop.f32.mrb[0].mxu0
        %v4320 = vadd.f32 0.0, %v4319
        %v4321 = vpop.f32.mrb[0].mxu0
        %v4322 = vpop.f32.mrb[0].mxu0
        %v4323 = vadd.f32 0.0, %v4322
        %v4324 = vpop.f32.mrb[0].mxu0
        %4325 = vmatprep.mubr.bf16.mxu0 0
        %4326 = vmatmul.mubr.bf16.gmra.mrb[0].mxu0 %v4231
        %v4327 = vpop.f32.mrb[0].mxu0
        %v4328 = vadd.f32 0.0, %v4327
        %v4329 = vpop.f32.mrb[0].mxu0
        %v4330 = vpop.f32.mrb[0].mxu0
        %v4331 = vadd.f32 0.0, %v4330
        %v4332 = vpop.f32.mrb[0].mxu0
        %4333 = vmatprep.mubr.bf16.mxu0 0
        %4334 = vmatmul.mubr.bf16.gmra.mrb[0].mxu0 %v4234
        %v4335 = vpop.f32.mrb[0].mxu0
        %v4336 = vadd.f32 0.0, %v4335
        %v4337 = vpop.f32.mrb[0].mxu0
        %v4338 = vpop.f32.mrb[0].mxu0
        %v4339 = vadd.f32 0.0, %v4338
        %v4340 = vpop.f32.mrb[0].mxu0
        %4341 = vmatprep.mubr.bf16.mxu0 0
        %4342 = vmatmul.mubr.bf16.gmra.mrb[0].mxu0 %v4237
        %v4343 = vpop.f32.mrb[0].mxu0
        %v4344 = vadd.f32 0.0, %v4343
        %v4345 = vpop.f32.mrb[0].mxu0
        %v4346 = vpop.f32.mrb[0].mxu0
        %v4347 = vadd.f32 0.0, %v4346
        %v4348 = vpop.f32.mrb[0].mxu0
        %4349 = vmatprep.mubr.bf16.mxu0 0
        %4350 = vmatmul.mubr.bf16.gmra.mrb[0].mxu0 %v4240
        %v4351 = vpop.f32.mrb[0].mxu0
        %v4352 = vadd.f32 0.0, %v4351
        %v4353 = vpop.f32.mrb[0].mxu0
        %v4354 = vpop.f32.mrb[0].mxu0
        %v4355 = vadd.f32 0.0, %v4354
        %v4356 = vpop.f32.mrb[0].mxu0
        %4357 = vmatprep.mubr.bf16.mxu0 0
        %4358 = vmatmul.mubr.bf16.gmra.mrb[0].mxu0 %v4243
        %v4359 = vpop.f32.mrb[0].mxu0
        %v4360 = vadd.f32 0.0, %v4359
        %v4361 = vpop.f32.mrb[0].mxu0
        %v4362 = vpop.f32.mrb[0].mxu0
        %v4363 = vadd.f32 0.0, %v4362
        %v4364 = vpop.f32.mrb[0].mxu0
        %4365 = vdwg.mxu0
        %v4366 = vsub.f32 %v4304, %v984
        %v4367 = vsub.f32 %v4307, %v984
        %v4368 = vsub.f32 %v4312, %v984
        %v4369 = vsub.f32 %v4315, %v984
        %v4370 = vsub.f32 %v4320, %v984
        %v4371 = vsub.f32 %v4323, %v984
        %v4372 = vsub.f32 %v4328, %v984
        %v4373 = vsub.f32 %v4331, %v984
        %v4374 = vsub.f32 %v4336, %v984
        %v4375 = vsub.f32 %v4339, %v984
        %v4376 = vsub.f32 %v4344, %v984
        %v4377 = vsub.f32 %v4347, %v984
        %v4378 = vsub.f32 %v4352, %v984
        %v4379 = vsub.f32 %v4355, %v984
        %v4380 = vsub.f32 %v4360, %v984
        %v4381 = vsub.f32 %v4363, %v984
        %4382 = vmax.xlane.f32.xlu0 %v4366
        %v4383 = vpop.xlane.xlu0 %4382
        %4384 = vmax.xlane.f32.xlu0 %v4367
        %v4385 = vpop.xlane.xlu0 %4384
        %4386 = vmax.xlane.f32.xlu0 %v4368
        %v4387 = vpop.xlane.xlu0 %4386
        %4388 = vmax.xlane.f32.xlu0 %v4369
        %v4389 = vpop.xlane.xlu0 %4388
        %4390 = vmax.xlane.f32.xlu0 %v4370
        %v4391 = vpop.xlane.xlu0 %4390
        %4392 = vmax.xlane.f32.xlu0 %v4371
        %v4393 = vpop.xlane.xlu0 %4392
        %4394 = vmax.xlane.f32.xlu0 %v4372
        %v4395 = vpop.xlane.xlu0 %4394
        %4396 = vmax.xlane.f32.xlu0 %v4373
        %v4397 = vpop.xlane.xlu0 %4396
        %4398 = vmax.xlane.f32.xlu0 %v4374
        %v4399 = vpop.xlane.xlu0 %4398
        %4400 = vmax.xlane.f32.xlu0 %v4375
        %v4401 = vpop.xlane.xlu0 %4400
        %4402 = vmax.xlane.f32.xlu0 %v4376
        %v4403 = vpop.xlane.xlu0 %4402
        %4404 = vmax.xlane.f32.xlu0 %v4377
        %v4405 = vpop.xlane.xlu0 %4404
        %4406 = vmax.xlane.f32.xlu0 %v4378
        %v4407 = vpop.xlane.xlu0 %4406
        %4408 = vmax.xlane.f32.xlu0 %v4379
        %v4409 = vpop.xlane.xlu0 %4408
        %4410 = vmax.xlane.f32.xlu0 %v4380
        %v4411 = vpop.xlane.xlu0 %4410
        %4412 = vmax.xlane.f32.xlu0 %v4381
        %v4413 = vpop.xlane.xlu0 %4412
        %v4414 = vsub.f32 %v4366, %v4383
        %v4415 = vsub.f32 %v4367, %v4385
        %v4416 = vsub.f32 %v4368, %v4387
        %v4417 = vsub.f32 %v4369, %v4389
        %v4418 = vsub.f32 %v4370, %v4391
        %v4419 = vsub.f32 %v4371, %v4393
        %v4420 = vsub.f32 %v4372, %v4395
        %v4421 = vsub.f32 %v4373, %v4397
        %v4422 = vsub.f32 %v4374, %v4399
        %v4423 = vsub.f32 %v4375, %v4401
        %v4424 = vsub.f32 %v4376, %v4403
        %v4425 = vsub.f32 %v4377, %v4405
        %v4426 = vsub.f32 %v4378, %v4407
        %v4427 = vsub.f32 %v4379, %v4409
        %v4428 = vsub.f32 %v4380, %v4411
        %v4429 = vsub.f32 %v4381, %v4413
        %v4430 = vmul.f32 %v4414, 1.442695
        %v4431 = vpow.pop %v4430
        %v4432 = vmul.f32 %v4415, 1.442695
        %v4433 = vpow.pop %v4432
        %v4434 = vmul.f32 %v4416, 1.442695
        %v4435 = vpow.pop %v4434
        %v4436 = vmul.f32 %v4417, 1.442695
        %v4437 = vpow.pop %v4436
        %v4438 = vmul.f32 %v4418, 1.442695
        %v4439 = vpow.pop %v4438
        %v4440 = vmul.f32 %v4419, 1.442695
        %v4441 = vpow.pop %v4440
        %v4442 = vmul.f32 %v4420, 1.442695
        %v4443 = vpow.pop %v4442
        %v4444 = vmul.f32 %v4421, 1.442695
        %v4445 = vpow.pop %v4444
        %v4446 = vmul.f32 %v4422, 1.442695
        %v4447 = vpow.pop %v4446
        %v4448 = vmul.f32 %v4423, 1.442695
        %v4449 = vpow.pop %v4448
        %v4450 = vmul.f32 %v4424, 1.442695
        %v4451 = vpow.pop %v4450
        %v4452 = vmul.f32 %v4425, 1.442695
        %v4453 = vpow.pop %v4452
        %v4454 = vmul.f32 %v4426, 1.442695
        %v4455 = vpow.pop %v4454
        %v4456 = vmul.f32 %v4427, 1.442695
        %v4457 = vpow.pop %v4456
        %v4458 = vmul.f32 %v4428, 1.442695
        %v4459 = vpow.pop %v4458
        %v4460 = vmul.f32 %v4429, 1.442695
        %v4461 = vpow.pop %v4460
        %4462 = vadd.xlane.f32.xlu0 %v4431
        %v4463 = vpop.xlane.xlu0 %4462
        %4464 = vadd.xlane.f32.xlu0 %v4433
        %v4465 = vpop.xlane.xlu0 %4464
        %4466 = vadd.xlane.f32.xlu0 %v4435
        %v4467 = vpop.xlane.xlu0 %4466
        %4468 = vadd.xlane.f32.xlu0 %v4437
        %v4469 = vpop.xlane.xlu0 %4468
        %4470 = vadd.xlane.f32.xlu0 %v4439
        %v4471 = vpop.xlane.xlu0 %4470
        %4472 = vadd.xlane.f32.xlu0 %v4441
        %v4473 = vpop.xlane.xlu0 %4472
        %4474 = vadd.xlane.f32.xlu0 %v4443
        %v4475 = vpop.xlane.xlu0 %4474
        %4476 = vadd.xlane.f32.xlu0 %v4445
        %v4477 = vpop.xlane.xlu0 %4476
        %4478 = vadd.xlane.f32.xlu0 %v4447
        %v4479 = vpop.xlane.xlu0 %4478
        %4480 = vadd.xlane.f32.xlu0 %v4449
        %v4481 = vpop.xlane.xlu0 %4480
        %4482 = vadd.xlane.f32.xlu0 %v4451
        %v4483 = vpop.xlane.xlu0 %4482
        %4484 = vadd.xlane.f32.xlu0 %v4453
        %v4485 = vpop.xlane.xlu0 %4484
        %4486 = vadd.xlane.f32.xlu0 %v4455
        %v4487 = vpop.xlane.xlu0 %4486
        %4488 = vadd.xlane.f32.xlu0 %v4457
        %v4489 = vpop.xlane.xlu0 %4488
        %4490 = vadd.xlane.f32.xlu0 %v4459
        %v4491 = vpop.xlane.xlu0 %4490
        %4492 = vadd.xlane.f32.xlu0 %v4461
        %v4493 = vpop.xlane.xlu0 %4492
        %v4494 = vrcp.pop %v4463
        %v4495 = vrcp.pop %v4465
        %v4496 = vrcp.pop %v4467
        %v4497 = vrcp.pop %v4469
        %v4498 = vrcp.pop %v4471
        %v4499 = vrcp.pop %v4473
        %v4500 = vrcp.pop %v4475
        %v4501 = vrcp.pop %v4477
        %v4502 = vrcp.pop %v4479
        %v4503 = vrcp.pop %v4481
        %v4504 = vrcp.pop %v4483
        %v4505 = vrcp.pop %v4485
        %v4506 = vrcp.pop %v4487
        %v4507 = vrcp.pop %v4489
        %v4508 = vrcp.pop %v4491
        %v4509 = vrcp.pop %v4493
        %v4510 = vmul.f32 %v4431, %v4494
        %v4511 = vmul.f32 %v4433, %v4495
        %v4512 = vmul.f32 %v4435, %v4496
        %v4513 = vmul.f32 %v4437, %v4497
        %v4514 = vmul.f32 %v4439, %v4498
        %v4515 = vmul.f32 %v4441, %v4499
        %v4516 = vmul.f32 %v4443, %v4500
        %v4517 = vmul.f32 %v4445, %v4501
        %v4518 = vmul.f32 %v4447, %v4502
        %v4519 = vmul.f32 %v4449, %v4503
        %v4520 = vmul.f32 %v4451, %v4504
        %v4521 = vmul.f32 %v4453, %v4505
        %v4522 = vmul.f32 %v4455, %v4506
        %v4523 = vmul.f32 %v4457, %v4507
        %v4524 = vmul.f32 %v4459, %v4508
        %v4525 = vmul.f32 %v4461, %v4509
        %s4526 = scalar_lea.vmem %s331, 896 [#allocation2]
        %4527 = vst [vmem:[%s4526] sm:$0xff] %v4510
        %4528 = vst [vmem:[%s4526 + $0x8] sm:$0xff] %v4511
        %4529 = vst [vmem:[%s4526 + $0x10] sm:$0xff] %v4512
        %4530 = vst [vmem:[%s4526 + $0x18] sm:$0xff] %v4513
        %4531 = vst [vmem:[%s4526 + $0x20] sm:$0xff] %v4514
        %4532 = vst [vmem:[%s4526 + $0x28] sm:$0xff] %v4515
        %4533 = vst [vmem:[%s4526 + $0x30] sm:$0xff] %v4516
        %4534 = vst [vmem:[%s4526 + $0x38] sm:$0xff] %v4517
        %4535 = vst [vmem:[%s4526 + $0x40] sm:$0xff] %v4518
        %4536 = vst [vmem:[%s4526 + $0x48] sm:$0xff] %v4519
        %4537 = vst [vmem:[%s4526 + $0x50] sm:$0xff] %v4520
        %4538 = vst [vmem:[%s4526 + $0x58] sm:$0xff] %v4521
        %4539 = vst [vmem:[%s4526 + $0x60] sm:$0xff] %v4522
        %4540 = vst [vmem:[%s4526 + $0x68] sm:$0xff] %v4523
        %4541 = vst [vmem:[%s4526 + $0x70] sm:$0xff] %v4524
        %4542 = vst [vmem:[%s4526 + $0x78] sm:$0xff] %v4525
        %v4543 = vpack.c.bf16 %v4511, %v4510
        %v4544 = vpack.c.bf16 %v4513, %v4512
        %v4545 = vpack.c.bf16 %v4515, %v4514
        %v4546 = vpack.c.bf16 %v4517, %v4516
        %v4547 = vpack.c.bf16 %v4519, %v4518
        %v4548 = vpack.c.bf16 %v4521, %v4520
        %v4549 = vpack.c.bf16 %v4523, %v4522
        %v4550 = vpack.c.bf16 %v4525, %v4524
        %4551 = vrot.lane.b32.xlu0 %v820, 100
        %v4552 = vpop.permute.xlu0 %4551
        %4553 = vrot.lane.b32.xlu0 %v821, 100
        %v4554 = vpop.permute.xlu0 %4553
        %4555 = vrot.lane.b32.xlu0 %v822, 100
        %v4556 = vpop.permute.xlu0 %4555
        %4557 = vrot.lane.b32.xlu0 %v823, 100
        %v4558 = vpop.permute.xlu0 %4557
        %4559 = vrot.lane.b32.xlu0 %v824, 100
        %v4560 = vpop.permute.xlu0 %4559
        %4561 = vrot.lane.b32.xlu0 %v825, 100
        %v4562 = vpop.permute.xlu0 %4561
        %4563 = vrot.lane.b32.xlu0 %v826, 100
        %v4564 = vpop.permute.xlu0 %4563
        %4565 = vrot.lane.b32.xlu0 %v827, 100
        %v4566 = vpop.permute.xlu0 %4565
        %4575 = vmatprep.subr.bf16.mxu0 0
        %4576 = vmatpush1.bf16.msra.mxu0 %v4552
        %4577 = vmatprep.subr.bf16.mxu0 0
        %4578 = vmatpush1.bf16.msra.mxu0 %v4554
        %4579 = vmatprep.subr.bf16.mxu0 0
        %4580 = vmatpush1.bf16.msra.mxu0 %v4556
        %4581 = vmatprep.subr.bf16.mxu0 0
        %4582 = vmatpush1.bf16.msra.mxu0 %v4558
        %4583 = vmatprep.subr.bf16.mxu0 0
        %4584 = vmatpush1.bf16.msra.mxu0 %v4560
        %4585 = vmatprep.subr.bf16.mxu0 0
        %4586 = vmatpush1.bf16.msra.mxu0 %v4562
        %4587 = vmatprep.subr.bf16.mxu0 0
        %4588 = vmatpush1.bf16.msra.mxu0 %v4564
        %4589 = vmatprep.subr.bf16.mxu0 0
        %4590 = vmatpush1.bf16.msra.mxu0 %v4566
        %4591 = vmatprep.subr.bf16.mxu0 0
        %4592 = vmatpush1.bf16.msra.mxu0 0
        %4593 = vmatprep.subr.bf16.mxu0 0
        %4594 = vmatpush1.bf16.msra.mxu0 0
        %4595 = vmatprep.subr.bf16.mxu0 0
        %4596 = vmatpush1.bf16.msra.mxu0 0
        %4597 = vmatprep.subr.bf16.mxu0 0
        %4598 = vmatpush1.bf16.msra.mxu0 0
        %4599 = vmatprep.subr.bf16.mxu0 0
        %4600 = vmatpush1.bf16.msra.mxu0 0
        %4601 = vmatprep.subr.bf16.mxu0 0
        %4602 = vmatpush1.bf16.msra.mxu0 0
        %4603 = vmatprep.subr.bf16.mxu0 0
        %4604 = vmatpush1.bf16.msra.mxu0 0
        %4605 = vmatprep.subr.bf16.mxu0 0
        %4606 = vmatpush1.bf16.msra.mxu0 0
        %4607 = vmatprep.mubr.bf16.mxu0 0
        %4608 = vmatmul.mubr.bf16.gmra.mrb[0].mxu0 %v4543
        %v4609 = vpop.f32.mrb[0].mxu0
        %v4610 = vadd.f32 0.0, %v4609
        %v4611 = vpop.f32.mrb[0].mxu0
        %v4612 = vpop.f32.mrb[0].mxu0
        %v4613 = vadd.f32 0.0, %v4612
        %v4614 = vpop.f32.mrb[0].mxu0
        %4615 = vmatprep.mubr.bf16.mxu0 0
        %4616 = vmatmul.mubr.bf16.gmra.mrb[0].mxu0 %v4544
        %v4617 = vpop.f32.mrb[0].mxu0
        %v4618 = vadd.f32 0.0, %v4617
        %v4619 = vpop.f32.mrb[0].mxu0
        %v4620 = vpop.f32.mrb[0].mxu0
        %v4621 = vadd.f32 0.0, %v4620
        %v4622 = vpop.f32.mrb[0].mxu0
        %4623 = vmatprep.mubr.bf16.mxu0 0
        %4624 = vmatmul.mubr.bf16.gmra.mrb[0].mxu0 %v4545
        %v4625 = vpop.f32.mrb[0].mxu0
        %v4626 = vadd.f32 0.0, %v4625
        %v4627 = vpop.f32.mrb[0].mxu0
        %v4628 = vpop.f32.mrb[0].mxu0
        %v4629 = vadd.f32 0.0, %v4628
        %v4630 = vpop.f32.mrb[0].mxu0
        %4631 = vmatprep.mubr.bf16.mxu0 0
        %4632 = vmatmul.mubr.bf16.gmra.mrb[0].mxu0 %v4546
        %v4633 = vpop.f32.mrb[0].mxu0
        %v4634 = vadd.f32 0.0, %v4633
        %v4635 = vpop.f32.mrb[0].mxu0
        %v4636 = vpop.f32.mrb[0].mxu0
        %v4637 = vadd.f32 0.0, %v4636
        %v4638 = vpop.f32.mrb[0].mxu0
        %4639 = vmatprep.mubr.bf16.mxu0 0
        %4640 = vmatmul.mubr.bf16.gmra.mrb[0].mxu0 %v4547
        %v4641 = vpop.f32.mrb[0].mxu0
        %v4642 = vadd.f32 0.0, %v4641
        %v4643 = vpop.f32.mrb[0].mxu0
        %v4644 = vpop.f32.mrb[0].mxu0
        %v4645 = vadd.f32 0.0, %v4644
        %v4646 = vpop.f32.mrb[0].mxu0
        %4647 = vmatprep.mubr.bf16.mxu0 0
        %4648 = vmatmul.mubr.bf16.gmra.mrb[0].mxu0 %v4548
        %v4649 = vpop.f32.mrb[0].mxu0
        %v4650 = vadd.f32 0.0, %v4649
        %v4651 = vpop.f32.mrb[0].mxu0
        %v4652 = vpop.f32.mrb[0].mxu0
        %v4653 = vadd.f32 0.0, %v4652
        %v4654 = vpop.f32.mrb[0].mxu0
        %4655 = vmatprep.mubr.bf16.mxu0 0
        %4656 = vmatmul.mubr.bf16.gmra.mrb[0].mxu0 %v4549
        %v4657 = vpop.f32.mrb[0].mxu0
        %v4658 = vadd.f32 0.0, %v4657
        %v4659 = vpop.f32.mrb[0].mxu0
        %v4660 = vpop.f32.mrb[0].mxu0
        %v4661 = vadd.f32 0.0, %v4660
        %v4662 = vpop.f32.mrb[0].mxu0
        %4663 = vmatprep.mubr.bf16.mxu0 0
        %4664 = vmatmul.mubr.bf16.gmra.mrb[0].mxu0 %v4550
        %v4665 = vpop.f32.mrb[0].mxu0
        %v4666 = vadd.f32 0.0, %v4665
        %v4667 = vpop.f32.mrb[0].mxu0
        %v4668 = vpop.f32.mrb[0].mxu0
        %v4669 = vadd.f32 0.0, %v4668
        %v4670 = vpop.f32.mrb[0].mxu0
        %4671 = vdwg.mxu0
        %v4672 = vld [vmem:[%s344] sm:$0xff]
        %v4673 = vld [vmem:[%s344 + $0x8] sm:$0xff]
        %v4674 = vld [vmem:[%s344 + $0x10] sm:$0xff]
        %v4675 = vld [vmem:[%s344 + $0x18] sm:$0xff]
        %v4676 = vld [vmem:[%s344 + $0x20] sm:$0xff]
        %v4677 = vld [vmem:[%s344 + $0x28] sm:$0xff]
        %v4678 = vld [vmem:[%s344 + $0x30] sm:$0xff]
        %v4679 = vld [vmem:[%s344 + $0x38] sm:$0xff]
        %v4680 = vld [vmem:[%s344 + $0x40] sm:$0xff]
        %v4681 = vld [vmem:[%s344 + $0x48] sm:$0xff]
        %v4682 = vld [vmem:[%s344 + $0x50] sm:$0xff]
        %v4683 = vld [vmem:[%s344 + $0x58] sm:$0xff]
        %v4684 = vld [vmem:[%s344 + $0x60] sm:$0xff]
        %v4685 = vld [vmem:[%s344 + $0x68] sm:$0xff]
        %v4686 = vld [vmem:[%s344 + $0x70] sm:$0xff]
        %v4687 = vld [vmem:[%s344 + $0x78] sm:$0xff]
        %v4688 = vpack.c.bf16 %v1208, %v1205
        %v4689 = vpack.c.bf16 %v1216, %v1213
        %v4690 = vpack.c.bf16 %v1224, %v1221
        %v4691 = vpack.c.bf16 %v1232, %v1229
        %v4692 = vpack.c.bf16 %v1240, %v1237
        %v4693 = vpack.c.bf16 %v1248, %v1245
        %v4694 = vpack.c.bf16 %v1256, %v1253
        %v4695 = vpack.c.bf16 %v1264, %v1261
        %v4697 = vsel %vm834, %v4688, 0
        %v4700 = vsel %vm834, %v4689, 0
        %v4703 = vsel %vm834, %v4690, 0
        %v4706 = vsel %vm834, %v4691, 0
        %v4709 = vsel %vm834, %v4692, 0
        %v4712 = vsel %vm834, %v4693, 0
        %v4715 = vsel %vm834, %v4694, 0
        %v4718 = vsel %vm834, %v4695, 0
        %vm4720 = vcmask 1041408
        %v4722 = vsel %vm4720, %v830, 0
        %4724 = vmatprep.subr.bf16.mxu0 0
        %4725 = vmatpush1.bf16.msra.mxu0 %v4722
        %4726 = vmatprep.subr.bf16.mxu0 0
        %4727 = vmatpush1.bf16.msra.mxu0 0
        %4728 = vmatprep.subr.bf16.mxu0 0
        %4729 = vmatpush1.bf16.msra.mxu0 0
        %4730 = vmatprep.subr.bf16.mxu0 0
        %4731 = vmatpush1.bf16.msra.mxu0 0
        %4732 = vmatprep.subr.bf16.mxu0 0
        %4733 = vmatpush1.bf16.msra.mxu0 0
        %4734 = vmatprep.subr.bf16.mxu0 0
        %4735 = vmatpush1.bf16.msra.mxu0 0
        %4736 = vmatprep.subr.bf16.mxu0 0
        %4737 = vmatpush1.bf16.msra.mxu0 0
        %4738 = vmatprep.subr.bf16.mxu0 0
        %4739 = vmatpush1.bf16.msra.mxu0 0
        %4740 = vmatprep.subr.bf16.mxu0 0
        %4741 = vmatpush1.bf16.msra.mxu0 0
        %4742 = vmatprep.subr.bf16.mxu0 0
        %4743 = vmatpush1.bf16.msra.mxu0 0
        %4744 = vmatprep.subr.bf16.mxu0 0
        %4745 = vmatpush1.bf16.msra.mxu0 0
        %4746 = vmatprep.subr.bf16.mxu0 0
        %4747 = vmatpush1.bf16.msra.mxu0 0
        %4748 = vmatprep.subr.bf16.mxu0 0
        %4749 = vmatpush1.bf16.msra.mxu0 0
        %4750 = vmatprep.subr.bf16.mxu0 0
        %4751 = vmatpush1.bf16.msra.mxu0 0
        %4752 = vmatprep.subr.bf16.mxu0 0
        %4753 = vmatpush1.bf16.msra.mxu0 0
        %4754 = vmatprep.subr.bf16.mxu0 0
        %4755 = vmatpush1.bf16.msra.mxu0 0
        %4756 = vmatprep.mubr.bf16.mxu0 0
        %4757 = vmatmul.mubr.bf16.gmra.mrb[0].mxu0 %v4697
        %v4758 = vpop.f32.mrb[0].mxu0
        %v4759 = vadd.f32 0.0, %v4758
        %v4760 = vpop.f32.mrb[0].mxu0
        %v4761 = vpop.f32.mrb[0].mxu0
        %v4762 = vadd.f32 0.0, %v4761
        %v4763 = vpop.f32.mrb[0].mxu0
        %4764 = vmatprep.mubr.bf16.mxu0 0
        %4765 = vmatmul.mubr.bf16.gmra.mrb[0].mxu0 %v4700
        %v4766 = vpop.f32.mrb[0].mxu0
        %v4767 = vadd.f32 0.0, %v4766
        %v4768 = vpop.f32.mrb[0].mxu0
        %v4769 = vpop.f32.mrb[0].mxu0
        %v4770 = vadd.f32 0.0, %v4769
        %v4771 = vpop.f32.mrb[0].mxu0
        %4772 = vmatprep.mubr.bf16.mxu0 0
        %4773 = vmatmul.mubr.bf16.gmra.mrb[0].mxu0 %v4703
        %v4774 = vpop.f32.mrb[0].mxu0
        %v4775 = vadd.f32 0.0, %v4774
        %v4776 = vpop.f32.mrb[0].mxu0
        %v4777 = vpop.f32.mrb[0].mxu0
        %v4778 = vadd.f32 0.0, %v4777
        %v4779 = vpop.f32.mrb[0].mxu0
        %4780 = vmatprep.mubr.bf16.mxu0 0
        %4781 = vmatmul.mubr.bf16.gmra.mrb[0].mxu0 %v4706
        %v4782 = vpop.f32.mrb[0].mxu0
        %v4783 = vadd.f32 0.0, %v4782
        %v4784 = vpop.f32.mrb[0].mxu0
        %v4785 = vpop.f32.mrb[0].mxu0
        %v4786 = vadd.f32 0.0, %v4785
        %v4787 = vpop.f32.mrb[0].mxu0
        %4788 = vmatprep.mubr.bf16.mxu0 0
        %4789 = vmatmul.mubr.bf16.gmra.mrb[0].mxu0 %v4709
        %v4790 = vpop.f32.mrb[0].mxu0
        %v4791 = vadd.f32 0.0, %v4790
        %v4792 = vpop.f32.mrb[0].mxu0
        %v4793 = vpop.f32.mrb[0].mxu0
        %v4794 = vadd.f32 0.0, %v4793
        %v4795 = vpop.f32.mrb[0].mxu0
        %4796 = vmatprep.mubr.bf16.mxu0 0
        %4797 = vmatmul.mubr.bf16.gmra.mrb[0].mxu0 %v4712
        %v4798 = vpop.f32.mrb[0].mxu0
        %v4799 = vadd.f32 0.0, %v4798
        %v4800 = vpop.f32.mrb[0].mxu0
        %v4801 = vpop.f32.mrb[0].mxu0
        %v4802 = vadd.f32 0.0, %v4801
        %v4803 = vpop.f32.mrb[0].mxu0
        %4804 = vmatprep.mubr.bf16.mxu0 0
        %4805 = vmatmul.mubr.bf16.gmra.mrb[0].mxu0 %v4715
        %v4806 = vpop.f32.mrb[0].mxu0
        %v4807 = vadd.f32 0.0, %v4806
        %v4808 = vpop.f32.mrb[0].mxu0
        %v4809 = vpop.f32.mrb[0].mxu0
        %v4810 = vadd.f32 0.0, %v4809
        %v4811 = vpop.f32.mrb[0].mxu0
        %4812 = vmatprep.mubr.bf16.mxu0 0
        %4813 = vmatmul.mubr.bf16.gmra.mrb[0].mxu0 %v4718
        %v4814 = vpop.f32.mrb[0].mxu0
        %v4815 = vadd.f32 0.0, %v4814
        %v4816 = vpop.f32.mrb[0].mxu0
        %v4817 = vpop.f32.mrb[0].mxu0
        %v4818 = vadd.f32 0.0, %v4817
        %v4819 = vpop.f32.mrb[0].mxu0
        %4820 = vdwg.mxu0
        %v4821 = vadd.f32 %v4672, %v4759
        %v4822 = vadd.f32 %v4673, %v4762
        %v4823 = vadd.f32 %v4674, %v4767
        %v4824 = vadd.f32 %v4675, %v4770
        %v4825 = vadd.f32 %v4676, %v4775
        %v4826 = vadd.f32 %v4677, %v4778
        %v4827 = vadd.f32 %v4678, %v4783
        %v4828 = vadd.f32 %v4679, %v4786
        %v4829 = vadd.f32 %v4680, %v4791
        %v4830 = vadd.f32 %v4681, %v4794
        %v4831 = vadd.f32 %v4682, %v4799
        %v4832 = vadd.f32 %v4683, %v4802
        %v4833 = vadd.f32 %v4684, %v4807
        %v4834 = vadd.f32 %v4685, %v4810
        %v4835 = vadd.f32 %v4686, %v4815
        %v4836 = vadd.f32 %v4687, %v4818
        %4837 = vst.msk [vmem:[%s344] sm:$0xff] %vm452, %v4821
        %4838 = vst.msk [vmem:[%s344 + $0x8] sm:$0xff] %vm452, %v4822
        %4839 = vst.msk [vmem:[%s344 + $0x10] sm:$0xff] %vm452, %v4823
        %4840 = vst.msk [vmem:[%s344 + $0x18] sm:$0xff] %vm452, %v4824
        %4841 = vst.msk [vmem:[%s344 + $0x20] sm:$0xff] %vm452, %v4825
        %4842 = vst.msk [vmem:[%s344 + $0x28] sm:$0xff] %vm452, %v4826
        %4843 = vst.msk [vmem:[%s344 + $0x30] sm:$0xff] %vm452, %v4827
        %4844 = vst.msk [vmem:[%s344 + $0x38] sm:$0xff] %vm452, %v4828
        %4845 = vst.msk [vmem:[%s344 + $0x40] sm:$0xff] %vm452, %v4829
        %4846 = vst.msk [vmem:[%s344 + $0x48] sm:$0xff] %vm452, %v4830
        %4847 = vst.msk [vmem:[%s344 + $0x50] sm:$0xff] %vm452, %v4831
        %4848 = vst.msk [vmem:[%s344 + $0x58] sm:$0xff] %vm452, %v4832
        %4849 = vst.msk [vmem:[%s344 + $0x60] sm:$0xff] %vm452, %v4833
        %4850 = vst.msk [vmem:[%s344 + $0x68] sm:$0xff] %vm452, %v4834
        %4851 = vst.msk [vmem:[%s344 + $0x70] sm:$0xff] %vm452, %v4835
        %4852 = vst.msk [vmem:[%s344 + $0x78] sm:$0xff] %vm452, %v4836
        %v4853 = vld [vmem:[%s344] sm:$0xff]
        %v4854 = vld [vmem:[%s344 + $0x8] sm:$0xff]
        %v4855 = vld [vmem:[%s344 + $0x10] sm:$0xff]
        %v4856 = vld [vmem:[%s344 + $0x18] sm:$0xff]
        %v4857 = vld [vmem:[%s344 + $0x20] sm:$0xff]
        %v4858 = vld [vmem:[%s344 + $0x28] sm:$0xff]
        %v4859 = vld [vmem:[%s344 + $0x30] sm:$0xff]
        %v4860 = vld [vmem:[%s344 + $0x38] sm:$0xff]
        %v4861 = vld [vmem:[%s344 + $0x40] sm:$0xff]
        %v4862 = vld [vmem:[%s344 + $0x48] sm:$0xff]
        %v4863 = vld [vmem:[%s344 + $0x50] sm:$0xff]
        %v4864 = vld [vmem:[%s344 + $0x58] sm:$0xff]
        %v4865 = vld [vmem:[%s344 + $0x60] sm:$0xff]
        %v4866 = vld [vmem:[%s344 + $0x68] sm:$0xff]
        %v4867 = vld [vmem:[%s344 + $0x70] sm:$0xff]
        %v4868 = vld [vmem:[%s344 + $0x78] sm:$0xff]
        %v4869 = vpack.c.bf16 %v1715, %v1712
        %v4870 = vpack.c.bf16 %v1723, %v1720
        %v4871 = vpack.c.bf16 %v1731, %v1728
        %v4872 = vpack.c.bf16 %v1739, %v1736
        %v4873 = vpack.c.bf16 %v1747, %v1744
        %v4874 = vpack.c.bf16 %v1755, %v1752
        %v4875 = vpack.c.bf16 %v1763, %v1760
        %v4876 = vpack.c.bf16 %v1771, %v1768
        %v4878 = vunpack.c.l.b16 %v830
        %v4879 = vpack.c.b16 %v4878, %v4878
        %v4880 = vrot.slane %v4879, 2
        %v4882 = vsel %vm834, %v4869, 0
        %v4885 = vsel %vm834, %v4870, 0
        %v4888 = vsel %vm834, %v4871, 0
        %v4891 = vsel %vm834, %v4872, 0
        %v4894 = vsel %vm834, %v4873, 0
        %v4897 = vsel %vm834, %v4874, 0
        %v4900 = vsel %vm834, %v4875, 0
        %v4903 = vsel %vm834, %v4876, 0
        %v4906 = vsel %vm4720, %v4880, 0
        %4908 = vmatprep.subr.bf16.mxu0 0
        %4909 = vmatpush1.bf16.msra.mxu0 %v4906
        %4910 = vmatprep.subr.bf16.mxu0 0
        %4911 = vmatpush1.bf16.msra.mxu0 0
        %4912 = vmatprep.subr.bf16.mxu0 0
        %4913 = vmatpush1.bf16.msra.mxu0 0
        %4914 = vmatprep.subr.bf16.mxu0 0
        %4915 = vmatpush1.bf16.msra.mxu0 0
        %4916 = vmatprep.subr.bf16.mxu0 0
        %4917 = vmatpush1.bf16.msra.mxu0 0
        %4918 = vmatprep.subr.bf16.mxu0 0
        %4919 = vmatpush1.bf16.msra.mxu0 0
        %4920 = vmatprep.subr.bf16.mxu0 0
        %4921 = vmatpush1.bf16.msra.mxu0 0
        %4922 = vmatprep.subr.bf16.mxu0 0
        %4923 = vmatpush1.bf16.msra.mxu0 0
        %4924 = vmatprep.subr.bf16.mxu0 0
        %4925 = vmatpush1.bf16.msra.mxu0 0
        %4926 = vmatprep.subr.bf16.mxu0 0
        %4927 = vmatpush1.bf16.msra.mxu0 0
        %4928 = vmatprep.subr.bf16.mxu0 0
        %4929 = vmatpush1.bf16.msra.mxu0 0
        %4930 = vmatprep.subr.bf16.mxu0 0
        %4931 = vmatpush1.bf16.msra.mxu0 0
        %4932 = vmatprep.subr.bf16.mxu0 0
        %4933 = vmatpush1.bf16.msra.mxu0 0
        %4934 = vmatprep.subr.bf16.mxu0 0
        %4935 = vmatpush1.bf16.msra.mxu0 0
        %4936 = vmatprep.subr.bf16.mxu0 0
        %4937 = vmatpush1.bf16.msra.mxu0 0
        %4938 = vmatprep.subr.bf16.mxu0 0
        %4939 = vmatpush1.bf16.msra.mxu0 0
        %4940 = vmatprep.mubr.bf16.mxu0 0
        %4941 = vmatmul.mubr.bf16.gmra.mrb[0].mxu0 %v4882
        %v4942 = vpop.f32.mrb[0].mxu0
        %v4943 = vadd.f32 0.0, %v4942
        %v4944 = vpop.f32.mrb[0].mxu0
        %v4945 = vpop.f32.mrb[0].mxu0
        %v4946 = vadd.f32 0.0, %v4945
        %v4947 = vpop.f32.mrb[0].mxu0
        %4948 = vmatprep.mubr.bf16.mxu0 0
        %4949 = vmatmul.mubr.bf16.gmra.mrb[0].mxu0 %v4885
        %v4950 = vpop.f32.mrb[0].mxu0
        %v4951 = vadd.f32 0.0, %v4950
        %v4952 = vpop.f32.mrb[0].mxu0
        %v4953 = vpop.f32.mrb[0].mxu0
        %v4954 = vadd.f32 0.0, %v4953
        %v4955 = vpop.f32.mrb[0].mxu0
        %4956 = vmatprep.mubr.bf16.mxu0 0
        %4957 = vmatmul.mubr.bf16.gmra.mrb[0].mxu0 %v4888
        %v4958 = vpop.f32.mrb[0].mxu0
        %v4959 = vadd.f32 0.0, %v4958
        %v4960 = vpop.f32.mrb[0].mxu0
        %v4961 = vpop.f32.mrb[0].mxu0
        %v4962 = vadd.f32 0.0, %v4961
        %v4963 = vpop.f32.mrb[0].mxu0
        %4964 = vmatprep.mubr.bf16.mxu0 0
        %4965 = vmatmul.mubr.bf16.gmra.mrb[0].mxu0 %v4891
        %v4966 = vpop.f32.mrb[0].mxu0
        %v4967 = vadd.f32 0.0, %v4966
        %v4968 = vpop.f32.mrb[0].mxu0
        %v4969 = vpop.f32.mrb[0].mxu0
        %v4970 = vadd.f32 0.0, %v4969
        %v4971 = vpop.f32.mrb[0].mxu0
        %4972 = vmatprep.mubr.bf16.mxu0 0
        %4973 = vmatmul.mubr.bf16.gmra.mrb[0].mxu0 %v4894
        %v4974 = vpop.f32.mrb[0].mxu0
        %v4975 = vadd.f32 0.0, %v4974
        %v4976 = vpop.f32.mrb[0].mxu0
        %v4977 = vpop.f32.mrb[0].mxu0
        %v4978 = vadd.f32 0.0, %v4977
        %v4979 = vpop.f32.mrb[0].mxu0
        %4980 = vmatprep.mubr.bf16.mxu0 0
        %4981 = vmatmul.mubr.bf16.gmra.mrb[0].mxu0 %v4897
        %v4982 = vpop.f32.mrb[0].mxu0
        %v4983 = vadd.f32 0.0, %v4982
        %v4984 = vpop.f32.mrb[0].mxu0
        %v4985 = vpop.f32.mrb[0].mxu0
        %v4986 = vadd.f32 0.0, %v4985
        %v4987 = vpop.f32.mrb[0].mxu0
        %4988 = vmatprep.mubr.bf16.mxu0 0
        %4989 = vmatmul.mubr.bf16.gmra.mrb[0].mxu0 %v4900
        %v4990 = vpop.f32.mrb[0].mxu0
        %v4991 = vadd.f32 0.0, %v4990
        %v4992 = vpop.f32.mrb[0].mxu0
        %v4993 = vpop.f32.mrb[0].mxu0
        %v4994 = vadd.f32 0.0, %v4993
        %v4995 = vpop.f32.mrb[0].mxu0
        %4996 = vmatprep.mubr.bf16.mxu0 0
        %4997 = vmatmul.mubr.bf16.gmra.mrb[0].mxu0 %v4903
        %v4998 = vpop.f32.mrb[0].mxu0
        %v4999 = vadd.f32 0.0, %v4998
        %v5000 = vpop.f32.mrb[0].mxu0
        %v5001 = vpop.f32.mrb[0].mxu0
        %v5002 = vadd.f32 0.0, %v5001
        %v5003 = vpop.f32.mrb[0].mxu0
        %5004 = vdwg.mxu0
        %v5005 = vadd.f32 %v4853, %v4943
        %v5006 = vadd.f32 %v4854, %v4946
        %v5007 = vadd.f32 %v4855, %v4951
        %v5008 = vadd.f32 %v4856, %v4954
        %v5009 = vadd.f32 %v4857, %v4959
        %v5010 = vadd.f32 %v4858, %v4962
        %v5011 = vadd.f32 %v4859, %v4967
        %v5012 = vadd.f32 %v4860, %v4970
        %v5013 = vadd.f32 %v4861, %v4975
        %v5014 = vadd.f32 %v4862, %v4978
        %v5015 = vadd.f32 %v4863, %v4983
        %v5016 = vadd.f32 %v4864, %v4986
        %v5017 = vadd.f32 %v4865, %v4991
        %v5018 = vadd.f32 %v4866, %v4994
        %v5019 = vadd.f32 %v4867, %v4999
        %v5020 = vadd.f32 %v4868, %v5002
        %5021 = vst.msk [vmem:[%s344] sm:$0xff] %vm452, %v5005
        %5022 = vst.msk [vmem:[%s344 + $0x8] sm:$0xff] %vm452, %v5006
        %5023 = vst.msk [vmem:[%s344 + $0x10] sm:$0xff] %vm452, %v5007
        %5024 = vst.msk [vmem:[%s344 + $0x18] sm:$0xff] %vm452, %v5008
        %5025 = vst.msk [vmem:[%s344 + $0x20] sm:$0xff] %vm452, %v5009
        %5026 = vst.msk [vmem:[%s344 + $0x28] sm:$0xff] %vm452, %v5010
        %5027 = vst.msk [vmem:[%s344 + $0x30] sm:$0xff] %vm452, %v5011
        %5028 = vst.msk [vmem:[%s344 + $0x38] sm:$0xff] %vm452, %v5012
        %5029 = vst.msk [vmem:[%s344 + $0x40] sm:$0xff] %vm452, %v5013
        %5030 = vst.msk [vmem:[%s344 + $0x48] sm:$0xff] %vm452, %v5014
        %5031 = vst.msk [vmem:[%s344 + $0x50] sm:$0xff] %vm452, %v5015
        %5032 = vst.msk [vmem:[%s344 + $0x58] sm:$0xff] %vm452, %v5016
        %5033 = vst.msk [vmem:[%s344 + $0x60] sm:$0xff] %vm452, %v5017
        %5034 = vst.msk [vmem:[%s344 + $0x68] sm:$0xff] %vm452, %v5018
        %5035 = vst.msk [vmem:[%s344 + $0x70] sm:$0xff] %vm452, %v5019
        %5036 = vst.msk [vmem:[%s344 + $0x78] sm:$0xff] %vm452, %v5020
        %v5037 = vld [vmem:[%s344] sm:$0xff]
        %v5038 = vld [vmem:[%s344 + $0x8] sm:$0xff]
        %v5039 = vld [vmem:[%s344 + $0x10] sm:$0xff]
        %v5040 = vld [vmem:[%s344 + $0x18] sm:$0xff]
        %v5041 = vld [vmem:[%s344 + $0x20] sm:$0xff]
        %v5042 = vld [vmem:[%s344 + $0x28] sm:$0xff]
        %v5043 = vld [vmem:[%s344 + $0x30] sm:$0xff]
        %v5044 = vld [vmem:[%s344 + $0x38] sm:$0xff]
        %v5045 = vld [vmem:[%s344 + $0x40] sm:$0xff]
        %v5046 = vld [vmem:[%s344 + $0x48] sm:$0xff]
        %v5047 = vld [vmem:[%s344 + $0x50] sm:$0xff]
        %v5048 = vld [vmem:[%s344 + $0x58] sm:$0xff]
        %v5049 = vld [vmem:[%s344 + $0x60] sm:$0xff]
        %v5050 = vld [vmem:[%s344 + $0x68] sm:$0xff]
        %v5051 = vld [vmem:[%s344 + $0x70] sm:$0xff]
        %v5052 = vld [vmem:[%s344 + $0x78] sm:$0xff]
        %v5053 = vpack.c.bf16 %v2198, %v2195
        %v5054 = vpack.c.bf16 %v2206, %v2203
        %v5055 = vpack.c.bf16 %v2214, %v2211
        %v5056 = vpack.c.bf16 %v2222, %v2219
        %v5057 = vpack.c.bf16 %v2230, %v2227
        %v5058 = vpack.c.bf16 %v2238, %v2235
        %v5059 = vpack.c.bf16 %v2246, %v2243
        %v5060 = vpack.c.bf16 %v2254, %v2251
        %v5062 = vsel %vm834, %v5053, 0
        %v5065 = vsel %vm834, %v5054, 0
        %v5068 = vsel %vm834, %v5055, 0
        %v5071 = vsel %vm834, %v5056, 0
        %v5074 = vsel %vm834, %v5057, 0
        %v5077 = vsel %vm834, %v5058, 0
        %v5080 = vsel %vm834, %v5059, 0
        %v5083 = vsel %vm834, %v5060, 0
        %v5086 = vsel %vm4720, %v831, 0
        %5088 = vmatprep.subr.bf16.mxu0 0
        %5089 = vmatpush1.bf16.msra.mxu0 %v5086
        %5090 = vmatprep.subr.bf16.mxu0 0
        %5091 = vmatpush1.bf16.msra.mxu0 0
        %5092 = vmatprep.subr.bf16.mxu0 0
        %5093 = vmatpush1.bf16.msra.mxu0 0
        %5094 = vmatprep.subr.bf16.mxu0 0
        %5095 = vmatpush1.bf16.msra.mxu0 0
        %5096 = vmatprep.subr.bf16.mxu0 0
        %5097 = vmatpush1.bf16.msra.mxu0 0
        %5098 = vmatprep.subr.bf16.mxu0 0
        %5099 = vmatpush1.bf16.msra.mxu0 0
        %5100 = vmatprep.subr.bf16.mxu0 0
        %5101 = vmatpush1.bf16.msra.mxu0 0
        %5102 = vmatprep.subr.bf16.mxu0 0
        %5103 = vmatpush1.bf16.msra.mxu0 0
        %5104 = vmatprep.subr.bf16.mxu0 0
        %5105 = vmatpush1.bf16.msra.mxu0 0
        %5106 = vmatprep.subr.bf16.mxu0 0
        %5107 = vmatpush1.bf16.msra.mxu0 0
        %5108 = vmatprep.subr.bf16.mxu0 0
        %5109 = vmatpush1.bf16.msra.mxu0 0
        %5110 = vmatprep.subr.bf16.mxu0 0
        %5111 = vmatpush1.bf16.msra.mxu0 0
        %5112 = vmatprep.subr.bf16.mxu0 0
        %5113 = vmatpush1.bf16.msra.mxu0 0
        %5114 = vmatprep.subr.bf16.mxu0 0
        %5115 = vmatpush1.bf16.msra.mxu0 0
        %5116 = vmatprep.subr.bf16.mxu0 0
        %5117 = vmatpush1.bf16.msra.mxu0 0
        %5118 = vmatprep.subr.bf16.mxu0 0
        %5119 = vmatpush1.bf16.msra.mxu0 0
        %5120 = vmatprep.mubr.bf16.mxu0 0
        %5121 = vmatmul.mubr.bf16.gmra.mrb[0].mxu0 %v5062
        %v5122 = vpop.f32.mrb[0].mxu0
        %v5123 = vadd.f32 0.0, %v5122
        %v5124 = vpop.f32.mrb[0].mxu0
        %v5125 = vpop.f32.mrb[0].mxu0
        %v5126 = vadd.f32 0.0, %v5125
        %v5127 = vpop.f32.mrb[0].mxu0
        %5128 = vmatprep.mubr.bf16.mxu0 0
        %5129 = vmatmul.mubr.bf16.gmra.mrb[0].mxu0 %v5065
        %v5130 = vpop.f32.mrb[0].mxu0
        %v5131 = vadd.f32 0.0, %v5130
        %v5132 = vpop.f32.mrb[0].mxu0
        %v5133 = vpop.f32.mrb[0].mxu0
        %v5134 = vadd.f32 0.0, %v5133
        %v5135 = vpop.f32.mrb[0].mxu0
        %5136 = vmatprep.mubr.bf16.mxu0 0
        %5137 = vmatmul.mubr.bf16.gmra.mrb[0].mxu0 %v5068
        %v5138 = vpop.f32.mrb[0].mxu0
        %v5139 = vadd.f32 0.0, %v5138
        %v5140 = vpop.f32.mrb[0].mxu0
        %v5141 = vpop.f32.mrb[0].mxu0
        %v5142 = vadd.f32 0.0, %v5141
        %v5143 = vpop.f32.mrb[0].mxu0
        %5144 = vmatprep.mubr.bf16.mxu0 0
        %5145 = vmatmul.mubr.bf16.gmra.mrb[0].mxu0 %v5071
        %v5146 = vpop.f32.mrb[0].mxu0
        %v5147 = vadd.f32 0.0, %v5146
        %v5148 = vpop.f32.mrb[0].mxu0
        %v5149 = vpop.f32.mrb[0].mxu0
        %v5150 = vadd.f32 0.0, %v5149
        %v5151 = vpop.f32.mrb[0].mxu0
        %5152 = vmatprep.mubr.bf16.mxu0 0
        %5153 = vmatmul.mubr.bf16.gmra.mrb[0].mxu0 %v5074
        %v5154 = vpop.f32.mrb[0].mxu0
        %v5155 = vadd.f32 0.0, %v5154
        %v5156 = vpop.f32.mrb[0].mxu0
        %v5157 = vpop.f32.mrb[0].mxu0
        %v5158 = vadd.f32 0.0, %v5157
        %v5159 = vpop.f32.mrb[0].mxu0
        %5160 = vmatprep.mubr.bf16.mxu0 0
        %5161 = vmatmul.mubr.bf16.gmra.mrb[0].mxu0 %v5077
        %v5162 = vpop.f32.mrb[0].mxu0
        %v5163 = vadd.f32 0.0, %v5162
        %v5164 = vpop.f32.mrb[0].mxu0
        %v5165 = vpop.f32.mrb[0].mxu0
        %v5166 = vadd.f32 0.0, %v5165
        %v5167 = vpop.f32.mrb[0].mxu0
        %5168 = vmatprep.mubr.bf16.mxu0 0
        %5169 = vmatmul.mubr.bf16.gmra.mrb[0].mxu0 %v5080
        %v5170 = vpop.f32.mrb[0].mxu0
        %v5171 = vadd.f32 0.0, %v5170
        %v5172 = vpop.f32.mrb[0].mxu0
        %v5173 = vpop.f32.mrb[0].mxu0
        %v5174 = vadd.f32 0.0, %v5173
        %v5175 = vpop.f32.mrb[0].mxu0
        %5176 = vmatprep.mubr.bf16.mxu0 0
        %5177 = vmatmul.mubr.bf16.gmra.mrb[0].mxu0 %v5083
        %v5178 = vpop.f32.mrb[0].mxu0
        %v5179 = vadd.f32 0.0, %v5178
        %v5180 = vpop.f32.mrb[0].mxu0
        %v5181 = vpop.f32.mrb[0].mxu0
        %v5182 = vadd.f32 0.0, %v5181
        %v5183 = vpop.f32.mrb[0].mxu0
        %5184 = vdwg.mxu0
        %v5185 = vadd.f32 %v5037, %v5123
        %v5186 = vadd.f32 %v5038, %v5126
        %v5187 = vadd.f32 %v5039, %v5131
        %v5188 = vadd.f32 %v5040, %v5134
        %v5189 = vadd.f32 %v5041, %v5139
        %v5190 = vadd.f32 %v5042, %v5142
        %v5191 = vadd.f32 %v5043, %v5147
        %v5192 = vadd.f32 %v5044, %v5150
        %v5193 = vadd.f32 %v5045, %v5155
        %v5194 = vadd.f32 %v5046, %v5158
        %v5195 = vadd.f32 %v5047, %v5163
        %v5196 = vadd.f32 %v5048, %v5166
        %v5197 = vadd.f32 %v5049, %v5171
        %v5198 = vadd.f32 %v5050, %v5174
        %v5199 = vadd.f32 %v5051, %v5179
        %v5200 = vadd.f32 %v5052, %v5182
        %5201 = vst.msk [vmem:[%s344] sm:$0xff] %vm452, %v5185
        %5202 = vst.msk [vmem:[%s344 + $0x8] sm:$0xff] %vm452, %v5186
        %5203 = vst.msk [vmem:[%s344 + $0x10] sm:$0xff] %vm452, %v5187
        %5204 = vst.msk [vmem:[%s344 + $0x18] sm:$0xff] %vm452, %v5188
        %5205 = vst.msk [vmem:[%s344 + $0x20] sm:$0xff] %vm452, %v5189
        %5206 = vst.msk [vmem:[%s344 + $0x28] sm:$0xff] %vm452, %v5190
        %5207 = vst.msk [vmem:[%s344 + $0x30] sm:$0xff] %vm452, %v5191
        %5208 = vst.msk [vmem:[%s344 + $0x38] sm:$0xff] %vm452, %v5192
        %5209 = vst.msk [vmem:[%s344 + $0x40] sm:$0xff] %vm452, %v5193
        %5210 = vst.msk [vmem:[%s344 + $0x48] sm:$0xff] %vm452, %v5194
        %5211 = vst.msk [vmem:[%s344 + $0x50] sm:$0xff] %vm452, %v5195
        %5212 = vst.msk [vmem:[%s344 + $0x58] sm:$0xff] %vm452, %v5196
        %5213 = vst.msk [vmem:[%s344 + $0x60] sm:$0xff] %vm452, %v5197
        %5214 = vst.msk [vmem:[%s344 + $0x68] sm:$0xff] %vm452, %v5198
        %5215 = vst.msk [vmem:[%s344 + $0x70] sm:$0xff] %vm452, %v5199
        %5216 = vst.msk [vmem:[%s344 + $0x78] sm:$0xff] %vm452, %v5200
        %v5217 = vld [vmem:[%s344] sm:$0xff]
        %v5218 = vld [vmem:[%s344 + $0x8] sm:$0xff]
        %v5219 = vld [vmem:[%s344 + $0x10] sm:$0xff]
        %v5220 = vld [vmem:[%s344 + $0x18] sm:$0xff]
        %v5221 = vld [vmem:[%s344 + $0x20] sm:$0xff]
        %v5222 = vld [vmem:[%s344 + $0x28] sm:$0xff]
        %v5223 = vld [vmem:[%s344 + $0x30] sm:$0xff]
        %v5224 = vld [vmem:[%s344 + $0x38] sm:$0xff]
        %v5225 = vld [vmem:[%s344 + $0x40] sm:$0xff]
        %v5226 = vld [vmem:[%s344 + $0x48] sm:$0xff]
        %v5227 = vld [vmem:[%s344 + $0x50] sm:$0xff]
        %v5228 = vld [vmem:[%s344 + $0x58] sm:$0xff]
        %v5229 = vld [vmem:[%s344 + $0x60] sm:$0xff]
        %v5230 = vld [vmem:[%s344 + $0x68] sm:$0xff]
        %v5231 = vld [vmem:[%s344 + $0x70] sm:$0xff]
        %v5232 = vld [vmem:[%s344 + $0x78] sm:$0xff]
        %v5233 = vpack.c.bf16 %v2681, %v2678
        %v5234 = vpack.c.bf16 %v2689, %v2686
        %v5235 = vpack.c.bf16 %v2697, %v2694
        %v5236 = vpack.c.bf16 %v2705, %v2702
        %v5237 = vpack.c.bf16 %v2713, %v2710
        %v5238 = vpack.c.bf16 %v2721, %v2718
        %v5239 = vpack.c.bf16 %v2729, %v2726
        %v5240 = vpack.c.bf16 %v2737, %v2734
        %v5242 = vunpack.c.l.b16 %v831
        %v5243 = vpack.c.b16 %v5242, %v5242
        %v5244 = vrot.slane %v5243, 2
        %v5246 = vsel %vm834, %v5233, 0
        %v5249 = vsel %vm834, %v5234, 0
        %v5252 = vsel %vm834, %v5235, 0
        %v5255 = vsel %vm834, %v5236, 0
        %v5258 = vsel %vm834, %v5237, 0
        %v5261 = vsel %vm834, %v5238, 0
        %v5264 = vsel %vm834, %v5239, 0
        %v5267 = vsel %vm834, %v5240, 0
        %v5270 = vsel %vm4720, %v5244, 0
        %5272 = vmatprep.subr.bf16.mxu0 0
        %5273 = vmatpush1.bf16.msra.mxu0 %v5270
        %5274 = vmatprep.subr.bf16.mxu0 0
        %5275 = vmatpush1.bf16.msra.mxu0 0
        %5276 = vmatprep.subr.bf16.mxu0 0
        %5277 = vmatpush1.bf16.msra.mxu0 0
        %5278 = vmatprep.subr.bf16.mxu0 0
        %5279 = vmatpush1.bf16.msra.mxu0 0
        %5280 = vmatprep.subr.bf16.mxu0 0
        %5281 = vmatpush1.bf16.msra.mxu0 0
        %5282 = vmatprep.subr.bf16.mxu0 0
        %5283 = vmatpush1.bf16.msra.mxu0 0
        %5284 = vmatprep.subr.bf16.mxu0 0
        %5285 = vmatpush1.bf16.msra.mxu0 0
        %5286 = vmatprep.subr.bf16.mxu0 0
        %5287 = vmatpush1.bf16.msra.mxu0 0
        %5288 = vmatprep.subr.bf16.mxu0 0
        %5289 = vmatpush1.bf16.msra.mxu0 0
        %5290 = vmatprep.subr.bf16.mxu0 0
        %5291 = vmatpush1.bf16.msra.mxu0 0
        %5292 = vmatprep.subr.bf16.mxu0 0
        %5293 = vmatpush1.bf16.msra.mxu0 0
        %5294 = vmatprep.subr.bf16.mxu0 0
        %5295 = vmatpush1.bf16.msra.mxu0 0
        %5296 = vmatprep.subr.bf16.mxu0 0
        %5297 = vmatpush1.bf16.msra.mxu0 0
        %5298 = vmatprep.subr.bf16.mxu0 0
        %5299 = vmatpush1.bf16.msra.mxu0 0
        %5300 = vmatprep.subr.bf16.mxu0 0
        %5301 = vmatpush1.bf16.msra.mxu0 0
        %5302 = vmatprep.subr.bf16.mxu0 0
        %5303 = vmatpush1.bf16.msra.mxu0 0
        %5304 = vmatprep.mubr.bf16.mxu0 0
        %5305 = vmatmul.mubr.bf16.gmra.mrb[0].mxu0 %v5246
        %v5306 = vpop.f32.mrb[0].mxu0
        %v5307 = vadd.f32 0.0, %v5306
        %v5308 = vpop.f32.mrb[0].mxu0
        %v5309 = vpop.f32.mrb[0].mxu0
        %v5310 = vadd.f32 0.0, %v5309
        %v5311 = vpop.f32.mrb[0].mxu0
        %5312 = vmatprep.mubr.bf16.mxu0 0
        %5313 = vmatmul.mubr.bf16.gmra.mrb[0].mxu0 %v5249
        %v5314 = vpop.f32.mrb[0].mxu0
        %v5315 = vadd.f32 0.0, %v5314
        %v5316 = vpop.f32.mrb[0].mxu0
        %v5317 = vpop.f32.mrb[0].mxu0
        %v5318 = vadd.f32 0.0, %v5317
        %v5319 = vpop.f32.mrb[0].mxu0
        %5320 = vmatprep.mubr.bf16.mxu0 0
        %5321 = vmatmul.mubr.bf16.gmra.mrb[0].mxu0 %v5252
        %v5322 = vpop.f32.mrb[0].mxu0
        %v5323 = vadd.f32 0.0, %v5322
        %v5324 = vpop.f32.mrb[0].mxu0
        %v5325 = vpop.f32.mrb[0].mxu0
        %v5326 = vadd.f32 0.0, %v5325
        %v5327 = vpop.f32.mrb[0].mxu0
        %5328 = vmatprep.mubr.bf16.mxu0 0
        %5329 = vmatmul.mubr.bf16.gmra.mrb[0].mxu0 %v5255
        %v5330 = vpop.f32.mrb[0].mxu0
        %v5331 = vadd.f32 0.0, %v5330
        %v5332 = vpop.f32.mrb[0].mxu0
        %v5333 = vpop.f32.mrb[0].mxu0
        %v5334 = vadd.f32 0.0, %v5333
        %v5335 = vpop.f32.mrb[0].mxu0
        %5336 = vmatprep.mubr.bf16.mxu0 0
        %5337 = vmatmul.mubr.bf16.gmra.mrb[0].mxu0 %v5258
        %v5338 = vpop.f32.mrb[0].mxu0
        %v5339 = vadd.f32 0.0, %v5338
        %v5340 = vpop.f32.mrb[0].mxu0
        %v5341 = vpop.f32.mrb[0].mxu0
        %v5342 = vadd.f32 0.0, %v5341
        %v5343 = vpop.f32.mrb[0].mxu0
        %5344 = vmatprep.mubr.bf16.mxu0 0
        %5345 = vmatmul.mubr.bf16.gmra.mrb[0].mxu0 %v5261
        %v5346 = vpop.f32.mrb[0].mxu0
        %v5347 = vadd.f32 0.0, %v5346
        %v5348 = vpop.f32.mrb[0].mxu0
        %v5349 = vpop.f32.mrb[0].mxu0
        %v5350 = vadd.f32 0.0, %v5349
        %v5351 = vpop.f32.mrb[0].mxu0
        %5352 = vmatprep.mubr.bf16.mxu0 0
        %5353 = vmatmul.mubr.bf16.gmra.mrb[0].mxu0 %v5264
        %v5354 = vpop.f32.mrb[0].mxu0
        %v5355 = vadd.f32 0.0, %v5354
        %v5356 = vpop.f32.mrb[0].mxu0
        %v5357 = vpop.f32.mrb[0].mxu0
        %v5358 = vadd.f32 0.0, %v5357
        %v5359 = vpop.f32.mrb[0].mxu0
        %5360 = vmatprep.mubr.bf16.mxu0 0
        %5361 = vmatmul.mubr.bf16.gmra.mrb[0].mxu0 %v5267
        %v5362 = vpop.f32.mrb[0].mxu0
        %v5363 = vadd.f32 0.0, %v5362
        %v5364 = vpop.f32.mrb[0].mxu0
        %v5365 = vpop.f32.mrb[0].mxu0
        %v5366 = vadd.f32 0.0, %v5365
        %v5367 = vpop.f32.mrb[0].mxu0
        %5368 = vdwg.mxu0
        %v5369 = vadd.f32 %v5217, %v5307
        %v5370 = vadd.f32 %v5218, %v5310
        %v5371 = vadd.f32 %v5219, %v5315
        %v5372 = vadd.f32 %v5220, %v5318
        %v5373 = vadd.f32 %v5221, %v5323
        %v5374 = vadd.f32 %v5222, %v5326
        %v5375 = vadd.f32 %v5223, %v5331
        %v5376 = vadd.f32 %v5224, %v5334
        %v5377 = vadd.f32 %v5225, %v5339
        %v5378 = vadd.f32 %v5226, %v5342
        %v5379 = vadd.f32 %v5227, %v5347
        %v5380 = vadd.f32 %v5228, %v5350
        %v5381 = vadd.f32 %v5229, %v5355
        %v5382 = vadd.f32 %v5230, %v5358
        %v5383 = vadd.f32 %v5231, %v5363
        %v5384 = vadd.f32 %v5232, %v5366
        %5385 = vst.msk [vmem:[%s344] sm:$0xff] %vm452, %v5369
        %5386 = vst.msk [vmem:[%s344 + $0x8] sm:$0xff] %vm452, %v5370
        %5387 = vst.msk [vmem:[%s344 + $0x10] sm:$0xff] %vm452, %v5371
        %5388 = vst.msk [vmem:[%s344 + $0x18] sm:$0xff] %vm452, %v5372
        %5389 = vst.msk [vmem:[%s344 + $0x20] sm:$0xff] %vm452, %v5373
        %5390 = vst.msk [vmem:[%s344 + $0x28] sm:$0xff] %vm452, %v5374
        %5391 = vst.msk [vmem:[%s344 + $0x30] sm:$0xff] %vm452, %v5375
        %5392 = vst.msk [vmem:[%s344 + $0x38] sm:$0xff] %vm452, %v5376
        %5393 = vst.msk [vmem:[%s344 + $0x40] sm:$0xff] %vm452, %v5377
        %5394 = vst.msk [vmem:[%s344 + $0x48] sm:$0xff] %vm452, %v5378
        %5395 = vst.msk [vmem:[%s344 + $0x50] sm:$0xff] %vm452, %v5379
        %5396 = vst.msk [vmem:[%s344 + $0x58] sm:$0xff] %vm452, %v5380
        %5397 = vst.msk [vmem:[%s344 + $0x60] sm:$0xff] %vm452, %v5381
        %5398 = vst.msk [vmem:[%s344 + $0x68] sm:$0xff] %vm452, %v5382
        %5399 = vst.msk [vmem:[%s344 + $0x70] sm:$0xff] %vm452, %v5383
        %5400 = vst.msk [vmem:[%s344 + $0x78] sm:$0xff] %vm452, %v5384
        %v5401 = vld [vmem:[%s344] sm:$0xff]
        %v5402 = vld [vmem:[%s344 + $0x8] sm:$0xff]
        %v5403 = vld [vmem:[%s344 + $0x10] sm:$0xff]
        %v5404 = vld [vmem:[%s344 + $0x18] sm:$0xff]
        %v5405 = vld [vmem:[%s344 + $0x20] sm:$0xff]
        %v5406 = vld [vmem:[%s344 + $0x28] sm:$0xff]
        %v5407 = vld [vmem:[%s344 + $0x30] sm:$0xff]
        %v5408 = vld [vmem:[%s344 + $0x38] sm:$0xff]
        %v5409 = vld [vmem:[%s344 + $0x40] sm:$0xff]
        %v5410 = vld [vmem:[%s344 + $0x48] sm:$0xff]
        %v5411 = vld [vmem:[%s344 + $0x50] sm:$0xff]
        %v5412 = vld [vmem:[%s344 + $0x58] sm:$0xff]
        %v5413 = vld [vmem:[%s344 + $0x60] sm:$0xff]
        %v5414 = vld [vmem:[%s344 + $0x68] sm:$0xff]
        %v5415 = vld [vmem:[%s344 + $0x70] sm:$0xff]
        %v5416 = vld [vmem:[%s344 + $0x78] sm:$0xff]
        %v5417 = vpack.c.bf16 %v3164, %v3161
        %v5418 = vpack.c.bf16 %v3172, %v3169
        %v5419 = vpack.c.bf16 %v3180, %v3177
        %v5420 = vpack.c.bf16 %v3188, %v3185
        %v5421 = vpack.c.bf16 %v3196, %v3193
        %v5422 = vpack.c.bf16 %v3204, %v3201
        %v5423 = vpack.c.bf16 %v3212, %v3209
        %v5424 = vpack.c.bf16 %v3220, %v3217
        %v5426 = vsel %vm834, %v5417, 0
        %v5429 = vsel %vm834, %v5418, 0
        %v5432 = vsel %vm834, %v5419, 0
        %v5435 = vsel %vm834, %v5420, 0
        %v5438 = vsel %vm834, %v5421, 0
        %v5441 = vsel %vm834, %v5422, 0
        %v5444 = vsel %vm834, %v5423, 0
        %v5447 = vsel %vm834, %v5424, 0
        %v5450 = vsel %vm4720, %v832, 0
        %5452 = vmatprep.subr.bf16.mxu0 0
        %5453 = vmatpush1.bf16.msra.mxu0 %v5450
        %5454 = vmatprep.subr.bf16.mxu0 0
        %5455 = vmatpush1.bf16.msra.mxu0 0
        %5456 = vmatprep.subr.bf16.mxu0 0
        %5457 = vmatpush1.bf16.msra.mxu0 0
        %5458 = vmatprep.subr.bf16.mxu0 0
        %5459 = vmatpush1.bf16.msra.mxu0 0
        %5460 = vmatprep.subr.bf16.mxu0 0
        %5461 = vmatpush1.bf16.msra.mxu0 0
        %5462 = vmatprep.subr.bf16.mxu0 0
        %5463 = vmatpush1.bf16.msra.mxu0 0
        %5464 = vmatprep.subr.bf16.mxu0 0
        %5465 = vmatpush1.bf16.msra.mxu0 0
        %5466 = vmatprep.subr.bf16.mxu0 0
        %5467 = vmatpush1.bf16.msra.mxu0 0
        %5468 = vmatprep.subr.bf16.mxu0 0
        %5469 = vmatpush1.bf16.msra.mxu0 0
        %5470 = vmatprep.subr.bf16.mxu0 0
        %5471 = vmatpush1.bf16.msra.mxu0 0
        %5472 = vmatprep.subr.bf16.mxu0 0
        %5473 = vmatpush1.bf16.msra.mxu0 0
        %5474 = vmatprep.subr.bf16.mxu0 0
        %5475 = vmatpush1.bf16.msra.mxu0 0
        %5476 = vmatprep.subr.bf16.mxu0 0
        %5477 = vmatpush1.bf16.msra.mxu0 0
        %5478 = vmatprep.subr.bf16.mxu0 0
        %5479 = vmatpush1.bf16.msra.mxu0 0
        %5480 = vmatprep.subr.bf16.mxu0 0
        %5481 = vmatpush1.bf16.msra.mxu0 0
        %5482 = vmatprep.subr.bf16.mxu0 0
        %5483 = vmatpush1.bf16.msra.mxu0 0
        %5484 = vmatprep.mubr.bf16.mxu0 0
        %5485 = vmatmul.mubr.bf16.gmra.mrb[0].mxu0 %v5426
        %v5486 = vpop.f32.mrb[0].mxu0
        %v5487 = vadd.f32 0.0, %v5486
        %v5488 = vpop.f32.mrb[0].mxu0
        %v5489 = vpop.f32.mrb[0].mxu0
        %v5490 = vadd.f32 0.0, %v5489
        %v5491 = vpop.f32.mrb[0].mxu0
        %5492 = vmatprep.mubr.bf16.mxu0 0
        %5493 = vmatmul.mubr.bf16.gmra.mrb[0].mxu0 %v5429
        %v5494 = vpop.f32.mrb[0].mxu0
        %v5495 = vadd.f32 0.0, %v5494
        %v5496 = vpop.f32.mrb[0].mxu0
        %v5497 = vpop.f32.mrb[0].mxu0
        %v5498 = vadd.f32 0.0, %v5497
        %v5499 = vpop.f32.mrb[0].mxu0
        %5500 = vmatprep.mubr.bf16.mxu0 0
        %5501 = vmatmul.mubr.bf16.gmra.mrb[0].mxu0 %v5432
        %v5502 = vpop.f32.mrb[0].mxu0
        %v5503 = vadd.f32 0.0, %v5502
        %v5504 = vpop.f32.mrb[0].mxu0
        %v5505 = vpop.f32.mrb[0].mxu0
        %v5506 = vadd.f32 0.0, %v5505
        %v5507 = vpop.f32.mrb[0].mxu0
        %5508 = vmatprep.mubr.bf16.mxu0 0
        %5509 = vmatmul.mubr.bf16.gmra.mrb[0].mxu0 %v5435
        %v5510 = vpop.f32.mrb[0].mxu0
        %v5511 = vadd.f32 0.0, %v5510
        %v5512 = vpop.f32.mrb[0].mxu0
        %v5513 = vpop.f32.mrb[0].mxu0
        %v5514 = vadd.f32 0.0, %v5513
        %v5515 = vpop.f32.mrb[0].mxu0
        %5516 = vmatprep.mubr.bf16.mxu0 0
        %5517 = vmatmul.mubr.bf16.gmra.mrb[0].mxu0 %v5438
        %v5518 = vpop.f32.mrb[0].mxu0
        %v5519 = vadd.f32 0.0, %v5518
        %v5520 = vpop.f32.mrb[0].mxu0
        %v5521 = vpop.f32.mrb[0].mxu0
        %v5522 = vadd.f32 0.0, %v5521
        %v5523 = vpop.f32.mrb[0].mxu0
        %5524 = vmatprep.mubr.bf16.mxu0 0
        %5525 = vmatmul.mubr.bf16.gmra.mrb[0].mxu0 %v5441
        %v5526 = vpop.f32.mrb[0].mxu0
        %v5527 = vadd.f32 0.0, %v5526
        %v5528 = vpop.f32.mrb[0].mxu0
        %v5529 = vpop.f32.mrb[0].mxu0
        %v5530 = vadd.f32 0.0, %v5529
        %v5531 = vpop.f32.mrb[0].mxu0
        %5532 = vmatprep.mubr.bf16.mxu0 0
        %5533 = vmatmul.mubr.bf16.gmra.mrb[0].mxu0 %v5444
        %v5534 = vpop.f32.mrb[0].mxu0
        %v5535 = vadd.f32 0.0, %v5534
        %v5536 = vpop.f32.mrb[0].mxu0
        %v5537 = vpop.f32.mrb[0].mxu0
        %v5538 = vadd.f32 0.0, %v5537
        %v5539 = vpop.f32.mrb[0].mxu0
        %5540 = vmatprep.mubr.bf16.mxu0 0
        %5541 = vmatmul.mubr.bf16.gmra.mrb[0].mxu0 %v5447
        %v5542 = vpop.f32.mrb[0].mxu0
        %v5543 = vadd.f32 0.0, %v5542
        %v5544 = vpop.f32.mrb[0].mxu0
        %v5545 = vpop.f32.mrb[0].mxu0
        %v5546 = vadd.f32 0.0, %v5545
        %v5547 = vpop.f32.mrb[0].mxu0
        %5548 = vdwg.mxu0
        %v5549 = vadd.f32 %v5401, %v5487
        %v5550 = vadd.f32 %v5402, %v5490
        %v5551 = vadd.f32 %v5403, %v5495
        %v5552 = vadd.f32 %v5404, %v5498
        %v5553 = vadd.f32 %v5405, %v5503
        %v5554 = vadd.f32 %v5406, %v5506
        %v5555 = vadd.f32 %v5407, %v5511
        %v5556 = vadd.f32 %v5408, %v5514
        %v5557 = vadd.f32 %v5409, %v5519
        %v5558 = vadd.f32 %v5410, %v5522
        %v5559 = vadd.f32 %v5411, %v5527
        %v5560 = vadd.f32 %v5412, %v5530
        %v5561 = vadd.f32 %v5413, %v5535
        %v5562 = vadd.f32 %v5414, %v5538
        %v5563 = vadd.f32 %v5415, %v5543
        %v5564 = vadd.f32 %v5416, %v5546
        %5565 = vst.msk [vmem:[%s344] sm:$0xff] %vm452, %v5549
        %5566 = vst.msk [vmem:[%s344 + $0x8] sm:$0xff] %vm452, %v5550
        %5567 = vst.msk [vmem:[%s344 + $0x10] sm:$0xff] %vm452, %v5551
        %5568 = vst.msk [vmem:[%s344 + $0x18] sm:$0xff] %vm452, %v5552
        %5569 = vst.msk [vmem:[%s344 + $0x20] sm:$0xff] %vm452, %v5553
        %5570 = vst.msk [vmem:[%s344 + $0x28] sm:$0xff] %vm452, %v5554
        %5571 = vst.msk [vmem:[%s344 + $0x30] sm:$0xff] %vm452, %v5555
        %5572 = vst.msk [vmem:[%s344 + $0x38] sm:$0xff] %vm452, %v5556
        %5573 = vst.msk [vmem:[%s344 + $0x40] sm:$0xff] %vm452, %v5557
        %5574 = vst.msk [vmem:[%s344 + $0x48] sm:$0xff] %vm452, %v5558
        %5575 = vst.msk [vmem:[%s344 + $0x50] sm:$0xff] %vm452, %v5559
        %5576 = vst.msk [vmem:[%s344 + $0x58] sm:$0xff] %vm452, %v5560
        %5577 = vst.msk [vmem:[%s344 + $0x60] sm:$0xff] %vm452, %v5561
        %5578 = vst.msk [vmem:[%s344 + $0x68] sm:$0xff] %vm452, %v5562
        %5579 = vst.msk [vmem:[%s344 + $0x70] sm:$0xff] %vm452, %v5563
        %5580 = vst.msk [vmem:[%s344 + $0x78] sm:$0xff] %vm452, %v5564
        %v5581 = vld [vmem:[%s344] sm:$0xff]
        %v5582 = vld [vmem:[%s344 + $0x8] sm:$0xff]
        %v5583 = vld [vmem:[%s344 + $0x10] sm:$0xff]
        %v5584 = vld [vmem:[%s344 + $0x18] sm:$0xff]
        %v5585 = vld [vmem:[%s344 + $0x20] sm:$0xff]
        %v5586 = vld [vmem:[%s344 + $0x28] sm:$0xff]
        %v5587 = vld [vmem:[%s344 + $0x30] sm:$0xff]
        %v5588 = vld [vmem:[%s344 + $0x38] sm:$0xff]
        %v5589 = vld [vmem:[%s344 + $0x40] sm:$0xff]
        %v5590 = vld [vmem:[%s344 + $0x48] sm:$0xff]
        %v5591 = vld [vmem:[%s344 + $0x50] sm:$0xff]
        %v5592 = vld [vmem:[%s344 + $0x58] sm:$0xff]
        %v5593 = vld [vmem:[%s344 + $0x60] sm:$0xff]
        %v5594 = vld [vmem:[%s344 + $0x68] sm:$0xff]
        %v5595 = vld [vmem:[%s344 + $0x70] sm:$0xff]
        %v5596 = vld [vmem:[%s344 + $0x78] sm:$0xff]
        %v5597 = vpack.c.bf16 %v3647, %v3644
        %v5598 = vpack.c.bf16 %v3655, %v3652
        %v5599 = vpack.c.bf16 %v3663, %v3660
        %v5600 = vpack.c.bf16 %v3671, %v3668
        %v5601 = vpack.c.bf16 %v3679, %v3676
        %v5602 = vpack.c.bf16 %v3687, %v3684
        %v5603 = vpack.c.bf16 %v3695, %v3692
        %v5604 = vpack.c.bf16 %v3703, %v3700
        %v5606 = vunpack.c.l.b16 %v832
        %v5607 = vpack.c.b16 %v5606, %v5606
        %v5608 = vrot.slane %v5607, 2
        %v5610 = vsel %vm834, %v5597, 0
        %v5613 = vsel %vm834, %v5598, 0
        %v5616 = vsel %vm834, %v5599, 0
        %v5619 = vsel %vm834, %v5600, 0
        %v5622 = vsel %vm834, %v5601, 0
        %v5625 = vsel %vm834, %v5602, 0
        %v5628 = vsel %vm834, %v5603, 0
        %v5631 = vsel %vm834, %v5604, 0
        %v5634 = vsel %vm4720, %v5608, 0
        %5636 = vmatprep.subr.bf16.mxu0 0
        %5637 = vmatpush1.bf16.msra.mxu0 %v5634
        %5638 = vmatprep.subr.bf16.mxu0 0
        %5639 = vmatpush1.bf16.msra.mxu0 0
        %5640 = vmatprep.subr.bf16.mxu0 0
        %5641 = vmatpush1.bf16.msra.mxu0 0
        %5642 = vmatprep.subr.bf16.mxu0 0
        %5643 = vmatpush1.bf16.msra.mxu0 0
        %5644 = vmatprep.subr.bf16.mxu0 0
        %5645 = vmatpush1.bf16.msra.mxu0 0
        %5646 = vmatprep.subr.bf16.mxu0 0
        %5647 = vmatpush1.bf16.msra.mxu0 0
        %5648 = vmatprep.subr.bf16.mxu0 0
        %5649 = vmatpush1.bf16.msra.mxu0 0
        %5650 = vmatprep.subr.bf16.mxu0 0
        %5651 = vmatpush1.bf16.msra.mxu0 0
        %5652 = vmatprep.subr.bf16.mxu0 0
        %5653 = vmatpush1.bf16.msra.mxu0 0
        %5654 = vmatprep.subr.bf16.mxu0 0
        %5655 = vmatpush1.bf16.msra.mxu0 0
        %5656 = vmatprep.subr.bf16.mxu0 0
        %5657 = vmatpush1.bf16.msra.mxu0 0
        %5658 = vmatprep.subr.bf16.mxu0 0
        %5659 = vmatpush1.bf16.msra.mxu0 0
        %5660 = vmatprep.subr.bf16.mxu0 0
        %5661 = vmatpush1.bf16.msra.mxu0 0
        %5662 = vmatprep.subr.bf16.mxu0 0
        %5663 = vmatpush1.bf16.msra.mxu0 0
        %5664 = vmatprep.subr.bf16.mxu0 0
        %5665 = vmatpush1.bf16.msra.mxu0 0
        %5666 = vmatprep.subr.bf16.mxu0 0
        %5667 = vmatpush1.bf16.msra.mxu0 0
        %5668 = vmatprep.mubr.bf16.mxu0 0
        %5669 = vmatmul.mubr.bf16.gmra.mrb[0].mxu0 %v5610
        %v5670 = vpop.f32.mrb[0].mxu0
        %v5671 = vadd.f32 0.0, %v5670
        %v5672 = vpop.f32.mrb[0].mxu0
        %v5673 = vpop.f32.mrb[0].mxu0
        %v5674 = vadd.f32 0.0, %v5673
        %v5675 = vpop.f32.mrb[0].mxu0
        %5676 = vmatprep.mubr.bf16.mxu0 0
        %5677 = vmatmul.mubr.bf16.gmra.mrb[0].mxu0 %v5613
        %v5678 = vpop.f32.mrb[0].mxu0
        %v5679 = vadd.f32 0.0, %v5678
        %v5680 = vpop.f32.mrb[0].mxu0
        %v5681 = vpop.f32.mrb[0].mxu0
        %v5682 = vadd.f32 0.0, %v5681
        %v5683 = vpop.f32.mrb[0].mxu0
        %5684 = vmatprep.mubr.bf16.mxu0 0
        %5685 = vmatmul.mubr.bf16.gmra.mrb[0].mxu0 %v5616
        %v5686 = vpop.f32.mrb[0].mxu0
        %v5687 = vadd.f32 0.0, %v5686
        %v5688 = vpop.f32.mrb[0].mxu0
        %v5689 = vpop.f32.mrb[0].mxu0
        %v5690 = vadd.f32 0.0, %v5689
        %v5691 = vpop.f32.mrb[0].mxu0
        %5692 = vmatprep.mubr.bf16.mxu0 0
        %5693 = vmatmul.mubr.bf16.gmra.mrb[0].mxu0 %v5619
        %v5694 = vpop.f32.mrb[0].mxu0
        %v5695 = vadd.f32 0.0, %v5694
        %v5696 = vpop.f32.mrb[0].mxu0
        %v5697 = vpop.f32.mrb[0].mxu0
        %v5698 = vadd.f32 0.0, %v5697
        %v5699 = vpop.f32.mrb[0].mxu0
        %5700 = vmatprep.mubr.bf16.mxu0 0
        %5701 = vmatmul.mubr.bf16.gmra.mrb[0].mxu0 %v5622
        %v5702 = vpop.f32.mrb[0].mxu0
        %v5703 = vadd.f32 0.0, %v5702
        %v5704 = vpop.f32.mrb[0].mxu0
        %v5705 = vpop.f32.mrb[0].mxu0
        %v5706 = vadd.f32 0.0, %v5705
        %v5707 = vpop.f32.mrb[0].mxu0
        %5708 = vmatprep.mubr.bf16.mxu0 0
        %5709 = vmatmul.mubr.bf16.gmra.mrb[0].mxu0 %v5625
        %v5710 = vpop.f32.mrb[0].mxu0
        %v5711 = vadd.f32 0.0, %v5710
        %v5712 = vpop.f32.mrb[0].mxu0
        %v5713 = vpop.f32.mrb[0].mxu0
        %v5714 = vadd.f32 0.0, %v5713
        %v5715 = vpop.f32.mrb[0].mxu0
        %5716 = vmatprep.mubr.bf16.mxu0 0
        %5717 = vmatmul.mubr.bf16.gmra.mrb[0].mxu0 %v5628
        %v5718 = vpop.f32.mrb[0].mxu0
        %v5719 = vadd.f32 0.0, %v5718
        %v5720 = vpop.f32.mrb[0].mxu0
        %v5721 = vpop.f32.mrb[0].mxu0
        %v5722 = vadd.f32 0.0, %v5721
        %v5723 = vpop.f32.mrb[0].mxu0
        %5724 = vmatprep.mubr.bf16.mxu0 0
        %5725 = vmatmul.mubr.bf16.gmra.mrb[0].mxu0 %v5631
        %v5726 = vpop.f32.mrb[0].mxu0
        %v5727 = vadd.f32 0.0, %v5726
        %v5728 = vpop.f32.mrb[0].mxu0
        %v5729 = vpop.f32.mrb[0].mxu0
        %v5730 = vadd.f32 0.0, %v5729
        %v5731 = vpop.f32.mrb[0].mxu0
        %5732 = vdwg.mxu0
        %v5733 = vadd.f32 %v5581, %v5671
        %v5734 = vadd.f32 %v5582, %v5674
        %v5735 = vadd.f32 %v5583, %v5679
        %v5736 = vadd.f32 %v5584, %v5682
        %v5737 = vadd.f32 %v5585, %v5687
        %v5738 = vadd.f32 %v5586, %v5690
        %v5739 = vadd.f32 %v5587, %v5695
        %v5740 = vadd.f32 %v5588, %v5698
        %v5741 = vadd.f32 %v5589, %v5703
        %v5742 = vadd.f32 %v5590, %v5706
        %v5743 = vadd.f32 %v5591, %v5711
        %v5744 = vadd.f32 %v5592, %v5714
        %v5745 = vadd.f32 %v5593, %v5719
        %v5746 = vadd.f32 %v5594, %v5722
        %v5747 = vadd.f32 %v5595, %v5727
        %v5748 = vadd.f32 %v5596, %v5730
        %5749 = vst.msk [vmem:[%s344] sm:$0xff] %vm452, %v5733
        %5750 = vst.msk [vmem:[%s344 + $0x8] sm:$0xff] %vm452, %v5734
        %5751 = vst.msk [vmem:[%s344 + $0x10] sm:$0xff] %vm452, %v5735
        %5752 = vst.msk [vmem:[%s344 + $0x18] sm:$0xff] %vm452, %v5736
        %5753 = vst.msk [vmem:[%s344 + $0x20] sm:$0xff] %vm452, %v5737
        %5754 = vst.msk [vmem:[%s344 + $0x28] sm:$0xff] %vm452, %v5738
        %5755 = vst.msk [vmem:[%s344 + $0x30] sm:$0xff] %vm452, %v5739
        %5756 = vst.msk [vmem:[%s344 + $0x38] sm:$0xff] %vm452, %v5740
        %5757 = vst.msk [vmem:[%s344 + $0x40] sm:$0xff] %vm452, %v5741
        %5758 = vst.msk [vmem:[%s344 + $0x48] sm:$0xff] %vm452, %v5742
        %5759 = vst.msk [vmem:[%s344 + $0x50] sm:$0xff] %vm452, %v5743
        %5760 = vst.msk [vmem:[%s344 + $0x58] sm:$0xff] %vm452, %v5744
        %5761 = vst.msk [vmem:[%s344 + $0x60] sm:$0xff] %vm452, %v5745
        %5762 = vst.msk [vmem:[%s344 + $0x68] sm:$0xff] %vm452, %v5746
        %5763 = vst.msk [vmem:[%s344 + $0x70] sm:$0xff] %vm452, %v5747
        %5764 = vst.msk [vmem:[%s344 + $0x78] sm:$0xff] %vm452, %v5748
        %v5765 = vld [vmem:[%s344] sm:$0xff]
        %v5766 = vld [vmem:[%s344 + $0x8] sm:$0xff]
        %v5767 = vld [vmem:[%s344 + $0x10] sm:$0xff]
        %v5768 = vld [vmem:[%s344 + $0x18] sm:$0xff]
        %v5769 = vld [vmem:[%s344 + $0x20] sm:$0xff]
        %v5770 = vld [vmem:[%s344 + $0x28] sm:$0xff]
        %v5771 = vld [vmem:[%s344 + $0x30] sm:$0xff]
        %v5772 = vld [vmem:[%s344 + $0x38] sm:$0xff]
        %v5773 = vld [vmem:[%s344 + $0x40] sm:$0xff]
        %v5774 = vld [vmem:[%s344 + $0x48] sm:$0xff]
        %v5775 = vld [vmem:[%s344 + $0x50] sm:$0xff]
        %v5776 = vld [vmem:[%s344 + $0x58] sm:$0xff]
        %v5777 = vld [vmem:[%s344 + $0x60] sm:$0xff]
        %v5778 = vld [vmem:[%s344 + $0x68] sm:$0xff]
        %v5779 = vld [vmem:[%s344 + $0x70] sm:$0xff]
        %v5780 = vld [vmem:[%s344 + $0x78] sm:$0xff]
        %v5781 = vpack.c.bf16 %v4130, %v4127
        %v5782 = vpack.c.bf16 %v4138, %v4135
        %v5783 = vpack.c.bf16 %v4146, %v4143
        %v5784 = vpack.c.bf16 %v4154, %v4151
        %v5785 = vpack.c.bf16 %v4162, %v4159
        %v5786 = vpack.c.bf16 %v4170, %v4167
        %v5787 = vpack.c.bf16 %v4178, %v4175
        %v5788 = vpack.c.bf16 %v4186, %v4183
        %v5790 = vsel %vm834, %v5781, 0
        %v5793 = vsel %vm834, %v5782, 0
        %v5796 = vsel %vm834, %v5783, 0
        %v5799 = vsel %vm834, %v5784, 0
        %v5802 = vsel %vm834, %v5785, 0
        %v5805 = vsel %vm834, %v5786, 0
        %v5808 = vsel %vm834, %v5787, 0
        %v5811 = vsel %vm834, %v5788, 0
        %v5814 = vsel %vm4720, %v833, 0
        %5816 = vmatprep.subr.bf16.mxu0 0
        %5817 = vmatpush1.bf16.msra.mxu0 %v5814
        %5818 = vmatprep.subr.bf16.mxu0 0
        %5819 = vmatpush1.bf16.msra.mxu0 0
        %5820 = vmatprep.subr.bf16.mxu0 0
        %5821 = vmatpush1.bf16.msra.mxu0 0
        %5822 = vmatprep.subr.bf16.mxu0 0
        %5823 = vmatpush1.bf16.msra.mxu0 0
        %5824 = vmatprep.subr.bf16.mxu0 0
        %5825 = vmatpush1.bf16.msra.mxu0 0
        %5826 = vmatprep.subr.bf16.mxu0 0
        %5827 = vmatpush1.bf16.msra.mxu0 0
        %5828 = vmatprep.subr.bf16.mxu0 0
        %5829 = vmatpush1.bf16.msra.mxu0 0
        %5830 = vmatprep.subr.bf16.mxu0 0
        %5831 = vmatpush1.bf16.msra.mxu0 0
        %5832 = vmatprep.subr.bf16.mxu0 0
        %5833 = vmatpush1.bf16.msra.mxu0 0
        %5834 = vmatprep.subr.bf16.mxu0 0
        %5835 = vmatpush1.bf16.msra.mxu0 0
        %5836 = vmatprep.subr.bf16.mxu0 0
        %5837 = vmatpush1.bf16.msra.mxu0 0
        %5838 = vmatprep.subr.bf16.mxu0 0
        %5839 = vmatpush1.bf16.msra.mxu0 0
        %5840 = vmatprep.subr.bf16.mxu0 0
        %5841 = vmatpush1.bf16.msra.mxu0 0
        %5842 = vmatprep.subr.bf16.mxu0 0
        %5843 = vmatpush1.bf16.msra.mxu0 0
        %5844 = vmatprep.subr.bf16.mxu0 0
        %5845 = vmatpush1.bf16.msra.mxu0 0
        %5846 = vmatprep.subr.bf16.mxu0 0
        %5847 = vmatpush1.bf16.msra.mxu0 0
        %5848 = vmatprep.mubr.bf16.mxu0 0
        %5849 = vmatmul.mubr.bf16.gmra.mrb[0].mxu0 %v5790
        %v5850 = vpop.f32.mrb[0].mxu0
        %v5851 = vadd.f32 0.0, %v5850
        %v5852 = vpop.f32.mrb[0].mxu0
        %v5853 = vpop.f32.mrb[0].mxu0
        %v5854 = vadd.f32 0.0, %v5853
        %v5855 = vpop.f32.mrb[0].mxu0
        %5856 = vmatprep.mubr.bf16.mxu0 0
        %5857 = vmatmul.mubr.bf16.gmra.mrb[0].mxu0 %v5793
        %v5858 = vpop.f32.mrb[0].mxu0
        %v5859 = vadd.f32 0.0, %v5858
        %v5860 = vpop.f32.mrb[0].mxu0
        %v5861 = vpop.f32.mrb[0].mxu0
        %v5862 = vadd.f32 0.0, %v5861
        %v5863 = vpop.f32.mrb[0].mxu0
        %5864 = vmatprep.mubr.bf16.mxu0 0
        %5865 = vmatmul.mubr.bf16.gmra.mrb[0].mxu0 %v5796
        %v5866 = vpop.f32.mrb[0].mxu0
        %v5867 = vadd.f32 0.0, %v5866
        %v5868 = vpop.f32.mrb[0].mxu0
        %v5869 = vpop.f32.mrb[0].mxu0
        %v5870 = vadd.f32 0.0, %v5869
        %v5871 = vpop.f32.mrb[0].mxu0
        %5872 = vmatprep.mubr.bf16.mxu0 0
        %5873 = vmatmul.mubr.bf16.gmra.mrb[0].mxu0 %v5799
        %v5874 = vpop.f32.mrb[0].mxu0
        %v5875 = vadd.f32 0.0, %v5874
        %v5876 = vpop.f32.mrb[0].mxu0
        %v5877 = vpop.f32.mrb[0].mxu0
        %v5878 = vadd.f32 0.0, %v5877
        %v5879 = vpop.f32.mrb[0].mxu0
        %5880 = vmatprep.mubr.bf16.mxu0 0
        %5881 = vmatmul.mubr.bf16.gmra.mrb[0].mxu0 %v5802
        %v5882 = vpop.f32.mrb[0].mxu0
        %v5883 = vadd.f32 0.0, %v5882
        %v5884 = vpop.f32.mrb[0].mxu0
        %v5885 = vpop.f32.mrb[0].mxu0
        %v5886 = vadd.f32 0.0, %v5885
        %v5887 = vpop.f32.mrb[0].mxu0
        %5888 = vmatprep.mubr.bf16.mxu0 0
        %5889 = vmatmul.mubr.bf16.gmra.mrb[0].mxu0 %v5805
        %v5890 = vpop.f32.mrb[0].mxu0
        %v5891 = vadd.f32 0.0, %v5890
        %v5892 = vpop.f32.mrb[0].mxu0
        %v5893 = vpop.f32.mrb[0].mxu0
        %v5894 = vadd.f32 0.0, %v5893
        %v5895 = vpop.f32.mrb[0].mxu0
        %5896 = vmatprep.mubr.bf16.mxu0 0
        %5897 = vmatmul.mubr.bf16.gmra.mrb[0].mxu0 %v5808
        %v5898 = vpop.f32.mrb[0].mxu0
        %v5899 = vadd.f32 0.0, %v5898
        %v5900 = vpop.f32.mrb[0].mxu0
        %v5901 = vpop.f32.mrb[0].mxu0
        %v5902 = vadd.f32 0.0, %v5901
        %v5903 = vpop.f32.mrb[0].mxu0
        %5904 = vmatprep.mubr.bf16.mxu0 0
        %5905 = vmatmul.mubr.bf16.gmra.mrb[0].mxu0 %v5811
        %v5906 = vpop.f32.mrb[0].mxu0
        %v5907 = vadd.f32 0.0, %v5906
        %v5908 = vpop.f32.mrb[0].mxu0
        %v5909 = vpop.f32.mrb[0].mxu0
        %v5910 = vadd.f32 0.0, %v5909
        %v5911 = vpop.f32.mrb[0].mxu0
        %5912 = vdwg.mxu0
        %v5913 = vadd.f32 %v5765, %v5851
        %v5914 = vadd.f32 %v5766, %v5854
        %v5915 = vadd.f32 %v5767, %v5859
        %v5916 = vadd.f32 %v5768, %v5862
        %v5917 = vadd.f32 %v5769, %v5867
        %v5918 = vadd.f32 %v5770, %v5870
        %v5919 = vadd.f32 %v5771, %v5875
        %v5920 = vadd.f32 %v5772, %v5878
        %v5921 = vadd.f32 %v5773, %v5883
        %v5922 = vadd.f32 %v5774, %v5886
        %v5923 = vadd.f32 %v5775, %v5891
        %v5924 = vadd.f32 %v5776, %v5894
        %v5925 = vadd.f32 %v5777, %v5899
        %v5926 = vadd.f32 %v5778, %v5902
        %v5927 = vadd.f32 %v5779, %v5907
        %v5928 = vadd.f32 %v5780, %v5910
        %5929 = vst.msk [vmem:[%s344] sm:$0xff] %vm452, %v5913
        %5930 = vst.msk [vmem:[%s344 + $0x8] sm:$0xff] %vm452, %v5914
        %5931 = vst.msk [vmem:[%s344 + $0x10] sm:$0xff] %vm452, %v5915
        %5932 = vst.msk [vmem:[%s344 + $0x18] sm:$0xff] %vm452, %v5916
        %5933 = vst.msk [vmem:[%s344 + $0x20] sm:$0xff] %vm452, %v5917
        %5934 = vst.msk [vmem:[%s344 + $0x28] sm:$0xff] %vm452, %v5918
        %5935 = vst.msk [vmem:[%s344 + $0x30] sm:$0xff] %vm452, %v5919
        %5936 = vst.msk [vmem:[%s344 + $0x38] sm:$0xff] %vm452, %v5920
        %5937 = vst.msk [vmem:[%s344 + $0x40] sm:$0xff] %vm452, %v5921
        %5938 = vst.msk [vmem:[%s344 + $0x48] sm:$0xff] %vm452, %v5922
        %5939 = vst.msk [vmem:[%s344 + $0x50] sm:$0xff] %vm452, %v5923
        %5940 = vst.msk [vmem:[%s344 + $0x58] sm:$0xff] %vm452, %v5924
        %5941 = vst.msk [vmem:[%s344 + $0x60] sm:$0xff] %vm452, %v5925
        %5942 = vst.msk [vmem:[%s344 + $0x68] sm:$0xff] %vm452, %v5926
        %5943 = vst.msk [vmem:[%s344 + $0x70] sm:$0xff] %vm452, %v5927
        %5944 = vst.msk [vmem:[%s344 + $0x78] sm:$0xff] %vm452, %v5928
        %v5945 = vld [vmem:[%s344] sm:$0xff]
        %v5946 = vld [vmem:[%s344 + $0x8] sm:$0xff]
        %v5947 = vld [vmem:[%s344 + $0x10] sm:$0xff]
        %v5948 = vld [vmem:[%s344 + $0x18] sm:$0xff]
        %v5949 = vld [vmem:[%s344 + $0x20] sm:$0xff]
        %v5950 = vld [vmem:[%s344 + $0x28] sm:$0xff]
        %v5951 = vld [vmem:[%s344 + $0x30] sm:$0xff]
        %v5952 = vld [vmem:[%s344 + $0x38] sm:$0xff]
        %v5953 = vld [vmem:[%s344 + $0x40] sm:$0xff]
        %v5954 = vld [vmem:[%s344 + $0x48] sm:$0xff]
        %v5955 = vld [vmem:[%s344 + $0x50] sm:$0xff]
        %v5956 = vld [vmem:[%s344 + $0x58] sm:$0xff]
        %v5957 = vld [vmem:[%s344 + $0x60] sm:$0xff]
        %v5958 = vld [vmem:[%s344 + $0x68] sm:$0xff]
        %v5959 = vld [vmem:[%s344 + $0x70] sm:$0xff]
        %v5960 = vld [vmem:[%s344 + $0x78] sm:$0xff]
        %v5961 = vpack.c.bf16 %v4613, %v4610
        %v5962 = vpack.c.bf16 %v4621, %v4618
        %v5963 = vpack.c.bf16 %v4629, %v4626
        %v5964 = vpack.c.bf16 %v4637, %v4634
        %v5965 = vpack.c.bf16 %v4645, %v4642
        %v5966 = vpack.c.bf16 %v4653, %v4650
        %v5967 = vpack.c.bf16 %v4661, %v4658
        %v5968 = vpack.c.bf16 %v4669, %v4666
        %v5970 = vunpack.c.l.b16 %v833
        %v5971 = vpack.c.b16 %v5970, %v5970
        %v5972 = vrot.slane %v5971, 2
        %v5974 = vsel %vm834, %v5961, 0
        %v5977 = vsel %vm834, %v5962, 0
        %v5980 = vsel %vm834, %v5963, 0
        %v5983 = vsel %vm834, %v5964, 0
        %v5986 = vsel %vm834, %v5965, 0
        %v5989 = vsel %vm834, %v5966, 0
        %v5992 = vsel %vm834, %v5967, 0
        %v5995 = vsel %vm834, %v5968, 0
        %v5998 = vsel %vm4720, %v5972, 0
        %6000 = vmatprep.subr.bf16.mxu0 0
        %6001 = vmatpush1.bf16.msra.mxu0 %v5998
        %6002 = vmatprep.subr.bf16.mxu0 0
        %6003 = vmatpush1.bf16.msra.mxu0 0
        %6004 = vmatprep.subr.bf16.mxu0 0
        %6005 = vmatpush1.bf16.msra.mxu0 0
        %6006 = vmatprep.subr.bf16.mxu0 0
        %6007 = vmatpush1.bf16.msra.mxu0 0
        %6008 = vmatprep.subr.bf16.mxu0 0
        %6009 = vmatpush1.bf16.msra.mxu0 0
        %6010 = vmatprep.subr.bf16.mxu0 0
        %6011 = vmatpush1.bf16.msra.mxu0 0
        %6012 = vmatprep.subr.bf16.mxu0 0
        %6013 = vmatpush1.bf16.msra.mxu0 0
        %6014 = vmatprep.subr.bf16.mxu0 0
        %6015 = vmatpush1.bf16.msra.mxu0 0
        %6016 = vmatprep.subr.bf16.mxu0 0
        %6017 = vmatpush1.bf16.msra.mxu0 0
        %6018 = vmatprep.subr.bf16.mxu0 0
        %6019 = vmatpush1.bf16.msra.mxu0 0
        %6020 = vmatprep.subr.bf16.mxu0 0
        %6021 = vmatpush1.bf16.msra.mxu0 0
        %6022 = vmatprep.subr.bf16.mxu0 0
        %6023 = vmatpush1.bf16.msra.mxu0 0
        %6024 = vmatprep.subr.bf16.mxu0 0
        %6025 = vmatpush1.bf16.msra.mxu0 0
        %6026 = vmatprep.subr.bf16.mxu0 0
        %6027 = vmatpush1.bf16.msra.mxu0 0
        %6028 = vmatprep.subr.bf16.mxu0 0
        %6029 = vmatpush1.bf16.msra.mxu0 0
        %6030 = vmatprep.subr.bf16.mxu0 0
        %6031 = vmatpush1.bf16.msra.mxu0 0
        %6032 = vmatprep.mubr.bf16.mxu0 0
        %6033 = vmatmul.mubr.bf16.gmra.mrb[0].mxu0 %v5974
        %v6034 = vpop.f32.mrb[0].mxu0
        %v6035 = vadd.f32 0.0, %v6034
        %v6036 = vpop.f32.mrb[0].mxu0
        %v6037 = vpop.f32.mrb[0].mxu0
        %v6038 = vadd.f32 0.0, %v6037
        %v6039 = vpop.f32.mrb[0].mxu0
        %6040 = vmatprep.mubr.bf16.mxu0 0
        %6041 = vmatmul.mubr.bf16.gmra.mrb[0].mxu0 %v5977
        %v6042 = vpop.f32.mrb[0].mxu0
        %v6043 = vadd.f32 0.0, %v6042
        %v6044 = vpop.f32.mrb[0].mxu0
        %v6045 = vpop.f32.mrb[0].mxu0
        %v6046 = vadd.f32 0.0, %v6045
        %v6047 = vpop.f32.mrb[0].mxu0
        %6048 = vmatprep.mubr.bf16.mxu0 0
        %6049 = vmatmul.mubr.bf16.gmra.mrb[0].mxu0 %v5980
        %v6050 = vpop.f32.mrb[0].mxu0
        %v6051 = vadd.f32 0.0, %v6050
        %v6052 = vpop.f32.mrb[0].mxu0
        %v6053 = vpop.f32.mrb[0].mxu0
        %v6054 = vadd.f32 0.0, %v6053
        %v6055 = vpop.f32.mrb[0].mxu0
        %6056 = vmatprep.mubr.bf16.mxu0 0
        %6057 = vmatmul.mubr.bf16.gmra.mrb[0].mxu0 %v5983
        %v6058 = vpop.f32.mrb[0].mxu0
        %v6059 = vadd.f32 0.0, %v6058
        %v6060 = vpop.f32.mrb[0].mxu0
        %v6061 = vpop.f32.mrb[0].mxu0
        %v6062 = vadd.f32 0.0, %v6061
        %v6063 = vpop.f32.mrb[0].mxu0
        %6064 = vmatprep.mubr.bf16.mxu0 0
        %6065 = vmatmul.mubr.bf16.gmra.mrb[0].mxu0 %v5986
        %v6066 = vpop.f32.mrb[0].mxu0
        %v6067 = vadd.f32 0.0, %v6066
        %v6068 = vpop.f32.mrb[0].mxu0
        %v6069 = vpop.f32.mrb[0].mxu0
        %v6070 = vadd.f32 0.0, %v6069
        %v6071 = vpop.f32.mrb[0].mxu0
        %6072 = vmatprep.mubr.bf16.mxu0 0
        %6073 = vmatmul.mubr.bf16.gmra.mrb[0].mxu0 %v5989
        %v6074 = vpop.f32.mrb[0].mxu0
        %v6075 = vadd.f32 0.0, %v6074
        %v6076 = vpop.f32.mrb[0].mxu0
        %v6077 = vpop.f32.mrb[0].mxu0
        %v6078 = vadd.f32 0.0, %v6077
        %v6079 = vpop.f32.mrb[0].mxu0
        %6080 = vmatprep.mubr.bf16.mxu0 0
        %6081 = vmatmul.mubr.bf16.gmra.mrb[0].mxu0 %v5992
        %v6082 = vpop.f32.mrb[0].mxu0
        %v6083 = vadd.f32 0.0, %v6082
        %v6084 = vpop.f32.mrb[0].mxu0
        %v6085 = vpop.f32.mrb[0].mxu0
        %v6086 = vadd.f32 0.0, %v6085
        %v6087 = vpop.f32.mrb[0].mxu0
        %6088 = vmatprep.mubr.bf16.mxu0 0
        %6089 = vmatmul.mubr.bf16.gmra.mrb[0].mxu0 %v5995
        %v6090 = vpop.f32.mrb[0].mxu0
        %v6091 = vadd.f32 0.0, %v6090
        %v6092 = vpop.f32.mrb[0].mxu0
        %v6093 = vpop.f32.mrb[0].mxu0
        %v6094 = vadd.f32 0.0, %v6093
        %v6095 = vpop.f32.mrb[0].mxu0
        %6096 = vdwg.mxu0
        %v6097 = vadd.f32 %v5945, %v6035
        %v6098 = vadd.f32 %v5946, %v6038
        %v6099 = vadd.f32 %v5947, %v6043
        %v6100 = vadd.f32 %v5948, %v6046
        %v6101 = vadd.f32 %v5949, %v6051
        %v6102 = vadd.f32 %v5950, %v6054
        %v6103 = vadd.f32 %v5951, %v6059
        %v6104 = vadd.f32 %v5952, %v6062
        %v6105 = vadd.f32 %v5953, %v6067
        %v6106 = vadd.f32 %v5954, %v6070
        %v6107 = vadd.f32 %v5955, %v6075
        %v6108 = vadd.f32 %v5956, %v6078
        %v6109 = vadd.f32 %v5957, %v6083
        %v6110 = vadd.f32 %v5958, %v6086
        %v6111 = vadd.f32 %v5959, %v6091
        %v6112 = vadd.f32 %v5960, %v6094
        %6113 = vst.msk [vmem:[%s344] sm:$0xff] %vm452, %v6097
        %6114 = vst.msk [vmem:[%s344 + $0x8] sm:$0xff] %vm452, %v6098
        %6115 = vst.msk [vmem:[%s344 + $0x10] sm:$0xff] %vm452, %v6099
        %6116 = vst.msk [vmem:[%s344 + $0x18] sm:$0xff] %vm452, %v6100
        %6117 = vst.msk [vmem:[%s344 + $0x20] sm:$0xff] %vm452, %v6101
        %6118 = vst.msk [vmem:[%s344 + $0x28] sm:$0xff] %vm452, %v6102
        %6119 = vst.msk [vmem:[%s344 + $0x30] sm:$0xff] %vm452, %v6103
        %6120 = vst.msk [vmem:[%s344 + $0x38] sm:$0xff] %vm452, %v6104
        %6121 = vst.msk [vmem:[%s344 + $0x40] sm:$0xff] %vm452, %v6105
        %6122 = vst.msk [vmem:[%s344 + $0x48] sm:$0xff] %vm452, %v6106
        %6123 = vst.msk [vmem:[%s344 + $0x50] sm:$0xff] %vm452, %v6107
        %6124 = vst.msk [vmem:[%s344 + $0x58] sm:$0xff] %vm452, %v6108
        %6125 = vst.msk [vmem:[%s344 + $0x60] sm:$0xff] %vm452, %v6109
        %6126 = vst.msk [vmem:[%s344 + $0x68] sm:$0xff] %vm452, %v6110
        %6127 = vst.msk [vmem:[%s344 + $0x70] sm:$0xff] %vm452, %v6111
        %6128 = vst.msk [vmem:[%s344 + $0x78] sm:$0xff] %vm452, %v6112
        %p6129 = scmp.lt.s32.totalorder %s27, 1
        %s6130 = scalar_select %p6129, %s27, 1
        %s6131 = smul.addr %s6130, 16
        %s6132 = smul.addr %s6131, 8
        %s6133 = scalar_lea.vmem %s7, %s6132
        %s6134 = sand.u32 %s228, 1
        %s6135 = scalar_lea.sflag [#allocation3], %s6134
        %s6136 = sand.u32 %s228, 1
        %s6137 = smul.addr %s6136, 1024
        %s6138 = scalar_lea.vmem [#allocation2], %s6137
        // Predicated region
        $region53: #{tpu_custom_call.1} parent=47 // pred_check
          %p6139 = pneg %p210
        $region54: #{tpu_custom_call.1} parent=47 // pred_check_branch
          %6141 = sbr.rel (%p6139) target = $region56
        $region55: #{tpu_custom_call.1} parent=47 // pred_region
          _
        $region56: #{tpu_custom_call.1} parent=47 // pred_fallthru
          _
        // Predicated region
        $region57: #{tpu_custom_call.1} parent=47 // pred_check
          %p6142 = pneg %p238
        $region58: #{tpu_custom_call.1} parent=47 // pred_check_branch
          %6144 = sbr.rel (%p6142) target = $region60
        $region59: #{tpu_custom_call.1} parent=47 // pred_region
          %s6145 = smul.u32 8, %s28
          %s6147 = ssub.s32 16384, 16384
          %6148 = vsyncadd %s6135, %s6147
          %s6149 = smul.addr %s6145, 16
          %s6150 = smul.addr %s27, 128
          %s6151 = sadd.s32 %s6149, %s6150
          %s6152 = smul.addr %s6151, 128
          %s6153 = scalar_lea.hbm %s8, %s6152
          %s6154 = sshll.u32 %s6138, 4
          %s6155 = int_to_ptr.vmem [resolvable:$true] %s6154
          %6160 = dma.vmem_to_hbm [thread:$0]  %s6155, 16384, %s6153, %s6135, 128, 128, 8
        $region60: #{tpu_custom_call.1} parent=47 // pred_fallthru
          _
      $region48: #{tpu_custom_call.1} parent=5 // pred_fallthru
        _
      %p6161 = scmp.le.s32.totalorder 2, %s18
      // Predicated region
      $region61: #{tpu_custom_call.1} parent=5 // pred_check
        %p6162 = pneg %p6161
      $region62: #{tpu_custom_call.1} parent=5 // pred_check_branch
        %6164 = sbr.rel (%p6162) target = $region64
      $region63: #{tpu_custom_call.1} parent=5 // pred_region
        %s6165 = ssub.s32 %s18, 2
        // Predicated region
        $region65: #{tpu_custom_call.1} parent=63 // pred_check
          %p6166 = pneg %p216
        $region66: #{tpu_custom_call.1} parent=63 // pred_check_branch
          %6168 = sbr.rel (%p6166) target = $region68
        $region67: #{tpu_custom_call.1} parent=63 // pred_region
          %p6169 = scmp.lt.s32.totalorder %s29, 1
          %s6170 = scalar_select %p6169, %s29, 1
          %s6171 = smul.addr %s6170, 16
          %s6172 = smul.addr %s6171, 8
          %s6173 = scalar_lea.vmem %s7, %s6172
        $region68: #{tpu_custom_call.1} parent=63 // pred_fallthru
          _
        // Predicated region
        $region69: #{tpu_custom_call.1} parent=63 // pred_check
          %p6174 = pneg %p244
        $region70: #{tpu_custom_call.1} parent=63 // pred_check_branch
          %6176 = sbr.rel (%p6174) target = $region72
        $region71: #{tpu_custom_call.1} parent=63 // pred_region
          %s6177 = sand.u32 %s229, 1
          %s6178 = scalar_lea.sflag [#allocation3], %s6177
          %s6179 = sand.u32 %s229, 1
          %s6180 = smul.addr %s6179, 1024
          %s6181 = scalar_lea.vmem [#allocation2], %s6180
          %6182 = dma.done %s6178, 16384
        $region72: #{tpu_custom_call.1} parent=63 // pred_fallthru
          _
      $region64: #{tpu_custom_call.1} parent=5 // pred_fallthru
        _
    $region6: #{tpu_custom_call.1} parent=1 // loop_footer
      %s22 = sadd.s32 1, %s18
    $region7: #{tpu_custom_call.1} parent=1 // loop_footer_branch
      %17 = sbr.rel target = $region3
    $region8: #{tpu_custom_call.1} parent=1 // loop_exit
      _
    %6183 = vsyncpa [#allocation3], 1
    %s6184 = scalar_lea.sflag [#allocation3], 1
    %6185 = vsyncpa %s6184, 1

</llo_original>
